<compile_context>
chip_gen: v6e
topology: v6e:2x2x1
jax: 0.10.0
libtpu: 0.0.40
codegen_flags: <defaults>
</compile_context>

<pallas_src>
import jax
import jax.numpy as jnp
from jax import lax
from jax.experimental import pallas as pl
from jax.experimental.pallas import tpu as pltpu


def _round_up(x, m):
    return ((x + m - 1) // m) * m


def _row_chunk(h, w, cap=256):
    """Largest divisor of h such that (rows * w) spatial positions <= cap."""
    best = 1
    for c in range(1, h + 1):
        if h % c == 0 and c * w <= cap:
            best = c
    return best


def _patch(xpad_ref, h0, hc, w, c):
    """im2col patch (hc*w, 9*c) for output image rows [h0, h0+hc)."""
    cols = []
    for dy in range(3):
        for dx in range(3):
            cols.append(
                xpad_ref[h0 + dy:h0 + dy + hc, dx:dx + w, :].reshape(hc * w, c))
    return jnp.concatenate(cols, axis=1)


def _fused_convnet_kernel(xp_ref, w1_ref, b1_ref, w2_ref, b2_ref, w3_ref, b3_ref,
                          o_ref, xpad2, xpad3):
    # xp_ref : (1, H*W, 9*C0)  layer-1 im2col patches for one batch element
    # w1_ref : (9*C0, C1)      b1_ref : (1, C1)
    # w2_ref : (9*C1, C2P)     b2_ref : (1, C2P)   (C2P = 130 padded to 256)
    # w3_ref : (9, C2P, C3)    b3_ref : (1, C3)    (per-tap weights, no im2col)
    # o_ref  : (1, C3, H*W)    lane-dense (channel-major) output
    # xpad2  : (H+2, W+2, C1)  VMEM scratch (zero halo) for layer-1 activations
    # xpad3  : (H+2, W+2, C2P) VMEM scratch (zero halo) for layer-2 activations
    hp2, wp2, c1 = xpad2.shape
    H, W = hp2 - 2, wp2 - 2
    c2p = xpad3.shape[2]
    c3 = o_ref.shape[1]
    hc = _row_chunk(H, W)          # image rows per M-chunk (static)
    mc = hc * W                    # spatial positions per M-chunk (<=256)
    mxu_dt = w2_ref.dtype          # bf16 when use_bf16_mxu, else f32

    # Zero only the 1-pixel halo frame each grid step (interior is fully
    # overwritten every step).  Per-step zeroing keeps this correct if the
    # batch axis is megacore-split.
    for buf in (xpad2, xpad3):
        c = buf.shape[2]
        zrow = jnp.zeros((1, W + 2, c), buf.dtype)
        buf[0:1, :, :] = zrow
        buf[H + 1:H + 2, :, :] = zrow
        zcol = jnp.zeros((H + 2, 1, c), buf.dtype)
        buf[:, 0:1, :] = zcol
        buf[:, W + 1:W + 2, :] = zcol

    # ---- layer 1: (mc, 9*C0) @ (9*C0, C1) + bias, ReLU -> xpad2 interior ----
    for h0 in range(0, H, hc):
        m0 = h0 * W
        p = xp_ref[0, m0:m0 + mc, :]
        y = jnp.dot(p, w1_ref[...], preferred_element_type=jnp.float32)
        y = jnp.maximum(y + b1_ref[...], 0.0)
        xpad2[1 + h0:1 + h0 + hc, 1:1 + W, :] = y.reshape(hc, W, c1).astype(
            xpad2.dtype)

    # ---- layer 2: (mc, 9*C1) @ (9*C1, C2P) + bias, ReLU -> xpad3 interior ----
    for h0 in range(0, H, hc):
        p = _patch(xpad2, h0, hc, W, c1)
        y = jnp.dot(p.astype(mxu_dt), w2_ref[...],
                    preferred_element_type=jnp.float32)
        y = jnp.maximum(y + b2_ref[...], 0.0)
        xpad3[1 + h0:1 + h0 + hc, 1:1 + W, :] = y.reshape(hc, W, c2p).astype(
            xpad3.dtype)

    # ---- layer 3: per-tap accumulation (no im2col; Cout=4), lane-dense store -
    for h0 in range(0, H, hc):
        m0 = h0 * W
        acc = jnp.zeros((mc, c3), jnp.float32)
        for dy in range(3):
            for dx in range(3):
                s = xpad3[h0 + dy:h0 + dy + hc, dx:dx + W, :].reshape(mc, c2p)
                acc = acc + jnp.dot(s.astype(mxu_dt), w3_ref[dy * 3 + dx],
                                    preferred_element_type=jnp.float32)
        y = jnp.maximum(acc + b3_ref[...], 0.0)            # (mc, C3)
        o_ref[0, :, m0:m0 + mc] = y.T.astype(o_ref.dtype)  # (C3, mc) lane-dense


def convert1x_net_forward(x_nchw, params, *, use_bf16_mxu=False):
    """Forward pass equivalent to Convert1xNet.forward (NCHW in, NCHW out)."""
    (w1, b1), (w2, b2), (w3, b3) = params
    N, C0, H, W = x_nchw.shape
    C1 = w1.shape[-1]                      # 128
    C2 = w2.shape[-1]                      # 130
    C3 = w3.shape[-1]                      # 4
    C2P = _round_up(C2, 128)               # 256 (lane-dense middle layer)
    assert W <= 256, "TODO(synk): add W-tiling for very wide images"
    mxu_dt = jnp.bfloat16 if use_bf16_mxu else jnp.float32

    # ---- tiny wrapper-side prep (input is only a few KB) -------------------
    x = jnp.transpose(x_nchw, (0, 2, 3, 1))                      # NCHW -> NHWC
    xpad = jnp.pad(x, ((0, 0), (1, 1), (1, 1), (0, 0)))
    xp = jnp.concatenate(
        [xpad[:, dy:dy + H, dx:dx + W, :].reshape(N, H * W, C0)
         for dy in range(3) for dx in range(3)], axis=-1)        # (N, H*W, 9*C0)

    w1r = w1.reshape(9 * C0, C1)
    w2p = jnp.zeros((3, 3, C1, C2P), w2.dtype).at[..., :C2].set(w2)
    b2p = jnp.zeros((C2P,), b2.dtype).at[:C2].set(b2)
    w3p = jnp.zeros((3, 3, C2P, C3), w3.dtype).at[:, :, :C2, :].set(w3)
    w2r = w2p.reshape(9 * C1, C2P).astype(mxu_dt)
    w3r = w3p.reshape(9, C2P, C3).astype(mxu_dt)   # per-tap weights for layer 3

    out_flat = pl.pallas_call(
        _fused_convnet_kernel,
        out_shape=jax.ShapeDtypeStruct((N, C3, H * W), jnp.float32),
        grid_spec=pltpu.PrefetchScalarGridSpec(
            num_scalar_prefetch=0,
            grid=(N,),  # one grid step per batch element
            in_specs=[
                pl.BlockSpec((1, H * W, 9 * C0), lambda n: (n, 0, 0)),
                pl.BlockSpec((9 * C0, C1), lambda n: (0, 0)),
                pl.BlockSpec((1, C1), lambda n: (0, 0)),
                pl.BlockSpec((9 * C1, C2P), lambda n: (0, 0)),
                pl.BlockSpec((1, C2P), lambda n: (0, 0)),
                pl.BlockSpec((9, C2P, C3), lambda n: (0, 0, 0)),
                pl.BlockSpec((1, C3), lambda n: (0, 0)),
            ],
            out_specs=pl.BlockSpec((1, C3, H * W), lambda n: (n, 0, 0)),
            scratch_shapes=[
                pltpu.VMEM((H + 2, W + 2, C1), jnp.float32),
                pltpu.VMEM((H + 2, W + 2, C2P), jnp.float32),
            ],
        ),
        compiler_params=pltpu.CompilerParams(
            dimension_semantics=("parallel",),
            vmem_limit_bytes=32 * 1024 * 1024),
    )(xp, w1r, b1.reshape(1, C1), w2r, b2p.reshape(1, C2P), w3r,
      b3.reshape(1, C3))

    # (N, C3, H*W) -> NCHW directly (no transpose needed anymore).
    return out_flat.reshape(N, C3, H, W)


def init_params(inchannel, key):
    """Deterministic parameter init matching Convert1xNet's shapes (HWIO)."""
    dims = [(inchannel, 128), (128, 130), (130, 4)]
    params = []
    for cin, cout in dims:
        kw, kb, key = jax.random.split(key, 3)
        scale = 1.0 / jnp.sqrt(jnp.float32(cin * 9))
        w = jax.random.normal(kw, (3, 3, cin, cout), jnp.float32) * scale
        bias = jax.random.normal(kb, (cout,), jnp.float32) * 0.01
        params.append((w, bias))
    return params


def _reference_forward(x_nchw, params):
    """Pure-JAX reference (lax conv, f32) for correctness checking."""
    x = jnp.transpose(x_nchw, (0, 2, 3, 1))
    for w, b in params:
        x = lax.conv_general_dilated(
            x, w, window_strides=(1, 1), padding="SAME",
            dimension_numbers=("NHWC", "HWIO", "NHWC"),
            precision=lax.Precision.HIGHEST)
        x = jnp.maximum(x + b[None, None, None, :], 0.0)
    return jnp.transpose(x, (0, 3, 1, 2))


if __name__ == "__main__":
    key = jax.random.PRNGKey(0)
    kx, kp = jax.random.split(key)

    batch, inchannel, H, W = 2, 4, 16, 16
    x = jax.random.normal(kx, (batch, inchannel, H, W), jnp.float32)  # NCHW
    params = init_params(inchannel, kp)

    fwd = jax.jit(convert1x_net_forward, static_argnames=("use_bf16_mxu",))
    ref = _reference_forward(x, params)

    # f32 path (default): strict tolerance vs. the lax.conv reference.
    out = jax.block_until_ready(fwd(x, params, use_bf16_mxu=False))
    assert out.shape == (batch, 4, H, W)
    assert jnp.allclose(out, ref, atol=1e-4, rtol=1e-4), \
        float(jnp.max(jnp.abs(out - ref)))

    # Opt-in bf16-MXU fast path: looser tolerance (bf16 operands, f32 accum).
    out_bf16 = jax.block_until_ready(fwd(x, params, use_bf16_mxu=True))
    assert out_bf16.shape == (batch, 4, H, W)
    assert float(jnp.max(jnp.abs(out_bf16 - ref))) < 0.15, \
        float(jnp.max(jnp.abs(out_bf16 - ref)))

    print("KERNEL_OK")
</pallas_src>

<mosaic_0001>
module attributes {stable_mosaic.version = 11 : i64} {
  func.func @_fused_convnet_kernel(%arg0: i32, %arg1: memref<1x256x36xf32, #tpu.memory_space<vmem>>, %arg2: memref<36x128xf32, #tpu.memory_space<vmem>>, %arg3: memref<1x128xf32, #tpu.memory_space<vmem>>, %arg4: memref<1152x256xf32, #tpu.memory_space<vmem>>, %arg5: memref<1x256xf32, #tpu.memory_space<vmem>>, %arg6: memref<9x256x4xf32, #tpu.memory_space<vmem>>, %arg7: memref<1x4xf32, #tpu.memory_space<vmem>>, %arg8: memref<1x4x256xf32, #tpu.memory_space<vmem>>, %arg9: memref<18x18x128xf32, #tpu.memory_space<vmem>>, %arg10: memref<18x18x256xf32, #tpu.memory_space<vmem>>) attributes {dimension_semantics = [#tpu.dimension_semantics<parallel>], iteration_bounds = array<i64: 2>, scalar_prefetch = 0 : i64, scratch_operands = 2 : i64, tpu.core_type = #tpu.core_type<tc>, window_params = [{transform_indices = @transform_0, window_bounds = array<i64: 1, 256, 36>}, {pipeline_mode = #tpu.pipeline_mode<synchronous>, transform_indices = @transform_1, window_bounds = array<i64: 36, 128>}, {pipeline_mode = #tpu.pipeline_mode<synchronous>, transform_indices = @transform_2, window_bounds = array<i64: 1, 128>}, {pipeline_mode = #tpu.pipeline_mode<synchronous>, transform_indices = @transform_3, window_bounds = array<i64: 1152, 256>}, {pipeline_mode = #tpu.pipeline_mode<synchronous>, transform_indices = @transform_4, window_bounds = array<i64: 1, 256>}, {pipeline_mode = #tpu.pipeline_mode<synchronous>, transform_indices = @transform_5, window_bounds = array<i64: 9, 256, 4>}, {pipeline_mode = #tpu.pipeline_mode<synchronous>, transform_indices = @transform_6, window_bounds = array<i64: 1, 4>}, {transform_indices = @transform_7, window_bounds = array<i64: 1, 4, 256>}]} {
    %cst = arith.constant 0.000000e+00 : f32
    %0 = vector.broadcast %cst : f32 to vector<1x18x128xf32>
    %c0 = arith.constant 0 : index
    %c0_0 = arith.constant 0 : index
    %c0_1 = arith.constant 0 : index
    %1 = vector.load %arg9[%c0, %c0_0, %c0_1] : memref<18x18x128xf32, #tpu.memory_space<vmem>>, vector<1x18x128xf32>
    tpu.vector_store %arg9[%c0, %c0_0, %c0_1], %0 {strides = array<i32>} : memref<18x18x128xf32, #tpu.memory_space<vmem>>, vector<1x18x128xf32>,
    %c17 = arith.constant 17 : index
    %c0_2 = arith.constant 0 : index
    %c0_3 = arith.constant 0 : index
    %2 = vector.load %arg9[%c17, %c0_2, %c0_3] : memref<18x18x128xf32, #tpu.memory_space<vmem>>, vector<1x18x128xf32>
    tpu.vector_store %arg9[%c17, %c0_2, %c0_3], %0 {strides = array<i32>} : memref<18x18x128xf32, #tpu.memory_space<vmem>>, vector<1x18x128xf32>,
    %cst_4 = arith.constant 0.000000e+00 : f32
    %3 = vector.broadcast %cst_4 : f32 to vector<18x1x128xf32>
    %c0_5 = arith.constant 0 : index
    %c0_6 = arith.constant 0 : index
    %c0_7 = arith.constant 0 : index
    %4 = vector.load %arg9[%c0_5, %c0_6, %c0_7] : memref<18x18x128xf32, #tpu.memory_space<vmem>>, vector<18x1x128xf32>
    tpu.vector_store %arg9[%c0_5, %c0_6, %c0_7], %3 {strides = array<i32>} : memref<18x18x128xf32, #tpu.memory_space<vmem>>, vector<18x1x128xf32>,
    %c0_8 = arith.constant 0 : index
    %c17_9 = arith.constant 17 : index
    %c0_10 = arith.constant 0 : index
    %5 = vector.load %arg9[%c0_8, %c17_9, %c0_10] : memref<18x18x128xf32, #tpu.memory_space<vmem>>, vector<18x1x128xf32>
    tpu.vector_store %arg9[%c0_8, %c17_9, %c0_10], %3 {strides = array<i32>} : memref<18x18x128xf32, #tpu.memory_space<vmem>>, vector<18x1x128xf32>,
    %cst_11 = arith.constant 0.000000e+00 : f32
    %6 = vector.broadcast %cst_11 : f32 to vector<1x18x256xf32>
    %c0_12 = arith.constant 0 : index
    %c0_13 = arith.constant 0 : index
    %c0_14 = arith.constant 0 : index
    %7 = vector.load %arg10[%c0_12, %c0_13, %c0_14] : memref<18x18x256xf32, #tpu.memory_space<vmem>>, vector<1x18x256xf32>
    tpu.vector_store %arg10[%c0_12, %c0_13, %c0_14], %6 {strides = array<i32>} : memref<18x18x256xf32, #tpu.memory_space<vmem>>, vector<1x18x256xf32>,
    %c17_15 = arith.constant 17 : index
    %c0_16 = arith.constant 0 : index
    %c0_17 = arith.constant 0 : index
    %8 = vector.load %arg10[%c17_15, %c0_16, %c0_17] : memref<18x18x256xf32, #tpu.memory_space<vmem>>, vector<1x18x256xf32>
    tpu.vector_store %arg10[%c17_15, %c0_16, %c0_17], %6 {strides = array<i32>} : memref<18x18x256xf32, #tpu.memory_space<vmem>>, vector<1x18x256xf32>,
    %cst_18 = arith.constant 0.000000e+00 : f32
    %9 = vector.broadcast %cst_18 : f32 to vector<18x1x256xf32>
    %c0_19 = arith.constant 0 : index
    %c0_20 = arith.constant 0 : index
    %c0_21 = arith.constant 0 : index
    %10 = vector.load %arg10[%c0_19, %c0_20, %c0_21] : memref<18x18x256xf32, #tpu.memory_space<vmem>>, vector<18x1x256xf32>
    tpu.vector_store %arg10[%c0_19, %c0_20, %c0_21], %9 {strides = array<i32>} : memref<18x18x256xf32, #tpu.memory_space<vmem>>, vector<18x1x256xf32>,
    %c0_22 = arith.constant 0 : index
    %c17_23 = arith.constant 17 : index
    %c0_24 = arith.constant 0 : index
    %11 = vector.load %arg10[%c0_22, %c17_23, %c0_24] : memref<18x18x256xf32, #tpu.memory_space<vmem>>, vector<18x1x256xf32>
    tpu.vector_store %arg10[%c0_22, %c17_23, %c0_24], %9 {strides = array<i32>} : memref<18x18x256xf32, #tpu.memory_space<vmem>>, vector<18x1x256xf32>,
    %c0_25 = arith.constant 0 : index
    %c0_26 = arith.constant 0 : index
    %c0_27 = arith.constant 0 : index
    %12 = vector.load %arg1[%c0_25, %c0_26, %c0_27] : memref<1x256x36xf32, #tpu.memory_space<vmem>>, vector<1x256x36xf32>
    %13 = vector.shape_cast %12 : vector<1x256x36xf32> to vector<256x36xf32>
    %c0_28 = arith.constant 0 : index
    %c0_29 = arith.constant 0 : index
    %14 = vector.load %arg2[%c0_28, %c0_29] : memref<36x128xf32, #tpu.memory_space<vmem>>, vector<36x128xf32>
    %cst_30 = arith.constant dense<0.000000e+00> : vector<256x128xf32>
    %15 = tpu.matmul %13, %14, %cst_30 {dimension_numbers = #tpu.dot_dimension_numbers<[1], [0], [0], [1], [0, 0, 1, 1], [], []>} : vector<256x36xf32>, vector<36x128xf32>, vector<256x128xf32> -> vector<256x128xf32>
    %c0_31 = arith.constant 0 : index
    %c0_32 = arith.constant 0 : index
    %16 = vector.load %arg3[%c0_31, %c0_32] : memref<1x128xf32, #tpu.memory_space<vmem>>, vector<1x128xf32>
    %17 = vector.broadcast %16 : vector<1x128xf32> to vector<256x128xf32>
    %18 = arith.addf %15, %17 : vector<256x128xf32>
    %cst_33 = arith.constant 0.000000e+00 : f32
    %19 = vector.broadcast %cst_33 : f32 to vector<256x128xf32>
    %20 = arith.maximumf %18, %19 : vector<256x128xf32>
    %21 = vector.shape_cast %20 : vector<256x128xf32> to vector<16x16x128xf32>
    %c1 = arith.constant 1 : index
    %c1_34 = arith.constant 1 : index
    %c0_35 = arith.constant 0 : index
    %22 = vector.load %arg9[%c1, %c1_34, %c0_35] : memref<18x18x128xf32, #tpu.memory_space<vmem>>, vector<16x16x128xf32>
    tpu.vector_store %arg9[%c1, %c1_34, %c0_35], %21 {strides = array<i32>} : memref<18x18x128xf32, #tpu.memory_space<vmem>>, vector<16x16x128xf32>,
    %c0_36 = arith.constant 0 : index
    %c0_37 = arith.constant 0 : index
    %c0_38 = arith.constant 0 : index
    %23 = vector.load %arg9[%c0_36, %c0_37, %c0_38] : memref<18x18x128xf32, #tpu.memory_space<vmem>>, vector<16x16x128xf32>
    %24 = vector.shape_cast %23 : vector<16x16x128xf32> to vector<256x128xf32>
    %c0_39 = arith.constant 0 : index
    %c1_40 = arith.constant 1 : index
    %c0_41 = arith.constant 0 : index
    %25 = vector.load %arg9[%c0_39, %c1_40, %c0_41] : memref<18x18x128xf32, #tpu.memory_space<vmem>>, vector<16x16x128xf32>
    %26 = vector.shape_cast %25 : vector<16x16x128xf32> to vector<256x128xf32>
    %c0_42 = arith.constant 0 : index
    %c2 = arith.constant 2 : index
    %c0_43 = arith.constant 0 : index
    %27 = vector.load %arg9[%c0_42, %c2, %c0_43] : memref<18x18x128xf32, #tpu.memory_space<vmem>>, vector<16x16x128xf32>
    %28 = vector.shape_cast %27 : vector<16x16x128xf32> to vector<256x128xf32>
    %c1_44 = arith.constant 1 : index
    %c0_45 = arith.constant 0 : index
    %c0_46 = arith.constant 0 : index
    %29 = vector.load %arg9[%c1_44, %c0_45, %c0_46] : memref<18x18x128xf32, #tpu.memory_space<vmem>>, vector<16x16x128xf32>
    %30 = vector.shape_cast %29 : vector<16x16x128xf32> to vector<256x128xf32>
    %c1_47 = arith.constant 1 : index
    %c1_48 = arith.constant 1 : index
    %c0_49 = arith.constant 0 : index
    %31 = vector.load %arg9[%c1_47, %c1_48, %c0_49] : memref<18x18x128xf32, #tpu.memory_space<vmem>>, vector<16x16x128xf32>
    %32 = vector.shape_cast %31 : vector<16x16x128xf32> to vector<256x128xf32>
    %c1_50 = arith.constant 1 : index
    %c2_51 = arith.constant 2 : index
    %c0_52 = arith.constant 0 : index
    %33 = vector.load %arg9[%c1_50, %c2_51, %c0_52] : memref<18x18x128xf32, #tpu.memory_space<vmem>>, vector<16x16x128xf32>
    %34 = vector.shape_cast %33 : vector<16x16x128xf32> to vector<256x128xf32>
    %c2_53 = arith.constant 2 : index
    %c0_54 = arith.constant 0 : index
    %c0_55 = arith.constant 0 : index
    %35 = vector.load %arg9[%c2_53, %c0_54, %c0_55] : memref<18x18x128xf32, #tpu.memory_space<vmem>>, vector<16x16x128xf32>
    %36 = vector.shape_cast %35 : vector<16x16x128xf32> to vector<256x128xf32>
    %c2_56 = arith.constant 2 : index
    %c1_57 = arith.constant 1 : index
    %c0_58 = arith.constant 0 : index
    %37 = vector.load %arg9[%c2_56, %c1_57, %c0_58] : memref<18x18x128xf32, #tpu.memory_space<vmem>>, vector<16x16x128xf32>
    %38 = vector.shape_cast %37 : vector<16x16x128xf32> to vector<256x128xf32>
    %c2_59 = arith.constant 2 : index
    %c2_60 = arith.constant 2 : index
    %c0_61 = arith.constant 0 : index
    %39 = vector.load %arg9[%c2_59, %c2_60, %c0_61] : memref<18x18x128xf32, #tpu.memory_space<vmem>>, vector<16x16x128xf32>
    %40 = vector.shape_cast %39 : vector<16x16x128xf32> to vector<256x128xf32>
    %41 = tpu.concatenate %24, %26, %28, %30, %32, %34, %36, %38, %40 in 1 : vector<256x128xf32>, vector<256x128xf32>, vector<256x128xf32>, vector<256x128xf32>, vector<256x128xf32>, vector<256x128xf32>, vector<256x128xf32>, vector<256x128xf32>, vector<256x128xf32> -> vector<256x1152xf32>
    %c0_62 = arith.constant 0 : index
    %c0_63 = arith.constant 0 : index
    %42 = vector.load %arg4[%c0_62, %c0_63] : memref<1152x256xf32, #tpu.memory_space<vmem>>, vector<1152x256xf32>
    %cst_64 = arith.constant dense<0.000000e+00> : vector<256x256xf32>
    %43 = tpu.matmul %41, %42, %cst_64 {dimension_numbers = #tpu.dot_dimension_numbers<[1], [0], [0], [1], [0, 0, 1, 1], [], []>} : vector<256x1152xf32>, vector<1152x256xf32>, vector<256x256xf32> -> vector<256x256xf32>
    %c0_65 = arith.constant 0 : index
    %c0_66 = arith.constant 0 : index
    %44 = vector.load %arg5[%c0_65, %c0_66] : memref<1x256xf32, #tpu.memory_space<vmem>>, vector<1x256xf32>
    %45 = vector.broadcast %44 : vector<1x256xf32> to vector<256x256xf32>
    %46 = arith.addf %43, %45 : vector<256x256xf32>
    %cst_67 = arith.constant 0.000000e+00 : f32
    %47 = vector.broadcast %cst_67 : f32 to vector<256x256xf32>
    %48 = arith.maximumf %46, %47 : vector<256x256xf32>
    %49 = vector.shape_cast %48 : vector<256x256xf32> to vector<16x16x256xf32>
    %c1_68 = arith.constant 1 : index
    %c1_69 = arith.constant 1 : index
    %c0_70 = arith.constant 0 : index
    %50 = vector.load %arg10[%c1_68, %c1_69, %c0_70] : memref<18x18x256xf32, #tpu.memory_space<vmem>>, vector<16x16x256xf32>
    tpu.vector_store %arg10[%c1_68, %c1_69, %c0_70], %49 {strides = array<i32>} : memref<18x18x256xf32, #tpu.memory_space<vmem>>, vector<16x16x256xf32>,
    %cst_71 = arith.constant 0.000000e+00 : f32
    %51 = vector.broadcast %cst_71 : f32 to vector<256x4xf32>
    %c0_72 = arith.constant 0 : index
    %c0_73 = arith.constant 0 : index
    %c0_74 = arith.constant 0 : index
    %52 = vector.load %arg10[%c0_72, %c0_73, %c0_74] : memref<18x18x256xf32, #tpu.memory_space<vmem>>, vector<16x16x256xf32>
    %53 = vector.shape_cast %52 : vector<16x16x256xf32> to vector<256x256xf32>
    %c0_75 = arith.constant 0 : index
    %c0_76 = arith.constant 0 : index
    %c0_77 = arith.constant 0 : index
    %54 = vector.load %arg6[%c0_75, %c0_76, %c0_77] : memref<9x256x4xf32, #tpu.memory_space<vmem>>, vector<1x256x4xf32>
    %55 = vector.shape_cast %54 : vector<1x256x4xf32> to vector<256x4xf32>
    %cst_78 = arith.constant dense<0.000000e+00> : vector<256x4xf32>
    %56 = tpu.matmul %53, %55, %cst_78 {dimension_numbers = #tpu.dot_dimension_numbers<[1], [0], [0], [1], [0, 0, 1, 1], [], []>} : vector<256x256xf32>, vector<256x4xf32>, vector<256x4xf32> -> vector<256x4xf32>
    %57 = arith.addf %51, %56 : vector<256x4xf32>
    %c0_79 = arith.constant 0 : index
    %c1_80 = arith.constant 1 : index
    %c0_81 = arith.constant 0 : index
    %58 = vector.load %arg10[%c0_79, %c1_80, %c0_81] : memref<18x18x256xf32, #tpu.memory_space<vmem>>, vector<16x16x256xf32>
    %59 = vector.shape_cast %58 : vector<16x16x256xf32> to vector<256x256xf32>
    %c1_82 = arith.constant 1 : index
    %c0_83 = arith.constant 0 : index
    %c0_84 = arith.constant 0 : index
    %60 = vector.load %arg6[%c1_82, %c0_83, %c0_84] : memref<9x256x4xf32, #tpu.memory_space<vmem>>, vector<1x256x4xf32>
    %61 = vector.shape_cast %60 : vector<1x256x4xf32> to vector<256x4xf32>
    %cst_85 = arith.constant dense<0.000000e+00> : vector<256x4xf32>
    %62 = tpu.matmul %59, %61, %cst_85 {dimension_numbers = #tpu.dot_dimension_numbers<[1], [0], [0], [1], [0, 0, 1, 1], [], []>} : vector<256x256xf32>, vector<256x4xf32>, vector<256x4xf32> -> vector<256x4xf32>
    %63 = arith.addf %57, %62 : vector<256x4xf32>
    %c0_86 = arith.constant 0 : index
    %c2_87 = arith.constant 2 : index
    %c0_88 = arith.constant 0 : index
    %64 = vector.load %arg10[%c0_86, %c2_87, %c0_88] : memref<18x18x256xf32, #tpu.memory_space<vmem>>, vector<16x16x256xf32>
    %65 = vector.shape_cast %64 : vector<16x16x256xf32> to vector<256x256xf32>
    %c2_89 = arith.constant 2 : index
    %c0_90 = arith.constant 0 : index
    %c0_91 = arith.constant 0 : index
    %66 = vector.load %arg6[%c2_89, %c0_90, %c0_91] : memref<9x256x4xf32, #tpu.memory_space<vmem>>, vector<1x256x4xf32>
    %67 = vector.shape_cast %66 : vector<1x256x4xf32> to vector<256x4xf32>
    %cst_92 = arith.constant dense<0.000000e+00> : vector<256x4xf32>
    %68 = tpu.matmul %65, %67, %cst_92 {dimension_numbers = #tpu.dot_dimension_numbers<[1], [0], [0], [1], [0, 0, 1, 1], [], []>} : vector<256x256xf32>, vector<256x4xf32>, vector<256x4xf32> -> vector<256x4xf32>
    %69 = arith.addf %63, %68 : vector<256x4xf32>
    %c1_93 = arith.constant 1 : index
    %c0_94 = arith.constant 0 : index
    %c0_95 = arith.constant 0 : index
    %70 = vector.load %arg10[%c1_93, %c0_94, %c0_95] : memref<18x18x256xf32, #tpu.memory_space<vmem>>, vector<16x16x256xf32>
    %71 = vector.shape_cast %70 : vector<16x16x256xf32> to vector<256x256xf32>
    %c3 = arith.constant 3 : index
    %c0_96 = arith.constant 0 : index
    %c0_97 = arith.constant 0 : index
    %72 = vector.load %arg6[%c3, %c0_96, %c0_97] : memref<9x256x4xf32, #tpu.memory_space<vmem>>, vector<1x256x4xf32>
    %73 = vector.shape_cast %72 : vector<1x256x4xf32> to vector<256x4xf32>
    %cst_98 = arith.constant dense<0.000000e+00> : vector<256x4xf32>
    %74 = tpu.matmul %71, %73, %cst_98 {dimension_numbers = #tpu.dot_dimension_numbers<[1], [0], [0], [1], [0, 0, 1, 1], [], []>} : vector<256x256xf32>, vector<256x4xf32>, vector<256x4xf32> -> vector<256x4xf32>
    %75 = arith.addf %69, %74 : vector<256x4xf32>
    %c1_99 = arith.constant 1 : index
    %c1_100 = arith.constant 1 : index
    %c0_101 = arith.constant 0 : index
    %76 = vector.load %arg10[%c1_99, %c1_100, %c0_101] : memref<18x18x256xf32, #tpu.memory_space<vmem>>, vector<16x16x256xf32>
    %77 = vector.shape_cast %76 : vector<16x16x256xf32> to vector<256x256xf32>
    %c4 = arith.constant 4 : index
    %c0_102 = arith.constant 0 : index
    %c0_103 = arith.constant 0 : index
    %78 = vector.load %arg6[%c4, %c0_102, %c0_103] : memref<9x256x4xf32, #tpu.memory_space<vmem>>, vector<1x256x4xf32>
    %79 = vector.shape_cast %78 : vector<1x256x4xf32> to vector<256x4xf32>
    %cst_104 = arith.constant dense<0.000000e+00> : vector<256x4xf32>
    %80 = tpu.matmul %77, %79, %cst_104 {dimension_numbers = #tpu.dot_dimension_numbers<[1], [0], [0], [1], [0, 0, 1, 1], [], []>} : vector<256x256xf32>, vector<256x4xf32>, vector<256x4xf32> -> vector<256x4xf32>
    %81 = arith.addf %75, %80 : vector<256x4xf32>
    %c1_105 = arith.constant 1 : index
    %c2_106 = arith.constant 2 : index
    %c0_107 = arith.constant 0 : index
    %82 = vector.load %arg10[%c1_105, %c2_106, %c0_107] : memref<18x18x256xf32, #tpu.memory_space<vmem>>, vector<16x16x256xf32>
    %83 = vector.shape_cast %82 : vector<16x16x256xf32> to vector<256x256xf32>
    %c5 = arith.constant 5 : index
    %c0_108 = arith.constant 0 : index
    %c0_109 = arith.constant 0 : index
    %84 = vector.load %arg6[%c5, %c0_108, %c0_109] : memref<9x256x4xf32, #tpu.memory_space<vmem>>, vector<1x256x4xf32>
    %85 = vector.shape_cast %84 : vector<1x256x4xf32> to vector<256x4xf32>
    %cst_110 = arith.constant dense<0.000000e+00> : vector<256x4xf32>
    %86 = tpu.matmul %83, %85, %cst_110 {dimension_numbers = #tpu.dot_dimension_numbers<[1], [0], [0], [1], [0, 0, 1, 1], [], []>} : vector<256x256xf32>, vector<256x4xf32>, vector<256x4xf32> -> vector<256x4xf32>
    %87 = arith.addf %81, %86 : vector<256x4xf32>
    %c2_111 = arith.constant 2 : index
    %c0_112 = arith.constant 0 : index
    %c0_113 = arith.constant 0 : index
    %88 = vector.load %arg10[%c2_111, %c0_112, %c0_113] : memref<18x18x256xf32, #tpu.memory_space<vmem>>, vector<16x16x256xf32>
    %89 = vector.shape_cast %88 : vector<16x16x256xf32> to vector<256x256xf32>
    %c6 = arith.constant 6 : index
    %c0_114 = arith.constant 0 : index
    %c0_115 = arith.constant 0 : index
    %90 = vector.load %arg6[%c6, %c0_114, %c0_115] : memref<9x256x4xf32, #tpu.memory_space<vmem>>, vector<1x256x4xf32>
    %91 = vector.shape_cast %90 : vector<1x256x4xf32> to vector<256x4xf32>
    %cst_116 = arith.constant dense<0.000000e+00> : vector<256x4xf32>
    %92 = tpu.matmul %89, %91, %cst_116 {dimension_numbers = #tpu.dot_dimension_numbers<[1], [0], [0], [1], [0, 0, 1, 1], [], []>} : vector<256x256xf32>, vector<256x4xf32>, vector<256x4xf32> -> vector<256x4xf32>
    %93 = arith.addf %87, %92 : vector<256x4xf32>
    %c2_117 = arith.constant 2 : index
    %c1_118 = arith.constant 1 : index
    %c0_119 = arith.constant 0 : index
    %94 = vector.load %arg10[%c2_117, %c1_118, %c0_119] : memref<18x18x256xf32, #tpu.memory_space<vmem>>, vector<16x16x256xf32>
    %95 = vector.shape_cast %94 : vector<16x16x256xf32> to vector<256x256xf32>
    %c7 = arith.constant 7 : index
    %c0_120 = arith.constant 0 : index
    %c0_121 = arith.constant 0 : index
    %96 = vector.load %arg6[%c7, %c0_120, %c0_121] : memref<9x256x4xf32, #tpu.memory_space<vmem>>, vector<1x256x4xf32>
    %97 = vector.shape_cast %96 : vector<1x256x4xf32> to vector<256x4xf32>
    %cst_122 = arith.constant dense<0.000000e+00> : vector<256x4xf32>
    %98 = tpu.matmul %95, %97, %cst_122 {dimension_numbers = #tpu.dot_dimension_numbers<[1], [0], [0], [1], [0, 0, 1, 1], [], []>} : vector<256x256xf32>, vector<256x4xf32>, vector<256x4xf32> -> vector<256x4xf32>
    %99 = arith.addf %93, %98 : vector<256x4xf32>
    %c2_123 = arith.constant 2 : index
    %c2_124 = arith.constant 2 : index
    %c0_125 = arith.constant 0 : index
    %100 = vector.load %arg10[%c2_123, %c2_124, %c0_125] : memref<18x18x256xf32, #tpu.memory_space<vmem>>, vector<16x16x256xf32>
    %101 = vector.shape_cast %100 : vector<16x16x256xf32> to vector<256x256xf32>
    %c8 = arith.constant 8 : index
    %c0_126 = arith.constant 0 : index
    %c0_127 = arith.constant 0 : index
    %102 = vector.load %arg6[%c8, %c0_126, %c0_127] : memref<9x256x4xf32, #tpu.memory_space<vmem>>, vector<1x256x4xf32>
    %103 = vector.shape_cast %102 : vector<1x256x4xf32> to vector<256x4xf32>
    %cst_128 = arith.constant dense<0.000000e+00> : vector<256x4xf32>
    %104 = tpu.matmul %101, %103, %cst_128 {dimension_numbers = #tpu.dot_dimension_numbers<[1], [0], [0], [1], [0, 0, 1, 1], [], []>} : vector<256x256xf32>, vector<256x4xf32>, vector<256x4xf32> -> vector<256x4xf32>
    %105 = arith.addf %99, %104 : vector<256x4xf32>
    %c0_129 = arith.constant 0 : index
    %c0_130 = arith.constant 0 : index
    %106 = vector.load %arg7[%c0_129, %c0_130] : memref<1x4xf32, #tpu.memory_space<vmem>>, vector<1x4xf32>
    %107 = vector.broadcast %106 : vector<1x4xf32> to vector<256x4xf32>
    %108 = arith.addf %105, %107 : vector<256x4xf32>
    %cst_131 = arith.constant 0.000000e+00 : f32
    %109 = vector.broadcast %cst_131 : f32 to vector<256x4xf32>
    %110 = arith.maximumf %108, %109 : vector<256x4xf32>
    %111 = tpu.transpose %110, [1, 0] : vector<256x4xf32> -> vector<4x256xf32>
    %c0_132 = arith.constant 0 : index
    %c0_133 = arith.constant 0 : index
    %c0_134 = arith.constant 0 : index
    %112 = vector.load %arg8[%c0_132, %c0_133, %c0_134] : memref<1x4x256xf32, #tpu.memory_space<vmem>>, vector<1x4x256xf32>
    %113 = vector.shape_cast %112 : vector<1x4x256xf32> to vector<4x256xf32>
    %114 = vector.shape_cast %111 : vector<4x256xf32> to vector<1x4x256xf32>
    tpu.vector_store %arg8[%c0_132, %c0_133, %c0_134], %114 {strides = array<i32>} : memref<1x4x256xf32, #tpu.memory_space<vmem>>, vector<1x4x256xf32>,
    return
  }
  func.func @transform_0(%arg0: i32) -> (i32, i32, i32) {
    %c0_i32 = arith.constant 0 : i32
    %c0_i32_0 = arith.constant 0 : i32
    %c0_i32_1 = arith.constant 0 : i32
    return %arg0, %c0_i32, %c0_i32_0 : i32, i32, i32
  }
  func.func @transform_1(%arg0: i32) -> (i32, i32) {
    %c0_i32 = arith.constant 0 : i32
    %c0_i32_0 = arith.constant 0 : i32
    %c0_i32_1 = arith.constant 0 : i32
    return %c0_i32, %c0_i32_0 : i32, i32
  }
  func.func @transform_2(%arg0: i32) -> (i32, i32) {
    %c0_i32 = arith.constant 0 : i32
    %c0_i32_0 = arith.constant 0 : i32
    %c0_i32_1 = arith.constant 0 : i32
    return %c0_i32, %c0_i32_0 : i32, i32
  }
  func.func @transform_3(%arg0: i32) -> (i32, i32) {
    %c0_i32 = arith.constant 0 : i32
    %c0_i32_0 = arith.constant 0 : i32
    %c0_i32_1 = arith.constant 0 : i32
    return %c0_i32, %c0_i32_0 : i32, i32
  }
  func.func @transform_4(%arg0: i32) -> (i32, i32) {
    %c0_i32 = arith.constant 0 : i32
    %c0_i32_0 = arith.constant 0 : i32
    %c0_i32_1 = arith.constant 0 : i32
    return %c0_i32, %c0_i32_0 : i32, i32
  }
  func.func @transform_5(%arg0: i32) -> (i32, i32, i32) {
    %c0_i32 = arith.constant 0 : i32
    %c0_i32_0 = arith.constant 0 : i32
    %c0_i32_1 = arith.constant 0 : i32
    %c0_i32_2 = arith.constant 0 : i32
    return %c0_i32, %c0_i32_0, %c0_i32_1 : i32, i32, i32
  }
  func.func @transform_6(%arg0: i32) -> (i32, i32) {
    %c0_i32 = arith.constant 0 : i32
    %c0_i32_0 = arith.constant 0 : i32
    %c0_i32_1 = arith.constant 0 : i32
    return %c0_i32, %c0_i32_0 : i32, i32
  }
  func.func @transform_7(%arg0: i32) -> (i32, i32, i32) {
    %c0_i32 = arith.constant 0 : i32
    %c0_i32_0 = arith.constant 0 : i32
    %c0_i32_1 = arith.constant 0 : i32
    return %arg0, %c0_i32, %c0_i32_0 : i32, i32, i32
  }
}

</mosaic_0001>

<llo_original>
// kernel: convert1x_net_forward.1
$region0: #{convert1x_net_forward.1}
  #allocation0 [shape = 'u32[]', space=smem, size = 0x4, offset = 0x4, fixed_abs, tag = 'smem constant byte address 0x4 - core index']
  #allocation1 [shape = 'u32[144,128]{1,0:T(1,128)}', space=vmem, size = 0x12000, scoped, tag = 'internal scratch']
  #allocation2 [shape = 'f32[18,18,128]{2,1,0:T(8,128)}', space=vmem, size = 0x36000, scoped, tag = 'scratch operand']
  #allocation3 [shape = 'f32[18,18,256]{2,1,0:T(8,128)}', space=vmem, size = 0x6c000, scoped, tag = 'scratch operand']
  %s0 = inlined_call_operand.vmem [shape: f32[2,256,36], index: 0, kind: input, shape index: {}]
  %s1 = inlined_call_operand.vmem [shape: f32[36,128], index: 1, kind: input, shape index: {}]
  %s2 = inlined_call_operand.vmem [shape: f32[1,128], index: 2, kind: input, shape index: {}]
  %s3 = inlined_call_operand.vmem [shape: f32[1152,256], index: 3, kind: input, shape index: {}]
  %s4 = inlined_call_operand.vmem [shape: f32[1,256], index: 4, kind: input, shape index: {}]
  %s5 = inlined_call_operand.vmem [shape: f32[9,256,4], index: 5, kind: input, shape index: {}]
  %s6 = inlined_call_operand.vmem [shape: f32[1,4], index: 6, kind: input, shape index: {}]
  %s7 = inlined_call_operand.vmem [shape: f32[2,4,256], index: 7, kind: output, shape index: {}]
  %s8 = sld [smem:[#allocation0]]
  $region61: #{convert1x_net_forward.1} parent=0
    _
  %s10 = ssub.s32 1, %s8
  %s11 = scalar_select 0, %s10, %s8
  loop: start=0, step=1, limit=4
  $region2: #{convert1x_net_forward.1} parent=0 // loop_pre_header
    _
  $region3: #{convert1x_net_forward.1} parent=0 // loop_header
    %s13 = sphi 0, %s17
    %p14 = scmp.ge.s32.totalorder %s13, 4
    %s23 = sphi 0, %s25
    %s26 = sphi 0, %s23
    %s27 = sphi 0, %s26
    %s43 = sphi 0, %s27
    %s47 = sphi 0, %s47
    %s49 = sphi 0, %s47
    %s50 = sphi 0, %s49
    %s64 = sphi 0, %s50
    %s68 = sphi 0, %s68
    %s70 = sphi 0, %s68
    %s71 = sphi 0, %s70
    %s85 = sphi 0, %s71
    %s89 = sphi 0, %s89
    %s91 = sphi 0, %s89
    %s92 = sphi 0, %s91
    %s106 = sphi 0, %s92
    %s110 = sphi 0, %s110
    %s112 = sphi 0, %s110
    %s113 = sphi 0, %s112
    %s127 = sphi 0, %s113
    %s131 = sphi 0, %s131
    %s133 = sphi 0, %s131
    %s134 = sphi 0, %s133
    %s148 = sphi 0, %s134
    %s152 = sphi 0, %s152
    %s154 = sphi 0, %s152
    %s155 = sphi 0, %s154
    %s169 = sphi 0, %s155
    %s175 = sphi 0, %s177
    %s178 = sphi 0, %s175
    %s179 = sphi 0, %s178
    %s195 = sphi 0, %s179
  $region4: #{convert1x_net_forward.1} parent=0 // loop_header_branch
    %16 = sbr.rel (%p14) target = $region8
  $region5: #{convert1x_net_forward.1} parent=0 // loop_body
    %s18 = ssub.s32 %s13, 1
    %s19 = ssub.s32 %s13, 2
    %s20 = sadd.s32 %s13, 1
    %s21 = ssub.s32 %s13, %s20
    %p22 = scmp.eq.s32.totalorder %s21, 0
    %s24 = sadd.s32 %s23, 1
    %s25 = scalar_select %p22, %s23, %s24
    %p28 = pneg %p22
    %p29 = scmp.eq.s32.totalorder %s13, 1
    %p30 = por %p28, %p29
    %p31 = scmp.ne.s32.totalorder %s23, %s26
    %p32 = scmp.eq.s32.totalorder %s13, 0
    %p33 = por %p31, %p32
    %p34 = scmp.ne.s32.totalorder %s23, %s26
    %p35 = scmp.eq.s32.totalorder %s18, 1
    %p36 = por %p34, %p35
    %p37 = scmp.ne.s32.totalorder %s26, %s27
    %p38 = scmp.eq.s32.totalorder %s18, 0
    %p39 = por %p37, %p38
    %p40 = scmp.ne.s32.totalorder %s26, %s27
    %p41 = scmp.eq.s32.totalorder %s19, 1
    %p42 = por %p40, %p41
    %p44 = scmp.ne.s32.totalorder %s27, %s43
    %p45 = scmp.eq.s32.totalorder %s19, 0
    %p46 = por %p44, %p45
    %s48 = sadd.s32 %s47, 1
    %p51 = scmp.eq.s32.totalorder %s13, 1
    %p52 = scmp.ne.s32.totalorder %s47, %s49
    %p53 = scmp.eq.s32.totalorder %s13, 0
    %p54 = por %p52, %p53
    %p55 = scmp.ne.s32.totalorder %s47, %s49
    %p56 = scmp.eq.s32.totalorder %s18, 1
    %p57 = por %p55, %p56
    %p58 = scmp.ne.s32.totalorder %s49, %s50
    %p59 = scmp.eq.s32.totalorder %s18, 0
    %p60 = por %p58, %p59
    %p61 = scmp.ne.s32.totalorder %s49, %s50
    %p62 = scmp.eq.s32.totalorder %s19, 1
    %p63 = por %p61, %p62
    %p65 = scmp.ne.s32.totalorder %s50, %s64
    %p66 = scmp.eq.s32.totalorder %s19, 0
    %p67 = por %p65, %p66
    %s69 = sadd.s32 %s68, 1
    %p72 = scmp.eq.s32.totalorder %s13, 1
    %p73 = scmp.ne.s32.totalorder %s68, %s70
    %p74 = scmp.eq.s32.totalorder %s13, 0
    %p75 = por %p73, %p74
    %p76 = scmp.ne.s32.totalorder %s68, %s70
    %p77 = scmp.eq.s32.totalorder %s18, 1
    %p78 = por %p76, %p77
    %p79 = scmp.ne.s32.totalorder %s70, %s71
    %p80 = scmp.eq.s32.totalorder %s18, 0
    %p81 = por %p79, %p80
    %p82 = scmp.ne.s32.totalorder %s70, %s71
    %p83 = scmp.eq.s32.totalorder %s19, 1
    %p84 = por %p82, %p83
    %p86 = scmp.ne.s32.totalorder %s71, %s85
    %p87 = scmp.eq.s32.totalorder %s19, 0
    %p88 = por %p86, %p87
    %s90 = sadd.s32 %s89, 1
    %p93 = scmp.eq.s32.totalorder %s13, 1
    %p94 = scmp.ne.s32.totalorder %s89, %s91
    %p95 = scmp.eq.s32.totalorder %s13, 0
    %p96 = por %p94, %p95
    %p97 = scmp.ne.s32.totalorder %s89, %s91
    %p98 = scmp.eq.s32.totalorder %s18, 1
    %p99 = por %p97, %p98
    %p100 = scmp.ne.s32.totalorder %s91, %s92
    %p101 = scmp.eq.s32.totalorder %s18, 0
    %p102 = por %p100, %p101
    %p103 = scmp.ne.s32.totalorder %s91, %s92
    %p104 = scmp.eq.s32.totalorder %s19, 1
    %p105 = por %p103, %p104
    %p107 = scmp.ne.s32.totalorder %s92, %s106
    %p108 = scmp.eq.s32.totalorder %s19, 0
    %p109 = por %p107, %p108
    %s111 = sadd.s32 %s110, 1
    %p114 = scmp.eq.s32.totalorder %s13, 1
    %p115 = scmp.ne.s32.totalorder %s110, %s112
    %p116 = scmp.eq.s32.totalorder %s13, 0
    %p117 = por %p115, %p116
    %p118 = scmp.ne.s32.totalorder %s110, %s112
    %p119 = scmp.eq.s32.totalorder %s18, 1
    %p120 = por %p118, %p119
    %p121 = scmp.ne.s32.totalorder %s112, %s113
    %p122 = scmp.eq.s32.totalorder %s18, 0
    %p123 = por %p121, %p122
    %p124 = scmp.ne.s32.totalorder %s112, %s113
    %p125 = scmp.eq.s32.totalorder %s19, 1
    %p126 = por %p124, %p125
    %p128 = scmp.ne.s32.totalorder %s113, %s127
    %p129 = scmp.eq.s32.totalorder %s19, 0
    %p130 = por %p128, %p129
    %s132 = sadd.s32 %s131, 1
    %p135 = scmp.eq.s32.totalorder %s13, 1
    %p136 = scmp.ne.s32.totalorder %s131, %s133
    %p137 = scmp.eq.s32.totalorder %s13, 0
    %p138 = por %p136, %p137
    %p139 = scmp.ne.s32.totalorder %s131, %s133
    %p140 = scmp.eq.s32.totalorder %s18, 1
    %p141 = por %p139, %p140
    %p142 = scmp.ne.s32.totalorder %s133, %s134
    %p143 = scmp.eq.s32.totalorder %s18, 0
    %p144 = por %p142, %p143
    %p145 = scmp.ne.s32.totalorder %s133, %s134
    %p146 = scmp.eq.s32.totalorder %s19, 1
    %p147 = por %p145, %p146
    %p149 = scmp.ne.s32.totalorder %s134, %s148
    %p150 = scmp.eq.s32.totalorder %s19, 0
    %p151 = por %p149, %p150
    %s153 = sadd.s32 %s152, 1
    %p156 = scmp.eq.s32.totalorder %s13, 1
    %p157 = scmp.ne.s32.totalorder %s152, %s154
    %p158 = scmp.eq.s32.totalorder %s13, 0
    %p159 = por %p157, %p158
    %p160 = scmp.ne.s32.totalorder %s152, %s154
    %p161 = scmp.eq.s32.totalorder %s18, 1
    %p162 = por %p160, %p161
    %p163 = scmp.ne.s32.totalorder %s154, %s155
    %p164 = scmp.eq.s32.totalorder %s18, 0
    %p165 = por %p163, %p164
    %p166 = scmp.ne.s32.totalorder %s154, %s155
    %p167 = scmp.eq.s32.totalorder %s19, 1
    %p168 = por %p166, %p167
    %p170 = scmp.ne.s32.totalorder %s155, %s169
    %p171 = scmp.eq.s32.totalorder %s19, 0
    %p172 = por %p170, %p171
    %s173 = ssub.s32 %s13, %s20
    %p174 = scmp.eq.s32.totalorder %s173, 0
    %s176 = sadd.s32 %s175, 1
    %s177 = scalar_select %p174, %s175, %s176
    %p180 = pneg %p174
    %p181 = scmp.eq.s32.totalorder %s13, 1
    %p182 = por %p180, %p181
    %p183 = scmp.ne.s32.totalorder %s175, %s178
    %p184 = scmp.eq.s32.totalorder %s13, 0
    %p185 = por %p183, %p184
    %p186 = scmp.ne.s32.totalorder %s175, %s178
    %p187 = scmp.eq.s32.totalorder %s18, 1
    %p188 = por %p186, %p187
    %p189 = scmp.ne.s32.totalorder %s178, %s179
    %p190 = scmp.eq.s32.totalorder %s18, 0
    %p191 = por %p189, %p190
    %p192 = scmp.ne.s32.totalorder %s178, %s179
    %p193 = scmp.eq.s32.totalorder %s19, 1
    %p194 = por %p192, %p193
    %p196 = scmp.ne.s32.totalorder %s179, %s195
    %p197 = scmp.eq.s32.totalorder %s19, 0
    %p198 = por %p196, %p197
    %p199 = scmp.le.s32.totalorder 1, %s13
    %p200 = scmp.lt.s32.totalorder %s13, 3
    %p201 = pnand %p199, %p200
    %p202 = pneg %p201
    // Predicated region
    $region9: #{convert1x_net_forward.1} parent=5 // pred_check
      _
    $region10: #{convert1x_net_forward.1} parent=5 // pred_check_branch
      %204 = sbr.rel (%p201) target = $region12
    $region11: #{convert1x_net_forward.1} parent=5 // pred_region
      %s205 = ssub.s32 %s13, 1
      // Predicated region
      $region13: #{convert1x_net_forward.1} parent=11 // pred_check
        %p206 = pneg %p60
      $region14: #{convert1x_net_forward.1} parent=11 // pred_check_branch
        %208 = sbr.rel (%p206) target = $region16
      $region15: #{convert1x_net_forward.1} parent=11 // pred_region
        _
      $region16: #{convert1x_net_forward.1} parent=11 // pred_fallthru
        _
      // Predicated region
      $region17: #{convert1x_net_forward.1} parent=11 // pred_check
        %p209 = pneg %p81
      $region18: #{convert1x_net_forward.1} parent=11 // pred_check_branch
        %211 = sbr.rel (%p209) target = $region20
      $region19: #{convert1x_net_forward.1} parent=11 // pred_region
        _
      $region20: #{convert1x_net_forward.1} parent=11 // pred_fallthru
        _
      // Predicated region
      $region21: #{convert1x_net_forward.1} parent=11 // pred_check
        %p212 = pneg %p102
      $region22: #{convert1x_net_forward.1} parent=11 // pred_check_branch
        %214 = sbr.rel (%p212) target = $region24
      $region23: #{convert1x_net_forward.1} parent=11 // pred_region
        _
      $region24: #{convert1x_net_forward.1} parent=11 // pred_fallthru
        _
      // Predicated region
      $region25: #{convert1x_net_forward.1} parent=11 // pred_check
        %p215 = pneg %p123
      $region26: #{convert1x_net_forward.1} parent=11 // pred_check_branch
        %217 = sbr.rel (%p215) target = $region28
      $region27: #{convert1x_net_forward.1} parent=11 // pred_region
        _
      $region28: #{convert1x_net_forward.1} parent=11 // pred_fallthru
        _
      // Predicated region
      $region29: #{convert1x_net_forward.1} parent=11 // pred_check
        %p218 = pneg %p144
      $region30: #{convert1x_net_forward.1} parent=11 // pred_check_branch
        %220 = sbr.rel (%p218) target = $region32
      $region31: #{convert1x_net_forward.1} parent=11 // pred_region
        _
      $region32: #{convert1x_net_forward.1} parent=11 // pred_fallthru
        _
      // Predicated region
      $region33: #{convert1x_net_forward.1} parent=11 // pred_check
        %p221 = pneg %p165
      $region34: #{convert1x_net_forward.1} parent=11 // pred_check_branch
        %223 = sbr.rel (%p221) target = $region36
      $region35: #{convert1x_net_forward.1} parent=11 // pred_region
        _
      $region36: #{convert1x_net_forward.1} parent=11 // pred_fallthru
        _
    $region12: #{convert1x_net_forward.1} parent=5 // pred_fallthru
      _
    %p224 = scmp.lt.s32.totalorder %s13, 2
    // Predicated region
    $region37: #{convert1x_net_forward.1} parent=5 // pred_check
      %p225 = pneg %p224
    $region38: #{convert1x_net_forward.1} parent=5 // pred_check_branch
      %227 = sbr.rel (%p225) target = $region40
    $region39: #{convert1x_net_forward.1} parent=5 // pred_region
      // Predicated region
      $region41: #{convert1x_net_forward.1} parent=39 // pred_check
        %p228 = pneg %p33
      $region42: #{convert1x_net_forward.1} parent=39 // pred_check_branch
        %230 = sbr.rel (%p228) target = $region44
      $region43: #{convert1x_net_forward.1} parent=39 // pred_region
        %p231 = scmp.lt.s32.totalorder %s13, 1
        %s232 = scalar_select %p231, %s13, 1
        %s233 = smul.addr %s232, 32
        %s234 = smul.addr %s233, 8
        %s235 = scalar_lea.vmem %s0, %s234
      $region44: #{convert1x_net_forward.1} parent=39 // pred_fallthru
        _
    $region40: #{convert1x_net_forward.1} parent=5 // pred_fallthru
      _
    %p236 = scmp.le.s32.totalorder 1, %s13
    %p237 = scmp.lt.s32.totalorder %s13, 3
    %p238 = pnand %p236, %p237
    %p239 = pneg %p238
    // Predicated region
    $region45: #{convert1x_net_forward.1} parent=5 // pred_check
      _
    $region46: #{convert1x_net_forward.1} parent=5 // pred_check_branch
      %241 = sbr.rel (%p238) target = $region48
    $region47: #{convert1x_net_forward.1} parent=5 // pred_region
      %s242 = ssub.s32 %s13, 1
      %p243 = scmp.lt.s32.totalorder %s18, 1
      %s244 = scalar_select %p243, %s18, 1
      %s245 = smul.addr %s244, 32
      %s246 = smul.addr %s245, 8
      %s247 = scalar_lea.vmem %s0, %s246
      %p248 = pneg %p39
      %p249 = pneg %p36
      %p250 = pneg %p60
      %p251 = pneg %p57
      %p252 = pneg %p81
      %p253 = pneg %p78
      %p254 = pneg %p102
      %p255 = pneg %p99
      %p256 = pneg %p123
      %p257 = pneg %p120
      %p258 = pneg %p144
      %p259 = pneg %p141
      %p260 = pneg %p165
      %p261 = pneg %p162
      %p262 = pneg %p191
      %p263 = pneg %p188
      %p264 = scmp.lt.s32.totalorder %s18, 1
      %s265 = scalar_select %p264, %s18, 1
      %s266 = smul.addr %s265, 2
      %s267 = smul.addr %s266, 4
      %s268 = scalar_lea.vmem %s7, %s267
      %p269 = scmp.lt.s32.totalorder %s18, 1
      %s270 = scalar_select %p269, %s18, 1
      %s271 = smul.addr %s270, 32
      %s272 = smul.addr %s271, 8
      %s273 = scalar_lea.vmem %s0, %s272
      %p274 = scmp.lt.s32.totalorder %s18, 1
      %s275 = scalar_select %p274, %s18, 1
      %s276 = smul.addr %s275, 2
      %s277 = smul.addr %s276, 4
      %s278 = scalar_lea.vmem %s7, %s277
      %279 = vst [vmem:[#allocation2] sm:$0xff] 0.0
      %280 = vst [vmem:[#allocation2 + $0x8] sm:$0xff] 0.0
      %281 = vst [vmem:[#allocation2 + $0x10] sm:$0x3] 0.0
      %s282 = scalar_lea.vmem [#allocation2], 408
      %283 = vst [vmem:[%s282] sm:$0xff] 0.0
      %284 = vst [vmem:[%s282 + $0x8] sm:$0xff] 0.0
      %285 = vst [vmem:[%s282 + $0x10] sm:$0x3] 0.0
      %286 = vst [vmem:[#allocation2] sm:$0x1] 0.0
      %287 = vst [vmem:[#allocation2 + $0x18] sm:$0x1] 0.0
      %288 = vst [vmem:[#allocation2 + $0x30] sm:$0x1] 0.0
      %289 = vst [vmem:[#allocation2 + $0x48] sm:$0x1] 0.0
      %290 = vst [vmem:[#allocation2 + $0x60] sm:$0x1] 0.0
      %291 = vst [vmem:[#allocation2 + $0x78] sm:$0x1] 0.0
      %292 = vst [vmem:[#allocation2 + $0x90] sm:$0x1] 0.0
      %293 = vst [vmem:[#allocation2 + $0xa8] sm:$0x1] 0.0
      %294 = vst [vmem:[#allocation2 + $0xc0] sm:$0x1] 0.0
      %295 = vst [vmem:[#allocation2 + $0xd8] sm:$0x1] 0.0
      %296 = vst [vmem:[#allocation2 + $0xf0] sm:$0x1] 0.0
      %297 = vst [vmem:[#allocation2 + $0x108] sm:$0x1] 0.0
      %298 = vst [vmem:[#allocation2 + $0x120] sm:$0x1] 0.0
      %299 = vst [vmem:[#allocation2 + $0x138] sm:$0x1] 0.0
      %300 = vst [vmem:[#allocation2 + $0x150] sm:$0x1] 0.0
      %301 = vst [vmem:[#allocation2 + $0x168] sm:$0x1] 0.0
      %302 = vst [vmem:[#allocation2 + $0x180] sm:$0x1] 0.0
      %303 = vst [vmem:[#allocation2 + $0x198] sm:$0x1] 0.0
      %304 = vst [vmem:[#allocation2 + $0x11] sm:$0x1] 0.0
      %305 = vst [vmem:[#allocation2 + $0x29] sm:$0x1] 0.0
      %306 = vst [vmem:[#allocation2 + $0x41] sm:$0x1] 0.0
      %307 = vst [vmem:[#allocation2 + $0x59] sm:$0x1] 0.0
      %308 = vst [vmem:[#allocation2 + $0x71] sm:$0x1] 0.0
      %309 = vst [vmem:[#allocation2 + $0x89] sm:$0x1] 0.0
      %310 = vst [vmem:[#allocation2 + $0xa1] sm:$0x1] 0.0
      %311 = vst [vmem:[#allocation2 + $0xb9] sm:$0x1] 0.0
      %312 = vst [vmem:[#allocation2 + $0xd1] sm:$0x1] 0.0
      %313 = vst [vmem:[#allocation2 + $0xe9] sm:$0x1] 0.0
      %314 = vst [vmem:[#allocation2 + $0x101] sm:$0x1] 0.0
      %315 = vst [vmem:[#allocation2 + $0x119] sm:$0x1] 0.0
      %316 = vst [vmem:[#allocation2 + $0x131] sm:$0x1] 0.0
      %317 = vst [vmem:[#allocation2 + $0x149] sm:$0x1] 0.0
      %318 = vst [vmem:[#allocation2 + $0x161] sm:$0x1] 0.0
      %319 = vst [vmem:[#allocation2 + $0x179] sm:$0x1] 0.0
      %320 = vst [vmem:[#allocation2 + $0x191] sm:$0x1] 0.0
      %321 = vst [vmem:[#allocation2 + $0x1a9] sm:$0x1] 0.0
      %322 = vst [vmem:[#allocation3] sm:$0xff] 0.0
      %323 = vst [vmem:[#allocation3 + $0x8] sm:$0xff] 0.0
      %324 = vst [vmem:[#allocation3 + $0x10] sm:$0xff] 0.0
      %325 = vst [vmem:[#allocation3 + $0x18] sm:$0xff] 0.0
      %326 = vst [vmem:[#allocation3 + $0x20] sm:$0x3] 0.0
      %327 = vst [vmem:[#allocation3 + $0x28] sm:$0x3] 0.0
      %s328 = scalar_lea.vmem [#allocation3], 816
      %329 = vst [vmem:[%s328] sm:$0xff] 0.0
      %330 = vst [vmem:[%s328 + $0x8] sm:$0xff] 0.0
      %331 = vst [vmem:[%s328 + $0x10] sm:$0xff] 0.0
      %332 = vst [vmem:[%s328 + $0x18] sm:$0xff] 0.0
      %333 = vst [vmem:[%s328 + $0x20] sm:$0x3] 0.0
      %334 = vst [vmem:[%s328 + $0x28] sm:$0x3] 0.0
      %v335 = vlaneseq
      %vm336 = vcmp.ge.s32.totalorder %v335, 0
      %vm337 = vcmp.lt.s32.totalorder %v335, 256
      %vm338 = vmand %vm336, %vm337
      %339 = vst.msk [vmem:[#allocation3] ss:$8 sm:$0x3] %vm338, 0.0
      %340 = vst.msk [vmem:[#allocation3] ss:$8 sm:$0x0] %vm338, 0.0
      %s341 = scalar_lea.vmem [#allocation3], 48
      %342 = vst.msk [vmem:[%s341] ss:$8 sm:$0x3] %vm338, 0.0
      %343 = vst.msk [vmem:[%s341] ss:$8 sm:$0x0] %vm338, 0.0
      %s344 = scalar_lea.vmem [#allocation3], 96
      %345 = vst.msk [vmem:[%s344] ss:$8 sm:$0x3] %vm338, 0.0
      %346 = vst.msk [vmem:[%s344] ss:$8 sm:$0x0] %vm338, 0.0
      %s347 = scalar_lea.vmem [#allocation3], 144
      %348 = vst.msk [vmem:[%s347] ss:$8 sm:$0x3] %vm338, 0.0
      %349 = vst.msk [vmem:[%s347] ss:$8 sm:$0x0] %vm338, 0.0
      %s350 = scalar_lea.vmem [#allocation3], 192
      %351 = vst.msk [vmem:[%s350] ss:$8 sm:$0x3] %vm338, 0.0
      %352 = vst.msk [vmem:[%s350] ss:$8 sm:$0x0] %vm338, 0.0
      %s353 = scalar_lea.vmem [#allocation3], 240
      %354 = vst.msk [vmem:[%s353] ss:$8 sm:$0x3] %vm338, 0.0
      %355 = vst.msk [vmem:[%s353] ss:$8 sm:$0x0] %vm338, 0.0
      %s356 = scalar_lea.vmem [#allocation3], 288
      %357 = vst.msk [vmem:[%s356] ss:$8 sm:$0x3] %vm338, 0.0
      %358 = vst.msk [vmem:[%s356] ss:$8 sm:$0x0] %vm338, 0.0
      %s359 = scalar_lea.vmem [#allocation3], 336
      %360 = vst.msk [vmem:[%s359] ss:$8 sm:$0x3] %vm338, 0.0
      %361 = vst.msk [vmem:[%s359] ss:$8 sm:$0x0] %vm338, 0.0
      %s362 = scalar_lea.vmem [#allocation3], 384
      %363 = vst.msk [vmem:[%s362] ss:$8 sm:$0x3] %vm338, 0.0
      %364 = vst.msk [vmem:[%s362] ss:$8 sm:$0x0] %vm338, 0.0
      %s365 = scalar_lea.vmem [#allocation3], 432
      %366 = vst.msk [vmem:[%s365] ss:$8 sm:$0x3] %vm338, 0.0
      %367 = vst.msk [vmem:[%s365] ss:$8 sm:$0x0] %vm338, 0.0
      %s368 = scalar_lea.vmem [#allocation3], 480
      %369 = vst.msk [vmem:[%s368] ss:$8 sm:$0x3] %vm338, 0.0
      %370 = vst.msk [vmem:[%s368] ss:$8 sm:$0x0] %vm338, 0.0
      %s371 = scalar_lea.vmem [#allocation3], 528
      %372 = vst.msk [vmem:[%s371] ss:$8 sm:$0x3] %vm338, 0.0
      %373 = vst.msk [vmem:[%s371] ss:$8 sm:$0x0] %vm338, 0.0
      %s374 = scalar_lea.vmem [#allocation3], 576
      %375 = vst.msk [vmem:[%s374] ss:$8 sm:$0x3] %vm338, 0.0
      %376 = vst.msk [vmem:[%s374] ss:$8 sm:$0x0] %vm338, 0.0
      %s377 = scalar_lea.vmem [#allocation3], 624
      %378 = vst.msk [vmem:[%s377] ss:$8 sm:$0x3] %vm338, 0.0
      %379 = vst.msk [vmem:[%s377] ss:$8 sm:$0x0] %vm338, 0.0
      %s380 = scalar_lea.vmem [#allocation3], 672
      %381 = vst.msk [vmem:[%s380] ss:$8 sm:$0x3] %vm338, 0.0
      %382 = vst.msk [vmem:[%s380] ss:$8 sm:$0x0] %vm338, 0.0
      %s383 = scalar_lea.vmem [#allocation3], 720
      %384 = vst.msk [vmem:[%s383] ss:$8 sm:$0x3] %vm338, 0.0
      %385 = vst.msk [vmem:[%s383] ss:$8 sm:$0x0] %vm338, 0.0
      %s386 = scalar_lea.vmem [#allocation3], 768
      %387 = vst.msk [vmem:[%s386] ss:$8 sm:$0x3] %vm338, 0.0
      %388 = vst.msk [vmem:[%s386] ss:$8 sm:$0x0] %vm338, 0.0
      %s389 = scalar_lea.vmem [#allocation3], 816
      %390 = vst.msk [vmem:[%s389] ss:$8 sm:$0x3] %vm338, 0.0
      %391 = vst.msk [vmem:[%s389] ss:$8 sm:$0x0] %vm338, 0.0
      %s392 = scalar_lea.vmem [#allocation3], 33
      %393 = vst.msk [vmem:[%s392] ss:$8 sm:$0x3] %vm338, 0.0
      %394 = vst.msk [vmem:[%s392] ss:$8 sm:$0x0] %vm338, 0.0
      %s395 = scalar_lea.vmem [#allocation3], 81
      %396 = vst.msk [vmem:[%s395] ss:$8 sm:$0x3] %vm338, 0.0
      %397 = vst.msk [vmem:[%s395] ss:$8 sm:$0x0] %vm338, 0.0
      %s398 = scalar_lea.vmem [#allocation3], 129
      %399 = vst.msk [vmem:[%s398] ss:$8 sm:$0x3] %vm338, 0.0
      %400 = vst.msk [vmem:[%s398] ss:$8 sm:$0x0] %vm338, 0.0
      %s401 = scalar_lea.vmem [#allocation3], 177
      %402 = vst.msk [vmem:[%s401] ss:$8 sm:$0x3] %vm338, 0.0
      %403 = vst.msk [vmem:[%s401] ss:$8 sm:$0x0] %vm338, 0.0
      %s404 = scalar_lea.vmem [#allocation3], 225
      %405 = vst.msk [vmem:[%s404] ss:$8 sm:$0x3] %vm338, 0.0
      %406 = vst.msk [vmem:[%s404] ss:$8 sm:$0x0] %vm338, 0.0
      %s407 = scalar_lea.vmem [#allocation3], 273
      %408 = vst.msk [vmem:[%s407] ss:$8 sm:$0x3] %vm338, 0.0
      %409 = vst.msk [vmem:[%s407] ss:$8 sm:$0x0] %vm338, 0.0
      %s410 = scalar_lea.vmem [#allocation3], 321
      %411 = vst.msk [vmem:[%s410] ss:$8 sm:$0x3] %vm338, 0.0
      %412 = vst.msk [vmem:[%s410] ss:$8 sm:$0x0] %vm338, 0.0
      %s413 = scalar_lea.vmem [#allocation3], 369
      %414 = vst.msk [vmem:[%s413] ss:$8 sm:$0x3] %vm338, 0.0
      %415 = vst.msk [vmem:[%s413] ss:$8 sm:$0x0] %vm338, 0.0
      %s416 = scalar_lea.vmem [#allocation3], 417
      %417 = vst.msk [vmem:[%s416] ss:$8 sm:$0x3] %vm338, 0.0
      %418 = vst.msk [vmem:[%s416] ss:$8 sm:$0x0] %vm338, 0.0
      %s419 = scalar_lea.vmem [#allocation3], 465
      %420 = vst.msk [vmem:[%s419] ss:$8 sm:$0x3] %vm338, 0.0
      %421 = vst.msk [vmem:[%s419] ss:$8 sm:$0x0] %vm338, 0.0
      %s422 = scalar_lea.vmem [#allocation3], 513
      %423 = vst.msk [vmem:[%s422] ss:$8 sm:$0x3] %vm338, 0.0
      %424 = vst.msk [vmem:[%s422] ss:$8 sm:$0x0] %vm338, 0.0
      %s425 = scalar_lea.vmem [#allocation3], 561
      %426 = vst.msk [vmem:[%s425] ss:$8 sm:$0x3] %vm338, 0.0
      %427 = vst.msk [vmem:[%s425] ss:$8 sm:$0x0] %vm338, 0.0
      %s428 = scalar_lea.vmem [#allocation3], 609
      %429 = vst.msk [vmem:[%s428] ss:$8 sm:$0x3] %vm338, 0.0
      %430 = vst.msk [vmem:[%s428] ss:$8 sm:$0x0] %vm338, 0.0
      %s431 = scalar_lea.vmem [#allocation3], 657
      %432 = vst.msk [vmem:[%s431] ss:$8 sm:$0x3] %vm338, 0.0
      %433 = vst.msk [vmem:[%s431] ss:$8 sm:$0x0] %vm338, 0.0
      %s434 = scalar_lea.vmem [#allocation3], 705
      %435 = vst.msk [vmem:[%s434] ss:$8 sm:$0x3] %vm338, 0.0
      %436 = vst.msk [vmem:[%s434] ss:$8 sm:$0x0] %vm338, 0.0
      %s437 = scalar_lea.vmem [#allocation3], 753
      %438 = vst.msk [vmem:[%s437] ss:$8 sm:$0x3] %vm338, 0.0
      %439 = vst.msk [vmem:[%s437] ss:$8 sm:$0x0] %vm338, 0.0
      %s440 = scalar_lea.vmem [#allocation3], 801
      %441 = vst.msk [vmem:[%s440] ss:$8 sm:$0x3] %vm338, 0.0
      %442 = vst.msk [vmem:[%s440] ss:$8 sm:$0x0] %vm338, 0.0
      %s443 = scalar_lea.vmem [#allocation3], 849
      %444 = vst.msk [vmem:[%s443] ss:$8 sm:$0x3] %vm338, 0.0
      %445 = vst.msk [vmem:[%s443] ss:$8 sm:$0x0] %vm338, 0.0
      %v446 = vld [vmem:[%s273] sm:$0xff]
      %v447 = vld [vmem:[%s273 + $0x8] sm:$0xff]
      %v448 = vld [vmem:[%s273 + $0x10] sm:$0xff]
      %v449 = vld [vmem:[%s273 + $0x18] sm:$0xff]
      %v450 = vld [vmem:[%s273 + $0x20] sm:$0xff]
      %v451 = vld [vmem:[%s273 + $0x28] sm:$0xff]
      %v452 = vld [vmem:[%s273 + $0x30] sm:$0xff]
      %v453 = vld [vmem:[%s273 + $0x38] sm:$0xff]
      %v454 = vld [vmem:[%s273 + $0x40] sm:$0xff]
      %v455 = vld [vmem:[%s273 + $0x48] sm:$0xff]
      %v456 = vld [vmem:[%s273 + $0x50] sm:$0xff]
      %v457 = vld [vmem:[%s273 + $0x58] sm:$0xff]
      %v458 = vld [vmem:[%s273 + $0x60] sm:$0xff]
      %v459 = vld [vmem:[%s273 + $0x68] sm:$0xff]
      %v460 = vld [vmem:[%s273 + $0x70] sm:$0xff]
      %v461 = vld [vmem:[%s273 + $0x78] sm:$0xff]
      %v462 = vld [vmem:[%s273 + $0x80] sm:$0xff]
      %v463 = vld [vmem:[%s273 + $0x88] sm:$0xff]
      %v464 = vld [vmem:[%s273 + $0x90] sm:$0xff]
      %v465 = vld [vmem:[%s273 + $0x98] sm:$0xff]
      %v466 = vld [vmem:[%s273 + $0xa0] sm:$0xff]
      %v467 = vld [vmem:[%s273 + $0xa8] sm:$0xff]
      %v468 = vld [vmem:[%s273 + $0xb0] sm:$0xff]
      %v469 = vld [vmem:[%s273 + $0xb8] sm:$0xff]
      %v470 = vld [vmem:[%s273 + $0xc0] sm:$0xff]
      %v471 = vld [vmem:[%s273 + $0xc8] sm:$0xff]
      %v472 = vld [vmem:[%s273 + $0xd0] sm:$0xff]
      %v473 = vld [vmem:[%s273 + $0xd8] sm:$0xff]
      %v474 = vld [vmem:[%s273 + $0xe0] sm:$0xff]
      %v475 = vld [vmem:[%s273 + $0xe8] sm:$0xff]
      %v476 = vld [vmem:[%s273 + $0xf0] sm:$0xff]
      %v477 = vld [vmem:[%s273 + $0xf8] sm:$0xff]
      %v478 = vld [vmem:[%s1] sm:$0xff]
      %v479 = vld [vmem:[%s1 + $0x8] sm:$0xff]
      %v480 = vld [vmem:[%s1 + $0x10] sm:$0xff]
      %v481 = vld [vmem:[%s1 + $0x18] sm:$0xff]
      %v482 = vld [vmem:[%s1 + $0x20] sm:$0xf]
      %v483 = vld [vmem:[%s2] sm:$0x1]
      %v485 = vlaneseq
      %v486 = vshrl.u32 %v485, 7
      %v487 = vsub.s32 0, %v486
      %v488 = vrot.slane %v483, %v487
      %vm490 = vcmask 293888
      %v492 = vsel %vm490, %v446, 0
      %v495 = vsel %vm490, %v447, 0
      %v498 = vsel %vm490, %v448, 0
      %v501 = vsel %vm490, %v449, 0
      %v504 = vsel %vm490, %v450, 0
      %v507 = vsel %vm490, %v451, 0
      %v510 = vsel %vm490, %v452, 0
      %v513 = vsel %vm490, %v453, 0
      %v516 = vsel %vm490, %v454, 0
      %v519 = vsel %vm490, %v455, 0
      %v522 = vsel %vm490, %v456, 0
      %v525 = vsel %vm490, %v457, 0
      %v528 = vsel %vm490, %v458, 0
      %v531 = vsel %vm490, %v459, 0
      %v534 = vsel %vm490, %v460, 0
      %v537 = vsel %vm490, %v461, 0
      %v540 = vsel %vm490, %v462, 0
      %v543 = vsel %vm490, %v463, 0
      %v546 = vsel %vm490, %v464, 0
      %v549 = vsel %vm490, %v465, 0
      %v552 = vsel %vm490, %v466, 0
      %v555 = vsel %vm490, %v467, 0
      %v558 = vsel %vm490, %v468, 0
      %v561 = vsel %vm490, %v469, 0
      %v564 = vsel %vm490, %v470, 0
      %v567 = vsel %vm490, %v471, 0
      %v570 = vsel %vm490, %v472, 0
      %v573 = vsel %vm490, %v473, 0
      %v576 = vsel %vm490, %v474, 0
      %v579 = vsel %vm490, %v475, 0
      %v582 = vsel %vm490, %v476, 0
      %v585 = vsel %vm490, %v477, 0
      %vm587 = vcmask 1043456
      %v589 = vsel %vm587, %v482, 0
      %591 = vmatprep.subr.mxu0 0.0
      %592 = vmatpush1.msra.mxu0 0.0
      %593 = vmatprep.subr.mxu0 0.0
      %594 = vmatpush1.msra.mxu0 0.0
      %595 = vmatprep.subr.mxu0 0.0
      %596 = vmatpush1.msra.mxu0 0.0
      %597 = vmatprep.subr.mxu0 0.0
      %598 = vmatpush1.msra.mxu0 0.0
      %599 = vmatprep.subr.mxu0 0.0
      %600 = vmatpush1.msra.mxu0 0.0
      %601 = vmatprep.subr.mxu0 0.0
      %602 = vmatpush1.msra.mxu0 0.0
      %603 = vmatprep.subr.mxu0 0.0
      %604 = vmatpush1.msra.mxu0 0.0
      %605 = vmatprep.subr.mxu0 0.0
      %606 = vmatpush1.msra.mxu0 0.0
      %607 = vmatprep.subr.mxu0 0.0
      %608 = vmatpush1.msra.mxu0 0.0
      %609 = vmatprep.subr.mxu0 0.0
      %610 = vmatpush1.msra.mxu0 0.0
      %611 = vmatprep.subr.mxu0 0.0
      %612 = vmatpush1.msra.mxu0 0.0
      %613 = vmatprep.subr.mxu0 0.0
      %614 = vmatpush1.msra.mxu0 %v589
      %615 = vmatprep.subr.mxu0 0.0
      %616 = vmatpush1.msra.mxu0 %v481
      %617 = vmatprep.subr.mxu0 0.0
      %618 = vmatpush1.msra.mxu0 %v480
      %619 = vmatprep.subr.mxu0 0.0
      %620 = vmatpush1.msra.mxu0 %v479
      %621 = vmatprep.subr.mxu0 0.0
      %622 = vmatpush1.msra.mxu0 %v478
      %623 = vmatprep.subr.mxu0 0.0
      %624 = vmatpush2.msra.mxu0 0.0
      %625 = vmatprep.subr.mxu0 0.0
      %626 = vmatpush2.msra.mxu0 0.0
      %627 = vmatprep.subr.mxu0 0.0
      %628 = vmatpush2.msra.mxu0 0.0
      %629 = vmatprep.subr.mxu0 0.0
      %630 = vmatpush2.msra.mxu0 0.0
      %631 = vmatprep.subr.mxu0 0.0
      %632 = vmatpush2.msra.mxu0 0.0
      %633 = vmatprep.subr.mxu0 0.0
      %634 = vmatpush2.msra.mxu0 0.0
      %635 = vmatprep.subr.mxu0 0.0
      %636 = vmatpush2.msra.mxu0 0.0
      %637 = vmatprep.subr.mxu0 0.0
      %638 = vmatpush2.msra.mxu0 0.0
      %639 = vmatprep.subr.mxu0 0.0
      %640 = vmatpush2.msra.mxu0 0.0
      %641 = vmatprep.subr.mxu0 0.0
      %642 = vmatpush2.msra.mxu0 0.0
      %643 = vmatprep.subr.mxu0 0.0
      %644 = vmatpush2.msra.mxu0 0.0
      %645 = vmatprep.subr.mxu0 0.0
      %646 = vmatpush2.msra.mxu0 0.0
      %647 = vmatprep.subr.mxu0 0.0
      %648 = vmatpush2.msra.mxu0 0.0
      %649 = vmatprep.subr.mxu0 0.0
      %650 = vmatpush2.msra.mxu0 0.0
      %651 = vmatprep.subr.mxu0 0.0
      %652 = vmatpush2.msra.mxu0 0.0
      %653 = vmatprep.subr.mxu0 0.0
      %654 = vmatpush2.msra.mxu0 0.0
      %655 = vmatprep.mubr.f32.mxu0 0.0
      %656 = vmatmul.mubr.f32.gmra.mxu0 %v492
      %v657 = vpop.f32.mrf.mxu0
      %v658 = vadd.f32 %v488, %v657
      %v659 = vpop.f32.mrf.mxu0
      %660 = vmatprep.mubr.f32.mxu0 0.0
      %661 = vmatmul.mubr.f32.gmra.mxu0 %v495
      %v662 = vpop.f32.mrf.mxu0
      %v663 = vadd.f32 %v488, %v662
      %v664 = vpop.f32.mrf.mxu0
      %665 = vmatprep.mubr.f32.mxu0 0.0
      %666 = vmatmul.mubr.f32.gmra.mxu0 %v498
      %v667 = vpop.f32.mrf.mxu0
      %v668 = vadd.f32 %v488, %v667
      %v669 = vpop.f32.mrf.mxu0
      %670 = vmatprep.mubr.f32.mxu0 0.0
      %671 = vmatmul.mubr.f32.gmra.mxu0 %v501
      %v672 = vpop.f32.mrf.mxu0
      %v673 = vadd.f32 %v488, %v672
      %v674 = vpop.f32.mrf.mxu0
      %675 = vmatprep.mubr.f32.mxu0 0.0
      %676 = vmatmul.mubr.f32.gmra.mxu0 %v504
      %v677 = vpop.f32.mrf.mxu0
      %v678 = vadd.f32 %v488, %v677
      %v679 = vpop.f32.mrf.mxu0
      %680 = vmatprep.mubr.f32.mxu0 0.0
      %681 = vmatmul.mubr.f32.gmra.mxu0 %v507
      %v682 = vpop.f32.mrf.mxu0
      %v683 = vadd.f32 %v488, %v682
      %v684 = vpop.f32.mrf.mxu0
      %685 = vmatprep.mubr.f32.mxu0 0.0
      %686 = vmatmul.mubr.f32.gmra.mxu0 %v510
      %v687 = vpop.f32.mrf.mxu0
      %v688 = vadd.f32 %v488, %v687
      %v689 = vpop.f32.mrf.mxu0
      %690 = vmatprep.mubr.f32.mxu0 0.0
      %691 = vmatmul.mubr.f32.gmra.mxu0 %v513
      %v692 = vpop.f32.mrf.mxu0
      %v693 = vadd.f32 %v488, %v692
      %v694 = vpop.f32.mrf.mxu0
      %695 = vmatprep.mubr.f32.mxu0 0.0
      %696 = vmatmul.mubr.f32.gmra.mxu0 %v516
      %v697 = vpop.f32.mrf.mxu0
      %v698 = vadd.f32 %v488, %v697
      %v699 = vpop.f32.mrf.mxu0
      %700 = vmatprep.mubr.f32.mxu0 0.0
      %701 = vmatmul.mubr.f32.gmra.mxu0 %v519
      %v702 = vpop.f32.mrf.mxu0
      %v703 = vadd.f32 %v488, %v702
      %v704 = vpop.f32.mrf.mxu0
      %705 = vmatprep.mubr.f32.mxu0 0.0
      %706 = vmatmul.mubr.f32.gmra.mxu0 %v522
      %v707 = vpop.f32.mrf.mxu0
      %v708 = vadd.f32 %v488, %v707
      %v709 = vpop.f32.mrf.mxu0
      %710 = vmatprep.mubr.f32.mxu0 0.0
      %711 = vmatmul.mubr.f32.gmra.mxu0 %v525
      %v712 = vpop.f32.mrf.mxu0
      %v713 = vadd.f32 %v488, %v712
      %v714 = vpop.f32.mrf.mxu0
      %715 = vmatprep.mubr.f32.mxu0 0.0
      %716 = vmatmul.mubr.f32.gmra.mxu0 %v528
      %v717 = vpop.f32.mrf.mxu0
      %v718 = vadd.f32 %v488, %v717
      %v719 = vpop.f32.mrf.mxu0
      %720 = vmatprep.mubr.f32.mxu0 0.0
      %721 = vmatmul.mubr.f32.gmra.mxu0 %v531
      %v722 = vpop.f32.mrf.mxu0
      %v723 = vadd.f32 %v488, %v722
      %v724 = vpop.f32.mrf.mxu0
      %725 = vmatprep.mubr.f32.mxu0 0.0
      %726 = vmatmul.mubr.f32.gmra.mxu0 %v534
      %v727 = vpop.f32.mrf.mxu0
      %v728 = vadd.f32 %v488, %v727
      %v729 = vpop.f32.mrf.mxu0
      %730 = vmatprep.mubr.f32.mxu0 0.0
      %731 = vmatmul.mubr.f32.gmra.mxu0 %v537
      %v732 = vpop.f32.mrf.mxu0
      %v733 = vadd.f32 %v488, %v732
      %v734 = vpop.f32.mrf.mxu0
      %735 = vmatprep.mubr.f32.mxu0 0.0
      %736 = vmatmul.mubr.f32.gmra.mxu0 %v540
      %v737 = vpop.f32.mrf.mxu0
      %v738 = vadd.f32 %v488, %v737
      %v739 = vpop.f32.mrf.mxu0
      %740 = vmatprep.mubr.f32.mxu0 0.0
      %741 = vmatmul.mubr.f32.gmra.mxu0 %v543
      %v742 = vpop.f32.mrf.mxu0
      %v743 = vadd.f32 %v488, %v742
      %v744 = vpop.f32.mrf.mxu0
      %745 = vmatprep.mubr.f32.mxu0 0.0
      %746 = vmatmul.mubr.f32.gmra.mxu0 %v546
      %v747 = vpop.f32.mrf.mxu0
      %v748 = vadd.f32 %v488, %v747
      %v749 = vpop.f32.mrf.mxu0
      %750 = vmatprep.mubr.f32.mxu0 0.0
      %751 = vmatmul.mubr.f32.gmra.mxu0 %v549
      %v752 = vpop.f32.mrf.mxu0
      %v753 = vadd.f32 %v488, %v752
      %v754 = vpop.f32.mrf.mxu0
      %755 = vmatprep.mubr.f32.mxu0 0.0
      %756 = vmatmul.mubr.f32.gmra.mxu0 %v552
      %v757 = vpop.f32.mrf.mxu0
      %v758 = vadd.f32 %v488, %v757
      %v759 = vpop.f32.mrf.mxu0
      %760 = vmatprep.mubr.f32.mxu0 0.0
      %761 = vmatmul.mubr.f32.gmra.mxu0 %v555
      %v762 = vpop.f32.mrf.mxu0
      %v763 = vadd.f32 %v488, %v762
      %v764 = vpop.f32.mrf.mxu0
      %765 = vmatprep.mubr.f32.mxu0 0.0
      %766 = vmatmul.mubr.f32.gmra.mxu0 %v558
      %v767 = vpop.f32.mrf.mxu0
      %v768 = vadd.f32 %v488, %v767
      %v769 = vpop.f32.mrf.mxu0
      %770 = vmatprep.mubr.f32.mxu0 0.0
      %771 = vmatmul.mubr.f32.gmra.mxu0 %v561
      %v772 = vpop.f32.mrf.mxu0
      %v773 = vadd.f32 %v488, %v772
      %v774 = vpop.f32.mrf.mxu0
      %775 = vmatprep.mubr.f32.mxu0 0.0
      %776 = vmatmul.mubr.f32.gmra.mxu0 %v564
      %v777 = vpop.f32.mrf.mxu0
      %v778 = vadd.f32 %v488, %v777
      %v779 = vpop.f32.mrf.mxu0
      %780 = vmatprep.mubr.f32.mxu0 0.0
      %781 = vmatmul.mubr.f32.gmra.mxu0 %v567
      %v782 = vpop.f32.mrf.mxu0
      %v783 = vadd.f32 %v488, %v782
      %v784 = vpop.f32.mrf.mxu0
      %785 = vmatprep.mubr.f32.mxu0 0.0
      %786 = vmatmul.mubr.f32.gmra.mxu0 %v570
      %v787 = vpop.f32.mrf.mxu0
      %v788 = vadd.f32 %v488, %v787
      %v789 = vpop.f32.mrf.mxu0
      %790 = vmatprep.mubr.f32.mxu0 0.0
      %791 = vmatmul.mubr.f32.gmra.mxu0 %v573
      %v792 = vpop.f32.mrf.mxu0
      %v793 = vadd.f32 %v488, %v792
      %v794 = vpop.f32.mrf.mxu0
      %795 = vmatprep.mubr.f32.mxu0 0.0
      %796 = vmatmul.mubr.f32.gmra.mxu0 %v576
      %v797 = vpop.f32.mrf.mxu0
      %v798 = vadd.f32 %v488, %v797
      %v799 = vpop.f32.mrf.mxu0
      %800 = vmatprep.mubr.f32.mxu0 0.0
      %801 = vmatmul.mubr.f32.gmra.mxu0 %v579
      %v802 = vpop.f32.mrf.mxu0
      %v803 = vadd.f32 %v488, %v802
      %v804 = vpop.f32.mrf.mxu0
      %805 = vmatprep.mubr.f32.mxu0 0.0
      %806 = vmatmul.mubr.f32.gmra.mxu0 %v582
      %v807 = vpop.f32.mrf.mxu0
      %v808 = vadd.f32 %v488, %v807
      %v809 = vpop.f32.mrf.mxu0
      %810 = vmatprep.mubr.f32.mxu0 0.0
      %811 = vmatmul.mubr.f32.gmra.mxu0 %v585
      %v812 = vpop.f32.mrf.mxu0
      %v813 = vadd.f32 %v488, %v812
      %v814 = vpop.f32.mrf.mxu0
      %815 = vdwg.mxu0
      %v816 = vmax.f32 %v658, 0.0
      %v817 = vmax.f32 %v663, 0.0
      %v818 = vmax.f32 %v668, 0.0
      %v819 = vmax.f32 %v673, 0.0
      %v820 = vmax.f32 %v678, 0.0
      %v821 = vmax.f32 %v683, 0.0
      %v822 = vmax.f32 %v688, 0.0
      %v823 = vmax.f32 %v693, 0.0
      %v824 = vmax.f32 %v698, 0.0
      %v825 = vmax.f32 %v703, 0.0
      %v826 = vmax.f32 %v708, 0.0
      %v827 = vmax.f32 %v713, 0.0
      %v828 = vmax.f32 %v718, 0.0
      %v829 = vmax.f32 %v723, 0.0
      %v830 = vmax.f32 %v728, 0.0
      %v831 = vmax.f32 %v733, 0.0
      %v832 = vmax.f32 %v738, 0.0
      %v833 = vmax.f32 %v743, 0.0
      %v834 = vmax.f32 %v748, 0.0
      %v835 = vmax.f32 %v753, 0.0
      %v836 = vmax.f32 %v758, 0.0
      %v837 = vmax.f32 %v763, 0.0
      %v838 = vmax.f32 %v768, 0.0
      %v839 = vmax.f32 %v773, 0.0
      %v840 = vmax.f32 %v778, 0.0
      %v841 = vmax.f32 %v783, 0.0
      %v842 = vmax.f32 %v788, 0.0
      %v843 = vmax.f32 %v793, 0.0
      %v844 = vmax.f32 %v798, 0.0
      %v845 = vmax.f32 %v803, 0.0
      %v846 = vmax.f32 %v808, 0.0
      %v847 = vmax.f32 %v813, 0.0
      %s848 = scalar_lea.vmem [#allocation2], 24
      %849 = vst [vmem:[%s848 + $0x1] sm:$0xff] %v816
      %850 = vst [vmem:[%s848 + $0x9] sm:$0xff] %v817
      %851 = vst [vmem:[%s848 + $0x19] sm:$0xff] %v818
      %852 = vst [vmem:[%s848 + $0x21] sm:$0xff] %v819
      %853 = vst [vmem:[%s848 + $0x31] sm:$0xff] %v820
      %854 = vst [vmem:[%s848 + $0x39] sm:$0xff] %v821
      %855 = vst [vmem:[%s848 + $0x49] sm:$0xff] %v822
      %856 = vst [vmem:[%s848 + $0x51] sm:$0xff] %v823
      %857 = vst [vmem:[%s848 + $0x61] sm:$0xff] %v824
      %858 = vst [vmem:[%s848 + $0x69] sm:$0xff] %v825
      %859 = vst [vmem:[%s848 + $0x79] sm:$0xff] %v826
      %860 = vst [vmem:[%s848 + $0x81] sm:$0xff] %v827
      %861 = vst [vmem:[%s848 + $0x91] sm:$0xff] %v828
      %862 = vst [vmem:[%s848 + $0x99] sm:$0xff] %v829
      %863 = vst [vmem:[%s848 + $0xa9] sm:$0xff] %v830
      %864 = vst [vmem:[%s848 + $0xb1] sm:$0xff] %v831
      %865 = vst [vmem:[%s848 + $0xc1] sm:$0xff] %v832
      %866 = vst [vmem:[%s848 + $0xc9] sm:$0xff] %v833
      %867 = vst [vmem:[%s848 + $0xd9] sm:$0xff] %v834
      %868 = vst [vmem:[%s848 + $0xe1] sm:$0xff] %v835
      %869 = vst [vmem:[%s848 + $0xf1] sm:$0xff] %v836
      %870 = vst [vmem:[%s848 + $0xf9] sm:$0xff] %v837
      %871 = vst [vmem:[%s848 + $0x109] sm:$0xff] %v838
      %872 = vst [vmem:[%s848 + $0x111] sm:$0xff] %v839
      %873 = vst [vmem:[%s848 + $0x121] sm:$0xff] %v840
      %874 = vst [vmem:[%s848 + $0x129] sm:$0xff] %v841
      %875 = vst [vmem:[%s848 + $0x139] sm:$0xff] %v842
      %876 = vst [vmem:[%s848 + $0x141] sm:$0xff] %v843
      %877 = vst [vmem:[%s848 + $0x151] sm:$0xff] %v844
      %878 = vst [vmem:[%s848 + $0x159] sm:$0xff] %v845
      %879 = vst [vmem:[%s848 + $0x169] sm:$0xff] %v846
      %880 = vst [vmem:[%s848 + $0x171] sm:$0xff] %v847
      %v881 = vld [vmem:[#allocation2] sm:$0xff]
      %v882 = vld [vmem:[#allocation2 + $0x8] sm:$0xff]
      %v883 = vld [vmem:[#allocation2 + $0x18] sm:$0xff]
      %v884 = vld [vmem:[#allocation2 + $0x20] sm:$0xff]
      %v885 = vld [vmem:[#allocation2 + $0x30] sm:$0xff]
      %v886 = vld [vmem:[#allocation2 + $0x38] sm:$0xff]
      %v887 = vld [vmem:[#allocation2 + $0x48] sm:$0xff]
      %v888 = vld [vmem:[#allocation2 + $0x50] sm:$0xff]
      %v889 = vld [vmem:[#allocation2 + $0x60] sm:$0xff]
      %v890 = vld [vmem:[#allocation2 + $0x68] sm:$0xff]
      %v891 = vld [vmem:[#allocation2 + $0x78] sm:$0xff]
      %v892 = vld [vmem:[#allocation2 + $0x80] sm:$0xff]
      %v893 = vld [vmem:[#allocation2 + $0x90] sm:$0xff]
      %v894 = vld [vmem:[#allocation2 + $0x98] sm:$0xff]
      %v895 = vld [vmem:[#allocation2 + $0xa8] sm:$0xff]
      %v896 = vld [vmem:[#allocation2 + $0xb0] sm:$0xff]
      %v897 = vld [vmem:[#allocation2 + $0xc0] sm:$0xff]
      %v898 = vld [vmem:[#allocation2 + $0xc8] sm:$0xff]
      %v899 = vld [vmem:[#allocation2 + $0xd8] sm:$0xff]
      %v900 = vld [vmem:[#allocation2 + $0xe0] sm:$0xff]
      %v901 = vld [vmem:[#allocation2 + $0xf0] sm:$0xff]
      %v902 = vld [vmem:[#allocation2 + $0xf8] sm:$0xff]
      %v903 = vld [vmem:[#allocation2 + $0x108] sm:$0xff]
      %v904 = vld [vmem:[#allocation2 + $0x110] sm:$0xff]
      %v905 = vld [vmem:[#allocation2 + $0x120] sm:$0xff]
      %v906 = vld [vmem:[#allocation2 + $0x128] sm:$0xff]
      %v907 = vld [vmem:[#allocation2 + $0x138] sm:$0xff]
      %v908 = vld [vmem:[#allocation2 + $0x140] sm:$0xff]
      %v909 = vld [vmem:[#allocation2 + $0x150] sm:$0xff]
      %v910 = vld [vmem:[#allocation2 + $0x158] sm:$0xff]
      %v911 = vld [vmem:[#allocation2 + $0x168] sm:$0xff]
      %v912 = vld [vmem:[#allocation2 + $0x170] sm:$0xff]
      %v913 = vld [vmem:[#allocation2 + $0x1] sm:$0xff]
      %v914 = vld [vmem:[#allocation2 + $0x9] sm:$0xff]
      %v915 = vld [vmem:[#allocation2 + $0x19] sm:$0xff]
      %v916 = vld [vmem:[#allocation2 + $0x21] sm:$0xff]
      %v917 = vld [vmem:[#allocation2 + $0x31] sm:$0xff]
      %v918 = vld [vmem:[#allocation2 + $0x39] sm:$0xff]
      %v919 = vld [vmem:[#allocation2 + $0x49] sm:$0xff]
      %v920 = vld [vmem:[#allocation2 + $0x51] sm:$0xff]
      %v921 = vld [vmem:[#allocation2 + $0x61] sm:$0xff]
      %v922 = vld [vmem:[#allocation2 + $0x69] sm:$0xff]
      %v923 = vld [vmem:[#allocation2 + $0x79] sm:$0xff]
      %v924 = vld [vmem:[#allocation2 + $0x81] sm:$0xff]
      %v925 = vld [vmem:[#allocation2 + $0x91] sm:$0xff]
      %v926 = vld [vmem:[#allocation2 + $0x99] sm:$0xff]
      %v927 = vld [vmem:[#allocation2 + $0xa9] sm:$0xff]
      %v928 = vld [vmem:[#allocation2 + $0xb1] sm:$0xff]
      %v929 = vld [vmem:[#allocation2 + $0xc1] sm:$0xff]
      %v930 = vld [vmem:[#allocation2 + $0xc9] sm:$0xff]
      %v931 = vld [vmem:[#allocation2 + $0xd9] sm:$0xff]
      %v932 = vld [vmem:[#allocation2 + $0xe1] sm:$0xff]
      %v933 = vld [vmem:[#allocation2 + $0xf1] sm:$0xff]
      %v934 = vld [vmem:[#allocation2 + $0xf9] sm:$0xff]
      %v935 = vld [vmem:[#allocation2 + $0x109] sm:$0xff]
      %v936 = vld [vmem:[#allocation2 + $0x111] sm:$0xff]
      %v937 = vld [vmem:[#allocation2 + $0x121] sm:$0xff]
      %v938 = vld [vmem:[#allocation2 + $0x129] sm:$0xff]
      %v939 = vld [vmem:[#allocation2 + $0x139] sm:$0xff]
      %v940 = vld [vmem:[#allocation2 + $0x141] sm:$0xff]
      %v941 = vld [vmem:[#allocation2 + $0x151] sm:$0xff]
      %v942 = vld [vmem:[#allocation2 + $0x159] sm:$0xff]
      %v943 = vld [vmem:[#allocation2 + $0x169] sm:$0xff]
      %v944 = vld [vmem:[#allocation2 + $0x171] sm:$0xff]
      %v945 = vld [vmem:[#allocation2 + $0x2] sm:$0xff]
      %v946 = vld [vmem:[#allocation2 + $0xa] sm:$0xff]
      %v947 = vld [vmem:[#allocation2 + $0x1a] sm:$0xff]
      %v948 = vld [vmem:[#allocation2 + $0x22] sm:$0xff]
      %v949 = vld [vmem:[#allocation2 + $0x32] sm:$0xff]
      %v950 = vld [vmem:[#allocation2 + $0x3a] sm:$0xff]
      %v951 = vld [vmem:[#allocation2 + $0x4a] sm:$0xff]
      %v952 = vld [vmem:[#allocation2 + $0x52] sm:$0xff]
      %v953 = vld [vmem:[#allocation2 + $0x62] sm:$0xff]
      %v954 = vld [vmem:[#allocation2 + $0x6a] sm:$0xff]
      %v955 = vld [vmem:[#allocation2 + $0x7a] sm:$0xff]
      %v956 = vld [vmem:[#allocation2 + $0x82] sm:$0xff]
      %v957 = vld [vmem:[#allocation2 + $0x92] sm:$0xff]
      %v958 = vld [vmem:[#allocation2 + $0x9a] sm:$0xff]
      %v959 = vld [vmem:[#allocation2 + $0xaa] sm:$0xff]
      %v960 = vld [vmem:[#allocation2 + $0xb2] sm:$0xff]
      %v961 = vld [vmem:[#allocation2 + $0xc2] sm:$0xff]
      %v962 = vld [vmem:[#allocation2 + $0xca] sm:$0xff]
      %v963 = vld [vmem:[#allocation2 + $0xda] sm:$0xff]
      %v964 = vld [vmem:[#allocation2 + $0xe2] sm:$0xff]
      %v965 = vld [vmem:[#allocation2 + $0xf2] sm:$0xff]
      %v966 = vld [vmem:[#allocation2 + $0xfa] sm:$0xff]
      %v967 = vld [vmem:[#allocation2 + $0x10a] sm:$0xff]
      %v968 = vld [vmem:[#allocation2 + $0x112] sm:$0xff]
      %v969 = vld [vmem:[#allocation2 + $0x122] sm:$0xff]
      %v970 = vld [vmem:[#allocation2 + $0x12a] sm:$0xff]
      %v971 = vld [vmem:[#allocation2 + $0x13a] sm:$0xff]
      %v972 = vld [vmem:[#allocation2 + $0x142] sm:$0xff]
      %v973 = vld [vmem:[#allocation2 + $0x152] sm:$0xff]
      %v974 = vld [vmem:[#allocation2 + $0x15a] sm:$0xff]
      %v975 = vld [vmem:[#allocation2 + $0x16a] sm:$0xff]
      %v976 = vld [vmem:[#allocation2 + $0x172] sm:$0xff]
      %v977 = vld [vmem:[%s848] sm:$0xff]
      %v978 = vld [vmem:[%s848 + $0x8] sm:$0xff]
      %v979 = vld [vmem:[%s848 + $0x18] sm:$0xff]
      %v980 = vld [vmem:[%s848 + $0x20] sm:$0xff]
      %v981 = vld [vmem:[%s848 + $0x30] sm:$0xff]
      %v982 = vld [vmem:[%s848 + $0x38] sm:$0xff]
      %v983 = vld [vmem:[%s848 + $0x48] sm:$0xff]
      %v984 = vld [vmem:[%s848 + $0x50] sm:$0xff]
      %v985 = vld [vmem:[%s848 + $0x60] sm:$0xff]
      %v986 = vld [vmem:[%s848 + $0x68] sm:$0xff]
      %v987 = vld [vmem:[%s848 + $0x78] sm:$0xff]
      %v988 = vld [vmem:[%s848 + $0x80] sm:$0xff]
      %v989 = vld [vmem:[%s848 + $0x90] sm:$0xff]
      %v990 = vld [vmem:[%s848 + $0x98] sm:$0xff]
      %v991 = vld [vmem:[%s848 + $0xa8] sm:$0xff]
      %v992 = vld [vmem:[%s848 + $0xb0] sm:$0xff]
      %v993 = vld [vmem:[%s848 + $0xc0] sm:$0xff]
      %v994 = vld [vmem:[%s848 + $0xc8] sm:$0xff]
      %v995 = vld [vmem:[%s848 + $0xd8] sm:$0xff]
      %v996 = vld [vmem:[%s848 + $0xe0] sm:$0xff]
      %v997 = vld [vmem:[%s848 + $0xf0] sm:$0xff]
      %v998 = vld [vmem:[%s848 + $0xf8] sm:$0xff]
      %v999 = vld [vmem:[%s848 + $0x108] sm:$0xff]
      %v1000 = vld [vmem:[%s848 + $0x110] sm:$0xff]
      %v1001 = vld [vmem:[%s848 + $0x120] sm:$0xff]
      %v1002 = vld [vmem:[%s848 + $0x128] sm:$0xff]
      %v1003 = vld [vmem:[%s848 + $0x138] sm:$0xff]
      %v1004 = vld [vmem:[%s848 + $0x140] sm:$0xff]
      %v1005 = vld [vmem:[%s848 + $0x150] sm:$0xff]
      %v1006 = vld [vmem:[%s848 + $0x158] sm:$0xff]
      %v1007 = vld [vmem:[%s848 + $0x168] sm:$0xff]
      %v1008 = vld [vmem:[%s848 + $0x170] sm:$0xff]
      %v1009 = vld [vmem:[%s848 + $0x1] sm:$0xff]
      %v1010 = vld [vmem:[%s848 + $0x9] sm:$0xff]
      %v1011 = vld [vmem:[%s848 + $0x19] sm:$0xff]
      %v1012 = vld [vmem:[%s848 + $0x21] sm:$0xff]
      %v1013 = vld [vmem:[%s848 + $0x31] sm:$0xff]
      %v1014 = vld [vmem:[%s848 + $0x39] sm:$0xff]
      %v1015 = vld [vmem:[%s848 + $0x49] sm:$0xff]
      %v1016 = vld [vmem:[%s848 + $0x51] sm:$0xff]
      %v1017 = vld [vmem:[%s848 + $0x61] sm:$0xff]
      %v1018 = vld [vmem:[%s848 + $0x69] sm:$0xff]
      %v1019 = vld [vmem:[%s848 + $0x79] sm:$0xff]
      %v1020 = vld [vmem:[%s848 + $0x81] sm:$0xff]
      %v1021 = vld [vmem:[%s848 + $0x91] sm:$0xff]
      %v1022 = vld [vmem:[%s848 + $0x99] sm:$0xff]
      %v1023 = vld [vmem:[%s848 + $0xa9] sm:$0xff]
      %v1024 = vld [vmem:[%s848 + $0xb1] sm:$0xff]
      %v1025 = vld [vmem:[%s848 + $0xc1] sm:$0xff]
      %v1026 = vld [vmem:[%s848 + $0xc9] sm:$0xff]
      %v1027 = vld [vmem:[%s848 + $0xd9] sm:$0xff]
      %v1028 = vld [vmem:[%s848 + $0xe1] sm:$0xff]
      %v1029 = vld [vmem:[%s848 + $0xf1] sm:$0xff]
      %v1030 = vld [vmem:[%s848 + $0xf9] sm:$0xff]
      %v1031 = vld [vmem:[%s848 + $0x109] sm:$0xff]
      %v1032 = vld [vmem:[%s848 + $0x111] sm:$0xff]
      %v1033 = vld [vmem:[%s848 + $0x121] sm:$0xff]
      %v1034 = vld [vmem:[%s848 + $0x129] sm:$0xff]
      %v1035 = vld [vmem:[%s848 + $0x139] sm:$0xff]
      %v1036 = vld [vmem:[%s848 + $0x141] sm:$0xff]
      %v1037 = vld [vmem:[%s848 + $0x151] sm:$0xff]
      %v1038 = vld [vmem:[%s848 + $0x159] sm:$0xff]
      %v1039 = vld [vmem:[%s848 + $0x169] sm:$0xff]
      %v1040 = vld [vmem:[%s848 + $0x171] sm:$0xff]
      %v1041 = vld [vmem:[%s848 + $0x2] sm:$0xff]
      %v1042 = vld [vmem:[%s848 + $0xa] sm:$0xff]
      %v1043 = vld [vmem:[%s848 + $0x1a] sm:$0xff]
      %v1044 = vld [vmem:[%s848 + $0x22] sm:$0xff]
      %v1045 = vld [vmem:[%s848 + $0x32] sm:$0xff]
      %v1046 = vld [vmem:[%s848 + $0x3a] sm:$0xff]
      %v1047 = vld [vmem:[%s848 + $0x4a] sm:$0xff]
      %v1048 = vld [vmem:[%s848 + $0x52] sm:$0xff]
      %v1049 = vld [vmem:[%s848 + $0x62] sm:$0xff]
      %v1050 = vld [vmem:[%s848 + $0x6a] sm:$0xff]
      %v1051 = vld [vmem:[%s848 + $0x7a] sm:$0xff]
      %v1052 = vld [vmem:[%s848 + $0x82] sm:$0xff]
      %v1053 = vld [vmem:[%s848 + $0x92] sm:$0xff]
      %v1054 = vld [vmem:[%s848 + $0x9a] sm:$0xff]
      %v1055 = vld [vmem:[%s848 + $0xaa] sm:$0xff]
      %v1056 = vld [vmem:[%s848 + $0xb2] sm:$0xff]
      %v1057 = vld [vmem:[%s848 + $0xc2] sm:$0xff]
      %v1058 = vld [vmem:[%s848 + $0xca] sm:$0xff]
      %v1059 = vld [vmem:[%s848 + $0xda] sm:$0xff]
      %v1060 = vld [vmem:[%s848 + $0xe2] sm:$0xff]
      %v1061 = vld [vmem:[%s848 + $0xf2] sm:$0xff]
      %v1062 = vld [vmem:[%s848 + $0xfa] sm:$0xff]
      %v1063 = vld [vmem:[%s848 + $0x10a] sm:$0xff]
      %v1064 = vld [vmem:[%s848 + $0x112] sm:$0xff]
      %v1065 = vld [vmem:[%s848 + $0x122] sm:$0xff]
      %v1066 = vld [vmem:[%s848 + $0x12a] sm:$0xff]
      %v1067 = vld [vmem:[%s848 + $0x13a] sm:$0xff]
      %v1068 = vld [vmem:[%s848 + $0x142] sm:$0xff]
      %v1069 = vld [vmem:[%s848 + $0x152] sm:$0xff]
      %v1070 = vld [vmem:[%s848 + $0x15a] sm:$0xff]
      %v1071 = vld [vmem:[%s848 + $0x16a] sm:$0xff]
      %v1072 = vld [vmem:[%s848 + $0x172] sm:$0xff]
      %s1073 = scalar_lea.vmem [#allocation2], 48
      %v1074 = vld [vmem:[%s1073] sm:$0xff]
      %v1075 = vld [vmem:[%s1073 + $0x8] sm:$0xff]
      %v1076 = vld [vmem:[%s1073 + $0x18] sm:$0xff]
      %v1077 = vld [vmem:[%s1073 + $0x20] sm:$0xff]
      %v1078 = vld [vmem:[%s1073 + $0x30] sm:$0xff]
      %v1079 = vld [vmem:[%s1073 + $0x38] sm:$0xff]
      %v1080 = vld [vmem:[%s1073 + $0x48] sm:$0xff]
      %v1081 = vld [vmem:[%s1073 + $0x50] sm:$0xff]
      %v1082 = vld [vmem:[%s1073 + $0x60] sm:$0xff]
      %v1083 = vld [vmem:[%s1073 + $0x68] sm:$0xff]
      %v1084 = vld [vmem:[%s1073 + $0x78] sm:$0xff]
      %v1085 = vld [vmem:[%s1073 + $0x80] sm:$0xff]
      %v1086 = vld [vmem:[%s1073 + $0x90] sm:$0xff]
      %v1087 = vld [vmem:[%s1073 + $0x98] sm:$0xff]
      %v1088 = vld [vmem:[%s1073 + $0xa8] sm:$0xff]
      %v1089 = vld [vmem:[%s1073 + $0xb0] sm:$0xff]
      %v1090 = vld [vmem:[%s1073 + $0xc0] sm:$0xff]
      %v1091 = vld [vmem:[%s1073 + $0xc8] sm:$0xff]
      %v1092 = vld [vmem:[%s1073 + $0xd8] sm:$0xff]
      %v1093 = vld [vmem:[%s1073 + $0xe0] sm:$0xff]
      %v1094 = vld [vmem:[%s1073 + $0xf0] sm:$0xff]
      %v1095 = vld [vmem:[%s1073 + $0xf8] sm:$0xff]
      %v1096 = vld [vmem:[%s1073 + $0x108] sm:$0xff]
      %v1097 = vld [vmem:[%s1073 + $0x110] sm:$0xff]
      %v1098 = vld [vmem:[%s1073 + $0x120] sm:$0xff]
      %v1099 = vld [vmem:[%s1073 + $0x128] sm:$0xff]
      %v1100 = vld [vmem:[%s1073 + $0x138] sm:$0xff]
      %v1101 = vld [vmem:[%s1073 + $0x140] sm:$0xff]
      %v1102 = vld [vmem:[%s1073 + $0x150] sm:$0xff]
      %v1103 = vld [vmem:[%s1073 + $0x158] sm:$0xff]
      %v1104 = vld [vmem:[%s1073 + $0x168] sm:$0xff]
      %v1105 = vld [vmem:[%s1073 + $0x170] sm:$0xff]
      %v1106 = vld [vmem:[%s1073 + $0x1] sm:$0xff]
      %v1107 = vld [vmem:[%s1073 + $0x9] sm:$0xff]
      %v1108 = vld [vmem:[%s1073 + $0x19] sm:$0xff]
      %v1109 = vld [vmem:[%s1073 + $0x21] sm:$0xff]
      %v1110 = vld [vmem:[%s1073 + $0x31] sm:$0xff]
      %v1111 = vld [vmem:[%s1073 + $0x39] sm:$0xff]
      %v1112 = vld [vmem:[%s1073 + $0x49] sm:$0xff]
      %v1113 = vld [vmem:[%s1073 + $0x51] sm:$0xff]
      %v1114 = vld [vmem:[%s1073 + $0x61] sm:$0xff]
      %v1115 = vld [vmem:[%s1073 + $0x69] sm:$0xff]
      %v1116 = vld [vmem:[%s1073 + $0x79] sm:$0xff]
      %v1117 = vld [vmem:[%s1073 + $0x81] sm:$0xff]
      %v1118 = vld [vmem:[%s1073 + $0x91] sm:$0xff]
      %v1119 = vld [vmem:[%s1073 + $0x99] sm:$0xff]
      %v1120 = vld [vmem:[%s1073 + $0xa9] sm:$0xff]
      %v1121 = vld [vmem:[%s1073 + $0xb1] sm:$0xff]
      %v1122 = vld [vmem:[%s1073 + $0xc1] sm:$0xff]
      %v1123 = vld [vmem:[%s1073 + $0xc9] sm:$0xff]
      %v1124 = vld [vmem:[%s1073 + $0xd9] sm:$0xff]
      %v1125 = vld [vmem:[%s1073 + $0xe1] sm:$0xff]
      %v1126 = vld [vmem:[%s1073 + $0xf1] sm:$0xff]
      %v1127 = vld [vmem:[%s1073 + $0xf9] sm:$0xff]
      %v1128 = vld [vmem:[%s1073 + $0x109] sm:$0xff]
      %v1129 = vld [vmem:[%s1073 + $0x111] sm:$0xff]
      %v1130 = vld [vmem:[%s1073 + $0x121] sm:$0xff]
      %v1131 = vld [vmem:[%s1073 + $0x129] sm:$0xff]
      %v1132 = vld [vmem:[%s1073 + $0x139] sm:$0xff]
      %v1133 = vld [vmem:[%s1073 + $0x141] sm:$0xff]
      %v1134 = vld [vmem:[%s1073 + $0x151] sm:$0xff]
      %v1135 = vld [vmem:[%s1073 + $0x159] sm:$0xff]
      %v1136 = vld [vmem:[%s1073 + $0x169] sm:$0xff]
      %v1137 = vld [vmem:[%s1073 + $0x171] sm:$0xff]
      %v1138 = vld [vmem:[%s1073 + $0x2] sm:$0xff]
      %v1139 = vld [vmem:[%s1073 + $0xa] sm:$0xff]
      %v1140 = vld [vmem:[%s1073 + $0x1a] sm:$0xff]
      %v1141 = vld [vmem:[%s1073 + $0x22] sm:$0xff]
      %v1142 = vld [vmem:[%s1073 + $0x32] sm:$0xff]
      %v1143 = vld [vmem:[%s1073 + $0x3a] sm:$0xff]
      %v1144 = vld [vmem:[%s1073 + $0x4a] sm:$0xff]
      %v1145 = vld [vmem:[%s1073 + $0x52] sm:$0xff]
      %v1146 = vld [vmem:[%s1073 + $0x62] sm:$0xff]
      %v1147 = vld [vmem:[%s1073 + $0x6a] sm:$0xff]
      %v1148 = vld [vmem:[%s1073 + $0x7a] sm:$0xff]
      %v1149 = vld [vmem:[%s1073 + $0x82] sm:$0xff]
      %v1150 = vld [vmem:[%s1073 + $0x92] sm:$0xff]
      %v1151 = vld [vmem:[%s1073 + $0x9a] sm:$0xff]
      %v1152 = vld [vmem:[%s1073 + $0xaa] sm:$0xff]
      %v1153 = vld [vmem:[%s1073 + $0xb2] sm:$0xff]
      %v1154 = vld [vmem:[%s1073 + $0xc2] sm:$0xff]
      %v1155 = vld [vmem:[%s1073 + $0xca] sm:$0xff]
      %v1156 = vld [vmem:[%s1073 + $0xda] sm:$0xff]
      %v1157 = vld [vmem:[%s1073 + $0xe2] sm:$0xff]
      %v1158 = vld [vmem:[%s1073 + $0xf2] sm:$0xff]
      %v1159 = vld [vmem:[%s1073 + $0xfa] sm:$0xff]
      %v1160 = vld [vmem:[%s1073 + $0x10a] sm:$0xff]
      %v1161 = vld [vmem:[%s1073 + $0x112] sm:$0xff]
      %v1162 = vld [vmem:[%s1073 + $0x122] sm:$0xff]
      %v1163 = vld [vmem:[%s1073 + $0x12a] sm:$0xff]
      %v1164 = vld [vmem:[%s1073 + $0x13a] sm:$0xff]
      %v1165 = vld [vmem:[%s1073 + $0x142] sm:$0xff]
      %v1166 = vld [vmem:[%s1073 + $0x152] sm:$0xff]
      %v1167 = vld [vmem:[%s1073 + $0x15a] sm:$0xff]
      %v1168 = vld [vmem:[%s1073 + $0x16a] sm:$0xff]
      %v1169 = vld [vmem:[%s1073 + $0x172] sm:$0xff]
      %v1170 = vld [vmem:[%s3] sm:$0xff]
      %v1171 = vld [vmem:[%s3 + $0x8] sm:$0xff]
      %v1172 = vld [vmem:[%s3 + $0x10] sm:$0xff]
      %v1173 = vld [vmem:[%s3 + $0x18] sm:$0xff]
      %v1174 = vld [vmem:[%s3 + $0x20] sm:$0xff]
      %v1175 = vld [vmem:[%s3 + $0x28] sm:$0xff]
      %v1176 = vld [vmem:[%s3 + $0x30] sm:$0xff]
      %v1177 = vld [vmem:[%s3 + $0x38] sm:$0xff]
      %v1178 = vld [vmem:[%s3 + $0x40] sm:$0xff]
      %v1179 = vld [vmem:[%s3 + $0x48] sm:$0xff]
      %v1180 = vld [vmem:[%s3 + $0x50] sm:$0xff]
      %v1181 = vld [vmem:[%s3 + $0x58] sm:$0xff]
      %v1182 = vld [vmem:[%s3 + $0x60] sm:$0xff]
      %v1183 = vld [vmem:[%s3 + $0x68] sm:$0xff]
      %v1184 = vld [vmem:[%s3 + $0x70] sm:$0xff]
      %v1185 = vld [vmem:[%s3 + $0x78] sm:$0xff]
      %v1186 = vld [vmem:[%s3 + $0x80] sm:$0xff]
      %v1187 = vld [vmem:[%s3 + $0x88] sm:$0xff]
      %v1188 = vld [vmem:[%s3 + $0x90] sm:$0xff]
      %v1189 = vld [vmem:[%s3 + $0x98] sm:$0xff]
      %v1190 = vld [vmem:[%s3 + $0xa0] sm:$0xff]
      %v1191 = vld [vmem:[%s3 + $0xa8] sm:$0xff]
      %v1192 = vld [vmem:[%s3 + $0xb0] sm:$0xff]
      %v1193 = vld [vmem:[%s3 + $0xb8] sm:$0xff]
      %v1194 = vld [vmem:[%s3 + $0xc0] sm:$0xff]
      %v1195 = vld [vmem:[%s3 + $0xc8] sm:$0xff]
      %v1196 = vld [vmem:[%s3 + $0xd0] sm:$0xff]
      %v1197 = vld [vmem:[%s3 + $0xd8] sm:$0xff]
      %v1198 = vld [vmem:[%s3 + $0xe0] sm:$0xff]
      %v1199 = vld [vmem:[%s3 + $0xe8] sm:$0xff]
      %v1200 = vld [vmem:[%s3 + $0xf0] sm:$0xff]
      %v1201 = vld [vmem:[%s3 + $0xf8] sm:$0xff]
      %v1202 = vld [vmem:[%s3 + $0x100] sm:$0xff]
      %v1203 = vld [vmem:[%s3 + $0x108] sm:$0xff]
      %v1204 = vld [vmem:[%s3 + $0x110] sm:$0xff]
      %v1205 = vld [vmem:[%s3 + $0x118] sm:$0xff]
      %v1206 = vld [vmem:[%s3 + $0x120] sm:$0xff]
      %v1207 = vld [vmem:[%s3 + $0x128] sm:$0xff]
      %v1208 = vld [vmem:[%s3 + $0x130] sm:$0xff]
      %v1209 = vld [vmem:[%s3 + $0x138] sm:$0xff]
      %v1210 = vld [vmem:[%s3 + $0x140] sm:$0xff]
      %v1211 = vld [vmem:[%s3 + $0x148] sm:$0xff]
      %v1212 = vld [vmem:[%s3 + $0x150] sm:$0xff]
      %v1213 = vld [vmem:[%s3 + $0x158] sm:$0xff]
      %v1214 = vld [vmem:[%s3 + $0x160] sm:$0xff]
      %v1215 = vld [vmem:[%s3 + $0x168] sm:$0xff]
      %v1216 = vld [vmem:[%s3 + $0x170] sm:$0xff]
      %v1217 = vld [vmem:[%s3 + $0x178] sm:$0xff]
      %v1218 = vld [vmem:[%s3 + $0x180] sm:$0xff]
      %v1219 = vld [vmem:[%s3 + $0x188] sm:$0xff]
      %v1220 = vld [vmem:[%s3 + $0x190] sm:$0xff]
      %v1221 = vld [vmem:[%s3 + $0x198] sm:$0xff]
      %v1222 = vld [vmem:[%s3 + $0x1a0] sm:$0xff]
      %v1223 = vld [vmem:[%s3 + $0x1a8] sm:$0xff]
      %v1224 = vld [vmem:[%s3 + $0x1b0] sm:$0xff]
      %v1225 = vld [vmem:[%s3 + $0x1b8] sm:$0xff]
      %v1226 = vld [vmem:[%s3 + $0x1c0] sm:$0xff]
      %v1227 = vld [vmem:[%s3 + $0x1c8] sm:$0xff]
      %v1228 = vld [vmem:[%s3 + $0x1d0] sm:$0xff]
      %v1229 = vld [vmem:[%s3 + $0x1d8] sm:$0xff]
      %v1230 = vld [vmem:[%s3 + $0x1e0] sm:$0xff]
      %v1231 = vld [vmem:[%s3 + $0x1e8] sm:$0xff]
      %v1232 = vld [vmem:[%s3 + $0x1f0] sm:$0xff]
      %v1233 = vld [vmem:[%s3 + $0x1f8] sm:$0xff]
      %v1234 = vld [vmem:[%s3 + $0x200] sm:$0xff]
      %v1235 = vld [vmem:[%s3 + $0x208] sm:$0xff]
      %v1236 = vld [vmem:[%s3 + $0x210] sm:$0xff]
      %v1237 = vld [vmem:[%s3 + $0x218] sm:$0xff]
      %v1238 = vld [vmem:[%s3 + $0x220] sm:$0xff]
      %v1239 = vld [vmem:[%s3 + $0x228] sm:$0xff]
      %v1240 = vld [vmem:[%s3 + $0x230] sm:$0xff]
      %v1241 = vld [vmem:[%s3 + $0x238] sm:$0xff]
      %v1242 = vld [vmem:[%s3 + $0x240] sm:$0xff]
      %v1243 = vld [vmem:[%s3 + $0x248] sm:$0xff]
      %v1244 = vld [vmem:[%s3 + $0x250] sm:$0xff]
      %v1245 = vld [vmem:[%s3 + $0x258] sm:$0xff]
      %v1246 = vld [vmem:[%s3 + $0x260] sm:$0xff]
      %v1247 = vld [vmem:[%s3 + $0x268] sm:$0xff]
      %v1248 = vld [vmem:[%s3 + $0x270] sm:$0xff]
      %v1249 = vld [vmem:[%s3 + $0x278] sm:$0xff]
      %v1250 = vld [vmem:[%s3 + $0x280] sm:$0xff]
      %v1251 = vld [vmem:[%s3 + $0x288] sm:$0xff]
      %v1252 = vld [vmem:[%s3 + $0x290] sm:$0xff]
      %v1253 = vld [vmem:[%s3 + $0x298] sm:$0xff]
      %v1254 = vld [vmem:[%s3 + $0x2a0] sm:$0xff]
      %v1255 = vld [vmem:[%s3 + $0x2a8] sm:$0xff]
      %v1256 = vld [vmem:[%s3 + $0x2b0] sm:$0xff]
      %v1257 = vld [vmem:[%s3 + $0x2b8] sm:$0xff]
      %v1258 = vld [vmem:[%s3 + $0x2c0] sm:$0xff]
      %v1259 = vld [vmem:[%s3 + $0x2c8] sm:$0xff]
      %v1260 = vld [vmem:[%s3 + $0x2d0] sm:$0xff]
      %v1261 = vld [vmem:[%s3 + $0x2d8] sm:$0xff]
      %v1262 = vld [vmem:[%s3 + $0x2e0] sm:$0xff]
      %v1263 = vld [vmem:[%s3 + $0x2e8] sm:$0xff]
      %v1264 = vld [vmem:[%s3 + $0x2f0] sm:$0xff]
      %v1265 = vld [vmem:[%s3 + $0x2f8] sm:$0xff]
      %v1266 = vld [vmem:[%s3 + $0x300] sm:$0xff]
      %v1267 = vld [vmem:[%s3 + $0x308] sm:$0xff]
      %v1268 = vld [vmem:[%s3 + $0x310] sm:$0xff]
      %v1269 = vld [vmem:[%s3 + $0x318] sm:$0xff]
      %v1270 = vld [vmem:[%s3 + $0x320] sm:$0xff]
      %v1271 = vld [vmem:[%s3 + $0x328] sm:$0xff]
      %v1272 = vld [vmem:[%s3 + $0x330] sm:$0xff]
      %v1273 = vld [vmem:[%s3 + $0x338] sm:$0xff]
      %v1274 = vld [vmem:[%s3 + $0x340] sm:$0xff]
      %v1275 = vld [vmem:[%s3 + $0x348] sm:$0xff]
      %v1276 = vld [vmem:[%s3 + $0x350] sm:$0xff]
      %v1277 = vld [vmem:[%s3 + $0x358] sm:$0xff]
      %v1278 = vld [vmem:[%s3 + $0x360] sm:$0xff]
      %v1279 = vld [vmem:[%s3 + $0x368] sm:$0xff]
      %v1280 = vld [vmem:[%s3 + $0x370] sm:$0xff]
      %v1281 = vld [vmem:[%s3 + $0x378] sm:$0xff]
      %v1282 = vld [vmem:[%s3 + $0x380] sm:$0xff]
      %v1283 = vld [vmem:[%s3 + $0x388] sm:$0xff]
      %v1284 = vld [vmem:[%s3 + $0x390] sm:$0xff]
      %v1285 = vld [vmem:[%s3 + $0x398] sm:$0xff]
      %v1286 = vld [vmem:[%s3 + $0x3a0] sm:$0xff]
      %v1287 = vld [vmem:[%s3 + $0x3a8] sm:$0xff]
      %v1288 = vld [vmem:[%s3 + $0x3b0] sm:$0xff]
      %v1289 = vld [vmem:[%s3 + $0x3b8] sm:$0xff]
      %v1290 = vld [vmem:[%s3 + $0x3c0] sm:$0xff]
      %v1291 = vld [vmem:[%s3 + $0x3c8] sm:$0xff]
      %v1292 = vld [vmem:[%s3 + $0x3d0] sm:$0xff]
      %v1293 = vld [vmem:[%s3 + $0x3d8] sm:$0xff]
      %v1294 = vld [vmem:[%s3 + $0x3e0] sm:$0xff]
      %v1295 = vld [vmem:[%s3 + $0x3e8] sm:$0xff]
      %v1296 = vld [vmem:[%s3 + $0x3f0] sm:$0xff]
      %v1297 = vld [vmem:[%s3 + $0x3f8] sm:$0xff]
      %v1298 = vld [vmem:[%s3 + $0x400] sm:$0xff]
      %v1299 = vld [vmem:[%s3 + $0x408] sm:$0xff]
      %v1300 = vld [vmem:[%s3 + $0x410] sm:$0xff]
      %v1301 = vld [vmem:[%s3 + $0x418] sm:$0xff]
      %v1302 = vld [vmem:[%s3 + $0x420] sm:$0xff]
      %v1303 = vld [vmem:[%s3 + $0x428] sm:$0xff]
      %v1304 = vld [vmem:[%s3 + $0x430] sm:$0xff]
      %v1305 = vld [vmem:[%s3 + $0x438] sm:$0xff]
      %v1306 = vld [vmem:[%s3 + $0x440] sm:$0xff]
      %v1307 = vld [vmem:[%s3 + $0x448] sm:$0xff]
      %v1308 = vld [vmem:[%s3 + $0x450] sm:$0xff]
      %v1309 = vld [vmem:[%s3 + $0x458] sm:$0xff]
      %v1310 = vld [vmem:[%s3 + $0x460] sm:$0xff]
      %v1311 = vld [vmem:[%s3 + $0x468] sm:$0xff]
      %v1312 = vld [vmem:[%s3 + $0x470] sm:$0xff]
      %v1313 = vld [vmem:[%s3 + $0x478] sm:$0xff]
      %v1314 = vld [vmem:[%s3 + $0x480] sm:$0xff]
      %v1315 = vld [vmem:[%s3 + $0x488] sm:$0xff]
      %v1316 = vld [vmem:[%s3 + $0x490] sm:$0xff]
      %v1317 = vld [vmem:[%s3 + $0x498] sm:$0xff]
      %v1318 = vld [vmem:[%s3 + $0x4a0] sm:$0xff]
      %v1319 = vld [vmem:[%s3 + $0x4a8] sm:$0xff]
      %v1320 = vld [vmem:[%s3 + $0x4b0] sm:$0xff]
      %v1321 = vld [vmem:[%s3 + $0x4b8] sm:$0xff]
      %v1322 = vld [vmem:[%s3 + $0x4c0] sm:$0xff]
      %v1323 = vld [vmem:[%s3 + $0x4c8] sm:$0xff]
      %v1324 = vld [vmem:[%s3 + $0x4d0] sm:$0xff]
      %v1325 = vld [vmem:[%s3 + $0x4d8] sm:$0xff]
      %v1326 = vld [vmem:[%s3 + $0x4e0] sm:$0xff]
      %v1327 = vld [vmem:[%s3 + $0x4e8] sm:$0xff]
      %v1328 = vld [vmem:[%s3 + $0x4f0] sm:$0xff]
      %v1329 = vld [vmem:[%s3 + $0x4f8] sm:$0xff]
      %v1330 = vld [vmem:[%s3 + $0x500] sm:$0xff]
      %v1331 = vld [vmem:[%s3 + $0x508] sm:$0xff]
      %v1332 = vld [vmem:[%s3 + $0x510] sm:$0xff]
      %v1333 = vld [vmem:[%s3 + $0x518] sm:$0xff]
      %v1334 = vld [vmem:[%s3 + $0x520] sm:$0xff]
      %v1335 = vld [vmem:[%s3 + $0x528] sm:$0xff]
      %v1336 = vld [vmem:[%s3 + $0x530] sm:$0xff]
      %v1337 = vld [vmem:[%s3 + $0x538] sm:$0xff]
      %v1338 = vld [vmem:[%s3 + $0x540] sm:$0xff]
      %v1339 = vld [vmem:[%s3 + $0x548] sm:$0xff]
      %v1340 = vld [vmem:[%s3 + $0x550] sm:$0xff]
      %v1341 = vld [vmem:[%s3 + $0x558] sm:$0xff]
      %v1342 = vld [vmem:[%s3 + $0x560] sm:$0xff]
      %v1343 = vld [vmem:[%s3 + $0x568] sm:$0xff]
      %v1344 = vld [vmem:[%s3 + $0x570] sm:$0xff]
      %v1345 = vld [vmem:[%s3 + $0x578] sm:$0xff]
      %v1346 = vld [vmem:[%s3 + $0x580] sm:$0xff]
      %v1347 = vld [vmem:[%s3 + $0x588] sm:$0xff]
      %v1348 = vld [vmem:[%s3 + $0x590] sm:$0xff]
      %v1349 = vld [vmem:[%s3 + $0x598] sm:$0xff]
      %v1350 = vld [vmem:[%s3 + $0x5a0] sm:$0xff]
      %v1351 = vld [vmem:[%s3 + $0x5a8] sm:$0xff]
      %v1352 = vld [vmem:[%s3 + $0x5b0] sm:$0xff]
      %v1353 = vld [vmem:[%s3 + $0x5b8] sm:$0xff]
      %v1354 = vld [vmem:[%s3 + $0x5c0] sm:$0xff]
      %v1355 = vld [vmem:[%s3 + $0x5c8] sm:$0xff]
      %v1356 = vld [vmem:[%s3 + $0x5d0] sm:$0xff]
      %v1357 = vld [vmem:[%s3 + $0x5d8] sm:$0xff]
      %v1358 = vld [vmem:[%s3 + $0x5e0] sm:$0xff]
      %v1359 = vld [vmem:[%s3 + $0x5e8] sm:$0xff]
      %v1360 = vld [vmem:[%s3 + $0x5f0] sm:$0xff]
      %v1361 = vld [vmem:[%s3 + $0x5f8] sm:$0xff]
      %v1362 = vld [vmem:[%s3 + $0x600] sm:$0xff]
      %v1363 = vld [vmem:[%s3 + $0x608] sm:$0xff]
      %v1364 = vld [vmem:[%s3 + $0x610] sm:$0xff]
      %v1365 = vld [vmem:[%s3 + $0x618] sm:$0xff]
      %v1366 = vld [vmem:[%s3 + $0x620] sm:$0xff]
      %v1367 = vld [vmem:[%s3 + $0x628] sm:$0xff]
      %v1368 = vld [vmem:[%s3 + $0x630] sm:$0xff]
      %v1369 = vld [vmem:[%s3 + $0x638] sm:$0xff]
      %v1370 = vld [vmem:[%s3 + $0x640] sm:$0xff]
      %v1371 = vld [vmem:[%s3 + $0x648] sm:$0xff]
      %v1372 = vld [vmem:[%s3 + $0x650] sm:$0xff]
      %v1373 = vld [vmem:[%s3 + $0x658] sm:$0xff]
      %v1374 = vld [vmem:[%s3 + $0x660] sm:$0xff]
      %v1375 = vld [vmem:[%s3 + $0x668] sm:$0xff]
      %v1376 = vld [vmem:[%s3 + $0x670] sm:$0xff]
      %v1377 = vld [vmem:[%s3 + $0x678] sm:$0xff]
      %v1378 = vld [vmem:[%s3 + $0x680] sm:$0xff]
      %v1379 = vld [vmem:[%s3 + $0x688] sm:$0xff]
      %v1380 = vld [vmem:[%s3 + $0x690] sm:$0xff]
      %v1381 = vld [vmem:[%s3 + $0x698] sm:$0xff]
      %v1382 = vld [vmem:[%s3 + $0x6a0] sm:$0xff]
      %v1383 = vld [vmem:[%s3 + $0x6a8] sm:$0xff]
      %v1384 = vld [vmem:[%s3 + $0x6b0] sm:$0xff]
      %v1385 = vld [vmem:[%s3 + $0x6b8] sm:$0xff]
      %v1386 = vld [vmem:[%s3 + $0x6c0] sm:$0xff]
      %v1387 = vld [vmem:[%s3 + $0x6c8] sm:$0xff]
      %v1388 = vld [vmem:[%s3 + $0x6d0] sm:$0xff]
      %v1389 = vld [vmem:[%s3 + $0x6d8] sm:$0xff]
      %v1390 = vld [vmem:[%s3 + $0x6e0] sm:$0xff]
      %v1391 = vld [vmem:[%s3 + $0x6e8] sm:$0xff]
      %v1392 = vld [vmem:[%s3 + $0x6f0] sm:$0xff]
      %v1393 = vld [vmem:[%s3 + $0x6f8] sm:$0xff]
      %v1394 = vld [vmem:[%s3 + $0x700] sm:$0xff]
      %v1395 = vld [vmem:[%s3 + $0x708] sm:$0xff]
      %v1396 = vld [vmem:[%s3 + $0x710] sm:$0xff]
      %v1397 = vld [vmem:[%s3 + $0x718] sm:$0xff]
      %v1398 = vld [vmem:[%s3 + $0x720] sm:$0xff]
      %v1399 = vld [vmem:[%s3 + $0x728] sm:$0xff]
      %v1400 = vld [vmem:[%s3 + $0x730] sm:$0xff]
      %v1401 = vld [vmem:[%s3 + $0x738] sm:$0xff]
      %v1402 = vld [vmem:[%s3 + $0x740] sm:$0xff]
      %v1403 = vld [vmem:[%s3 + $0x748] sm:$0xff]
      %v1404 = vld [vmem:[%s3 + $0x750] sm:$0xff]
      %v1405 = vld [vmem:[%s3 + $0x758] sm:$0xff]
      %v1406 = vld [vmem:[%s3 + $0x760] sm:$0xff]
      %v1407 = vld [vmem:[%s3 + $0x768] sm:$0xff]
      %v1408 = vld [vmem:[%s3 + $0x770] sm:$0xff]
      %v1409 = vld [vmem:[%s3 + $0x778] sm:$0xff]
      %v1410 = vld [vmem:[%s3 + $0x780] sm:$0xff]
      %v1411 = vld [vmem:[%s3 + $0x788] sm:$0xff]
      %v1412 = vld [vmem:[%s3 + $0x790] sm:$0xff]
      %v1413 = vld [vmem:[%s3 + $0x798] sm:$0xff]
      %v1414 = vld [vmem:[%s3 + $0x7a0] sm:$0xff]
      %v1415 = vld [vmem:[%s3 + $0x7a8] sm:$0xff]
      %v1416 = vld [vmem:[%s3 + $0x7b0] sm:$0xff]
      %v1417 = vld [vmem:[%s3 + $0x7b8] sm:$0xff]
      %v1418 = vld [vmem:[%s3 + $0x7c0] sm:$0xff]
      %v1419 = vld [vmem:[%s3 + $0x7c8] sm:$0xff]
      %v1420 = vld [vmem:[%s3 + $0x7d0] sm:$0xff]
      %v1421 = vld [vmem:[%s3 + $0x7d8] sm:$0xff]
      %v1422 = vld [vmem:[%s3 + $0x7e0] sm:$0xff]
      %v1423 = vld [vmem:[%s3 + $0x7e8] sm:$0xff]
      %v1424 = vld [vmem:[%s3 + $0x7f0] sm:$0xff]
      %v1425 = vld [vmem:[%s3 + $0x7f8] sm:$0xff]
      %v1426 = vld [vmem:[%s3 + $0x800] sm:$0xff]
      %v1427 = vld [vmem:[%s3 + $0x808] sm:$0xff]
      %v1428 = vld [vmem:[%s3 + $0x810] sm:$0xff]
      %v1429 = vld [vmem:[%s3 + $0x818] sm:$0xff]
      %v1430 = vld [vmem:[%s3 + $0x820] sm:$0xff]
      %v1431 = vld [vmem:[%s3 + $0x828] sm:$0xff]
      %v1432 = vld [vmem:[%s3 + $0x830] sm:$0xff]
      %v1433 = vld [vmem:[%s3 + $0x838] sm:$0xff]
      %v1434 = vld [vmem:[%s3 + $0x840] sm:$0xff]
      %v1435 = vld [vmem:[%s3 + $0x848] sm:$0xff]
      %v1436 = vld [vmem:[%s3 + $0x850] sm:$0xff]
      %v1437 = vld [vmem:[%s3 + $0x858] sm:$0xff]
      %v1438 = vld [vmem:[%s3 + $0x860] sm:$0xff]
      %v1439 = vld [vmem:[%s3 + $0x868] sm:$0xff]
      %v1440 = vld [vmem:[%s3 + $0x870] sm:$0xff]
      %v1441 = vld [vmem:[%s3 + $0x878] sm:$0xff]
      %v1442 = vld [vmem:[%s3 + $0x880] sm:$0xff]
      %v1443 = vld [vmem:[%s3 + $0x888] sm:$0xff]
      %v1444 = vld [vmem:[%s3 + $0x890] sm:$0xff]
      %v1445 = vld [vmem:[%s3 + $0x898] sm:$0xff]
      %v1446 = vld [vmem:[%s3 + $0x8a0] sm:$0xff]
      %v1447 = vld [vmem:[%s3 + $0x8a8] sm:$0xff]
      %v1448 = vld [vmem:[%s3 + $0x8b0] sm:$0xff]
      %v1449 = vld [vmem:[%s3 + $0x8b8] sm:$0xff]
      %v1450 = vld [vmem:[%s3 + $0x8c0] sm:$0xff]
      %v1451 = vld [vmem:[%s3 + $0x8c8] sm:$0xff]
      %v1452 = vld [vmem:[%s3 + $0x8d0] sm:$0xff]
      %v1453 = vld [vmem:[%s3 + $0x8d8] sm:$0xff]
      %v1454 = vld [vmem:[%s3 + $0x8e0] sm:$0xff]
      %v1455 = vld [vmem:[%s3 + $0x8e8] sm:$0xff]
      %v1456 = vld [vmem:[%s3 + $0x8f0] sm:$0xff]
      %v1457 = vld [vmem:[%s3 + $0x8f8] sm:$0xff]
      %v1458 = vld [vmem:[%s4] sm:$0x3]
      %v1460 = vlaneseq
      %v1461 = vshrl.u32 %v1460, 7
      %v1462 = vsub.s32 0, %v1461
      %v1463 = vrot.slane %v1458, %v1462
      %v1464 = vlaneseq
      %v1465 = vshrl.u32 %v1464, 7
      %v1466 = vsub.s32 1, %v1465
      %v1467 = vrot.slane %v1458, %v1466
      %1470 = vmatprep.subr.mxu0 %v1201
      %1471 = vmatpush1.msra.mxu0 %v1200
      %1472 = vmatprep.subr.mxu0 %v1199
      %1473 = vmatpush1.msra.mxu0 %v1198
      %1474 = vmatprep.subr.mxu0 %v1197
      %1475 = vmatpush1.msra.mxu0 %v1196
      %1476 = vmatprep.subr.mxu0 %v1195
      %1477 = vmatpush1.msra.mxu0 %v1194
      %1478 = vmatprep.subr.mxu0 %v1193
      %1479 = vmatpush1.msra.mxu0 %v1192
      %1480 = vmatprep.subr.mxu0 %v1191
      %1481 = vmatpush1.msra.mxu0 %v1190
      %1482 = vmatprep.subr.mxu0 %v1189
      %1483 = vmatpush1.msra.mxu0 %v1188
      %1484 = vmatprep.subr.mxu0 %v1187
      %1485 = vmatpush1.msra.mxu0 %v1186
      %1486 = vmatprep.subr.mxu0 %v1185
      %1487 = vmatpush1.msra.mxu0 %v1184
      %1488 = vmatprep.subr.mxu0 %v1183
      %1489 = vmatpush1.msra.mxu0 %v1182
      %1490 = vmatprep.subr.mxu0 %v1181
      %1491 = vmatpush1.msra.mxu0 %v1180
      %1492 = vmatprep.subr.mxu0 %v1179
      %1493 = vmatpush1.msra.mxu0 %v1178
      %1494 = vmatprep.subr.mxu0 %v1177
      %1495 = vmatpush1.msra.mxu0 %v1176
      %1496 = vmatprep.subr.mxu0 %v1175
      %1497 = vmatpush1.msra.mxu0 %v1174
      %1498 = vmatprep.subr.mxu0 %v1173
      %1499 = vmatpush1.msra.mxu0 %v1172
      %1500 = vmatprep.subr.mxu0 %v1171
      %1501 = vmatpush1.msra.mxu0 %v1170
      %1502 = vmatprep.subr.mxu0 %v1233
      %1503 = vmatpush2.msra.mxu0 %v1232
      %1504 = vmatprep.subr.mxu0 %v1231
      %1505 = vmatpush2.msra.mxu0 %v1230
      %1506 = vmatprep.subr.mxu0 %v1229
      %1507 = vmatpush2.msra.mxu0 %v1228
      %1508 = vmatprep.subr.mxu0 %v1227
      %1509 = vmatpush2.msra.mxu0 %v1226
      %1510 = vmatprep.subr.mxu0 %v1225
      %1511 = vmatpush2.msra.mxu0 %v1224
      %1512 = vmatprep.subr.mxu0 %v1223
      %1513 = vmatpush2.msra.mxu0 %v1222
      %1514 = vmatprep.subr.mxu0 %v1221
      %1515 = vmatpush2.msra.mxu0 %v1220
      %1516 = vmatprep.subr.mxu0 %v1219
      %1517 = vmatpush2.msra.mxu0 %v1218
      %1518 = vmatprep.subr.mxu0 %v1217
      %1519 = vmatpush2.msra.mxu0 %v1216
      %1520 = vmatprep.subr.mxu0 %v1215
      %1521 = vmatpush2.msra.mxu0 %v1214
      %1522 = vmatprep.subr.mxu0 %v1213
      %1523 = vmatpush2.msra.mxu0 %v1212
      %1524 = vmatprep.subr.mxu0 %v1211
      %1525 = vmatpush2.msra.mxu0 %v1210
      %1526 = vmatprep.subr.mxu0 %v1209
      %1527 = vmatpush2.msra.mxu0 %v1208
      %1528 = vmatprep.subr.mxu0 %v1207
      %1529 = vmatpush2.msra.mxu0 %v1206
      %1530 = vmatprep.subr.mxu0 %v1205
      %1531 = vmatpush2.msra.mxu0 %v1204
      %1532 = vmatprep.subr.mxu0 %v1203
      %1533 = vmatpush2.msra.mxu0 %v1202
      %1534 = vmatprep.mubr.f32.mxu0 %v913
      %1535 = vmatmul.mubr.f32.gmra.mxu0 %v881
      %v1536 = vpop.f32.mrf.mxu0
      %v1537 = vadd.f32 %v1463, %v1536
      %v1538 = vpop.f32.mrf.mxu0
      %v1539 = vadd.f32 %v1467, %v1538
      %1540 = vmatprep.mubr.f32.mxu0 %v914
      %1541 = vmatmul.mubr.f32.gmra.mxu0 %v882
      %v1542 = vpop.f32.mrf.mxu0
      %v1543 = vadd.f32 %v1463, %v1542
      %v1544 = vpop.f32.mrf.mxu0
      %v1545 = vadd.f32 %v1467, %v1544
      %1546 = vmatprep.mubr.f32.mxu0 %v915
      %1547 = vmatmul.mubr.f32.gmra.mxu0 %v883
      %v1548 = vpop.f32.mrf.mxu0
      %v1549 = vadd.f32 %v1463, %v1548
      %v1550 = vpop.f32.mrf.mxu0
      %v1551 = vadd.f32 %v1467, %v1550
      %1552 = vmatprep.mubr.f32.mxu0 %v916
      %1553 = vmatmul.mubr.f32.gmra.mxu0 %v884
      %v1554 = vpop.f32.mrf.mxu0
      %v1555 = vadd.f32 %v1463, %v1554
      %v1556 = vpop.f32.mrf.mxu0
      %v1557 = vadd.f32 %v1467, %v1556
      %1558 = vmatprep.mubr.f32.mxu0 %v917
      %1559 = vmatmul.mubr.f32.gmra.mxu0 %v885
      %v1560 = vpop.f32.mrf.mxu0
      %v1561 = vadd.f32 %v1463, %v1560
      %v1562 = vpop.f32.mrf.mxu0
      %v1563 = vadd.f32 %v1467, %v1562
      %1564 = vmatprep.mubr.f32.mxu0 %v918
      %1565 = vmatmul.mubr.f32.gmra.mxu0 %v886
      %v1566 = vpop.f32.mrf.mxu0
      %v1567 = vadd.f32 %v1463, %v1566
      %v1568 = vpop.f32.mrf.mxu0
      %v1569 = vadd.f32 %v1467, %v1568
      %1570 = vmatprep.mubr.f32.mxu0 %v919
      %1571 = vmatmul.mubr.f32.gmra.mxu0 %v887
      %v1572 = vpop.f32.mrf.mxu0
      %v1573 = vadd.f32 %v1463, %v1572
      %v1574 = vpop.f32.mrf.mxu0
      %v1575 = vadd.f32 %v1467, %v1574
      %1576 = vmatprep.mubr.f32.mxu0 %v920
      %1577 = vmatmul.mubr.f32.gmra.mxu0 %v888
      %v1578 = vpop.f32.mrf.mxu0
      %v1579 = vadd.f32 %v1463, %v1578
      %v1580 = vpop.f32.mrf.mxu0
      %v1581 = vadd.f32 %v1467, %v1580
      %1582 = vmatprep.mubr.f32.mxu0 %v921
      %1583 = vmatmul.mubr.f32.gmra.mxu0 %v889
      %v1584 = vpop.f32.mrf.mxu0
      %v1585 = vadd.f32 %v1463, %v1584
      %v1586 = vpop.f32.mrf.mxu0
      %v1587 = vadd.f32 %v1467, %v1586
      %1588 = vmatprep.mubr.f32.mxu0 %v922
      %1589 = vmatmul.mubr.f32.gmra.mxu0 %v890
      %v1590 = vpop.f32.mrf.mxu0
      %v1591 = vadd.f32 %v1463, %v1590
      %v1592 = vpop.f32.mrf.mxu0
      %v1593 = vadd.f32 %v1467, %v1592
      %1594 = vmatprep.mubr.f32.mxu0 %v923
      %1595 = vmatmul.mubr.f32.gmra.mxu0 %v891
      %v1596 = vpop.f32.mrf.mxu0
      %v1597 = vadd.f32 %v1463, %v1596
      %v1598 = vpop.f32.mrf.mxu0
      %v1599 = vadd.f32 %v1467, %v1598
      %1600 = vmatprep.mubr.f32.mxu0 %v924
      %1601 = vmatmul.mubr.f32.gmra.mxu0 %v892
      %v1602 = vpop.f32.mrf.mxu0
      %v1603 = vadd.f32 %v1463, %v1602
      %v1604 = vpop.f32.mrf.mxu0
      %v1605 = vadd.f32 %v1467, %v1604
      %1606 = vmatprep.mubr.f32.mxu0 %v925
      %1607 = vmatmul.mubr.f32.gmra.mxu0 %v893
      %v1608 = vpop.f32.mrf.mxu0
      %v1609 = vadd.f32 %v1463, %v1608
      %v1610 = vpop.f32.mrf.mxu0
      %v1611 = vadd.f32 %v1467, %v1610
      %1612 = vmatprep.mubr.f32.mxu0 %v926
      %1613 = vmatmul.mubr.f32.gmra.mxu0 %v894
      %v1614 = vpop.f32.mrf.mxu0
      %v1615 = vadd.f32 %v1463, %v1614
      %v1616 = vpop.f32.mrf.mxu0
      %v1617 = vadd.f32 %v1467, %v1616
      %1618 = vmatprep.mubr.f32.mxu0 %v927
      %1619 = vmatmul.mubr.f32.gmra.mxu0 %v895
      %v1620 = vpop.f32.mrf.mxu0
      %v1621 = vadd.f32 %v1463, %v1620
      %v1622 = vpop.f32.mrf.mxu0
      %v1623 = vadd.f32 %v1467, %v1622
      %1624 = vmatprep.mubr.f32.mxu0 %v928
      %1625 = vmatmul.mubr.f32.gmra.mxu0 %v896
      %v1626 = vpop.f32.mrf.mxu0
      %v1627 = vadd.f32 %v1463, %v1626
      %v1628 = vpop.f32.mrf.mxu0
      %v1629 = vadd.f32 %v1467, %v1628
      %1630 = vmatprep.mubr.f32.mxu0 %v929
      %1631 = vmatmul.mubr.f32.gmra.mxu0 %v897
      %v1632 = vpop.f32.mrf.mxu0
      %v1633 = vadd.f32 %v1463, %v1632
      %v1634 = vpop.f32.mrf.mxu0
      %v1635 = vadd.f32 %v1467, %v1634
      %1636 = vmatprep.mubr.f32.mxu0 %v930
      %1637 = vmatmul.mubr.f32.gmra.mxu0 %v898
      %v1638 = vpop.f32.mrf.mxu0
      %v1639 = vadd.f32 %v1463, %v1638
      %v1640 = vpop.f32.mrf.mxu0
      %v1641 = vadd.f32 %v1467, %v1640
      %1642 = vmatprep.mubr.f32.mxu0 %v931
      %1643 = vmatmul.mubr.f32.gmra.mxu0 %v899
      %v1644 = vpop.f32.mrf.mxu0
      %v1645 = vadd.f32 %v1463, %v1644
      %v1646 = vpop.f32.mrf.mxu0
      %v1647 = vadd.f32 %v1467, %v1646
      %1648 = vmatprep.mubr.f32.mxu0 %v932
      %1649 = vmatmul.mubr.f32.gmra.mxu0 %v900
      %v1650 = vpop.f32.mrf.mxu0
      %v1651 = vadd.f32 %v1463, %v1650
      %v1652 = vpop.f32.mrf.mxu0
      %v1653 = vadd.f32 %v1467, %v1652
      %1654 = vmatprep.mubr.f32.mxu0 %v933
      %1655 = vmatmul.mubr.f32.gmra.mxu0 %v901
      %v1656 = vpop.f32.mrf.mxu0
      %v1657 = vadd.f32 %v1463, %v1656
      %v1658 = vpop.f32.mrf.mxu0
      %v1659 = vadd.f32 %v1467, %v1658
      %1660 = vmatprep.mubr.f32.mxu0 %v934
      %1661 = vmatmul.mubr.f32.gmra.mxu0 %v902
      %v1662 = vpop.f32.mrf.mxu0
      %v1663 = vadd.f32 %v1463, %v1662
      %v1664 = vpop.f32.mrf.mxu0
      %v1665 = vadd.f32 %v1467, %v1664
      %1666 = vmatprep.mubr.f32.mxu0 %v935
      %1667 = vmatmul.mubr.f32.gmra.mxu0 %v903
      %v1668 = vpop.f32.mrf.mxu0
      %v1669 = vadd.f32 %v1463, %v1668
      %v1670 = vpop.f32.mrf.mxu0
      %v1671 = vadd.f32 %v1467, %v1670
      %1672 = vmatprep.mubr.f32.mxu0 %v936
      %1673 = vmatmul.mubr.f32.gmra.mxu0 %v904
      %v1674 = vpop.f32.mrf.mxu0
      %v1675 = vadd.f32 %v1463, %v1674
      %v1676 = vpop.f32.mrf.mxu0
      %v1677 = vadd.f32 %v1467, %v1676
      %1678 = vmatprep.mubr.f32.mxu0 %v937
      %1679 = vmatmul.mubr.f32.gmra.mxu0 %v905
      %v1680 = vpop.f32.mrf.mxu0
      %v1681 = vadd.f32 %v1463, %v1680
      %v1682 = vpop.f32.mrf.mxu0
      %v1683 = vadd.f32 %v1467, %v1682
      %1684 = vmatprep.mubr.f32.mxu0 %v938
      %1685 = vmatmul.mubr.f32.gmra.mxu0 %v906
      %v1686 = vpop.f32.mrf.mxu0
      %v1687 = vadd.f32 %v1463, %v1686
      %v1688 = vpop.f32.mrf.mxu0
      %v1689 = vadd.f32 %v1467, %v1688
      %1690 = vmatprep.mubr.f32.mxu0 %v939
      %1691 = vmatmul.mubr.f32.gmra.mxu0 %v907
      %v1692 = vpop.f32.mrf.mxu0
      %v1693 = vadd.f32 %v1463, %v1692
      %v1694 = vpop.f32.mrf.mxu0
      %v1695 = vadd.f32 %v1467, %v1694
      %1696 = vmatprep.mubr.f32.mxu0 %v940
      %1697 = vmatmul.mubr.f32.gmra.mxu0 %v908
      %v1698 = vpop.f32.mrf.mxu0
      %v1699 = vadd.f32 %v1463, %v1698
      %v1700 = vpop.f32.mrf.mxu0
      %v1701 = vadd.f32 %v1467, %v1700
      %1702 = vmatprep.mubr.f32.mxu0 %v941
      %1703 = vmatmul.mubr.f32.gmra.mxu0 %v909
      %v1704 = vpop.f32.mrf.mxu0
      %v1705 = vadd.f32 %v1463, %v1704
      %v1706 = vpop.f32.mrf.mxu0
      %v1707 = vadd.f32 %v1467, %v1706
      %1708 = vmatprep.mubr.f32.mxu0 %v942
      %1709 = vmatmul.mubr.f32.gmra.mxu0 %v910
      %v1710 = vpop.f32.mrf.mxu0
      %v1711 = vadd.f32 %v1463, %v1710
      %v1712 = vpop.f32.mrf.mxu0
      %v1713 = vadd.f32 %v1467, %v1712
      %1714 = vmatprep.mubr.f32.mxu0 %v943
      %1715 = vmatmul.mubr.f32.gmra.mxu0 %v911
      %v1716 = vpop.f32.mrf.mxu0
      %v1717 = vadd.f32 %v1463, %v1716
      %v1718 = vpop.f32.mrf.mxu0
      %v1719 = vadd.f32 %v1467, %v1718
      %1720 = vmatprep.mubr.f32.mxu0 %v944
      %1721 = vmatmul.mubr.f32.gmra.mxu0 %v912
      %v1722 = vpop.f32.mrf.mxu0
      %v1723 = vadd.f32 %v1463, %v1722
      %v1724 = vpop.f32.mrf.mxu0
      %v1725 = vadd.f32 %v1467, %v1724
      %1726 = vdwg.mxu0
      %1727 = vmatprep.subr.mxu0 %v1265
      %1728 = vmatpush1.msra.mxu0 %v1264
      %1729 = vmatprep.subr.mxu0 %v1263
      %1730 = vmatpush1.msra.mxu0 %v1262
      %1731 = vmatprep.subr.mxu0 %v1261
      %1732 = vmatpush1.msra.mxu0 %v1260
      %1733 = vmatprep.subr.mxu0 %v1259
      %1734 = vmatpush1.msra.mxu0 %v1258
      %1735 = vmatprep.subr.mxu0 %v1257
      %1736 = vmatpush1.msra.mxu0 %v1256
      %1737 = vmatprep.subr.mxu0 %v1255
      %1738 = vmatpush1.msra.mxu0 %v1254
      %1739 = vmatprep.subr.mxu0 %v1253
      %1740 = vmatpush1.msra.mxu0 %v1252
      %1741 = vmatprep.subr.mxu0 %v1251
      %1742 = vmatpush1.msra.mxu0 %v1250
      %1743 = vmatprep.subr.mxu0 %v1249
      %1744 = vmatpush1.msra.mxu0 %v1248
      %1745 = vmatprep.subr.mxu0 %v1247
      %1746 = vmatpush1.msra.mxu0 %v1246
      %1747 = vmatprep.subr.mxu0 %v1245
      %1748 = vmatpush1.msra.mxu0 %v1244
      %1749 = vmatprep.subr.mxu0 %v1243
      %1750 = vmatpush1.msra.mxu0 %v1242
      %1751 = vmatprep.subr.mxu0 %v1241
      %1752 = vmatpush1.msra.mxu0 %v1240
      %1753 = vmatprep.subr.mxu0 %v1239
      %1754 = vmatpush1.msra.mxu0 %v1238
      %1755 = vmatprep.subr.mxu0 %v1237
      %1756 = vmatpush1.msra.mxu0 %v1236
      %1757 = vmatprep.subr.mxu0 %v1235
      %1758 = vmatpush1.msra.mxu0 %v1234
      %1759 = vmatprep.subr.mxu0 %v1297
      %1760 = vmatpush2.msra.mxu0 %v1296
      %1761 = vmatprep.subr.mxu0 %v1295
      %1762 = vmatpush2.msra.mxu0 %v1294
      %1763 = vmatprep.subr.mxu0 %v1293
      %1764 = vmatpush2.msra.mxu0 %v1292
      %1765 = vmatprep.subr.mxu0 %v1291
      %1766 = vmatpush2.msra.mxu0 %v1290
      %1767 = vmatprep.subr.mxu0 %v1289
      %1768 = vmatpush2.msra.mxu0 %v1288
      %1769 = vmatprep.subr.mxu0 %v1287
      %1770 = vmatpush2.msra.mxu0 %v1286
      %1771 = vmatprep.subr.mxu0 %v1285
      %1772 = vmatpush2.msra.mxu0 %v1284
      %1773 = vmatprep.subr.mxu0 %v1283
      %1774 = vmatpush2.msra.mxu0 %v1282
      %1775 = vmatprep.subr.mxu0 %v1281
      %1776 = vmatpush2.msra.mxu0 %v1280
      %1777 = vmatprep.subr.mxu0 %v1279
      %1778 = vmatpush2.msra.mxu0 %v1278
      %1779 = vmatprep.subr.mxu0 %v1277
      %1780 = vmatpush2.msra.mxu0 %v1276
      %1781 = vmatprep.subr.mxu0 %v1275
      %1782 = vmatpush2.msra.mxu0 %v1274
      %1783 = vmatprep.subr.mxu0 %v1273
      %1784 = vmatpush2.msra.mxu0 %v1272
      %1785 = vmatprep.subr.mxu0 %v1271
      %1786 = vmatpush2.msra.mxu0 %v1270
      %1787 = vmatprep.subr.mxu0 %v1269
      %1788 = vmatpush2.msra.mxu0 %v1268
      %1789 = vmatprep.subr.mxu0 %v1267
      %1790 = vmatpush2.msra.mxu0 %v1266
      %1791 = vmatprep.mubr.f32.mxu0 %v977
      %1792 = vmatmul.mubr.f32.gmra.mxu0 %v945
      %v1793 = vpop.f32.mrf.mxu0
      %v1794 = vadd.f32 %v1537, %v1793
      %v1795 = vpop.f32.mrf.mxu0
      %v1796 = vadd.f32 %v1539, %v1795
      %1797 = vmatprep.mubr.f32.mxu0 %v978
      %1798 = vmatmul.mubr.f32.gmra.mxu0 %v946
      %v1799 = vpop.f32.mrf.mxu0
      %v1800 = vadd.f32 %v1543, %v1799
      %v1801 = vpop.f32.mrf.mxu0
      %v1802 = vadd.f32 %v1545, %v1801
      %1803 = vmatprep.mubr.f32.mxu0 %v979
      %1804 = vmatmul.mubr.f32.gmra.mxu0 %v947
      %v1805 = vpop.f32.mrf.mxu0
      %v1806 = vadd.f32 %v1549, %v1805
      %v1807 = vpop.f32.mrf.mxu0
      %v1808 = vadd.f32 %v1551, %v1807
      %1809 = vmatprep.mubr.f32.mxu0 %v980
      %1810 = vmatmul.mubr.f32.gmra.mxu0 %v948
      %v1811 = vpop.f32.mrf.mxu0
      %v1812 = vadd.f32 %v1555, %v1811
      %v1813 = vpop.f32.mrf.mxu0
      %v1814 = vadd.f32 %v1557, %v1813
      %1815 = vmatprep.mubr.f32.mxu0 %v981
      %1816 = vmatmul.mubr.f32.gmra.mxu0 %v949
      %v1817 = vpop.f32.mrf.mxu0
      %v1818 = vadd.f32 %v1561, %v1817
      %v1819 = vpop.f32.mrf.mxu0
      %v1820 = vadd.f32 %v1563, %v1819
      %1821 = vmatprep.mubr.f32.mxu0 %v982
      %1822 = vmatmul.mubr.f32.gmra.mxu0 %v950
      %v1823 = vpop.f32.mrf.mxu0
      %v1824 = vadd.f32 %v1567, %v1823
      %v1825 = vpop.f32.mrf.mxu0
      %v1826 = vadd.f32 %v1569, %v1825
      %1827 = vmatprep.mubr.f32.mxu0 %v983
      %1828 = vmatmul.mubr.f32.gmra.mxu0 %v951
      %v1829 = vpop.f32.mrf.mxu0
      %v1830 = vadd.f32 %v1573, %v1829
      %v1831 = vpop.f32.mrf.mxu0
      %v1832 = vadd.f32 %v1575, %v1831
      %1833 = vmatprep.mubr.f32.mxu0 %v984
      %1834 = vmatmul.mubr.f32.gmra.mxu0 %v952
      %v1835 = vpop.f32.mrf.mxu0
      %v1836 = vadd.f32 %v1579, %v1835
      %v1837 = vpop.f32.mrf.mxu0
      %v1838 = vadd.f32 %v1581, %v1837
      %1839 = vmatprep.mubr.f32.mxu0 %v985
      %1840 = vmatmul.mubr.f32.gmra.mxu0 %v953
      %v1841 = vpop.f32.mrf.mxu0
      %v1842 = vadd.f32 %v1585, %v1841
      %v1843 = vpop.f32.mrf.mxu0
      %v1844 = vadd.f32 %v1587, %v1843
      %1845 = vmatprep.mubr.f32.mxu0 %v986
      %1846 = vmatmul.mubr.f32.gmra.mxu0 %v954
      %v1847 = vpop.f32.mrf.mxu0
      %v1848 = vadd.f32 %v1591, %v1847
      %v1849 = vpop.f32.mrf.mxu0
      %v1850 = vadd.f32 %v1593, %v1849
      %1851 = vmatprep.mubr.f32.mxu0 %v987
      %1852 = vmatmul.mubr.f32.gmra.mxu0 %v955
      %v1853 = vpop.f32.mrf.mxu0
      %v1854 = vadd.f32 %v1597, %v1853
      %v1855 = vpop.f32.mrf.mxu0
      %v1856 = vadd.f32 %v1599, %v1855
      %1857 = vmatprep.mubr.f32.mxu0 %v988
      %1858 = vmatmul.mubr.f32.gmra.mxu0 %v956
      %v1859 = vpop.f32.mrf.mxu0
      %v1860 = vadd.f32 %v1603, %v1859
      %v1861 = vpop.f32.mrf.mxu0
      %v1862 = vadd.f32 %v1605, %v1861
      %1863 = vmatprep.mubr.f32.mxu0 %v989
      %1864 = vmatmul.mubr.f32.gmra.mxu0 %v957
      %v1865 = vpop.f32.mrf.mxu0
      %v1866 = vadd.f32 %v1609, %v1865
      %v1867 = vpop.f32.mrf.mxu0
      %v1868 = vadd.f32 %v1611, %v1867
      %1869 = vmatprep.mubr.f32.mxu0 %v990
      %1870 = vmatmul.mubr.f32.gmra.mxu0 %v958
      %v1871 = vpop.f32.mrf.mxu0
      %v1872 = vadd.f32 %v1615, %v1871
      %v1873 = vpop.f32.mrf.mxu0
      %v1874 = vadd.f32 %v1617, %v1873
      %1875 = vmatprep.mubr.f32.mxu0 %v991
      %1876 = vmatmul.mubr.f32.gmra.mxu0 %v959
      %v1877 = vpop.f32.mrf.mxu0
      %v1878 = vadd.f32 %v1621, %v1877
      %v1879 = vpop.f32.mrf.mxu0
      %v1880 = vadd.f32 %v1623, %v1879
      %1881 = vmatprep.mubr.f32.mxu0 %v992
      %1882 = vmatmul.mubr.f32.gmra.mxu0 %v960
      %v1883 = vpop.f32.mrf.mxu0
      %v1884 = vadd.f32 %v1627, %v1883
      %v1885 = vpop.f32.mrf.mxu0
      %v1886 = vadd.f32 %v1629, %v1885
      %1887 = vmatprep.mubr.f32.mxu0 %v993
      %1888 = vmatmul.mubr.f32.gmra.mxu0 %v961
      %v1889 = vpop.f32.mrf.mxu0
      %v1890 = vadd.f32 %v1633, %v1889
      %v1891 = vpop.f32.mrf.mxu0
      %v1892 = vadd.f32 %v1635, %v1891
      %1893 = vmatprep.mubr.f32.mxu0 %v994
      %1894 = vmatmul.mubr.f32.gmra.mxu0 %v962
      %v1895 = vpop.f32.mrf.mxu0
      %v1896 = vadd.f32 %v1639, %v1895
      %v1897 = vpop.f32.mrf.mxu0
      %v1898 = vadd.f32 %v1641, %v1897
      %1899 = vmatprep.mubr.f32.mxu0 %v995
      %1900 = vmatmul.mubr.f32.gmra.mxu0 %v963
      %v1901 = vpop.f32.mrf.mxu0
      %v1902 = vadd.f32 %v1645, %v1901
      %v1903 = vpop.f32.mrf.mxu0
      %v1904 = vadd.f32 %v1647, %v1903
      %1905 = vmatprep.mubr.f32.mxu0 %v996
      %1906 = vmatmul.mubr.f32.gmra.mxu0 %v964
      %v1907 = vpop.f32.mrf.mxu0
      %v1908 = vadd.f32 %v1651, %v1907
      %v1909 = vpop.f32.mrf.mxu0
      %v1910 = vadd.f32 %v1653, %v1909
      %1911 = vmatprep.mubr.f32.mxu0 %v997
      %1912 = vmatmul.mubr.f32.gmra.mxu0 %v965
      %v1913 = vpop.f32.mrf.mxu0
      %v1914 = vadd.f32 %v1657, %v1913
      %v1915 = vpop.f32.mrf.mxu0
      %v1916 = vadd.f32 %v1659, %v1915
      %1917 = vmatprep.mubr.f32.mxu0 %v998
      %1918 = vmatmul.mubr.f32.gmra.mxu0 %v966
      %v1919 = vpop.f32.mrf.mxu0
      %v1920 = vadd.f32 %v1663, %v1919
      %v1921 = vpop.f32.mrf.mxu0
      %v1922 = vadd.f32 %v1665, %v1921
      %1923 = vmatprep.mubr.f32.mxu0 %v999
      %1924 = vmatmul.mubr.f32.gmra.mxu0 %v967
      %v1925 = vpop.f32.mrf.mxu0
      %v1926 = vadd.f32 %v1669, %v1925
      %v1927 = vpop.f32.mrf.mxu0
      %v1928 = vadd.f32 %v1671, %v1927
      %1929 = vmatprep.mubr.f32.mxu0 %v1000
      %1930 = vmatmul.mubr.f32.gmra.mxu0 %v968
      %v1931 = vpop.f32.mrf.mxu0
      %v1932 = vadd.f32 %v1675, %v1931
      %v1933 = vpop.f32.mrf.mxu0
      %v1934 = vadd.f32 %v1677, %v1933
      %1935 = vmatprep.mubr.f32.mxu0 %v1001
      %1936 = vmatmul.mubr.f32.gmra.mxu0 %v969
      %v1937 = vpop.f32.mrf.mxu0
      %v1938 = vadd.f32 %v1681, %v1937
      %v1939 = vpop.f32.mrf.mxu0
      %v1940 = vadd.f32 %v1683, %v1939
      %1941 = vmatprep.mubr.f32.mxu0 %v1002
      %1942 = vmatmul.mubr.f32.gmra.mxu0 %v970
      %v1943 = vpop.f32.mrf.mxu0
      %v1944 = vadd.f32 %v1687, %v1943
      %v1945 = vpop.f32.mrf.mxu0
      %v1946 = vadd.f32 %v1689, %v1945
      %1947 = vmatprep.mubr.f32.mxu0 %v1003
      %1948 = vmatmul.mubr.f32.gmra.mxu0 %v971
      %v1949 = vpop.f32.mrf.mxu0
      %v1950 = vadd.f32 %v1693, %v1949
      %v1951 = vpop.f32.mrf.mxu0
      %v1952 = vadd.f32 %v1695, %v1951
      %1953 = vmatprep.mubr.f32.mxu0 %v1004
      %1954 = vmatmul.mubr.f32.gmra.mxu0 %v972
      %v1955 = vpop.f32.mrf.mxu0
      %v1956 = vadd.f32 %v1699, %v1955
      %v1957 = vpop.f32.mrf.mxu0
      %v1958 = vadd.f32 %v1701, %v1957
      %1959 = vmatprep.mubr.f32.mxu0 %v1005
      %1960 = vmatmul.mubr.f32.gmra.mxu0 %v973
      %v1961 = vpop.f32.mrf.mxu0
      %v1962 = vadd.f32 %v1705, %v1961
      %v1963 = vpop.f32.mrf.mxu0
      %v1964 = vadd.f32 %v1707, %v1963
      %1965 = vmatprep.mubr.f32.mxu0 %v1006
      %1966 = vmatmul.mubr.f32.gmra.mxu0 %v974
      %v1967 = vpop.f32.mrf.mxu0
      %v1968 = vadd.f32 %v1711, %v1967
      %v1969 = vpop.f32.mrf.mxu0
      %v1970 = vadd.f32 %v1713, %v1969
      %1971 = vmatprep.mubr.f32.mxu0 %v1007
      %1972 = vmatmul.mubr.f32.gmra.mxu0 %v975
      %v1973 = vpop.f32.mrf.mxu0
      %v1974 = vadd.f32 %v1717, %v1973
      %v1975 = vpop.f32.mrf.mxu0
      %v1976 = vadd.f32 %v1719, %v1975
      %1977 = vmatprep.mubr.f32.mxu0 %v1008
      %1978 = vmatmul.mubr.f32.gmra.mxu0 %v976
      %v1979 = vpop.f32.mrf.mxu0
      %v1980 = vadd.f32 %v1723, %v1979
      %v1981 = vpop.f32.mrf.mxu0
      %v1982 = vadd.f32 %v1725, %v1981
      %1983 = vdwg.mxu0
      %1984 = vmatprep.subr.mxu0 %v1329
      %1985 = vmatpush1.msra.mxu0 %v1328
      %1986 = vmatprep.subr.mxu0 %v1327
      %1987 = vmatpush1.msra.mxu0 %v1326
      %1988 = vmatprep.subr.mxu0 %v1325
      %1989 = vmatpush1.msra.mxu0 %v1324
      %1990 = vmatprep.subr.mxu0 %v1323
      %1991 = vmatpush1.msra.mxu0 %v1322
      %1992 = vmatprep.subr.mxu0 %v1321
      %1993 = vmatpush1.msra.mxu0 %v1320
      %1994 = vmatprep.subr.mxu0 %v1319
      %1995 = vmatpush1.msra.mxu0 %v1318
      %1996 = vmatprep.subr.mxu0 %v1317
      %1997 = vmatpush1.msra.mxu0 %v1316
      %1998 = vmatprep.subr.mxu0 %v1315
      %1999 = vmatpush1.msra.mxu0 %v1314
      %2000 = vmatprep.subr.mxu0 %v1313
      %2001 = vmatpush1.msra.mxu0 %v1312
      %2002 = vmatprep.subr.mxu0 %v1311
      %2003 = vmatpush1.msra.mxu0 %v1310
      %2004 = vmatprep.subr.mxu0 %v1309
      %2005 = vmatpush1.msra.mxu0 %v1308
      %2006 = vmatprep.subr.mxu0 %v1307
      %2007 = vmatpush1.msra.mxu0 %v1306
      %2008 = vmatprep.subr.mxu0 %v1305
      %2009 = vmatpush1.msra.mxu0 %v1304
      %2010 = vmatprep.subr.mxu0 %v1303
      %2011 = vmatpush1.msra.mxu0 %v1302
      %2012 = vmatprep.subr.mxu0 %v1301
      %2013 = vmatpush1.msra.mxu0 %v1300
      %2014 = vmatprep.subr.mxu0 %v1299
      %2015 = vmatpush1.msra.mxu0 %v1298
      %2016 = vmatprep.subr.mxu0 %v1361
      %2017 = vmatpush2.msra.mxu0 %v1360
      %2018 = vmatprep.subr.mxu0 %v1359
      %2019 = vmatpush2.msra.mxu0 %v1358
      %2020 = vmatprep.subr.mxu0 %v1357
      %2021 = vmatpush2.msra.mxu0 %v1356
      %2022 = vmatprep.subr.mxu0 %v1355
      %2023 = vmatpush2.msra.mxu0 %v1354
      %2024 = vmatprep.subr.mxu0 %v1353
      %2025 = vmatpush2.msra.mxu0 %v1352
      %2026 = vmatprep.subr.mxu0 %v1351
      %2027 = vmatpush2.msra.mxu0 %v1350
      %2028 = vmatprep.subr.mxu0 %v1349
      %2029 = vmatpush2.msra.mxu0 %v1348
      %2030 = vmatprep.subr.mxu0 %v1347
      %2031 = vmatpush2.msra.mxu0 %v1346
      %2032 = vmatprep.subr.mxu0 %v1345
      %2033 = vmatpush2.msra.mxu0 %v1344
      %2034 = vmatprep.subr.mxu0 %v1343
      %2035 = vmatpush2.msra.mxu0 %v1342
      %2036 = vmatprep.subr.mxu0 %v1341
      %2037 = vmatpush2.msra.mxu0 %v1340
      %2038 = vmatprep.subr.mxu0 %v1339
      %2039 = vmatpush2.msra.mxu0 %v1338
      %2040 = vmatprep.subr.mxu0 %v1337
      %2041 = vmatpush2.msra.mxu0 %v1336
      %2042 = vmatprep.subr.mxu0 %v1335
      %2043 = vmatpush2.msra.mxu0 %v1334
      %2044 = vmatprep.subr.mxu0 %v1333
      %2045 = vmatpush2.msra.mxu0 %v1332
      %2046 = vmatprep.subr.mxu0 %v1331
      %2047 = vmatpush2.msra.mxu0 %v1330
      %2048 = vmatprep.mubr.f32.mxu0 %v1041
      %2049 = vmatmul.mubr.f32.gmra.mxu0 %v1009
      %v2050 = vpop.f32.mrf.mxu0
      %v2051 = vadd.f32 %v1794, %v2050
      %v2052 = vpop.f32.mrf.mxu0
      %v2053 = vadd.f32 %v1796, %v2052
      %2054 = vmatprep.mubr.f32.mxu0 %v1042
      %2055 = vmatmul.mubr.f32.gmra.mxu0 %v1010
      %v2056 = vpop.f32.mrf.mxu0
      %v2057 = vadd.f32 %v1800, %v2056
      %v2058 = vpop.f32.mrf.mxu0
      %v2059 = vadd.f32 %v1802, %v2058
      %2060 = vmatprep.mubr.f32.mxu0 %v1043
      %2061 = vmatmul.mubr.f32.gmra.mxu0 %v1011
      %v2062 = vpop.f32.mrf.mxu0
      %v2063 = vadd.f32 %v1806, %v2062
      %v2064 = vpop.f32.mrf.mxu0
      %v2065 = vadd.f32 %v1808, %v2064
      %2066 = vmatprep.mubr.f32.mxu0 %v1044
      %2067 = vmatmul.mubr.f32.gmra.mxu0 %v1012
      %v2068 = vpop.f32.mrf.mxu0
      %v2069 = vadd.f32 %v1812, %v2068
      %v2070 = vpop.f32.mrf.mxu0
      %v2071 = vadd.f32 %v1814, %v2070
      %2072 = vmatprep.mubr.f32.mxu0 %v1045
      %2073 = vmatmul.mubr.f32.gmra.mxu0 %v1013
      %v2074 = vpop.f32.mrf.mxu0
      %v2075 = vadd.f32 %v1818, %v2074
      %v2076 = vpop.f32.mrf.mxu0
      %v2077 = vadd.f32 %v1820, %v2076
      %2078 = vmatprep.mubr.f32.mxu0 %v1046
      %2079 = vmatmul.mubr.f32.gmra.mxu0 %v1014
      %v2080 = vpop.f32.mrf.mxu0
      %v2081 = vadd.f32 %v1824, %v2080
      %v2082 = vpop.f32.mrf.mxu0
      %v2083 = vadd.f32 %v1826, %v2082
      %2084 = vmatprep.mubr.f32.mxu0 %v1047
      %2085 = vmatmul.mubr.f32.gmra.mxu0 %v1015
      %v2086 = vpop.f32.mrf.mxu0
      %v2087 = vadd.f32 %v1830, %v2086
      %v2088 = vpop.f32.mrf.mxu0
      %v2089 = vadd.f32 %v1832, %v2088
      %2090 = vmatprep.mubr.f32.mxu0 %v1048
      %2091 = vmatmul.mubr.f32.gmra.mxu0 %v1016
      %v2092 = vpop.f32.mrf.mxu0
      %v2093 = vadd.f32 %v1836, %v2092
      %v2094 = vpop.f32.mrf.mxu0
      %v2095 = vadd.f32 %v1838, %v2094
      %2096 = vmatprep.mubr.f32.mxu0 %v1049
      %2097 = vmatmul.mubr.f32.gmra.mxu0 %v1017
      %v2098 = vpop.f32.mrf.mxu0
      %v2099 = vadd.f32 %v1842, %v2098
      %v2100 = vpop.f32.mrf.mxu0
      %v2101 = vadd.f32 %v1844, %v2100
      %2102 = vmatprep.mubr.f32.mxu0 %v1050
      %2103 = vmatmul.mubr.f32.gmra.mxu0 %v1018
      %v2104 = vpop.f32.mrf.mxu0
      %v2105 = vadd.f32 %v1848, %v2104
      %v2106 = vpop.f32.mrf.mxu0
      %v2107 = vadd.f32 %v1850, %v2106
      %2108 = vmatprep.mubr.f32.mxu0 %v1051
      %2109 = vmatmul.mubr.f32.gmra.mxu0 %v1019
      %v2110 = vpop.f32.mrf.mxu0
      %v2111 = vadd.f32 %v1854, %v2110
      %v2112 = vpop.f32.mrf.mxu0
      %v2113 = vadd.f32 %v1856, %v2112
      %2114 = vmatprep.mubr.f32.mxu0 %v1052
      %2115 = vmatmul.mubr.f32.gmra.mxu0 %v1020
      %v2116 = vpop.f32.mrf.mxu0
      %v2117 = vadd.f32 %v1860, %v2116
      %v2118 = vpop.f32.mrf.mxu0
      %v2119 = vadd.f32 %v1862, %v2118
      %2120 = vmatprep.mubr.f32.mxu0 %v1053
      %2121 = vmatmul.mubr.f32.gmra.mxu0 %v1021
      %v2122 = vpop.f32.mrf.mxu0
      %v2123 = vadd.f32 %v1866, %v2122
      %v2124 = vpop.f32.mrf.mxu0
      %v2125 = vadd.f32 %v1868, %v2124
      %2126 = vmatprep.mubr.f32.mxu0 %v1054
      %2127 = vmatmul.mubr.f32.gmra.mxu0 %v1022
      %v2128 = vpop.f32.mrf.mxu0
      %v2129 = vadd.f32 %v1872, %v2128
      %v2130 = vpop.f32.mrf.mxu0
      %v2131 = vadd.f32 %v1874, %v2130
      %2132 = vmatprep.mubr.f32.mxu0 %v1055
      %2133 = vmatmul.mubr.f32.gmra.mxu0 %v1023
      %v2134 = vpop.f32.mrf.mxu0
      %v2135 = vadd.f32 %v1878, %v2134
      %v2136 = vpop.f32.mrf.mxu0
      %v2137 = vadd.f32 %v1880, %v2136
      %2138 = vmatprep.mubr.f32.mxu0 %v1056
      %2139 = vmatmul.mubr.f32.gmra.mxu0 %v1024
      %v2140 = vpop.f32.mrf.mxu0
      %v2141 = vadd.f32 %v1884, %v2140
      %v2142 = vpop.f32.mrf.mxu0
      %v2143 = vadd.f32 %v1886, %v2142
      %2144 = vmatprep.mubr.f32.mxu0 %v1057
      %2145 = vmatmul.mubr.f32.gmra.mxu0 %v1025
      %v2146 = vpop.f32.mrf.mxu0
      %v2147 = vadd.f32 %v1890, %v2146
      %v2148 = vpop.f32.mrf.mxu0
      %v2149 = vadd.f32 %v1892, %v2148
      %2150 = vmatprep.mubr.f32.mxu0 %v1058
      %2151 = vmatmul.mubr.f32.gmra.mxu0 %v1026
      %v2152 = vpop.f32.mrf.mxu0
      %v2153 = vadd.f32 %v1896, %v2152
      %v2154 = vpop.f32.mrf.mxu0
      %v2155 = vadd.f32 %v1898, %v2154
      %2156 = vmatprep.mubr.f32.mxu0 %v1059
      %2157 = vmatmul.mubr.f32.gmra.mxu0 %v1027
      %v2158 = vpop.f32.mrf.mxu0
      %v2159 = vadd.f32 %v1902, %v2158
      %v2160 = vpop.f32.mrf.mxu0
      %v2161 = vadd.f32 %v1904, %v2160
      %2162 = vmatprep.mubr.f32.mxu0 %v1060
      %2163 = vmatmul.mubr.f32.gmra.mxu0 %v1028
      %v2164 = vpop.f32.mrf.mxu0
      %v2165 = vadd.f32 %v1908, %v2164
      %v2166 = vpop.f32.mrf.mxu0
      %v2167 = vadd.f32 %v1910, %v2166
      %2168 = vmatprep.mubr.f32.mxu0 %v1061
      %2169 = vmatmul.mubr.f32.gmra.mxu0 %v1029
      %v2170 = vpop.f32.mrf.mxu0
      %v2171 = vadd.f32 %v1914, %v2170
      %v2172 = vpop.f32.mrf.mxu0
      %v2173 = vadd.f32 %v1916, %v2172
      %2174 = vmatprep.mubr.f32.mxu0 %v1062
      %2175 = vmatmul.mubr.f32.gmra.mxu0 %v1030
      %v2176 = vpop.f32.mrf.mxu0
      %v2177 = vadd.f32 %v1920, %v2176
      %v2178 = vpop.f32.mrf.mxu0
      %v2179 = vadd.f32 %v1922, %v2178
      %2180 = vmatprep.mubr.f32.mxu0 %v1063
      %2181 = vmatmul.mubr.f32.gmra.mxu0 %v1031
      %v2182 = vpop.f32.mrf.mxu0
      %v2183 = vadd.f32 %v1926, %v2182
      %v2184 = vpop.f32.mrf.mxu0
      %v2185 = vadd.f32 %v1928, %v2184
      %2186 = vmatprep.mubr.f32.mxu0 %v1064
      %2187 = vmatmul.mubr.f32.gmra.mxu0 %v1032
      %v2188 = vpop.f32.mrf.mxu0
      %v2189 = vadd.f32 %v1932, %v2188
      %v2190 = vpop.f32.mrf.mxu0
      %v2191 = vadd.f32 %v1934, %v2190
      %2192 = vmatprep.mubr.f32.mxu0 %v1065
      %2193 = vmatmul.mubr.f32.gmra.mxu0 %v1033
      %v2194 = vpop.f32.mrf.mxu0
      %v2195 = vadd.f32 %v1938, %v2194
      %v2196 = vpop.f32.mrf.mxu0
      %v2197 = vadd.f32 %v1940, %v2196
      %2198 = vmatprep.mubr.f32.mxu0 %v1066
      %2199 = vmatmul.mubr.f32.gmra.mxu0 %v1034
      %v2200 = vpop.f32.mrf.mxu0
      %v2201 = vadd.f32 %v1944, %v2200
      %v2202 = vpop.f32.mrf.mxu0
      %v2203 = vadd.f32 %v1946, %v2202
      %2204 = vmatprep.mubr.f32.mxu0 %v1067
      %2205 = vmatmul.mubr.f32.gmra.mxu0 %v1035
      %v2206 = vpop.f32.mrf.mxu0
      %v2207 = vadd.f32 %v1950, %v2206
      %v2208 = vpop.f32.mrf.mxu0
      %v2209 = vadd.f32 %v1952, %v2208
      %2210 = vmatprep.mubr.f32.mxu0 %v1068
      %2211 = vmatmul.mubr.f32.gmra.mxu0 %v1036
      %v2212 = vpop.f32.mrf.mxu0
      %v2213 = vadd.f32 %v1956, %v2212
      %v2214 = vpop.f32.mrf.mxu0
      %v2215 = vadd.f32 %v1958, %v2214
      %2216 = vmatprep.mubr.f32.mxu0 %v1069
      %2217 = vmatmul.mubr.f32.gmra.mxu0 %v1037
      %v2218 = vpop.f32.mrf.mxu0
      %v2219 = vadd.f32 %v1962, %v2218
      %v2220 = vpop.f32.mrf.mxu0
      %v2221 = vadd.f32 %v1964, %v2220
      %2222 = vmatprep.mubr.f32.mxu0 %v1070
      %2223 = vmatmul.mubr.f32.gmra.mxu0 %v1038
      %v2224 = vpop.f32.mrf.mxu0
      %v2225 = vadd.f32 %v1968, %v2224
      %v2226 = vpop.f32.mrf.mxu0
      %v2227 = vadd.f32 %v1970, %v2226
      %2228 = vmatprep.mubr.f32.mxu0 %v1071
      %2229 = vmatmul.mubr.f32.gmra.mxu0 %v1039
      %v2230 = vpop.f32.mrf.mxu0
      %v2231 = vadd.f32 %v1974, %v2230
      %v2232 = vpop.f32.mrf.mxu0
      %v2233 = vadd.f32 %v1976, %v2232
      %2234 = vmatprep.mubr.f32.mxu0 %v1072
      %2235 = vmatmul.mubr.f32.gmra.mxu0 %v1040
      %v2236 = vpop.f32.mrf.mxu0
      %v2237 = vadd.f32 %v1980, %v2236
      %v2238 = vpop.f32.mrf.mxu0
      %v2239 = vadd.f32 %v1982, %v2238
      %2240 = vdwg.mxu0
      %2241 = vmatprep.subr.mxu0 %v1393
      %2242 = vmatpush1.msra.mxu0 %v1392
      %2243 = vmatprep.subr.mxu0 %v1391
      %2244 = vmatpush1.msra.mxu0 %v1390
      %2245 = vmatprep.subr.mxu0 %v1389
      %2246 = vmatpush1.msra.mxu0 %v1388
      %2247 = vmatprep.subr.mxu0 %v1387
      %2248 = vmatpush1.msra.mxu0 %v1386
      %2249 = vmatprep.subr.mxu0 %v1385
      %2250 = vmatpush1.msra.mxu0 %v1384
      %2251 = vmatprep.subr.mxu0 %v1383
      %2252 = vmatpush1.msra.mxu0 %v1382
      %2253 = vmatprep.subr.mxu0 %v1381
      %2254 = vmatpush1.msra.mxu0 %v1380
      %2255 = vmatprep.subr.mxu0 %v1379
      %2256 = vmatpush1.msra.mxu0 %v1378
      %2257 = vmatprep.subr.mxu0 %v1377
      %2258 = vmatpush1.msra.mxu0 %v1376
      %2259 = vmatprep.subr.mxu0 %v1375
      %2260 = vmatpush1.msra.mxu0 %v1374
      %2261 = vmatprep.subr.mxu0 %v1373
      %2262 = vmatpush1.msra.mxu0 %v1372
      %2263 = vmatprep.subr.mxu0 %v1371
      %2264 = vmatpush1.msra.mxu0 %v1370
      %2265 = vmatprep.subr.mxu0 %v1369
      %2266 = vmatpush1.msra.mxu0 %v1368
      %2267 = vmatprep.subr.mxu0 %v1367
      %2268 = vmatpush1.msra.mxu0 %v1366
      %2269 = vmatprep.subr.mxu0 %v1365
      %2270 = vmatpush1.msra.mxu0 %v1364
      %2271 = vmatprep.subr.mxu0 %v1363
      %2272 = vmatpush1.msra.mxu0 %v1362
      %2273 = vmatprep.subr.mxu0 %v1425
      %2274 = vmatpush2.msra.mxu0 %v1424
      %2275 = vmatprep.subr.mxu0 %v1423
      %2276 = vmatpush2.msra.mxu0 %v1422
      %2277 = vmatprep.subr.mxu0 %v1421
      %2278 = vmatpush2.msra.mxu0 %v1420
      %2279 = vmatprep.subr.mxu0 %v1419
      %2280 = vmatpush2.msra.mxu0 %v1418
      %2281 = vmatprep.subr.mxu0 %v1417
      %2282 = vmatpush2.msra.mxu0 %v1416
      %2283 = vmatprep.subr.mxu0 %v1415
      %2284 = vmatpush2.msra.mxu0 %v1414
      %2285 = vmatprep.subr.mxu0 %v1413
      %2286 = vmatpush2.msra.mxu0 %v1412
      %2287 = vmatprep.subr.mxu0 %v1411
      %2288 = vmatpush2.msra.mxu0 %v1410
      %2289 = vmatprep.subr.mxu0 %v1409
      %2290 = vmatpush2.msra.mxu0 %v1408
      %2291 = vmatprep.subr.mxu0 %v1407
      %2292 = vmatpush2.msra.mxu0 %v1406
      %2293 = vmatprep.subr.mxu0 %v1405
      %2294 = vmatpush2.msra.mxu0 %v1404
      %2295 = vmatprep.subr.mxu0 %v1403
      %2296 = vmatpush2.msra.mxu0 %v1402
      %2297 = vmatprep.subr.mxu0 %v1401
      %2298 = vmatpush2.msra.mxu0 %v1400
      %2299 = vmatprep.subr.mxu0 %v1399
      %2300 = vmatpush2.msra.mxu0 %v1398
      %2301 = vmatprep.subr.mxu0 %v1397
      %2302 = vmatpush2.msra.mxu0 %v1396
      %2303 = vmatprep.subr.mxu0 %v1395
      %2304 = vmatpush2.msra.mxu0 %v1394
      %2305 = vmatprep.mubr.f32.mxu0 %v1106
      %2306 = vmatmul.mubr.f32.gmra.mxu0 %v1074
      %v2307 = vpop.f32.mrf.mxu0
      %v2308 = vadd.f32 %v2051, %v2307
      %v2309 = vpop.f32.mrf.mxu0
      %v2310 = vadd.f32 %v2053, %v2309
      %2311 = vmatprep.mubr.f32.mxu0 %v1107
      %2312 = vmatmul.mubr.f32.gmra.mxu0 %v1075
      %v2313 = vpop.f32.mrf.mxu0
      %v2314 = vadd.f32 %v2057, %v2313
      %v2315 = vpop.f32.mrf.mxu0
      %v2316 = vadd.f32 %v2059, %v2315
      %2317 = vmatprep.mubr.f32.mxu0 %v1108
      %2318 = vmatmul.mubr.f32.gmra.mxu0 %v1076
      %v2319 = vpop.f32.mrf.mxu0
      %v2320 = vadd.f32 %v2063, %v2319
      %v2321 = vpop.f32.mrf.mxu0
      %v2322 = vadd.f32 %v2065, %v2321
      %2323 = vmatprep.mubr.f32.mxu0 %v1109
      %2324 = vmatmul.mubr.f32.gmra.mxu0 %v1077
      %v2325 = vpop.f32.mrf.mxu0
      %v2326 = vadd.f32 %v2069, %v2325
      %v2327 = vpop.f32.mrf.mxu0
      %v2328 = vadd.f32 %v2071, %v2327
      %2329 = vmatprep.mubr.f32.mxu0 %v1110
      %2330 = vmatmul.mubr.f32.gmra.mxu0 %v1078
      %v2331 = vpop.f32.mrf.mxu0
      %v2332 = vadd.f32 %v2075, %v2331
      %v2333 = vpop.f32.mrf.mxu0
      %v2334 = vadd.f32 %v2077, %v2333
      %2335 = vmatprep.mubr.f32.mxu0 %v1111
      %2336 = vmatmul.mubr.f32.gmra.mxu0 %v1079
      %v2337 = vpop.f32.mrf.mxu0
      %v2338 = vadd.f32 %v2081, %v2337
      %v2339 = vpop.f32.mrf.mxu0
      %v2340 = vadd.f32 %v2083, %v2339
      %2341 = vmatprep.mubr.f32.mxu0 %v1112
      %2342 = vmatmul.mubr.f32.gmra.mxu0 %v1080
      %v2343 = vpop.f32.mrf.mxu0
      %v2344 = vadd.f32 %v2087, %v2343
      %v2345 = vpop.f32.mrf.mxu0
      %v2346 = vadd.f32 %v2089, %v2345
      %2347 = vmatprep.mubr.f32.mxu0 %v1113
      %2348 = vmatmul.mubr.f32.gmra.mxu0 %v1081
      %v2349 = vpop.f32.mrf.mxu0
      %v2350 = vadd.f32 %v2093, %v2349
      %v2351 = vpop.f32.mrf.mxu0
      %v2352 = vadd.f32 %v2095, %v2351
      %2353 = vmatprep.mubr.f32.mxu0 %v1114
      %2354 = vmatmul.mubr.f32.gmra.mxu0 %v1082
      %v2355 = vpop.f32.mrf.mxu0
      %v2356 = vadd.f32 %v2099, %v2355
      %v2357 = vpop.f32.mrf.mxu0
      %v2358 = vadd.f32 %v2101, %v2357
      %2359 = vmatprep.mubr.f32.mxu0 %v1115
      %2360 = vmatmul.mubr.f32.gmra.mxu0 %v1083
      %v2361 = vpop.f32.mrf.mxu0
      %v2362 = vadd.f32 %v2105, %v2361
      %v2363 = vpop.f32.mrf.mxu0
      %v2364 = vadd.f32 %v2107, %v2363
      %2365 = vmatprep.mubr.f32.mxu0 %v1116
      %2366 = vmatmul.mubr.f32.gmra.mxu0 %v1084
      %v2367 = vpop.f32.mrf.mxu0
      %v2368 = vadd.f32 %v2111, %v2367
      %v2369 = vpop.f32.mrf.mxu0
      %v2370 = vadd.f32 %v2113, %v2369
      %2371 = vmatprep.mubr.f32.mxu0 %v1117
      %2372 = vmatmul.mubr.f32.gmra.mxu0 %v1085
      %v2373 = vpop.f32.mrf.mxu0
      %v2374 = vadd.f32 %v2117, %v2373
      %v2375 = vpop.f32.mrf.mxu0
      %v2376 = vadd.f32 %v2119, %v2375
      %2377 = vmatprep.mubr.f32.mxu0 %v1118
      %2378 = vmatmul.mubr.f32.gmra.mxu0 %v1086
      %v2379 = vpop.f32.mrf.mxu0
      %v2380 = vadd.f32 %v2123, %v2379
      %v2381 = vpop.f32.mrf.mxu0
      %v2382 = vadd.f32 %v2125, %v2381
      %2383 = vmatprep.mubr.f32.mxu0 %v1119
      %2384 = vmatmul.mubr.f32.gmra.mxu0 %v1087
      %v2385 = vpop.f32.mrf.mxu0
      %v2386 = vadd.f32 %v2129, %v2385
      %v2387 = vpop.f32.mrf.mxu0
      %v2388 = vadd.f32 %v2131, %v2387
      %2389 = vmatprep.mubr.f32.mxu0 %v1120
      %2390 = vmatmul.mubr.f32.gmra.mxu0 %v1088
      %v2391 = vpop.f32.mrf.mxu0
      %v2392 = vadd.f32 %v2135, %v2391
      %v2393 = vpop.f32.mrf.mxu0
      %v2394 = vadd.f32 %v2137, %v2393
      %2395 = vmatprep.mubr.f32.mxu0 %v1121
      %2396 = vmatmul.mubr.f32.gmra.mxu0 %v1089
      %v2397 = vpop.f32.mrf.mxu0
      %v2398 = vadd.f32 %v2141, %v2397
      %v2399 = vpop.f32.mrf.mxu0
      %v2400 = vadd.f32 %v2143, %v2399
      %2401 = vmatprep.mubr.f32.mxu0 %v1122
      %2402 = vmatmul.mubr.f32.gmra.mxu0 %v1090
      %v2403 = vpop.f32.mrf.mxu0
      %v2404 = vadd.f32 %v2147, %v2403
      %v2405 = vpop.f32.mrf.mxu0
      %v2406 = vadd.f32 %v2149, %v2405
      %2407 = vmatprep.mubr.f32.mxu0 %v1123
      %2408 = vmatmul.mubr.f32.gmra.mxu0 %v1091
      %v2409 = vpop.f32.mrf.mxu0
      %v2410 = vadd.f32 %v2153, %v2409
      %v2411 = vpop.f32.mrf.mxu0
      %v2412 = vadd.f32 %v2155, %v2411
      %2413 = vmatprep.mubr.f32.mxu0 %v1124
      %2414 = vmatmul.mubr.f32.gmra.mxu0 %v1092
      %v2415 = vpop.f32.mrf.mxu0
      %v2416 = vadd.f32 %v2159, %v2415
      %v2417 = vpop.f32.mrf.mxu0
      %v2418 = vadd.f32 %v2161, %v2417
      %2419 = vmatprep.mubr.f32.mxu0 %v1125
      %2420 = vmatmul.mubr.f32.gmra.mxu0 %v1093
      %v2421 = vpop.f32.mrf.mxu0
      %v2422 = vadd.f32 %v2165, %v2421
      %v2423 = vpop.f32.mrf.mxu0
      %v2424 = vadd.f32 %v2167, %v2423
      %2425 = vmatprep.mubr.f32.mxu0 %v1126
      %2426 = vmatmul.mubr.f32.gmra.mxu0 %v1094
      %v2427 = vpop.f32.mrf.mxu0
      %v2428 = vadd.f32 %v2171, %v2427
      %v2429 = vpop.f32.mrf.mxu0
      %v2430 = vadd.f32 %v2173, %v2429
      %2431 = vmatprep.mubr.f32.mxu0 %v1127
      %2432 = vmatmul.mubr.f32.gmra.mxu0 %v1095
      %v2433 = vpop.f32.mrf.mxu0
      %v2434 = vadd.f32 %v2177, %v2433
      %v2435 = vpop.f32.mrf.mxu0
      %v2436 = vadd.f32 %v2179, %v2435
      %2437 = vmatprep.mubr.f32.mxu0 %v1128
      %2438 = vmatmul.mubr.f32.gmra.mxu0 %v1096
      %v2439 = vpop.f32.mrf.mxu0
      %v2440 = vadd.f32 %v2183, %v2439
      %v2441 = vpop.f32.mrf.mxu0
      %v2442 = vadd.f32 %v2185, %v2441
      %2443 = vmatprep.mubr.f32.mxu0 %v1129
      %2444 = vmatmul.mubr.f32.gmra.mxu0 %v1097
      %v2445 = vpop.f32.mrf.mxu0
      %v2446 = vadd.f32 %v2189, %v2445
      %v2447 = vpop.f32.mrf.mxu0
      %v2448 = vadd.f32 %v2191, %v2447
      %2449 = vmatprep.mubr.f32.mxu0 %v1130
      %2450 = vmatmul.mubr.f32.gmra.mxu0 %v1098
      %v2451 = vpop.f32.mrf.mxu0
      %v2452 = vadd.f32 %v2195, %v2451
      %v2453 = vpop.f32.mrf.mxu0
      %v2454 = vadd.f32 %v2197, %v2453
      %2455 = vmatprep.mubr.f32.mxu0 %v1131
      %2456 = vmatmul.mubr.f32.gmra.mxu0 %v1099
      %v2457 = vpop.f32.mrf.mxu0
      %v2458 = vadd.f32 %v2201, %v2457
      %v2459 = vpop.f32.mrf.mxu0
      %v2460 = vadd.f32 %v2203, %v2459
      %2461 = vmatprep.mubr.f32.mxu0 %v1132
      %2462 = vmatmul.mubr.f32.gmra.mxu0 %v1100
      %v2463 = vpop.f32.mrf.mxu0
      %v2464 = vadd.f32 %v2207, %v2463
      %v2465 = vpop.f32.mrf.mxu0
      %v2466 = vadd.f32 %v2209, %v2465
      %2467 = vmatprep.mubr.f32.mxu0 %v1133
      %2468 = vmatmul.mubr.f32.gmra.mxu0 %v1101
      %v2469 = vpop.f32.mrf.mxu0
      %v2470 = vadd.f32 %v2213, %v2469
      %v2471 = vpop.f32.mrf.mxu0
      %v2472 = vadd.f32 %v2215, %v2471
      %2473 = vmatprep.mubr.f32.mxu0 %v1134
      %2474 = vmatmul.mubr.f32.gmra.mxu0 %v1102
      %v2475 = vpop.f32.mrf.mxu0
      %v2476 = vadd.f32 %v2219, %v2475
      %v2477 = vpop.f32.mrf.mxu0
      %v2478 = vadd.f32 %v2221, %v2477
      %2479 = vmatprep.mubr.f32.mxu0 %v1135
      %2480 = vmatmul.mubr.f32.gmra.mxu0 %v1103
      %v2481 = vpop.f32.mrf.mxu0
      %v2482 = vadd.f32 %v2225, %v2481
      %v2483 = vpop.f32.mrf.mxu0
      %v2484 = vadd.f32 %v2227, %v2483
      %2485 = vmatprep.mubr.f32.mxu0 %v1136
      %2486 = vmatmul.mubr.f32.gmra.mxu0 %v1104
      %v2487 = vpop.f32.mrf.mxu0
      %v2488 = vadd.f32 %v2231, %v2487
      %v2489 = vpop.f32.mrf.mxu0
      %v2490 = vadd.f32 %v2233, %v2489
      %2491 = vmatprep.mubr.f32.mxu0 %v1137
      %2492 = vmatmul.mubr.f32.gmra.mxu0 %v1105
      %v2493 = vpop.f32.mrf.mxu0
      %v2494 = vadd.f32 %v2237, %v2493
      %v2495 = vpop.f32.mrf.mxu0
      %v2496 = vadd.f32 %v2239, %v2495
      %2497 = vdwg.mxu0
      %2498 = vmatprep.subr.mxu0 %v1457
      %2499 = vmatpush1.msra.mxu0 %v1456
      %2500 = vmatprep.subr.mxu0 %v1455
      %2501 = vmatpush1.msra.mxu0 %v1454
      %2502 = vmatprep.subr.mxu0 %v1453
      %2503 = vmatpush1.msra.mxu0 %v1452
      %2504 = vmatprep.subr.mxu0 %v1451
      %2505 = vmatpush1.msra.mxu0 %v1450
      %2506 = vmatprep.subr.mxu0 %v1449
      %2507 = vmatpush1.msra.mxu0 %v1448
      %2508 = vmatprep.subr.mxu0 %v1447
      %2509 = vmatpush1.msra.mxu0 %v1446
      %2510 = vmatprep.subr.mxu0 %v1445
      %2511 = vmatpush1.msra.mxu0 %v1444
      %2512 = vmatprep.subr.mxu0 %v1443
      %2513 = vmatpush1.msra.mxu0 %v1442
      %2514 = vmatprep.subr.mxu0 %v1441
      %2515 = vmatpush1.msra.mxu0 %v1440
      %2516 = vmatprep.subr.mxu0 %v1439
      %2517 = vmatpush1.msra.mxu0 %v1438
      %2518 = vmatprep.subr.mxu0 %v1437
      %2519 = vmatpush1.msra.mxu0 %v1436
      %2520 = vmatprep.subr.mxu0 %v1435
      %2521 = vmatpush1.msra.mxu0 %v1434
      %2522 = vmatprep.subr.mxu0 %v1433
      %2523 = vmatpush1.msra.mxu0 %v1432
      %2524 = vmatprep.subr.mxu0 %v1431
      %2525 = vmatpush1.msra.mxu0 %v1430
      %2526 = vmatprep.subr.mxu0 %v1429
      %2527 = vmatpush1.msra.mxu0 %v1428
      %2528 = vmatprep.subr.mxu0 %v1427
      %2529 = vmatpush1.msra.mxu0 %v1426
      %2530 = vmatprep.subr.mxu0 0.0
      %2531 = vmatpush2.msra.mxu0 0.0
      %2532 = vmatprep.subr.mxu0 0.0
      %2533 = vmatpush2.msra.mxu0 0.0
      %2534 = vmatprep.subr.mxu0 0.0
      %2535 = vmatpush2.msra.mxu0 0.0
      %2536 = vmatprep.subr.mxu0 0.0
      %2537 = vmatpush2.msra.mxu0 0.0
      %2538 = vmatprep.subr.mxu0 0.0
      %2539 = vmatpush2.msra.mxu0 0.0
      %2540 = vmatprep.subr.mxu0 0.0
      %2541 = vmatpush2.msra.mxu0 0.0
      %2542 = vmatprep.subr.mxu0 0.0
      %2543 = vmatpush2.msra.mxu0 0.0
      %2544 = vmatprep.subr.mxu0 0.0
      %2545 = vmatpush2.msra.mxu0 0.0
      %2546 = vmatprep.subr.mxu0 0.0
      %2547 = vmatpush2.msra.mxu0 0.0
      %2548 = vmatprep.subr.mxu0 0.0
      %2549 = vmatpush2.msra.mxu0 0.0
      %2550 = vmatprep.subr.mxu0 0.0
      %2551 = vmatpush2.msra.mxu0 0.0
      %2552 = vmatprep.subr.mxu0 0.0
      %2553 = vmatpush2.msra.mxu0 0.0
      %2554 = vmatprep.subr.mxu0 0.0
      %2555 = vmatpush2.msra.mxu0 0.0
      %2556 = vmatprep.subr.mxu0 0.0
      %2557 = vmatpush2.msra.mxu0 0.0
      %2558 = vmatprep.subr.mxu0 0.0
      %2559 = vmatpush2.msra.mxu0 0.0
      %2560 = vmatprep.subr.mxu0 0.0
      %2561 = vmatpush2.msra.mxu0 0.0
      %2562 = vmatprep.mubr.f32.mxu0 0.0
      %2563 = vmatmul.mubr.f32.gmra.mxu0 %v1138
      %v2564 = vpop.f32.mrf.mxu0
      %v2565 = vadd.f32 %v2308, %v2564
      %v2566 = vpop.f32.mrf.mxu0
      %v2567 = vadd.f32 %v2310, %v2566
      %2568 = vmatprep.mubr.f32.mxu0 0.0
      %2569 = vmatmul.mubr.f32.gmra.mxu0 %v1139
      %v2570 = vpop.f32.mrf.mxu0
      %v2571 = vadd.f32 %v2314, %v2570
      %v2572 = vpop.f32.mrf.mxu0
      %v2573 = vadd.f32 %v2316, %v2572
      %2574 = vmatprep.mubr.f32.mxu0 0.0
      %2575 = vmatmul.mubr.f32.gmra.mxu0 %v1140
      %v2576 = vpop.f32.mrf.mxu0
      %v2577 = vadd.f32 %v2320, %v2576
      %v2578 = vpop.f32.mrf.mxu0
      %v2579 = vadd.f32 %v2322, %v2578
      %2580 = vmatprep.mubr.f32.mxu0 0.0
      %2581 = vmatmul.mubr.f32.gmra.mxu0 %v1141
      %v2582 = vpop.f32.mrf.mxu0
      %v2583 = vadd.f32 %v2326, %v2582
      %v2584 = vpop.f32.mrf.mxu0
      %v2585 = vadd.f32 %v2328, %v2584
      %2586 = vmatprep.mubr.f32.mxu0 0.0
      %2587 = vmatmul.mubr.f32.gmra.mxu0 %v1142
      %v2588 = vpop.f32.mrf.mxu0
      %v2589 = vadd.f32 %v2332, %v2588
      %v2590 = vpop.f32.mrf.mxu0
      %v2591 = vadd.f32 %v2334, %v2590
      %2592 = vmatprep.mubr.f32.mxu0 0.0
      %2593 = vmatmul.mubr.f32.gmra.mxu0 %v1143
      %v2594 = vpop.f32.mrf.mxu0
      %v2595 = vadd.f32 %v2338, %v2594
      %v2596 = vpop.f32.mrf.mxu0
      %v2597 = vadd.f32 %v2340, %v2596
      %2598 = vmatprep.mubr.f32.mxu0 0.0
      %2599 = vmatmul.mubr.f32.gmra.mxu0 %v1144
      %v2600 = vpop.f32.mrf.mxu0
      %v2601 = vadd.f32 %v2344, %v2600
      %v2602 = vpop.f32.mrf.mxu0
      %v2603 = vadd.f32 %v2346, %v2602
      %2604 = vmatprep.mubr.f32.mxu0 0.0
      %2605 = vmatmul.mubr.f32.gmra.mxu0 %v1145
      %v2606 = vpop.f32.mrf.mxu0
      %v2607 = vadd.f32 %v2350, %v2606
      %v2608 = vpop.f32.mrf.mxu0
      %v2609 = vadd.f32 %v2352, %v2608
      %2610 = vmatprep.mubr.f32.mxu0 0.0
      %2611 = vmatmul.mubr.f32.gmra.mxu0 %v1146
      %v2612 = vpop.f32.mrf.mxu0
      %v2613 = vadd.f32 %v2356, %v2612
      %v2614 = vpop.f32.mrf.mxu0
      %v2615 = vadd.f32 %v2358, %v2614
      %2616 = vmatprep.mubr.f32.mxu0 0.0
      %2617 = vmatmul.mubr.f32.gmra.mxu0 %v1147
      %v2618 = vpop.f32.mrf.mxu0
      %v2619 = vadd.f32 %v2362, %v2618
      %v2620 = vpop.f32.mrf.mxu0
      %v2621 = vadd.f32 %v2364, %v2620
      %2622 = vmatprep.mubr.f32.mxu0 0.0
      %2623 = vmatmul.mubr.f32.gmra.mxu0 %v1148
      %v2624 = vpop.f32.mrf.mxu0
      %v2625 = vadd.f32 %v2368, %v2624
      %v2626 = vpop.f32.mrf.mxu0
      %v2627 = vadd.f32 %v2370, %v2626
      %2628 = vmatprep.mubr.f32.mxu0 0.0
      %2629 = vmatmul.mubr.f32.gmra.mxu0 %v1149
      %v2630 = vpop.f32.mrf.mxu0
      %v2631 = vadd.f32 %v2374, %v2630
      %v2632 = vpop.f32.mrf.mxu0
      %v2633 = vadd.f32 %v2376, %v2632
      %2634 = vmatprep.mubr.f32.mxu0 0.0
      %2635 = vmatmul.mubr.f32.gmra.mxu0 %v1150
      %v2636 = vpop.f32.mrf.mxu0
      %v2637 = vadd.f32 %v2380, %v2636
      %v2638 = vpop.f32.mrf.mxu0
      %v2639 = vadd.f32 %v2382, %v2638
      %2640 = vmatprep.mubr.f32.mxu0 0.0
      %2641 = vmatmul.mubr.f32.gmra.mxu0 %v1151
      %v2642 = vpop.f32.mrf.mxu0
      %v2643 = vadd.f32 %v2386, %v2642
      %v2644 = vpop.f32.mrf.mxu0
      %v2645 = vadd.f32 %v2388, %v2644
      %2646 = vmatprep.mubr.f32.mxu0 0.0
      %2647 = vmatmul.mubr.f32.gmra.mxu0 %v1152
      %v2648 = vpop.f32.mrf.mxu0
      %v2649 = vadd.f32 %v2392, %v2648
      %v2650 = vpop.f32.mrf.mxu0
      %v2651 = vadd.f32 %v2394, %v2650
      %2652 = vmatprep.mubr.f32.mxu0 0.0
      %2653 = vmatmul.mubr.f32.gmra.mxu0 %v1153
      %v2654 = vpop.f32.mrf.mxu0
      %v2655 = vadd.f32 %v2398, %v2654
      %v2656 = vpop.f32.mrf.mxu0
      %v2657 = vadd.f32 %v2400, %v2656
      %2658 = vmatprep.mubr.f32.mxu0 0.0
      %2659 = vmatmul.mubr.f32.gmra.mxu0 %v1154
      %v2660 = vpop.f32.mrf.mxu0
      %v2661 = vadd.f32 %v2404, %v2660
      %v2662 = vpop.f32.mrf.mxu0
      %v2663 = vadd.f32 %v2406, %v2662
      %2664 = vmatprep.mubr.f32.mxu0 0.0
      %2665 = vmatmul.mubr.f32.gmra.mxu0 %v1155
      %v2666 = vpop.f32.mrf.mxu0
      %v2667 = vadd.f32 %v2410, %v2666
      %v2668 = vpop.f32.mrf.mxu0
      %v2669 = vadd.f32 %v2412, %v2668
      %2670 = vmatprep.mubr.f32.mxu0 0.0
      %2671 = vmatmul.mubr.f32.gmra.mxu0 %v1156
      %v2672 = vpop.f32.mrf.mxu0
      %v2673 = vadd.f32 %v2416, %v2672
      %v2674 = vpop.f32.mrf.mxu0
      %v2675 = vadd.f32 %v2418, %v2674
      %2676 = vmatprep.mubr.f32.mxu0 0.0
      %2677 = vmatmul.mubr.f32.gmra.mxu0 %v1157
      %v2678 = vpop.f32.mrf.mxu0
      %v2679 = vadd.f32 %v2422, %v2678
      %v2680 = vpop.f32.mrf.mxu0
      %v2681 = vadd.f32 %v2424, %v2680
      %2682 = vmatprep.mubr.f32.mxu0 0.0
      %2683 = vmatmul.mubr.f32.gmra.mxu0 %v1158
      %v2684 = vpop.f32.mrf.mxu0
      %v2685 = vadd.f32 %v2428, %v2684
      %v2686 = vpop.f32.mrf.mxu0
      %v2687 = vadd.f32 %v2430, %v2686
      %2688 = vmatprep.mubr.f32.mxu0 0.0
      %2689 = vmatmul.mubr.f32.gmra.mxu0 %v1159
      %v2690 = vpop.f32.mrf.mxu0
      %v2691 = vadd.f32 %v2434, %v2690
      %v2692 = vpop.f32.mrf.mxu0
      %v2693 = vadd.f32 %v2436, %v2692
      %2694 = vmatprep.mubr.f32.mxu0 0.0
      %2695 = vmatmul.mubr.f32.gmra.mxu0 %v1160
      %v2696 = vpop.f32.mrf.mxu0
      %v2697 = vadd.f32 %v2440, %v2696
      %v2698 = vpop.f32.mrf.mxu0
      %v2699 = vadd.f32 %v2442, %v2698
      %2700 = vmatprep.mubr.f32.mxu0 0.0
      %2701 = vmatmul.mubr.f32.gmra.mxu0 %v1161
      %v2702 = vpop.f32.mrf.mxu0
      %v2703 = vadd.f32 %v2446, %v2702
      %v2704 = vpop.f32.mrf.mxu0
      %v2705 = vadd.f32 %v2448, %v2704
      %2706 = vmatprep.mubr.f32.mxu0 0.0
      %2707 = vmatmul.mubr.f32.gmra.mxu0 %v1162
      %v2708 = vpop.f32.mrf.mxu0
      %v2709 = vadd.f32 %v2452, %v2708
      %v2710 = vpop.f32.mrf.mxu0
      %v2711 = vadd.f32 %v2454, %v2710
      %2712 = vmatprep.mubr.f32.mxu0 0.0
      %2713 = vmatmul.mubr.f32.gmra.mxu0 %v1163
      %v2714 = vpop.f32.mrf.mxu0
      %v2715 = vadd.f32 %v2458, %v2714
      %v2716 = vpop.f32.mrf.mxu0
      %v2717 = vadd.f32 %v2460, %v2716
      %2718 = vmatprep.mubr.f32.mxu0 0.0
      %2719 = vmatmul.mubr.f32.gmra.mxu0 %v1164
      %v2720 = vpop.f32.mrf.mxu0
      %v2721 = vadd.f32 %v2464, %v2720
      %v2722 = vpop.f32.mrf.mxu0
      %v2723 = vadd.f32 %v2466, %v2722
      %2724 = vmatprep.mubr.f32.mxu0 0.0
      %2725 = vmatmul.mubr.f32.gmra.mxu0 %v1165
      %v2726 = vpop.f32.mrf.mxu0
      %v2727 = vadd.f32 %v2470, %v2726
      %v2728 = vpop.f32.mrf.mxu0
      %v2729 = vadd.f32 %v2472, %v2728
      %2730 = vmatprep.mubr.f32.mxu0 0.0
      %2731 = vmatmul.mubr.f32.gmra.mxu0 %v1166
      %v2732 = vpop.f32.mrf.mxu0
      %v2733 = vadd.f32 %v2476, %v2732
      %v2734 = vpop.f32.mrf.mxu0
      %v2735 = vadd.f32 %v2478, %v2734
      %2736 = vmatprep.mubr.f32.mxu0 0.0
      %2737 = vmatmul.mubr.f32.gmra.mxu0 %v1167
      %v2738 = vpop.f32.mrf.mxu0
      %v2739 = vadd.f32 %v2482, %v2738
      %v2740 = vpop.f32.mrf.mxu0
      %v2741 = vadd.f32 %v2484, %v2740
      %2742 = vmatprep.mubr.f32.mxu0 0.0
      %2743 = vmatmul.mubr.f32.gmra.mxu0 %v1168
      %v2744 = vpop.f32.mrf.mxu0
      %v2745 = vadd.f32 %v2488, %v2744
      %v2746 = vpop.f32.mrf.mxu0
      %v2747 = vadd.f32 %v2490, %v2746
      %2748 = vmatprep.mubr.f32.mxu0 0.0
      %2749 = vmatmul.mubr.f32.gmra.mxu0 %v1169
      %v2750 = vpop.f32.mrf.mxu0
      %v2751 = vadd.f32 %v2494, %v2750
      %v2752 = vpop.f32.mrf.mxu0
      %v2753 = vadd.f32 %v2496, %v2752
      %2754 = vdwg.mxu0
      %v2755 = vmax.f32 %v2565, 0.0
      %v2756 = vmax.f32 %v2567, 0.0
      %v2757 = vmax.f32 %v2571, 0.0
      %v2758 = vmax.f32 %v2573, 0.0
      %v2759 = vmax.f32 %v2577, 0.0
      %v2760 = vmax.f32 %v2579, 0.0
      %v2761 = vmax.f32 %v2583, 0.0
      %v2762 = vmax.f32 %v2585, 0.0
      %v2763 = vmax.f32 %v2589, 0.0
      %v2764 = vmax.f32 %v2591, 0.0
      %v2765 = vmax.f32 %v2595, 0.0
      %v2766 = vmax.f32 %v2597, 0.0
      %v2767 = vmax.f32 %v2601, 0.0
      %v2768 = vmax.f32 %v2603, 0.0
      %v2769 = vmax.f32 %v2607, 0.0
      %v2770 = vmax.f32 %v2609, 0.0
      %v2771 = vmax.f32 %v2613, 0.0
      %v2772 = vmax.f32 %v2615, 0.0
      %v2773 = vmax.f32 %v2619, 0.0
      %v2774 = vmax.f32 %v2621, 0.0
      %v2775 = vmax.f32 %v2625, 0.0
      %v2776 = vmax.f32 %v2627, 0.0
      %v2777 = vmax.f32 %v2631, 0.0
      %v2778 = vmax.f32 %v2633, 0.0
      %v2779 = vmax.f32 %v2637, 0.0
      %v2780 = vmax.f32 %v2639, 0.0
      %v2781 = vmax.f32 %v2643, 0.0
      %v2782 = vmax.f32 %v2645, 0.0
      %v2783 = vmax.f32 %v2649, 0.0
      %v2784 = vmax.f32 %v2651, 0.0
      %v2785 = vmax.f32 %v2655, 0.0
      %v2786 = vmax.f32 %v2657, 0.0
      %v2787 = vmax.f32 %v2661, 0.0
      %v2788 = vmax.f32 %v2663, 0.0
      %v2789 = vmax.f32 %v2667, 0.0
      %v2790 = vmax.f32 %v2669, 0.0
      %v2791 = vmax.f32 %v2673, 0.0
      %v2792 = vmax.f32 %v2675, 0.0
      %v2793 = vmax.f32 %v2679, 0.0
      %v2794 = vmax.f32 %v2681, 0.0
      %v2795 = vmax.f32 %v2685, 0.0
      %v2796 = vmax.f32 %v2687, 0.0
      %v2797 = vmax.f32 %v2691, 0.0
      %v2798 = vmax.f32 %v2693, 0.0
      %v2799 = vmax.f32 %v2697, 0.0
      %v2800 = vmax.f32 %v2699, 0.0
      %v2801 = vmax.f32 %v2703, 0.0
      %v2802 = vmax.f32 %v2705, 0.0
      %v2803 = vmax.f32 %v2709, 0.0
      %v2804 = vmax.f32 %v2711, 0.0
      %v2805 = vmax.f32 %v2715, 0.0
      %v2806 = vmax.f32 %v2717, 0.0
      %v2807 = vmax.f32 %v2721, 0.0
      %v2808 = vmax.f32 %v2723, 0.0
      %v2809 = vmax.f32 %v2727, 0.0
      %v2810 = vmax.f32 %v2729, 0.0
      %v2811 = vmax.f32 %v2733, 0.0
      %v2812 = vmax.f32 %v2735, 0.0
      %v2813 = vmax.f32 %v2739, 0.0
      %v2814 = vmax.f32 %v2741, 0.0
      %v2815 = vmax.f32 %v2745, 0.0
      %v2816 = vmax.f32 %v2747, 0.0
      %v2817 = vmax.f32 %v2751, 0.0
      %v2818 = vmax.f32 %v2753, 0.0
      %vm2883 = vcmask 1040384
      %v2884 = vrot.slane %v2755, 7
      %v2885 = vrot.slane %v2756, 7
      %v2886 = vrot.slane %v2757, 7
      %v2887 = vsel %vm2883, %v2884, %v2886
      %v2888 = vrot.slane %v2758, 7
      %v2889 = vsel %vm2883, %v2885, %v2888
      %v2890 = vrot.slane %v2759, 7
      %v2891 = vrot.slane %v2760, 7
      %v2892 = vrot.slane %v2761, 7
      %v2893 = vsel %vm2883, %v2890, %v2892
      %v2894 = vrot.slane %v2762, 7
      %v2895 = vsel %vm2883, %v2891, %v2894
      %v2896 = vrot.slane %v2763, 7
      %v2897 = vrot.slane %v2764, 7
      %v2898 = vrot.slane %v2765, 7
      %v2899 = vsel %vm2883, %v2896, %v2898
      %v2900 = vrot.slane %v2766, 7
      %v2901 = vsel %vm2883, %v2897, %v2900
      %v2902 = vrot.slane %v2767, 7
      %v2903 = vrot.slane %v2768, 7
      %v2904 = vrot.slane %v2769, 7
      %v2905 = vsel %vm2883, %v2902, %v2904
      %v2906 = vrot.slane %v2770, 7
      %v2907 = vsel %vm2883, %v2903, %v2906
      %v2908 = vrot.slane %v2771, 7
      %v2909 = vrot.slane %v2772, 7
      %v2910 = vrot.slane %v2773, 7
      %v2911 = vsel %vm2883, %v2908, %v2910
      %v2912 = vrot.slane %v2774, 7
      %v2913 = vsel %vm2883, %v2909, %v2912
      %v2914 = vrot.slane %v2775, 7
      %v2915 = vrot.slane %v2776, 7
      %v2916 = vrot.slane %v2777, 7
      %v2917 = vsel %vm2883, %v2914, %v2916
      %v2918 = vrot.slane %v2778, 7
      %v2919 = vsel %vm2883, %v2915, %v2918
      %v2920 = vrot.slane %v2779, 7
      %v2921 = vrot.slane %v2780, 7
      %v2922 = vrot.slane %v2781, 7
      %v2923 = vsel %vm2883, %v2920, %v2922
      %v2924 = vrot.slane %v2782, 7
      %v2925 = vsel %vm2883, %v2921, %v2924
      %v2926 = vrot.slane %v2783, 7
      %v2927 = vrot.slane %v2784, 7
      %v2928 = vrot.slane %v2785, 7
      %v2929 = vsel %vm2883, %v2926, %v2928
      %v2930 = vrot.slane %v2786, 7
      %v2931 = vsel %vm2883, %v2927, %v2930
      %v2932 = vrot.slane %v2787, 7
      %v2933 = vrot.slane %v2788, 7
      %v2934 = vrot.slane %v2789, 7
      %v2935 = vsel %vm2883, %v2932, %v2934
      %v2936 = vrot.slane %v2790, 7
      %v2937 = vsel %vm2883, %v2933, %v2936
      %v2938 = vrot.slane %v2791, 7
      %v2939 = vrot.slane %v2792, 7
      %v2940 = vrot.slane %v2793, 7
      %v2941 = vsel %vm2883, %v2938, %v2940
      %v2942 = vrot.slane %v2794, 7
      %v2943 = vsel %vm2883, %v2939, %v2942
      %v2944 = vrot.slane %v2795, 7
      %v2945 = vrot.slane %v2796, 7
      %v2946 = vrot.slane %v2797, 7
      %v2947 = vsel %vm2883, %v2944, %v2946
      %v2948 = vrot.slane %v2798, 7
      %v2949 = vsel %vm2883, %v2945, %v2948
      %v2950 = vrot.slane %v2799, 7
      %v2951 = vrot.slane %v2800, 7
      %v2952 = vrot.slane %v2801, 7
      %v2953 = vsel %vm2883, %v2950, %v2952
      %v2954 = vrot.slane %v2802, 7
      %v2955 = vsel %vm2883, %v2951, %v2954
      %v2956 = vrot.slane %v2803, 7
      %v2957 = vrot.slane %v2804, 7
      %v2958 = vrot.slane %v2805, 7
      %v2959 = vsel %vm2883, %v2956, %v2958
      %v2960 = vrot.slane %v2806, 7
      %v2961 = vsel %vm2883, %v2957, %v2960
      %v2962 = vrot.slane %v2807, 7
      %v2963 = vrot.slane %v2808, 7
      %v2964 = vrot.slane %v2809, 7
      %v2965 = vsel %vm2883, %v2962, %v2964
      %v2966 = vrot.slane %v2810, 7
      %v2967 = vsel %vm2883, %v2963, %v2966
      %v2968 = vrot.slane %v2811, 7
      %v2969 = vrot.slane %v2812, 7
      %v2970 = vrot.slane %v2813, 7
      %v2971 = vsel %vm2883, %v2968, %v2970
      %v2972 = vrot.slane %v2814, 7
      %v2973 = vsel %vm2883, %v2969, %v2972
      %v2974 = vrot.slane %v2815, 7
      %v2975 = vrot.slane %v2816, 7
      %v2976 = vrot.slane %v2817, 7
      %v2977 = vsel %vm2883, %v2974, %v2976
      %v2978 = vrot.slane %v2818, 7
      %v2979 = vsel %vm2883, %v2975, %v2978
      %s3076 = scalar_lea.vmem [#allocation3], 48
      %3077 = vst [vmem:[%s3076] sm:$0xfe] %v2884
      %3078 = vst [vmem:[%s3076 + $0x8] sm:$0xfe] %v2885
      %3079 = vst [vmem:[%s3076 + $0x10] sm:$0xff] %v2887
      %3080 = vst [vmem:[%s3076 + $0x18] sm:$0xff] %v2889
      %3081 = vst [vmem:[%s3076 + $0x20] sm:$0x1] %v2886
      %3082 = vst [vmem:[%s3076 + $0x28] sm:$0x1] %v2888
      %3083 = vst [vmem:[%s3076 + $0x30] sm:$0xfe] %v2890
      %3084 = vst [vmem:[%s3076 + $0x38] sm:$0xfe] %v2891
      %3085 = vst [vmem:[%s3076 + $0x40] sm:$0xff] %v2893
      %3086 = vst [vmem:[%s3076 + $0x48] sm:$0xff] %v2895
      %3087 = vst [vmem:[%s3076 + $0x50] sm:$0x1] %v2892
      %3088 = vst [vmem:[%s3076 + $0x58] sm:$0x1] %v2894
      %3089 = vst [vmem:[%s3076 + $0x60] sm:$0xfe] %v2896
      %3090 = vst [vmem:[%s3076 + $0x68] sm:$0xfe] %v2897
      %3091 = vst [vmem:[%s3076 + $0x70] sm:$0xff] %v2899
      %3092 = vst [vmem:[%s3076 + $0x78] sm:$0xff] %v2901
      %3093 = vst [vmem:[%s3076 + $0x80] sm:$0x1] %v2898
      %3094 = vst [vmem:[%s3076 + $0x88] sm:$0x1] %v2900
      %3095 = vst [vmem:[%s3076 + $0x90] sm:$0xfe] %v2902
      %3096 = vst [vmem:[%s3076 + $0x98] sm:$0xfe] %v2903
      %3097 = vst [vmem:[%s3076 + $0xa0] sm:$0xff] %v2905
      %3098 = vst [vmem:[%s3076 + $0xa8] sm:$0xff] %v2907
      %3099 = vst [vmem:[%s3076 + $0xb0] sm:$0x1] %v2904
      %3100 = vst [vmem:[%s3076 + $0xb8] sm:$0x1] %v2906
      %3101 = vst [vmem:[%s3076 + $0xc0] sm:$0xfe] %v2908
      %3102 = vst [vmem:[%s3076 + $0xc8] sm:$0xfe] %v2909
      %3103 = vst [vmem:[%s3076 + $0xd0] sm:$0xff] %v2911
      %3104 = vst [vmem:[%s3076 + $0xd8] sm:$0xff] %v2913
      %3105 = vst [vmem:[%s3076 + $0xe0] sm:$0x1] %v2910
      %3106 = vst [vmem:[%s3076 + $0xe8] sm:$0x1] %v2912
      %3107 = vst [vmem:[%s3076 + $0xf0] sm:$0xfe] %v2914
      %3108 = vst [vmem:[%s3076 + $0xf8] sm:$0xfe] %v2915
      %3109 = vst [vmem:[%s3076 + $0x100] sm:$0xff] %v2917
      %3110 = vst [vmem:[%s3076 + $0x108] sm:$0xff] %v2919
      %3111 = vst [vmem:[%s3076 + $0x110] sm:$0x1] %v2916
      %3112 = vst [vmem:[%s3076 + $0x118] sm:$0x1] %v2918
      %3113 = vst [vmem:[%s3076 + $0x120] sm:$0xfe] %v2920
      %3114 = vst [vmem:[%s3076 + $0x128] sm:$0xfe] %v2921
      %3115 = vst [vmem:[%s3076 + $0x130] sm:$0xff] %v2923
      %3116 = vst [vmem:[%s3076 + $0x138] sm:$0xff] %v2925
      %3117 = vst [vmem:[%s3076 + $0x140] sm:$0x1] %v2922
      %3118 = vst [vmem:[%s3076 + $0x148] sm:$0x1] %v2924
      %3119 = vst [vmem:[%s3076 + $0x150] sm:$0xfe] %v2926
      %3120 = vst [vmem:[%s3076 + $0x158] sm:$0xfe] %v2927
      %3121 = vst [vmem:[%s3076 + $0x160] sm:$0xff] %v2929
      %3122 = vst [vmem:[%s3076 + $0x168] sm:$0xff] %v2931
      %3123 = vst [vmem:[%s3076 + $0x170] sm:$0x1] %v2928
      %3124 = vst [vmem:[%s3076 + $0x178] sm:$0x1] %v2930
      %3125 = vst [vmem:[%s3076 + $0x180] sm:$0xfe] %v2932
      %3126 = vst [vmem:[%s3076 + $0x188] sm:$0xfe] %v2933
      %3127 = vst [vmem:[%s3076 + $0x190] sm:$0xff] %v2935
      %3128 = vst [vmem:[%s3076 + $0x198] sm:$0xff] %v2937
      %3129 = vst [vmem:[%s3076 + $0x1a0] sm:$0x1] %v2934
      %3130 = vst [vmem:[%s3076 + $0x1a8] sm:$0x1] %v2936
      %3131 = vst [vmem:[%s3076 + $0x1b0] sm:$0xfe] %v2938
      %3132 = vst [vmem:[%s3076 + $0x1b8] sm:$0xfe] %v2939
      %3133 = vst [vmem:[%s3076 + $0x1c0] sm:$0xff] %v2941
      %3134 = vst [vmem:[%s3076 + $0x1c8] sm:$0xff] %v2943
      %3135 = vst [vmem:[%s3076 + $0x1d0] sm:$0x1] %v2940
      %3136 = vst [vmem:[%s3076 + $0x1d8] sm:$0x1] %v2942
      %3137 = vst [vmem:[%s3076 + $0x1e0] sm:$0xfe] %v2944
      %3138 = vst [vmem:[%s3076 + $0x1e8] sm:$0xfe] %v2945
      %3139 = vst [vmem:[%s3076 + $0x1f0] sm:$0xff] %v2947
      %3140 = vst [vmem:[%s3076 + $0x1f8] sm:$0xff] %v2949
      %3141 = vst [vmem:[%s3076 + $0x200] sm:$0x1] %v2946
      %3142 = vst [vmem:[%s3076 + $0x208] sm:$0x1] %v2948
      %3143 = vst [vmem:[%s3076 + $0x210] sm:$0xfe] %v2950
      %3144 = vst [vmem:[%s3076 + $0x218] sm:$0xfe] %v2951
      %3145 = vst [vmem:[%s3076 + $0x220] sm:$0xff] %v2953
      %3146 = vst [vmem:[%s3076 + $0x228] sm:$0xff] %v2955
      %3147 = vst [vmem:[%s3076 + $0x230] sm:$0x1] %v2952
      %3148 = vst [vmem:[%s3076 + $0x238] sm:$0x1] %v2954
      %3149 = vst [vmem:[%s3076 + $0x240] sm:$0xfe] %v2956
      %3150 = vst [vmem:[%s3076 + $0x248] sm:$0xfe] %v2957
      %3151 = vst [vmem:[%s3076 + $0x250] sm:$0xff] %v2959
      %3152 = vst [vmem:[%s3076 + $0x258] sm:$0xff] %v2961
      %3153 = vst [vmem:[%s3076 + $0x260] sm:$0x1] %v2958
      %3154 = vst [vmem:[%s3076 + $0x268] sm:$0x1] %v2960
      %3155 = vst [vmem:[%s3076 + $0x270] sm:$0xfe] %v2962
      %3156 = vst [vmem:[%s3076 + $0x278] sm:$0xfe] %v2963
      %3157 = vst [vmem:[%s3076 + $0x280] sm:$0xff] %v2965
      %3158 = vst [vmem:[%s3076 + $0x288] sm:$0xff] %v2967
      %3159 = vst [vmem:[%s3076 + $0x290] sm:$0x1] %v2964
      %3160 = vst [vmem:[%s3076 + $0x298] sm:$0x1] %v2966
      %3161 = vst [vmem:[%s3076 + $0x2a0] sm:$0xfe] %v2968
      %3162 = vst [vmem:[%s3076 + $0x2a8] sm:$0xfe] %v2969
      %3163 = vst [vmem:[%s3076 + $0x2b0] sm:$0xff] %v2971
      %3164 = vst [vmem:[%s3076 + $0x2b8] sm:$0xff] %v2973
      %3165 = vst [vmem:[%s3076 + $0x2c0] sm:$0x1] %v2970
      %3166 = vst [vmem:[%s3076 + $0x2c8] sm:$0x1] %v2972
      %3167 = vst [vmem:[%s3076 + $0x2d0] sm:$0xfe] %v2974
      %3168 = vst [vmem:[%s3076 + $0x2d8] sm:$0xfe] %v2975
      %3169 = vst [vmem:[%s3076 + $0x2e0] sm:$0xff] %v2977
      %3170 = vst [vmem:[%s3076 + $0x2e8] sm:$0xff] %v2979
      %3171 = vst [vmem:[%s3076 + $0x2f0] sm:$0x1] %v2976
      %3172 = vst [vmem:[%s3076 + $0x2f8] sm:$0x1] %v2978
      %v3173 = vld [vmem:[#allocation3] sm:$0xff]
      %v3174 = vld [vmem:[#allocation3 + $0x8] sm:$0xff]
      %v3175 = vld [vmem:[#allocation3 + $0x10] sm:$0xff]
      %v3176 = vld [vmem:[#allocation3 + $0x18] sm:$0xff]
      %v3177 = vld [vmem:[#allocation3 + $0x30] sm:$0xff]
      %v3178 = vld [vmem:[#allocation3 + $0x38] sm:$0xff]
      %v3179 = vld [vmem:[#allocation3 + $0x40] sm:$0xff]
      %v3180 = vld [vmem:[#allocation3 + $0x48] sm:$0xff]
      %v3181 = vld [vmem:[#allocation3 + $0x60] sm:$0xff]
      %v3182 = vld [vmem:[#allocation3 + $0x68] sm:$0xff]
      %v3183 = vld [vmem:[#allocation3 + $0x70] sm:$0xff]
      %v3184 = vld [vmem:[#allocation3 + $0x78] sm:$0xff]
      %v3185 = vld [vmem:[#allocation3 + $0x90] sm:$0xff]
      %v3186 = vld [vmem:[#allocation3 + $0x98] sm:$0xff]
      %v3187 = vld [vmem:[#allocation3 + $0xa0] sm:$0xff]
      %v3188 = vld [vmem:[#allocation3 + $0xa8] sm:$0xff]
      %v3189 = vld [vmem:[#allocation3 + $0xc0] sm:$0xff]
      %v3190 = vld [vmem:[#allocation3 + $0xc8] sm:$0xff]
      %v3191 = vld [vmem:[#allocation3 + $0xd0] sm:$0xff]
      %v3192 = vld [vmem:[#allocation3 + $0xd8] sm:$0xff]
      %v3193 = vld [vmem:[#allocation3 + $0xf0] sm:$0xff]
      %v3194 = vld [vmem:[#allocation3 + $0xf8] sm:$0xff]
      %v3195 = vld [vmem:[#allocation3 + $0x100] sm:$0xff]
      %v3196 = vld [vmem:[#allocation3 + $0x108] sm:$0xff]
      %v3197 = vld [vmem:[#allocation3 + $0x120] sm:$0xff]
      %v3198 = vld [vmem:[#allocation3 + $0x128] sm:$0xff]
      %v3199 = vld [vmem:[#allocation3 + $0x130] sm:$0xff]
      %v3200 = vld [vmem:[#allocation3 + $0x138] sm:$0xff]
      %v3201 = vld [vmem:[#allocation3 + $0x150] sm:$0xff]
      %v3202 = vld [vmem:[#allocation3 + $0x158] sm:$0xff]
      %v3203 = vld [vmem:[#allocation3 + $0x160] sm:$0xff]
      %v3204 = vld [vmem:[#allocation3 + $0x168] sm:$0xff]
      %v3205 = vld [vmem:[#allocation3 + $0x180] sm:$0xff]
      %v3206 = vld [vmem:[#allocation3 + $0x188] sm:$0xff]
      %v3207 = vld [vmem:[#allocation3 + $0x190] sm:$0xff]
      %v3208 = vld [vmem:[#allocation3 + $0x198] sm:$0xff]
      %v3209 = vld [vmem:[#allocation3 + $0x1b0] sm:$0xff]
      %v3210 = vld [vmem:[#allocation3 + $0x1b8] sm:$0xff]
      %v3211 = vld [vmem:[#allocation3 + $0x1c0] sm:$0xff]
      %v3212 = vld [vmem:[#allocation3 + $0x1c8] sm:$0xff]
      %v3213 = vld [vmem:[#allocation3 + $0x1e0] sm:$0xff]
      %v3214 = vld [vmem:[#allocation3 + $0x1e8] sm:$0xff]
      %v3215 = vld [vmem:[#allocation3 + $0x1f0] sm:$0xff]
      %v3216 = vld [vmem:[#allocation3 + $0x1f8] sm:$0xff]
      %v3217 = vld [vmem:[#allocation3 + $0x210] sm:$0xff]
      %v3218 = vld [vmem:[#allocation3 + $0x218] sm:$0xff]
      %v3219 = vld [vmem:[#allocation3 + $0x220] sm:$0xff]
      %v3220 = vld [vmem:[#allocation3 + $0x228] sm:$0xff]
      %v3221 = vld [vmem:[#allocation3 + $0x240] sm:$0xff]
      %v3222 = vld [vmem:[#allocation3 + $0x248] sm:$0xff]
      %v3223 = vld [vmem:[#allocation3 + $0x250] sm:$0xff]
      %v3224 = vld [vmem:[#allocation3 + $0x258] sm:$0xff]
      %v3225 = vld [vmem:[#allocation3 + $0x270] sm:$0xff]
      %v3226 = vld [vmem:[#allocation3 + $0x278] sm:$0xff]
      %v3227 = vld [vmem:[#allocation3 + $0x280] sm:$0xff]
      %v3228 = vld [vmem:[#allocation3 + $0x288] sm:$0xff]
      %v3229 = vld [vmem:[#allocation3 + $0x2a0] sm:$0xff]
      %v3230 = vld [vmem:[#allocation3 + $0x2a8] sm:$0xff]
      %v3231 = vld [vmem:[#allocation3 + $0x2b0] sm:$0xff]
      %v3232 = vld [vmem:[#allocation3 + $0x2b8] sm:$0xff]
      %v3233 = vld [vmem:[#allocation3 + $0x2d0] sm:$0xff]
      %v3234 = vld [vmem:[#allocation3 + $0x2d8] sm:$0xff]
      %v3235 = vld [vmem:[#allocation3 + $0x2e0] sm:$0xff]
      %v3236 = vld [vmem:[#allocation3 + $0x2e8] sm:$0xff]
      %v3237 = vld [vmem:[%s5] sm:$0xff]
      %v3238 = vld [vmem:[%s5 + $0x8] sm:$0xff]
      %v3239 = vld [vmem:[%s5 + $0x10] sm:$0xff]
      %v3240 = vld [vmem:[%s5 + $0x18] sm:$0xff]
      %v3241 = vld [vmem:[%s5 + $0x20] sm:$0xff]
      %v3242 = vld [vmem:[%s5 + $0x28] sm:$0xff]
      %v3243 = vld [vmem:[%s5 + $0x30] sm:$0xff]
      %v3244 = vld [vmem:[%s5 + $0x38] sm:$0xff]
      %v3245 = vld [vmem:[%s5 + $0x40] sm:$0xff]
      %v3246 = vld [vmem:[%s5 + $0x48] sm:$0xff]
      %v3247 = vld [vmem:[%s5 + $0x50] sm:$0xff]
      %v3248 = vld [vmem:[%s5 + $0x58] sm:$0xff]
      %v3249 = vld [vmem:[%s5 + $0x60] sm:$0xff]
      %v3250 = vld [vmem:[%s5 + $0x68] sm:$0xff]
      %v3251 = vld [vmem:[%s5 + $0x70] sm:$0xff]
      %v3252 = vld [vmem:[%s5 + $0x78] sm:$0xff]
      %v3253 = vld [vmem:[%s5 + $0x80] sm:$0xff]
      %v3254 = vld [vmem:[%s5 + $0x88] sm:$0xff]
      %v3255 = vld [vmem:[%s5 + $0x90] sm:$0xff]
      %v3256 = vld [vmem:[%s5 + $0x98] sm:$0xff]
      %v3257 = vld [vmem:[%s5 + $0xa0] sm:$0xff]
      %v3258 = vld [vmem:[%s5 + $0xa8] sm:$0xff]
      %v3259 = vld [vmem:[%s5 + $0xb0] sm:$0xff]
      %v3260 = vld [vmem:[%s5 + $0xb8] sm:$0xff]
      %v3261 = vld [vmem:[%s5 + $0xc0] sm:$0xff]
      %v3262 = vld [vmem:[%s5 + $0xc8] sm:$0xff]
      %v3263 = vld [vmem:[%s5 + $0xd0] sm:$0xff]
      %v3264 = vld [vmem:[%s5 + $0xd8] sm:$0xff]
      %v3265 = vld [vmem:[%s5 + $0xe0] sm:$0xff]
      %v3266 = vld [vmem:[%s5 + $0xe8] sm:$0xff]
      %v3267 = vld [vmem:[%s5 + $0xf0] sm:$0xff]
      %v3268 = vld [vmem:[%s5 + $0xf8] sm:$0xff]
      %v3269 = vld [vmem:[#allocation3] sm:$0xfe]
      %v3270 = vld [vmem:[#allocation3 + $0x8] sm:$0xfe]
      %v3271 = vld [vmem:[#allocation3 + $0x20] sm:$0x1]
      %v3272 = vld [vmem:[#allocation3 + $0x28] sm:$0x1]
      %v3273 = vld [vmem:[#allocation3 + $0x30] sm:$0xfe]
      %v3274 = vld [vmem:[#allocation3 + $0x38] sm:$0xfe]
      %v3275 = vld [vmem:[#allocation3 + $0x50] sm:$0x1]
      %v3276 = vld [vmem:[#allocation3 + $0x58] sm:$0x1]
      %v3277 = vld [vmem:[#allocation3 + $0x60] sm:$0xfe]
      %v3278 = vld [vmem:[#allocation3 + $0x68] sm:$0xfe]
      %v3279 = vld [vmem:[#allocation3 + $0x80] sm:$0x1]
      %v3280 = vld [vmem:[#allocation3 + $0x88] sm:$0x1]
      %v3281 = vld [vmem:[#allocation3 + $0x90] sm:$0xfe]
      %v3282 = vld [vmem:[#allocation3 + $0x98] sm:$0xfe]
      %v3283 = vld [vmem:[#allocation3 + $0xb0] sm:$0x1]
      %v3284 = vld [vmem:[#allocation3 + $0xb8] sm:$0x1]
      %v3285 = vld [vmem:[#allocation3 + $0xc0] sm:$0xfe]
      %v3286 = vld [vmem:[#allocation3 + $0xc8] sm:$0xfe]
      %v3287 = vld [vmem:[#allocation3 + $0xe0] sm:$0x1]
      %v3288 = vld [vmem:[#allocation3 + $0xe8] sm:$0x1]
      %v3289 = vld [vmem:[#allocation3 + $0xf0] sm:$0xfe]
      %v3290 = vld [vmem:[#allocation3 + $0xf8] sm:$0xfe]
      %v3291 = vld [vmem:[#allocation3 + $0x110] sm:$0x1]
      %v3292 = vld [vmem:[#allocation3 + $0x118] sm:$0x1]
      %v3293 = vld [vmem:[#allocation3 + $0x120] sm:$0xfe]
      %v3294 = vld [vmem:[#allocation3 + $0x128] sm:$0xfe]
      %v3295 = vld [vmem:[#allocation3 + $0x140] sm:$0x1]
      %v3296 = vld [vmem:[#allocation3 + $0x148] sm:$0x1]
      %v3297 = vld [vmem:[#allocation3 + $0x150] sm:$0xfe]
      %v3298 = vld [vmem:[#allocation3 + $0x158] sm:$0xfe]
      %v3299 = vld [vmem:[#allocation3 + $0x170] sm:$0x1]
      %v3300 = vld [vmem:[#allocation3 + $0x178] sm:$0x1]
      %v3301 = vld [vmem:[#allocation3 + $0x180] sm:$0xfe]
      %v3302 = vld [vmem:[#allocation3 + $0x188] sm:$0xfe]
      %v3303 = vld [vmem:[#allocation3 + $0x1a0] sm:$0x1]
      %v3304 = vld [vmem:[#allocation3 + $0x1a8] sm:$0x1]
      %v3305 = vld [vmem:[#allocation3 + $0x1b0] sm:$0xfe]
      %v3306 = vld [vmem:[#allocation3 + $0x1b8] sm:$0xfe]
      %v3307 = vld [vmem:[#allocation3 + $0x1d0] sm:$0x1]
      %v3308 = vld [vmem:[#allocation3 + $0x1d8] sm:$0x1]
      %v3309 = vld [vmem:[#allocation3 + $0x1e0] sm:$0xfe]
      %v3310 = vld [vmem:[#allocation3 + $0x1e8] sm:$0xfe]
      %v3311 = vld [vmem:[#allocation3 + $0x200] sm:$0x1]
      %v3312 = vld [vmem:[#allocation3 + $0x208] sm:$0x1]
      %v3313 = vld [vmem:[#allocation3 + $0x210] sm:$0xfe]
      %v3314 = vld [vmem:[#allocation3 + $0x218] sm:$0xfe]
      %v3315 = vld [vmem:[#allocation3 + $0x230] sm:$0x1]
      %v3316 = vld [vmem:[#allocation3 + $0x238] sm:$0x1]
      %v3317 = vld [vmem:[#allocation3 + $0x240] sm:$0xfe]
      %v3318 = vld [vmem:[#allocation3 + $0x248] sm:$0xfe]
      %v3319 = vld [vmem:[#allocation3 + $0x260] sm:$0x1]
      %v3320 = vld [vmem:[#allocation3 + $0x268] sm:$0x1]
      %v3321 = vld [vmem:[#allocation3 + $0x270] sm:$0xfe]
      %v3322 = vld [vmem:[#allocation3 + $0x278] sm:$0xfe]
      %v3323 = vld [vmem:[#allocation3 + $0x290] sm:$0x1]
      %v3324 = vld [vmem:[#allocation3 + $0x298] sm:$0x1]
      %v3325 = vld [vmem:[#allocation3 + $0x2a0] sm:$0xfe]
      %v3326 = vld [vmem:[#allocation3 + $0x2a8] sm:$0xfe]
      %v3327 = vld [vmem:[#allocation3 + $0x2c0] sm:$0x1]
      %v3328 = vld [vmem:[#allocation3 + $0x2c8] sm:$0x1]
      %v3329 = vld [vmem:[#allocation3 + $0x2d0] sm:$0xfe]
      %v3330 = vld [vmem:[#allocation3 + $0x2d8] sm:$0xfe]
      %v3331 = vld [vmem:[#allocation3 + $0x2f0] sm:$0x1]
      %v3332 = vld [vmem:[#allocation3 + $0x2f8] sm:$0x1]
      %vm3429 = vcmask 1046528
      %v3430 = vrot.slane %v3269, 1
      %v3431 = vrot.slane %v3175, 1
      %v3432 = vsel %vm3429, %v3430, %v3431
      %v3433 = vrot.slane %v3270, 1
      %v3434 = vrot.slane %v3176, 1
      %v3435 = vsel %vm3429, %v3433, %v3434
      %v3436 = vrot.slane %v3271, 1
      %v3437 = vsel %vm3429, %v3431, %v3436
      %v3438 = vrot.slane %v3272, 1
      %v3439 = vsel %vm3429, %v3434, %v3438
      %v3440 = vrot.slane %v3273, 1
      %v3441 = vrot.slane %v3179, 1
      %v3442 = vsel %vm3429, %v3440, %v3441
      %v3443 = vrot.slane %v3274, 1
      %v3444 = vrot.slane %v3180, 1
      %v3445 = vsel %vm3429, %v3443, %v3444
      %v3446 = vrot.slane %v3275, 1
      %v3447 = vsel %vm3429, %v3441, %v3446
      %v3448 = vrot.slane %v3276, 1
      %v3449 = vsel %vm3429, %v3444, %v3448
      %v3450 = vrot.slane %v3277, 1
      %v3451 = vrot.slane %v3183, 1
      %v3452 = vsel %vm3429, %v3450, %v3451
      %v3453 = vrot.slane %v3278, 1
      %v3454 = vrot.slane %v3184, 1
      %v3455 = vsel %vm3429, %v3453, %v3454
      %v3456 = vrot.slane %v3279, 1
      %v3457 = vsel %vm3429, %v3451, %v3456
      %v3458 = vrot.slane %v3280, 1
      %v3459 = vsel %vm3429, %v3454, %v3458
      %v3460 = vrot.slane %v3281, 1
      %v3461 = vrot.slane %v3187, 1
      %v3462 = vsel %vm3429, %v3460, %v3461
      %v3463 = vrot.slane %v3282, 1
      %v3464 = vrot.slane %v3188, 1
      %v3465 = vsel %vm3429, %v3463, %v3464
      %v3466 = vrot.slane %v3283, 1
      %v3467 = vsel %vm3429, %v3461, %v3466
      %v3468 = vrot.slane %v3284, 1
      %v3469 = vsel %vm3429, %v3464, %v3468
      %v3470 = vrot.slane %v3285, 1
      %v3471 = vrot.slane %v3191, 1
      %v3472 = vsel %vm3429, %v3470, %v3471
      %v3473 = vrot.slane %v3286, 1
      %v3474 = vrot.slane %v3192, 1
      %v3475 = vsel %vm3429, %v3473, %v3474
      %v3476 = vrot.slane %v3287, 1
      %v3477 = vsel %vm3429, %v3471, %v3476
      %v3478 = vrot.slane %v3288, 1
      %v3479 = vsel %vm3429, %v3474, %v3478
      %v3480 = vrot.slane %v3289, 1
      %v3481 = vrot.slane %v3195, 1
      %v3482 = vsel %vm3429, %v3480, %v3481
      %v3483 = vrot.slane %v3290, 1
      %v3484 = vrot.slane %v3196, 1
      %v3485 = vsel %vm3429, %v3483, %v3484
      %v3486 = vrot.slane %v3291, 1
      %v3487 = vsel %vm3429, %v3481, %v3486
      %v3488 = vrot.slane %v3292, 1
      %v3489 = vsel %vm3429, %v3484, %v3488
      %v3490 = vrot.slane %v3293, 1
      %v3491 = vrot.slane %v3199, 1
      %v3492 = vsel %vm3429, %v3490, %v3491
      %v3493 = vrot.slane %v3294, 1
      %v3494 = vrot.slane %v3200, 1
      %v3495 = vsel %vm3429, %v3493, %v3494
      %v3496 = vrot.slane %v3295, 1
      %v3497 = vsel %vm3429, %v3491, %v3496
      %v3498 = vrot.slane %v3296, 1
      %v3499 = vsel %vm3429, %v3494, %v3498
      %v3500 = vrot.slane %v3297, 1
      %v3501 = vrot.slane %v3203, 1
      %v3502 = vsel %vm3429, %v3500, %v3501
      %v3503 = vrot.slane %v3298, 1
      %v3504 = vrot.slane %v3204, 1
      %v3505 = vsel %vm3429, %v3503, %v3504
      %v3506 = vrot.slane %v3299, 1
      %v3507 = vsel %vm3429, %v3501, %v3506
      %v3508 = vrot.slane %v3300, 1
      %v3509 = vsel %vm3429, %v3504, %v3508
      %v3510 = vrot.slane %v3301, 1
      %v3511 = vrot.slane %v3207, 1
      %v3512 = vsel %vm3429, %v3510, %v3511
      %v3513 = vrot.slane %v3302, 1
      %v3514 = vrot.slane %v3208, 1
      %v3515 = vsel %vm3429, %v3513, %v3514
      %v3516 = vrot.slane %v3303, 1
      %v3517 = vsel %vm3429, %v3511, %v3516
      %v3518 = vrot.slane %v3304, 1
      %v3519 = vsel %vm3429, %v3514, %v3518
      %v3520 = vrot.slane %v3305, 1
      %v3521 = vrot.slane %v3211, 1
      %v3522 = vsel %vm3429, %v3520, %v3521
      %v3523 = vrot.slane %v3306, 1
      %v3524 = vrot.slane %v3212, 1
      %v3525 = vsel %vm3429, %v3523, %v3524
      %v3526 = vrot.slane %v3307, 1
      %v3527 = vsel %vm3429, %v3521, %v3526
      %v3528 = vrot.slane %v3308, 1
      %v3529 = vsel %vm3429, %v3524, %v3528
      %v3530 = vrot.slane %v3309, 1
      %v3531 = vrot.slane %v3215, 1
      %v3532 = vsel %vm3429, %v3530, %v3531
      %v3533 = vrot.slane %v3310, 1
      %v3534 = vrot.slane %v3216, 1
      %v3535 = vsel %vm3429, %v3533, %v3534
      %v3536 = vrot.slane %v3311, 1
      %v3537 = vsel %vm3429, %v3531, %v3536
      %v3538 = vrot.slane %v3312, 1
      %v3539 = vsel %vm3429, %v3534, %v3538
      %v3540 = vrot.slane %v3313, 1
      %v3541 = vrot.slane %v3219, 1
      %v3542 = vsel %vm3429, %v3540, %v3541
      %v3543 = vrot.slane %v3314, 1
      %v3544 = vrot.slane %v3220, 1
      %v3545 = vsel %vm3429, %v3543, %v3544
      %v3546 = vrot.slane %v3315, 1
      %v3547 = vsel %vm3429, %v3541, %v3546
      %v3548 = vrot.slane %v3316, 1
      %v3549 = vsel %vm3429, %v3544, %v3548
      %v3550 = vrot.slane %v3317, 1
      %v3551 = vrot.slane %v3223, 1
      %v3552 = vsel %vm3429, %v3550, %v3551
      %v3553 = vrot.slane %v3318, 1
      %v3554 = vrot.slane %v3224, 1
      %v3555 = vsel %vm3429, %v3553, %v3554
      %v3556 = vrot.slane %v3319, 1
      %v3557 = vsel %vm3429, %v3551, %v3556
      %v3558 = vrot.slane %v3320, 1
      %v3559 = vsel %vm3429, %v3554, %v3558
      %v3560 = vrot.slane %v3321, 1
      %v3561 = vrot.slane %v3227, 1
      %v3562 = vsel %vm3429, %v3560, %v3561
      %v3563 = vrot.slane %v3322, 1
      %v3564 = vrot.slane %v3228, 1
      %v3565 = vsel %vm3429, %v3563, %v3564
      %v3566 = vrot.slane %v3323, 1
      %v3567 = vsel %vm3429, %v3561, %v3566
      %v3568 = vrot.slane %v3324, 1
      %v3569 = vsel %vm3429, %v3564, %v3568
      %v3570 = vrot.slane %v3325, 1
      %v3571 = vrot.slane %v3231, 1
      %v3572 = vsel %vm3429, %v3570, %v3571
      %v3573 = vrot.slane %v3326, 1
      %v3574 = vrot.slane %v3232, 1
      %v3575 = vsel %vm3429, %v3573, %v3574
      %v3576 = vrot.slane %v3327, 1
      %v3577 = vsel %vm3429, %v3571, %v3576
      %v3578 = vrot.slane %v3328, 1
      %v3579 = vsel %vm3429, %v3574, %v3578
      %v3580 = vrot.slane %v3329, 1
      %v3581 = vrot.slane %v3235, 1
      %v3582 = vsel %vm3429, %v3580, %v3581
      %v3583 = vrot.slane %v3330, 1
      %v3584 = vrot.slane %v3236, 1
      %v3585 = vsel %vm3429, %v3583, %v3584
      %v3586 = vrot.slane %v3331, 1
      %v3587 = vsel %vm3429, %v3581, %v3586
      %v3588 = vrot.slane %v3332, 1
      %v3589 = vsel %vm3429, %v3584, %v3588
      %s3654 = scalar_lea.vmem %s5, 256
      %v3655 = vld [vmem:[%s3654] sm:$0xff]
      %v3656 = vld [vmem:[%s3654 + $0x8] sm:$0xff]
      %v3657 = vld [vmem:[%s3654 + $0x10] sm:$0xff]
      %v3658 = vld [vmem:[%s3654 + $0x18] sm:$0xff]
      %v3659 = vld [vmem:[%s3654 + $0x20] sm:$0xff]
      %v3660 = vld [vmem:[%s3654 + $0x28] sm:$0xff]
      %v3661 = vld [vmem:[%s3654 + $0x30] sm:$0xff]
      %v3662 = vld [vmem:[%s3654 + $0x38] sm:$0xff]
      %v3663 = vld [vmem:[%s3654 + $0x40] sm:$0xff]
      %v3664 = vld [vmem:[%s3654 + $0x48] sm:$0xff]
      %v3665 = vld [vmem:[%s3654 + $0x50] sm:$0xff]
      %v3666 = vld [vmem:[%s3654 + $0x58] sm:$0xff]
      %v3667 = vld [vmem:[%s3654 + $0x60] sm:$0xff]
      %v3668 = vld [vmem:[%s3654 + $0x68] sm:$0xff]
      %v3669 = vld [vmem:[%s3654 + $0x70] sm:$0xff]
      %v3670 = vld [vmem:[%s3654 + $0x78] sm:$0xff]
      %v3671 = vld [vmem:[%s3654 + $0x80] sm:$0xff]
      %v3672 = vld [vmem:[%s3654 + $0x88] sm:$0xff]
      %v3673 = vld [vmem:[%s3654 + $0x90] sm:$0xff]
      %v3674 = vld [vmem:[%s3654 + $0x98] sm:$0xff]
      %v3675 = vld [vmem:[%s3654 + $0xa0] sm:$0xff]
      %v3676 = vld [vmem:[%s3654 + $0xa8] sm:$0xff]
      %v3677 = vld [vmem:[%s3654 + $0xb0] sm:$0xff]
      %v3678 = vld [vmem:[%s3654 + $0xb8] sm:$0xff]
      %v3679 = vld [vmem:[%s3654 + $0xc0] sm:$0xff]
      %v3680 = vld [vmem:[%s3654 + $0xc8] sm:$0xff]
      %v3681 = vld [vmem:[%s3654 + $0xd0] sm:$0xff]
      %v3682 = vld [vmem:[%s3654 + $0xd8] sm:$0xff]
      %v3683 = vld [vmem:[%s3654 + $0xe0] sm:$0xff]
      %v3684 = vld [vmem:[%s3654 + $0xe8] sm:$0xff]
      %v3685 = vld [vmem:[%s3654 + $0xf0] sm:$0xff]
      %v3686 = vld [vmem:[%s3654 + $0xf8] sm:$0xff]
      %3687 = vmatprep.subr.mxu0 0.0
      %3688 = vmatpush1.msra.mxu0 %v3670
      %3689 = vmatprep.subr.mxu0 0.0
      %3690 = vmatpush1.msra.mxu0 %v3669
      %3691 = vmatprep.subr.mxu0 0.0
      %3692 = vmatpush1.msra.mxu0 %v3668
      %3693 = vmatprep.subr.mxu0 0.0
      %3694 = vmatpush1.msra.mxu0 %v3667
      %3695 = vmatprep.subr.mxu0 0.0
      %3696 = vmatpush1.msra.mxu0 %v3666
      %3697 = vmatprep.subr.mxu0 0.0
      %3698 = vmatpush1.msra.mxu0 %v3665
      %3699 = vmatprep.subr.mxu0 0.0
      %3700 = vmatpush1.msra.mxu0 %v3664
      %3701 = vmatprep.subr.mxu0 0.0
      %3702 = vmatpush1.msra.mxu0 %v3663
      %3703 = vmatprep.subr.mxu0 0.0
      %3704 = vmatpush1.msra.mxu0 %v3662
      %3705 = vmatprep.subr.mxu0 0.0
      %3706 = vmatpush1.msra.mxu0 %v3661
      %3707 = vmatprep.subr.mxu0 0.0
      %3708 = vmatpush1.msra.mxu0 %v3660
      %3709 = vmatprep.subr.mxu0 0.0
      %3710 = vmatpush1.msra.mxu0 %v3659
      %3711 = vmatprep.subr.mxu0 0.0
      %3712 = vmatpush1.msra.mxu0 %v3658
      %3713 = vmatprep.subr.mxu0 0.0
      %3714 = vmatpush1.msra.mxu0 %v3657
      %3715 = vmatprep.subr.mxu0 0.0
      %3716 = vmatpush1.msra.mxu0 %v3656
      %3717 = vmatprep.subr.mxu0 0.0
      %3718 = vmatpush1.msra.mxu0 %v3655
      %3719 = vmatprep.subr.mxu0 0.0
      %3720 = vmatpush2.msra.mxu0 %v3686
      %3721 = vmatprep.subr.mxu0 0.0
      %3722 = vmatpush2.msra.mxu0 %v3685
      %3723 = vmatprep.subr.mxu0 0.0
      %3724 = vmatpush2.msra.mxu0 %v3684
      %3725 = vmatprep.subr.mxu0 0.0
      %3726 = vmatpush2.msra.mxu0 %v3683
      %3727 = vmatprep.subr.mxu0 0.0
      %3728 = vmatpush2.msra.mxu0 %v3682
      %3729 = vmatprep.subr.mxu0 0.0
      %3730 = vmatpush2.msra.mxu0 %v3681
      %3731 = vmatprep.subr.mxu0 0.0
      %3732 = vmatpush2.msra.mxu0 %v3680
      %3733 = vmatprep.subr.mxu0 0.0
      %3734 = vmatpush2.msra.mxu0 %v3679
      %3735 = vmatprep.subr.mxu0 0.0
      %3736 = vmatpush2.msra.mxu0 %v3678
      %3737 = vmatprep.subr.mxu0 0.0
      %3738 = vmatpush2.msra.mxu0 %v3677
      %3739 = vmatprep.subr.mxu0 0.0
      %3740 = vmatpush2.msra.mxu0 %v3676
      %3741 = vmatprep.subr.mxu0 0.0
      %3742 = vmatpush2.msra.mxu0 %v3675
      %3743 = vmatprep.subr.mxu0 0.0
      %3744 = vmatpush2.msra.mxu0 %v3674
      %3745 = vmatprep.subr.mxu0 0.0
      %3746 = vmatpush2.msra.mxu0 %v3673
      %3747 = vmatprep.subr.mxu0 0.0
      %3748 = vmatpush2.msra.mxu0 %v3672
      %3749 = vmatprep.subr.mxu0 0.0
      %3750 = vmatpush2.msra.mxu0 %v3671
      %3751 = vmatprep.mubr.f32.mxu0 %v3435
      %3752 = vmatmul.mubr.f32.gmra.mxu0 %v3432
      %v3753 = vpop.f32.mrf.mxu0
      %v3754 = vadd.f32 0.0, %v3753
      %v3755 = vpop.f32.mrf.mxu0
      %3756 = vmatprep.mubr.f32.mxu0 %v3439
      %3757 = vmatmul.mubr.f32.gmra.mxu0 %v3437
      %v3758 = vpop.f32.mrf.mxu0
      %v3759 = vadd.f32 0.0, %v3758
      %v3760 = vpop.f32.mrf.mxu0
      %3761 = vmatprep.mubr.f32.mxu0 %v3445
      %3762 = vmatmul.mubr.f32.gmra.mxu0 %v3442
      %v3763 = vpop.f32.mrf.mxu0
      %v3764 = vadd.f32 0.0, %v3763
      %v3765 = vpop.f32.mrf.mxu0
      %3766 = vmatprep.mubr.f32.mxu0 %v3449
      %3767 = vmatmul.mubr.f32.gmra.mxu0 %v3447
      %v3768 = vpop.f32.mrf.mxu0
      %v3769 = vadd.f32 0.0, %v3768
      %v3770 = vpop.f32.mrf.mxu0
      %3771 = vmatprep.mubr.f32.mxu0 %v3455
      %3772 = vmatmul.mubr.f32.gmra.mxu0 %v3452
      %v3773 = vpop.f32.mrf.mxu0
      %v3774 = vadd.f32 0.0, %v3773
      %v3775 = vpop.f32.mrf.mxu0
      %3776 = vmatprep.mubr.f32.mxu0 %v3459
      %3777 = vmatmul.mubr.f32.gmra.mxu0 %v3457
      %v3778 = vpop.f32.mrf.mxu0
      %v3779 = vadd.f32 0.0, %v3778
      %v3780 = vpop.f32.mrf.mxu0
      %3781 = vmatprep.mubr.f32.mxu0 %v3465
      %3782 = vmatmul.mubr.f32.gmra.mxu0 %v3462
      %v3783 = vpop.f32.mrf.mxu0
      %v3784 = vadd.f32 0.0, %v3783
      %v3785 = vpop.f32.mrf.mxu0
      %3786 = vmatprep.mubr.f32.mxu0 %v3469
      %3787 = vmatmul.mubr.f32.gmra.mxu0 %v3467
      %v3788 = vpop.f32.mrf.mxu0
      %v3789 = vadd.f32 0.0, %v3788
      %v3790 = vpop.f32.mrf.mxu0
      %3791 = vmatprep.mubr.f32.mxu0 %v3475
      %3792 = vmatmul.mubr.f32.gmra.mxu0 %v3472
      %v3793 = vpop.f32.mrf.mxu0
      %v3794 = vadd.f32 0.0, %v3793
      %v3795 = vpop.f32.mrf.mxu0
      %3796 = vmatprep.mubr.f32.mxu0 %v3479
      %3797 = vmatmul.mubr.f32.gmra.mxu0 %v3477
      %v3798 = vpop.f32.mrf.mxu0
      %v3799 = vadd.f32 0.0, %v3798
      %v3800 = vpop.f32.mrf.mxu0
      %3801 = vmatprep.mubr.f32.mxu0 %v3485
      %3802 = vmatmul.mubr.f32.gmra.mxu0 %v3482
      %v3803 = vpop.f32.mrf.mxu0
      %v3804 = vadd.f32 0.0, %v3803
      %v3805 = vpop.f32.mrf.mxu0
      %3806 = vmatprep.mubr.f32.mxu0 %v3489
      %3807 = vmatmul.mubr.f32.gmra.mxu0 %v3487
      %v3808 = vpop.f32.mrf.mxu0
      %v3809 = vadd.f32 0.0, %v3808
      %v3810 = vpop.f32.mrf.mxu0
      %3811 = vmatprep.mubr.f32.mxu0 %v3495
      %3812 = vmatmul.mubr.f32.gmra.mxu0 %v3492
      %v3813 = vpop.f32.mrf.mxu0
      %v3814 = vadd.f32 0.0, %v3813
      %v3815 = vpop.f32.mrf.mxu0
      %3816 = vmatprep.mubr.f32.mxu0 %v3499
      %3817 = vmatmul.mubr.f32.gmra.mxu0 %v3497
      %v3818 = vpop.f32.mrf.mxu0
      %v3819 = vadd.f32 0.0, %v3818
      %v3820 = vpop.f32.mrf.mxu0
      %3821 = vmatprep.mubr.f32.mxu0 %v3505
      %3822 = vmatmul.mubr.f32.gmra.mxu0 %v3502
      %v3823 = vpop.f32.mrf.mxu0
      %v3824 = vadd.f32 0.0, %v3823
      %v3825 = vpop.f32.mrf.mxu0
      %3826 = vmatprep.mubr.f32.mxu0 %v3509
      %3827 = vmatmul.mubr.f32.gmra.mxu0 %v3507
      %v3828 = vpop.f32.mrf.mxu0
      %v3829 = vadd.f32 0.0, %v3828
      %v3830 = vpop.f32.mrf.mxu0
      %3831 = vmatprep.mubr.f32.mxu0 %v3515
      %3832 = vmatmul.mubr.f32.gmra.mxu0 %v3512
      %v3833 = vpop.f32.mrf.mxu0
      %v3834 = vadd.f32 0.0, %v3833
      %v3835 = vpop.f32.mrf.mxu0
      %3836 = vmatprep.mubr.f32.mxu0 %v3519
      %3837 = vmatmul.mubr.f32.gmra.mxu0 %v3517
      %v3838 = vpop.f32.mrf.mxu0
      %v3839 = vadd.f32 0.0, %v3838
      %v3840 = vpop.f32.mrf.mxu0
      %3841 = vmatprep.mubr.f32.mxu0 %v3525
      %3842 = vmatmul.mubr.f32.gmra.mxu0 %v3522
      %v3843 = vpop.f32.mrf.mxu0
      %v3844 = vadd.f32 0.0, %v3843
      %v3845 = vpop.f32.mrf.mxu0
      %3846 = vmatprep.mubr.f32.mxu0 %v3529
      %3847 = vmatmul.mubr.f32.gmra.mxu0 %v3527
      %v3848 = vpop.f32.mrf.mxu0
      %v3849 = vadd.f32 0.0, %v3848
      %v3850 = vpop.f32.mrf.mxu0
      %3851 = vmatprep.mubr.f32.mxu0 %v3535
      %3852 = vmatmul.mubr.f32.gmra.mxu0 %v3532
      %v3853 = vpop.f32.mrf.mxu0
      %v3854 = vadd.f32 0.0, %v3853
      %v3855 = vpop.f32.mrf.mxu0
      %3856 = vmatprep.mubr.f32.mxu0 %v3539
      %3857 = vmatmul.mubr.f32.gmra.mxu0 %v3537
      %v3858 = vpop.f32.mrf.mxu0
      %v3859 = vadd.f32 0.0, %v3858
      %v3860 = vpop.f32.mrf.mxu0
      %3861 = vmatprep.mubr.f32.mxu0 %v3545
      %3862 = vmatmul.mubr.f32.gmra.mxu0 %v3542
      %v3863 = vpop.f32.mrf.mxu0
      %v3864 = vadd.f32 0.0, %v3863
      %v3865 = vpop.f32.mrf.mxu0
      %3866 = vmatprep.mubr.f32.mxu0 %v3549
      %3867 = vmatmul.mubr.f32.gmra.mxu0 %v3547
      %v3868 = vpop.f32.mrf.mxu0
      %v3869 = vadd.f32 0.0, %v3868
      %v3870 = vpop.f32.mrf.mxu0
      %3871 = vmatprep.mubr.f32.mxu0 %v3555
      %3872 = vmatmul.mubr.f32.gmra.mxu0 %v3552
      %v3873 = vpop.f32.mrf.mxu0
      %v3874 = vadd.f32 0.0, %v3873
      %v3875 = vpop.f32.mrf.mxu0
      %3876 = vmatprep.mubr.f32.mxu0 %v3559
      %3877 = vmatmul.mubr.f32.gmra.mxu0 %v3557
      %v3878 = vpop.f32.mrf.mxu0
      %v3879 = vadd.f32 0.0, %v3878
      %v3880 = vpop.f32.mrf.mxu0
      %3881 = vmatprep.mubr.f32.mxu0 %v3565
      %3882 = vmatmul.mubr.f32.gmra.mxu0 %v3562
      %v3883 = vpop.f32.mrf.mxu0
      %v3884 = vadd.f32 0.0, %v3883
      %v3885 = vpop.f32.mrf.mxu0
      %3886 = vmatprep.mubr.f32.mxu0 %v3569
      %3887 = vmatmul.mubr.f32.gmra.mxu0 %v3567
      %v3888 = vpop.f32.mrf.mxu0
      %v3889 = vadd.f32 0.0, %v3888
      %v3890 = vpop.f32.mrf.mxu0
      %3891 = vmatprep.mubr.f32.mxu0 %v3575
      %3892 = vmatmul.mubr.f32.gmra.mxu0 %v3572
      %v3893 = vpop.f32.mrf.mxu0
      %v3894 = vadd.f32 0.0, %v3893
      %v3895 = vpop.f32.mrf.mxu0
      %3896 = vmatprep.mubr.f32.mxu0 %v3579
      %3897 = vmatmul.mubr.f32.gmra.mxu0 %v3577
      %v3898 = vpop.f32.mrf.mxu0
      %v3899 = vadd.f32 0.0, %v3898
      %v3900 = vpop.f32.mrf.mxu0
      %3901 = vmatprep.mubr.f32.mxu0 %v3585
      %3902 = vmatmul.mubr.f32.gmra.mxu0 %v3582
      %v3903 = vpop.f32.mrf.mxu0
      %v3904 = vadd.f32 0.0, %v3903
      %v3905 = vpop.f32.mrf.mxu0
      %3906 = vmatprep.mubr.f32.mxu0 %v3589
      %3907 = vmatmul.mubr.f32.gmra.mxu0 %v3587
      %v3908 = vpop.f32.mrf.mxu0
      %v3909 = vadd.f32 0.0, %v3908
      %v3910 = vpop.f32.mrf.mxu0
      %3911 = vdwg.mxu0
      %3912 = vmatprep.subr.mxu0 0.0
      %3913 = vmatpush1.msra.mxu0 %v3252
      %3914 = vmatprep.subr.mxu0 0.0
      %3915 = vmatpush1.msra.mxu0 %v3251
      %3916 = vmatprep.subr.mxu0 0.0
      %3917 = vmatpush1.msra.mxu0 %v3250
      %3918 = vmatprep.subr.mxu0 0.0
      %3919 = vmatpush1.msra.mxu0 %v3249
      %3920 = vmatprep.subr.mxu0 0.0
      %3921 = vmatpush1.msra.mxu0 %v3248
      %3922 = vmatprep.subr.mxu0 0.0
      %3923 = vmatpush1.msra.mxu0 %v3247
      %3924 = vmatprep.subr.mxu0 0.0
      %3925 = vmatpush1.msra.mxu0 %v3246
      %3926 = vmatprep.subr.mxu0 0.0
      %3927 = vmatpush1.msra.mxu0 %v3245
      %3928 = vmatprep.subr.mxu0 0.0
      %3929 = vmatpush1.msra.mxu0 %v3244
      %3930 = vmatprep.subr.mxu0 0.0
      %3931 = vmatpush1.msra.mxu0 %v3243
      %3932 = vmatprep.subr.mxu0 0.0
      %3933 = vmatpush1.msra.mxu0 %v3242
      %3934 = vmatprep.subr.mxu0 0.0
      %3935 = vmatpush1.msra.mxu0 %v3241
      %3936 = vmatprep.subr.mxu0 0.0
      %3937 = vmatpush1.msra.mxu0 %v3240
      %3938 = vmatprep.subr.mxu0 0.0
      %3939 = vmatpush1.msra.mxu0 %v3239
      %3940 = vmatprep.subr.mxu0 0.0
      %3941 = vmatpush1.msra.mxu0 %v3238
      %3942 = vmatprep.subr.mxu0 0.0
      %3943 = vmatpush1.msra.mxu0 %v3237
      %3944 = vmatprep.subr.mxu0 0.0
      %3945 = vmatpush2.msra.mxu0 %v3268
      %3946 = vmatprep.subr.mxu0 0.0
      %3947 = vmatpush2.msra.mxu0 %v3267
      %3948 = vmatprep.subr.mxu0 0.0
      %3949 = vmatpush2.msra.mxu0 %v3266
      %3950 = vmatprep.subr.mxu0 0.0
      %3951 = vmatpush2.msra.mxu0 %v3265
      %3952 = vmatprep.subr.mxu0 0.0
      %3953 = vmatpush2.msra.mxu0 %v3264
      %3954 = vmatprep.subr.mxu0 0.0
      %3955 = vmatpush2.msra.mxu0 %v3263
      %3956 = vmatprep.subr.mxu0 0.0
      %3957 = vmatpush2.msra.mxu0 %v3262
      %3958 = vmatprep.subr.mxu0 0.0
      %3959 = vmatpush2.msra.mxu0 %v3261
      %3960 = vmatprep.subr.mxu0 0.0
      %3961 = vmatpush2.msra.mxu0 %v3260
      %3962 = vmatprep.subr.mxu0 0.0
      %3963 = vmatpush2.msra.mxu0 %v3259
      %3964 = vmatprep.subr.mxu0 0.0
      %3965 = vmatpush2.msra.mxu0 %v3258
      %3966 = vmatprep.subr.mxu0 0.0
      %3967 = vmatpush2.msra.mxu0 %v3257
      %3968 = vmatprep.subr.mxu0 0.0
      %3969 = vmatpush2.msra.mxu0 %v3256
      %3970 = vmatprep.subr.mxu0 0.0
      %3971 = vmatpush2.msra.mxu0 %v3255
      %3972 = vmatprep.subr.mxu0 0.0
      %3973 = vmatpush2.msra.mxu0 %v3254
      %3974 = vmatprep.subr.mxu0 0.0
      %3975 = vmatpush2.msra.mxu0 %v3253
      %3976 = vmatprep.mubr.f32.mxu0 %v3174
      %3977 = vmatmul.mubr.f32.gmra.mxu0 %v3173
      %v3978 = vpop.f32.mrf.mxu0
      %v3979 = vadd.f32 %v3754, %v3978
      %v3980 = vpop.f32.mrf.mxu0
      %3981 = vmatprep.mubr.f32.mxu0 %v3176
      %3982 = vmatmul.mubr.f32.gmra.mxu0 %v3175
      %v3983 = vpop.f32.mrf.mxu0
      %v3984 = vadd.f32 %v3759, %v3983
      %v3985 = vpop.f32.mrf.mxu0
      %3986 = vmatprep.mubr.f32.mxu0 %v3178
      %3987 = vmatmul.mubr.f32.gmra.mxu0 %v3177
      %v3988 = vpop.f32.mrf.mxu0
      %v3989 = vadd.f32 %v3764, %v3988
      %v3990 = vpop.f32.mrf.mxu0
      %3991 = vmatprep.mubr.f32.mxu0 %v3180
      %3992 = vmatmul.mubr.f32.gmra.mxu0 %v3179
      %v3993 = vpop.f32.mrf.mxu0
      %v3994 = vadd.f32 %v3769, %v3993
      %v3995 = vpop.f32.mrf.mxu0
      %3996 = vmatprep.mubr.f32.mxu0 %v3182
      %3997 = vmatmul.mubr.f32.gmra.mxu0 %v3181
      %v3998 = vpop.f32.mrf.mxu0
      %v3999 = vadd.f32 %v3774, %v3998
      %v4000 = vpop.f32.mrf.mxu0
      %4001 = vmatprep.mubr.f32.mxu0 %v3184
      %4002 = vmatmul.mubr.f32.gmra.mxu0 %v3183
      %v4003 = vpop.f32.mrf.mxu0
      %v4004 = vadd.f32 %v3779, %v4003
      %v4005 = vpop.f32.mrf.mxu0
      %4006 = vmatprep.mubr.f32.mxu0 %v3186
      %4007 = vmatmul.mubr.f32.gmra.mxu0 %v3185
      %v4008 = vpop.f32.mrf.mxu0
      %v4009 = vadd.f32 %v3784, %v4008
      %v4010 = vpop.f32.mrf.mxu0
      %4011 = vmatprep.mubr.f32.mxu0 %v3188
      %4012 = vmatmul.mubr.f32.gmra.mxu0 %v3187
      %v4013 = vpop.f32.mrf.mxu0
      %v4014 = vadd.f32 %v3789, %v4013
      %v4015 = vpop.f32.mrf.mxu0
      %4016 = vmatprep.mubr.f32.mxu0 %v3190
      %4017 = vmatmul.mubr.f32.gmra.mxu0 %v3189
      %v4018 = vpop.f32.mrf.mxu0
      %v4019 = vadd.f32 %v3794, %v4018
      %v4020 = vpop.f32.mrf.mxu0
      %4021 = vmatprep.mubr.f32.mxu0 %v3192
      %4022 = vmatmul.mubr.f32.gmra.mxu0 %v3191
      %v4023 = vpop.f32.mrf.mxu0
      %v4024 = vadd.f32 %v3799, %v4023
      %v4025 = vpop.f32.mrf.mxu0
      %4026 = vmatprep.mubr.f32.mxu0 %v3194
      %4027 = vmatmul.mubr.f32.gmra.mxu0 %v3193
      %v4028 = vpop.f32.mrf.mxu0
      %v4029 = vadd.f32 %v3804, %v4028
      %v4030 = vpop.f32.mrf.mxu0
      %4031 = vmatprep.mubr.f32.mxu0 %v3196
      %4032 = vmatmul.mubr.f32.gmra.mxu0 %v3195
      %v4033 = vpop.f32.mrf.mxu0
      %v4034 = vadd.f32 %v3809, %v4033
      %v4035 = vpop.f32.mrf.mxu0
      %4036 = vmatprep.mubr.f32.mxu0 %v3198
      %4037 = vmatmul.mubr.f32.gmra.mxu0 %v3197
      %v4038 = vpop.f32.mrf.mxu0
      %v4039 = vadd.f32 %v3814, %v4038
      %v4040 = vpop.f32.mrf.mxu0
      %4041 = vmatprep.mubr.f32.mxu0 %v3200
      %4042 = vmatmul.mubr.f32.gmra.mxu0 %v3199
      %v4043 = vpop.f32.mrf.mxu0
      %v4044 = vadd.f32 %v3819, %v4043
      %v4045 = vpop.f32.mrf.mxu0
      %4046 = vmatprep.mubr.f32.mxu0 %v3202
      %4047 = vmatmul.mubr.f32.gmra.mxu0 %v3201
      %v4048 = vpop.f32.mrf.mxu0
      %v4049 = vadd.f32 %v3824, %v4048
      %v4050 = vpop.f32.mrf.mxu0
      %4051 = vmatprep.mubr.f32.mxu0 %v3204
      %4052 = vmatmul.mubr.f32.gmra.mxu0 %v3203
      %v4053 = vpop.f32.mrf.mxu0
      %v4054 = vadd.f32 %v3829, %v4053
      %v4055 = vpop.f32.mrf.mxu0
      %4056 = vmatprep.mubr.f32.mxu0 %v3206
      %4057 = vmatmul.mubr.f32.gmra.mxu0 %v3205
      %v4058 = vpop.f32.mrf.mxu0
      %v4059 = vadd.f32 %v3834, %v4058
      %v4060 = vpop.f32.mrf.mxu0
      %4061 = vmatprep.mubr.f32.mxu0 %v3208
      %4062 = vmatmul.mubr.f32.gmra.mxu0 %v3207
      %v4063 = vpop.f32.mrf.mxu0
      %v4064 = vadd.f32 %v3839, %v4063
      %v4065 = vpop.f32.mrf.mxu0
      %4066 = vmatprep.mubr.f32.mxu0 %v3210
      %4067 = vmatmul.mubr.f32.gmra.mxu0 %v3209
      %v4068 = vpop.f32.mrf.mxu0
      %v4069 = vadd.f32 %v3844, %v4068
      %v4070 = vpop.f32.mrf.mxu0
      %4071 = vmatprep.mubr.f32.mxu0 %v3212
      %4072 = vmatmul.mubr.f32.gmra.mxu0 %v3211
      %v4073 = vpop.f32.mrf.mxu0
      %v4074 = vadd.f32 %v3849, %v4073
      %v4075 = vpop.f32.mrf.mxu0
      %4076 = vmatprep.mubr.f32.mxu0 %v3214
      %4077 = vmatmul.mubr.f32.gmra.mxu0 %v3213
      %v4078 = vpop.f32.mrf.mxu0
      %v4079 = vadd.f32 %v3854, %v4078
      %v4080 = vpop.f32.mrf.mxu0
      %4081 = vmatprep.mubr.f32.mxu0 %v3216
      %4082 = vmatmul.mubr.f32.gmra.mxu0 %v3215
      %v4083 = vpop.f32.mrf.mxu0
      %v4084 = vadd.f32 %v3859, %v4083
      %v4085 = vpop.f32.mrf.mxu0
      %4086 = vmatprep.mubr.f32.mxu0 %v3218
      %4087 = vmatmul.mubr.f32.gmra.mxu0 %v3217
      %v4088 = vpop.f32.mrf.mxu0
      %v4089 = vadd.f32 %v3864, %v4088
      %v4090 = vpop.f32.mrf.mxu0
      %4091 = vmatprep.mubr.f32.mxu0 %v3220
      %4092 = vmatmul.mubr.f32.gmra.mxu0 %v3219
      %v4093 = vpop.f32.mrf.mxu0
      %v4094 = vadd.f32 %v3869, %v4093
      %v4095 = vpop.f32.mrf.mxu0
      %4096 = vmatprep.mubr.f32.mxu0 %v3222
      %4097 = vmatmul.mubr.f32.gmra.mxu0 %v3221
      %v4098 = vpop.f32.mrf.mxu0
      %v4099 = vadd.f32 %v3874, %v4098
      %v4100 = vpop.f32.mrf.mxu0
      %4101 = vmatprep.mubr.f32.mxu0 %v3224
      %4102 = vmatmul.mubr.f32.gmra.mxu0 %v3223
      %v4103 = vpop.f32.mrf.mxu0
      %v4104 = vadd.f32 %v3879, %v4103
      %v4105 = vpop.f32.mrf.mxu0
      %4106 = vmatprep.mubr.f32.mxu0 %v3226
      %4107 = vmatmul.mubr.f32.gmra.mxu0 %v3225
      %v4108 = vpop.f32.mrf.mxu0
      %v4109 = vadd.f32 %v3884, %v4108
      %v4110 = vpop.f32.mrf.mxu0
      %4111 = vmatprep.mubr.f32.mxu0 %v3228
      %4112 = vmatmul.mubr.f32.gmra.mxu0 %v3227
      %v4113 = vpop.f32.mrf.mxu0
      %v4114 = vadd.f32 %v3889, %v4113
      %v4115 = vpop.f32.mrf.mxu0
      %4116 = vmatprep.mubr.f32.mxu0 %v3230
      %4117 = vmatmul.mubr.f32.gmra.mxu0 %v3229
      %v4118 = vpop.f32.mrf.mxu0
      %v4119 = vadd.f32 %v3894, %v4118
      %v4120 = vpop.f32.mrf.mxu0
      %4121 = vmatprep.mubr.f32.mxu0 %v3232
      %4122 = vmatmul.mubr.f32.gmra.mxu0 %v3231
      %v4123 = vpop.f32.mrf.mxu0
      %v4124 = vadd.f32 %v3899, %v4123
      %v4125 = vpop.f32.mrf.mxu0
      %4126 = vmatprep.mubr.f32.mxu0 %v3234
      %4127 = vmatmul.mubr.f32.gmra.mxu0 %v3233
      %v4128 = vpop.f32.mrf.mxu0
      %v4129 = vadd.f32 %v3904, %v4128
      %v4130 = vpop.f32.mrf.mxu0
      %4131 = vmatprep.mubr.f32.mxu0 %v3236
      %4132 = vmatmul.mubr.f32.gmra.mxu0 %v3235
      %v4133 = vpop.f32.mrf.mxu0
      %v4134 = vadd.f32 %v3909, %v4133
      %v4135 = vpop.f32.mrf.mxu0
      %4136 = vdwg.mxu0
      %v4137 = vld [vmem:[#allocation3] sm:$0xfc]
      %v4138 = vld [vmem:[#allocation3 + $0x8] sm:$0xfc]
      %v4139 = vld [vmem:[#allocation3 + $0x20] sm:$0x3]
      %v4140 = vld [vmem:[#allocation3 + $0x28] sm:$0x3]
      %v4141 = vld [vmem:[#allocation3 + $0x30] sm:$0xfc]
      %v4142 = vld [vmem:[#allocation3 + $0x38] sm:$0xfc]
      %v4143 = vld [vmem:[#allocation3 + $0x50] sm:$0x3]
      %v4144 = vld [vmem:[#allocation3 + $0x58] sm:$0x3]
      %v4145 = vld [vmem:[#allocation3 + $0x60] sm:$0xfc]
      %v4146 = vld [vmem:[#allocation3 + $0x68] sm:$0xfc]
      %v4147 = vld [vmem:[#allocation3 + $0x80] sm:$0x3]
      %v4148 = vld [vmem:[#allocation3 + $0x88] sm:$0x3]
      %v4149 = vld [vmem:[#allocation3 + $0x90] sm:$0xfc]
      %v4150 = vld [vmem:[#allocation3 + $0x98] sm:$0xfc]
      %v4151 = vld [vmem:[#allocation3 + $0xb0] sm:$0x3]
      %v4152 = vld [vmem:[#allocation3 + $0xb8] sm:$0x3]
      %v4153 = vld [vmem:[#allocation3 + $0xc0] sm:$0xfc]
      %v4154 = vld [vmem:[#allocation3 + $0xc8] sm:$0xfc]
      %v4155 = vld [vmem:[#allocation3 + $0xe0] sm:$0x3]
      %v4156 = vld [vmem:[#allocation3 + $0xe8] sm:$0x3]
      %v4157 = vld [vmem:[#allocation3 + $0xf0] sm:$0xfc]
      %v4158 = vld [vmem:[#allocation3 + $0xf8] sm:$0xfc]
      %v4159 = vld [vmem:[#allocation3 + $0x110] sm:$0x3]
      %v4160 = vld [vmem:[#allocation3 + $0x118] sm:$0x3]
      %v4161 = vld [vmem:[#allocation3 + $0x120] sm:$0xfc]
      %v4162 = vld [vmem:[#allocation3 + $0x128] sm:$0xfc]
      %v4163 = vld [vmem:[#allocation3 + $0x140] sm:$0x3]
      %v4164 = vld [vmem:[#allocation3 + $0x148] sm:$0x3]
      %v4165 = vld [vmem:[#allocation3 + $0x150] sm:$0xfc]
      %v4166 = vld [vmem:[#allocation3 + $0x158] sm:$0xfc]
      %v4167 = vld [vmem:[#allocation3 + $0x170] sm:$0x3]
      %v4168 = vld [vmem:[#allocation3 + $0x178] sm:$0x3]
      %v4169 = vld [vmem:[#allocation3 + $0x180] sm:$0xfc]
      %v4170 = vld [vmem:[#allocation3 + $0x188] sm:$0xfc]
      %v4171 = vld [vmem:[#allocation3 + $0x1a0] sm:$0x3]
      %v4172 = vld [vmem:[#allocation3 + $0x1a8] sm:$0x3]
      %v4173 = vld [vmem:[#allocation3 + $0x1b0] sm:$0xfc]
      %v4174 = vld [vmem:[#allocation3 + $0x1b8] sm:$0xfc]
      %v4175 = vld [vmem:[#allocation3 + $0x1d0] sm:$0x3]
      %v4176 = vld [vmem:[#allocation3 + $0x1d8] sm:$0x3]
      %v4177 = vld [vmem:[#allocation3 + $0x1e0] sm:$0xfc]
      %v4178 = vld [vmem:[#allocation3 + $0x1e8] sm:$0xfc]
      %v4179 = vld [vmem:[#allocation3 + $0x200] sm:$0x3]
      %v4180 = vld [vmem:[#allocation3 + $0x208] sm:$0x3]
      %v4181 = vld [vmem:[#allocation3 + $0x210] sm:$0xfc]
      %v4182 = vld [vmem:[#allocation3 + $0x218] sm:$0xfc]
      %v4183 = vld [vmem:[#allocation3 + $0x230] sm:$0x3]
      %v4184 = vld [vmem:[#allocation3 + $0x238] sm:$0x3]
      %v4185 = vld [vmem:[#allocation3 + $0x240] sm:$0xfc]
      %v4186 = vld [vmem:[#allocation3 + $0x248] sm:$0xfc]
      %v4187 = vld [vmem:[#allocation3 + $0x260] sm:$0x3]
      %v4188 = vld [vmem:[#allocation3 + $0x268] sm:$0x3]
      %v4189 = vld [vmem:[#allocation3 + $0x270] sm:$0xfc]
      %v4190 = vld [vmem:[#allocation3 + $0x278] sm:$0xfc]
      %v4191 = vld [vmem:[#allocation3 + $0x290] sm:$0x3]
      %v4192 = vld [vmem:[#allocation3 + $0x298] sm:$0x3]
      %v4193 = vld [vmem:[#allocation3 + $0x2a0] sm:$0xfc]
      %v4194 = vld [vmem:[#allocation3 + $0x2a8] sm:$0xfc]
      %v4195 = vld [vmem:[#allocation3 + $0x2c0] sm:$0x3]
      %v4196 = vld [vmem:[#allocation3 + $0x2c8] sm:$0x3]
      %v4197 = vld [vmem:[#allocation3 + $0x2d0] sm:$0xfc]
      %v4198 = vld [vmem:[#allocation3 + $0x2d8] sm:$0xfc]
      %v4199 = vld [vmem:[#allocation3 + $0x2f0] sm:$0x3]
      %v4200 = vld [vmem:[#allocation3 + $0x2f8] sm:$0x3]
      %vm4265 = vcmask 1045504
      %v4266 = vrot.slane %v4137, 2
      %v4267 = vrot.slane %v3175, 2
      %v4268 = vsel %vm4265, %v4266, %v4267
      %v4269 = vrot.slane %v4138, 2
      %v4270 = vrot.slane %v3176, 2
      %v4271 = vsel %vm4265, %v4269, %v4270
      %v4272 = vrot.slane %v4139, 2
      %v4273 = vsel %vm4265, %v4267, %v4272
      %v4274 = vrot.slane %v4140, 2
      %v4275 = vsel %vm4265, %v4270, %v4274
      %v4276 = vrot.slane %v4141, 2
      %v4277 = vrot.slane %v3179, 2
      %v4278 = vsel %vm4265, %v4276, %v4277
      %v4279 = vrot.slane %v4142, 2
      %v4280 = vrot.slane %v3180, 2
      %v4281 = vsel %vm4265, %v4279, %v4280
      %v4282 = vrot.slane %v4143, 2
      %v4283 = vsel %vm4265, %v4277, %v4282
      %v4284 = vrot.slane %v4144, 2
      %v4285 = vsel %vm4265, %v4280, %v4284
      %v4286 = vrot.slane %v4145, 2
      %v4287 = vrot.slane %v3183, 2
      %v4288 = vsel %vm4265, %v4286, %v4287
      %v4289 = vrot.slane %v4146, 2
      %v4290 = vrot.slane %v3184, 2
      %v4291 = vsel %vm4265, %v4289, %v4290
      %v4292 = vrot.slane %v4147, 2
      %v4293 = vsel %vm4265, %v4287, %v4292
      %v4294 = vrot.slane %v4148, 2
      %v4295 = vsel %vm4265, %v4290, %v4294
      %v4296 = vrot.slane %v4149, 2
      %v4297 = vrot.slane %v3187, 2
      %v4298 = vsel %vm4265, %v4296, %v4297
      %v4299 = vrot.slane %v4150, 2
      %v4300 = vrot.slane %v3188, 2
      %v4301 = vsel %vm4265, %v4299, %v4300
      %v4302 = vrot.slane %v4151, 2
      %v4303 = vsel %vm4265, %v4297, %v4302
      %v4304 = vrot.slane %v4152, 2
      %v4305 = vsel %vm4265, %v4300, %v4304
      %v4306 = vrot.slane %v4153, 2
      %v4307 = vrot.slane %v3191, 2
      %v4308 = vsel %vm4265, %v4306, %v4307
      %v4309 = vrot.slane %v4154, 2
      %v4310 = vrot.slane %v3192, 2
      %v4311 = vsel %vm4265, %v4309, %v4310
      %v4312 = vrot.slane %v4155, 2
      %v4313 = vsel %vm4265, %v4307, %v4312
      %v4314 = vrot.slane %v4156, 2
      %v4315 = vsel %vm4265, %v4310, %v4314
      %v4316 = vrot.slane %v4157, 2
      %v4317 = vrot.slane %v3195, 2
      %v4318 = vsel %vm4265, %v4316, %v4317
      %v4319 = vrot.slane %v4158, 2
      %v4320 = vrot.slane %v3196, 2
      %v4321 = vsel %vm4265, %v4319, %v4320
      %v4322 = vrot.slane %v4159, 2
      %v4323 = vsel %vm4265, %v4317, %v4322
      %v4324 = vrot.slane %v4160, 2
      %v4325 = vsel %vm4265, %v4320, %v4324
      %v4326 = vrot.slane %v4161, 2
      %v4327 = vrot.slane %v3199, 2
      %v4328 = vsel %vm4265, %v4326, %v4327
      %v4329 = vrot.slane %v4162, 2
      %v4330 = vrot.slane %v3200, 2
      %v4331 = vsel %vm4265, %v4329, %v4330
      %v4332 = vrot.slane %v4163, 2
      %v4333 = vsel %vm4265, %v4327, %v4332
      %v4334 = vrot.slane %v4164, 2
      %v4335 = vsel %vm4265, %v4330, %v4334
      %v4336 = vrot.slane %v4165, 2
      %v4337 = vrot.slane %v3203, 2
      %v4338 = vsel %vm4265, %v4336, %v4337
      %v4339 = vrot.slane %v4166, 2
      %v4340 = vrot.slane %v3204, 2
      %v4341 = vsel %vm4265, %v4339, %v4340
      %v4342 = vrot.slane %v4167, 2
      %v4343 = vsel %vm4265, %v4337, %v4342
      %v4344 = vrot.slane %v4168, 2
      %v4345 = vsel %vm4265, %v4340, %v4344
      %v4346 = vrot.slane %v4169, 2
      %v4347 = vrot.slane %v3207, 2
      %v4348 = vsel %vm4265, %v4346, %v4347
      %v4349 = vrot.slane %v4170, 2
      %v4350 = vrot.slane %v3208, 2
      %v4351 = vsel %vm4265, %v4349, %v4350
      %v4352 = vrot.slane %v4171, 2
      %v4353 = vsel %vm4265, %v4347, %v4352
      %v4354 = vrot.slane %v4172, 2
      %v4355 = vsel %vm4265, %v4350, %v4354
      %v4356 = vrot.slane %v4173, 2
      %v4357 = vrot.slane %v3211, 2
      %v4358 = vsel %vm4265, %v4356, %v4357
      %v4359 = vrot.slane %v4174, 2
      %v4360 = vrot.slane %v3212, 2
      %v4361 = vsel %vm4265, %v4359, %v4360
      %v4362 = vrot.slane %v4175, 2
      %v4363 = vsel %vm4265, %v4357, %v4362
      %v4364 = vrot.slane %v4176, 2
      %v4365 = vsel %vm4265, %v4360, %v4364
      %v4366 = vrot.slane %v4177, 2
      %v4367 = vrot.slane %v3215, 2
      %v4368 = vsel %vm4265, %v4366, %v4367
      %v4369 = vrot.slane %v4178, 2
      %v4370 = vrot.slane %v3216, 2
      %v4371 = vsel %vm4265, %v4369, %v4370
      %v4372 = vrot.slane %v4179, 2
      %v4373 = vsel %vm4265, %v4367, %v4372
      %v4374 = vrot.slane %v4180, 2
      %v4375 = vsel %vm4265, %v4370, %v4374
      %v4376 = vrot.slane %v4181, 2
      %v4377 = vrot.slane %v3219, 2
      %v4378 = vsel %vm4265, %v4376, %v4377
      %v4379 = vrot.slane %v4182, 2
      %v4380 = vrot.slane %v3220, 2
      %v4381 = vsel %vm4265, %v4379, %v4380
      %v4382 = vrot.slane %v4183, 2
      %v4383 = vsel %vm4265, %v4377, %v4382
      %v4384 = vrot.slane %v4184, 2
      %v4385 = vsel %vm4265, %v4380, %v4384
      %v4386 = vrot.slane %v4185, 2
      %v4387 = vrot.slane %v3223, 2
      %v4388 = vsel %vm4265, %v4386, %v4387
      %v4389 = vrot.slane %v4186, 2
      %v4390 = vrot.slane %v3224, 2
      %v4391 = vsel %vm4265, %v4389, %v4390
      %v4392 = vrot.slane %v4187, 2
      %v4393 = vsel %vm4265, %v4387, %v4392
      %v4394 = vrot.slane %v4188, 2
      %v4395 = vsel %vm4265, %v4390, %v4394
      %v4396 = vrot.slane %v4189, 2
      %v4397 = vrot.slane %v3227, 2
      %v4398 = vsel %vm4265, %v4396, %v4397
      %v4399 = vrot.slane %v4190, 2
      %v4400 = vrot.slane %v3228, 2
      %v4401 = vsel %vm4265, %v4399, %v4400
      %v4402 = vrot.slane %v4191, 2
      %v4403 = vsel %vm4265, %v4397, %v4402
      %v4404 = vrot.slane %v4192, 2
      %v4405 = vsel %vm4265, %v4400, %v4404
      %v4406 = vrot.slane %v4193, 2
      %v4407 = vrot.slane %v3231, 2
      %v4408 = vsel %vm4265, %v4406, %v4407
      %v4409 = vrot.slane %v4194, 2
      %v4410 = vrot.slane %v3232, 2
      %v4411 = vsel %vm4265, %v4409, %v4410
      %v4412 = vrot.slane %v4195, 2
      %v4413 = vsel %vm4265, %v4407, %v4412
      %v4414 = vrot.slane %v4196, 2
      %v4415 = vsel %vm4265, %v4410, %v4414
      %v4416 = vrot.slane %v4197, 2
      %v4417 = vrot.slane %v3235, 2
      %v4418 = vsel %vm4265, %v4416, %v4417
      %v4419 = vrot.slane %v4198, 2
      %v4420 = vrot.slane %v3236, 2
      %v4421 = vsel %vm4265, %v4419, %v4420
      %v4422 = vrot.slane %v4199, 2
      %v4423 = vsel %vm4265, %v4417, %v4422
      %v4424 = vrot.slane %v4200, 2
      %v4425 = vsel %vm4265, %v4420, %v4424
      %s4490 = scalar_lea.vmem %s5, 512
      %v4491 = vld [vmem:[%s4490] sm:$0xff]
      %v4492 = vld [vmem:[%s4490 + $0x8] sm:$0xff]
      %v4493 = vld [vmem:[%s4490 + $0x10] sm:$0xff]
      %v4494 = vld [vmem:[%s4490 + $0x18] sm:$0xff]
      %v4495 = vld [vmem:[%s4490 + $0x20] sm:$0xff]
      %v4496 = vld [vmem:[%s4490 + $0x28] sm:$0xff]
      %v4497 = vld [vmem:[%s4490 + $0x30] sm:$0xff]
      %v4498 = vld [vmem:[%s4490 + $0x38] sm:$0xff]
      %v4499 = vld [vmem:[%s4490 + $0x40] sm:$0xff]
      %v4500 = vld [vmem:[%s4490 + $0x48] sm:$0xff]
      %v4501 = vld [vmem:[%s4490 + $0x50] sm:$0xff]
      %v4502 = vld [vmem:[%s4490 + $0x58] sm:$0xff]
      %v4503 = vld [vmem:[%s4490 + $0x60] sm:$0xff]
      %v4504 = vld [vmem:[%s4490 + $0x68] sm:$0xff]
      %v4505 = vld [vmem:[%s4490 + $0x70] sm:$0xff]
      %v4506 = vld [vmem:[%s4490 + $0x78] sm:$0xff]
      %v4507 = vld [vmem:[%s4490 + $0x80] sm:$0xff]
      %v4508 = vld [vmem:[%s4490 + $0x88] sm:$0xff]
      %v4509 = vld [vmem:[%s4490 + $0x90] sm:$0xff]
      %v4510 = vld [vmem:[%s4490 + $0x98] sm:$0xff]
      %v4511 = vld [vmem:[%s4490 + $0xa0] sm:$0xff]
      %v4512 = vld [vmem:[%s4490 + $0xa8] sm:$0xff]
      %v4513 = vld [vmem:[%s4490 + $0xb0] sm:$0xff]
      %v4514 = vld [vmem:[%s4490 + $0xb8] sm:$0xff]
      %v4515 = vld [vmem:[%s4490 + $0xc0] sm:$0xff]
      %v4516 = vld [vmem:[%s4490 + $0xc8] sm:$0xff]
      %v4517 = vld [vmem:[%s4490 + $0xd0] sm:$0xff]
      %v4518 = vld [vmem:[%s4490 + $0xd8] sm:$0xff]
      %v4519 = vld [vmem:[%s4490 + $0xe0] sm:$0xff]
      %v4520 = vld [vmem:[%s4490 + $0xe8] sm:$0xff]
      %v4521 = vld [vmem:[%s4490 + $0xf0] sm:$0xff]
      %v4522 = vld [vmem:[%s4490 + $0xf8] sm:$0xff]
      %4523 = vmatprep.subr.mxu0 0.0
      %4524 = vmatpush1.msra.mxu0 %v4506
      %4525 = vmatprep.subr.mxu0 0.0
      %4526 = vmatpush1.msra.mxu0 %v4505
      %4527 = vmatprep.subr.mxu0 0.0
      %4528 = vmatpush1.msra.mxu0 %v4504
      %4529 = vmatprep.subr.mxu0 0.0
      %4530 = vmatpush1.msra.mxu0 %v4503
      %4531 = vmatprep.subr.mxu0 0.0
      %4532 = vmatpush1.msra.mxu0 %v4502
      %4533 = vmatprep.subr.mxu0 0.0
      %4534 = vmatpush1.msra.mxu0 %v4501
      %4535 = vmatprep.subr.mxu0 0.0
      %4536 = vmatpush1.msra.mxu0 %v4500
      %4537 = vmatprep.subr.mxu0 0.0
      %4538 = vmatpush1.msra.mxu0 %v4499
      %4539 = vmatprep.subr.mxu0 0.0
      %4540 = vmatpush1.msra.mxu0 %v4498
      %4541 = vmatprep.subr.mxu0 0.0
      %4542 = vmatpush1.msra.mxu0 %v4497
      %4543 = vmatprep.subr.mxu0 0.0
      %4544 = vmatpush1.msra.mxu0 %v4496
      %4545 = vmatprep.subr.mxu0 0.0
      %4546 = vmatpush1.msra.mxu0 %v4495
      %4547 = vmatprep.subr.mxu0 0.0
      %4548 = vmatpush1.msra.mxu0 %v4494
      %4549 = vmatprep.subr.mxu0 0.0
      %4550 = vmatpush1.msra.mxu0 %v4493
      %4551 = vmatprep.subr.mxu0 0.0
      %4552 = vmatpush1.msra.mxu0 %v4492
      %4553 = vmatprep.subr.mxu0 0.0
      %4554 = vmatpush1.msra.mxu0 %v4491
      %4555 = vmatprep.subr.mxu0 0.0
      %4556 = vmatpush2.msra.mxu0 %v4522
      %4557 = vmatprep.subr.mxu0 0.0
      %4558 = vmatpush2.msra.mxu0 %v4521
      %4559 = vmatprep.subr.mxu0 0.0
      %4560 = vmatpush2.msra.mxu0 %v4520
      %4561 = vmatprep.subr.mxu0 0.0
      %4562 = vmatpush2.msra.mxu0 %v4519
      %4563 = vmatprep.subr.mxu0 0.0
      %4564 = vmatpush2.msra.mxu0 %v4518
      %4565 = vmatprep.subr.mxu0 0.0
      %4566 = vmatpush2.msra.mxu0 %v4517
      %4567 = vmatprep.subr.mxu0 0.0
      %4568 = vmatpush2.msra.mxu0 %v4516
      %4569 = vmatprep.subr.mxu0 0.0
      %4570 = vmatpush2.msra.mxu0 %v4515
      %4571 = vmatprep.subr.mxu0 0.0
      %4572 = vmatpush2.msra.mxu0 %v4514
      %4573 = vmatprep.subr.mxu0 0.0
      %4574 = vmatpush2.msra.mxu0 %v4513
      %4575 = vmatprep.subr.mxu0 0.0
      %4576 = vmatpush2.msra.mxu0 %v4512
      %4577 = vmatprep.subr.mxu0 0.0
      %4578 = vmatpush2.msra.mxu0 %v4511
      %4579 = vmatprep.subr.mxu0 0.0
      %4580 = vmatpush2.msra.mxu0 %v4510
      %4581 = vmatprep.subr.mxu0 0.0
      %4582 = vmatpush2.msra.mxu0 %v4509
      %4583 = vmatprep.subr.mxu0 0.0
      %4584 = vmatpush2.msra.mxu0 %v4508
      %4585 = vmatprep.subr.mxu0 0.0
      %4586 = vmatpush2.msra.mxu0 %v4507
      %4587 = vmatprep.mubr.f32.mxu0 %v4271
      %4588 = vmatmul.mubr.f32.gmra.mxu0 %v4268
      %v4589 = vpop.f32.mrf.mxu0
      %v4590 = vadd.f32 0.0, %v4589
      %v4591 = vpop.f32.mrf.mxu0
      %4592 = vmatprep.mubr.f32.mxu0 %v4275
      %4593 = vmatmul.mubr.f32.gmra.mxu0 %v4273
      %v4594 = vpop.f32.mrf.mxu0
      %v4595 = vadd.f32 0.0, %v4594
      %v4596 = vpop.f32.mrf.mxu0
      %4597 = vmatprep.mubr.f32.mxu0 %v4281
      %4598 = vmatmul.mubr.f32.gmra.mxu0 %v4278
      %v4599 = vpop.f32.mrf.mxu0
      %v4600 = vadd.f32 0.0, %v4599
      %v4601 = vpop.f32.mrf.mxu0
      %4602 = vmatprep.mubr.f32.mxu0 %v4285
      %4603 = vmatmul.mubr.f32.gmra.mxu0 %v4283
      %v4604 = vpop.f32.mrf.mxu0
      %v4605 = vadd.f32 0.0, %v4604
      %v4606 = vpop.f32.mrf.mxu0
      %4607 = vmatprep.mubr.f32.mxu0 %v4291
      %4608 = vmatmul.mubr.f32.gmra.mxu0 %v4288
      %v4609 = vpop.f32.mrf.mxu0
      %v4610 = vadd.f32 0.0, %v4609
      %v4611 = vpop.f32.mrf.mxu0
      %4612 = vmatprep.mubr.f32.mxu0 %v4295
      %4613 = vmatmul.mubr.f32.gmra.mxu0 %v4293
      %v4614 = vpop.f32.mrf.mxu0
      %v4615 = vadd.f32 0.0, %v4614
      %v4616 = vpop.f32.mrf.mxu0
      %4617 = vmatprep.mubr.f32.mxu0 %v4301
      %4618 = vmatmul.mubr.f32.gmra.mxu0 %v4298
      %v4619 = vpop.f32.mrf.mxu0
      %v4620 = vadd.f32 0.0, %v4619
      %v4621 = vpop.f32.mrf.mxu0
      %4622 = vmatprep.mubr.f32.mxu0 %v4305
      %4623 = vmatmul.mubr.f32.gmra.mxu0 %v4303
      %v4624 = vpop.f32.mrf.mxu0
      %v4625 = vadd.f32 0.0, %v4624
      %v4626 = vpop.f32.mrf.mxu0
      %4627 = vmatprep.mubr.f32.mxu0 %v4311
      %4628 = vmatmul.mubr.f32.gmra.mxu0 %v4308
      %v4629 = vpop.f32.mrf.mxu0
      %v4630 = vadd.f32 0.0, %v4629
      %v4631 = vpop.f32.mrf.mxu0
      %4632 = vmatprep.mubr.f32.mxu0 %v4315
      %4633 = vmatmul.mubr.f32.gmra.mxu0 %v4313
      %v4634 = vpop.f32.mrf.mxu0
      %v4635 = vadd.f32 0.0, %v4634
      %v4636 = vpop.f32.mrf.mxu0
      %4637 = vmatprep.mubr.f32.mxu0 %v4321
      %4638 = vmatmul.mubr.f32.gmra.mxu0 %v4318
      %v4639 = vpop.f32.mrf.mxu0
      %v4640 = vadd.f32 0.0, %v4639
      %v4641 = vpop.f32.mrf.mxu0
      %4642 = vmatprep.mubr.f32.mxu0 %v4325
      %4643 = vmatmul.mubr.f32.gmra.mxu0 %v4323
      %v4644 = vpop.f32.mrf.mxu0
      %v4645 = vadd.f32 0.0, %v4644
      %v4646 = vpop.f32.mrf.mxu0
      %4647 = vmatprep.mubr.f32.mxu0 %v4331
      %4648 = vmatmul.mubr.f32.gmra.mxu0 %v4328
      %v4649 = vpop.f32.mrf.mxu0
      %v4650 = vadd.f32 0.0, %v4649
      %v4651 = vpop.f32.mrf.mxu0
      %4652 = vmatprep.mubr.f32.mxu0 %v4335
      %4653 = vmatmul.mubr.f32.gmra.mxu0 %v4333
      %v4654 = vpop.f32.mrf.mxu0
      %v4655 = vadd.f32 0.0, %v4654
      %v4656 = vpop.f32.mrf.mxu0
      %4657 = vmatprep.mubr.f32.mxu0 %v4341
      %4658 = vmatmul.mubr.f32.gmra.mxu0 %v4338
      %v4659 = vpop.f32.mrf.mxu0
      %v4660 = vadd.f32 0.0, %v4659
      %v4661 = vpop.f32.mrf.mxu0
      %4662 = vmatprep.mubr.f32.mxu0 %v4345
      %4663 = vmatmul.mubr.f32.gmra.mxu0 %v4343
      %v4664 = vpop.f32.mrf.mxu0
      %v4665 = vadd.f32 0.0, %v4664
      %v4666 = vpop.f32.mrf.mxu0
      %4667 = vmatprep.mubr.f32.mxu0 %v4351
      %4668 = vmatmul.mubr.f32.gmra.mxu0 %v4348
      %v4669 = vpop.f32.mrf.mxu0
      %v4670 = vadd.f32 0.0, %v4669
      %v4671 = vpop.f32.mrf.mxu0
      %4672 = vmatprep.mubr.f32.mxu0 %v4355
      %4673 = vmatmul.mubr.f32.gmra.mxu0 %v4353
      %v4674 = vpop.f32.mrf.mxu0
      %v4675 = vadd.f32 0.0, %v4674
      %v4676 = vpop.f32.mrf.mxu0
      %4677 = vmatprep.mubr.f32.mxu0 %v4361
      %4678 = vmatmul.mubr.f32.gmra.mxu0 %v4358
      %v4679 = vpop.f32.mrf.mxu0
      %v4680 = vadd.f32 0.0, %v4679
      %v4681 = vpop.f32.mrf.mxu0
      %4682 = vmatprep.mubr.f32.mxu0 %v4365
      %4683 = vmatmul.mubr.f32.gmra.mxu0 %v4363
      %v4684 = vpop.f32.mrf.mxu0
      %v4685 = vadd.f32 0.0, %v4684
      %v4686 = vpop.f32.mrf.mxu0
      %4687 = vmatprep.mubr.f32.mxu0 %v4371
      %4688 = vmatmul.mubr.f32.gmra.mxu0 %v4368
      %v4689 = vpop.f32.mrf.mxu0
      %v4690 = vadd.f32 0.0, %v4689
      %v4691 = vpop.f32.mrf.mxu0
      %4692 = vmatprep.mubr.f32.mxu0 %v4375
      %4693 = vmatmul.mubr.f32.gmra.mxu0 %v4373
      %v4694 = vpop.f32.mrf.mxu0
      %v4695 = vadd.f32 0.0, %v4694
      %v4696 = vpop.f32.mrf.mxu0
      %4697 = vmatprep.mubr.f32.mxu0 %v4381
      %4698 = vmatmul.mubr.f32.gmra.mxu0 %v4378
      %v4699 = vpop.f32.mrf.mxu0
      %v4700 = vadd.f32 0.0, %v4699
      %v4701 = vpop.f32.mrf.mxu0
      %4702 = vmatprep.mubr.f32.mxu0 %v4385
      %4703 = vmatmul.mubr.f32.gmra.mxu0 %v4383
      %v4704 = vpop.f32.mrf.mxu0
      %v4705 = vadd.f32 0.0, %v4704
      %v4706 = vpop.f32.mrf.mxu0
      %4707 = vmatprep.mubr.f32.mxu0 %v4391
      %4708 = vmatmul.mubr.f32.gmra.mxu0 %v4388
      %v4709 = vpop.f32.mrf.mxu0
      %v4710 = vadd.f32 0.0, %v4709
      %v4711 = vpop.f32.mrf.mxu0
      %4712 = vmatprep.mubr.f32.mxu0 %v4395
      %4713 = vmatmul.mubr.f32.gmra.mxu0 %v4393
      %v4714 = vpop.f32.mrf.mxu0
      %v4715 = vadd.f32 0.0, %v4714
      %v4716 = vpop.f32.mrf.mxu0
      %4717 = vmatprep.mubr.f32.mxu0 %v4401
      %4718 = vmatmul.mubr.f32.gmra.mxu0 %v4398
      %v4719 = vpop.f32.mrf.mxu0
      %v4720 = vadd.f32 0.0, %v4719
      %v4721 = vpop.f32.mrf.mxu0
      %4722 = vmatprep.mubr.f32.mxu0 %v4405
      %4723 = vmatmul.mubr.f32.gmra.mxu0 %v4403
      %v4724 = vpop.f32.mrf.mxu0
      %v4725 = vadd.f32 0.0, %v4724
      %v4726 = vpop.f32.mrf.mxu0
      %4727 = vmatprep.mubr.f32.mxu0 %v4411
      %4728 = vmatmul.mubr.f32.gmra.mxu0 %v4408
      %v4729 = vpop.f32.mrf.mxu0
      %v4730 = vadd.f32 0.0, %v4729
      %v4731 = vpop.f32.mrf.mxu0
      %4732 = vmatprep.mubr.f32.mxu0 %v4415
      %4733 = vmatmul.mubr.f32.gmra.mxu0 %v4413
      %v4734 = vpop.f32.mrf.mxu0
      %v4735 = vadd.f32 0.0, %v4734
      %v4736 = vpop.f32.mrf.mxu0
      %4737 = vmatprep.mubr.f32.mxu0 %v4421
      %4738 = vmatmul.mubr.f32.gmra.mxu0 %v4418
      %v4739 = vpop.f32.mrf.mxu0
      %v4740 = vadd.f32 0.0, %v4739
      %v4741 = vpop.f32.mrf.mxu0
      %4742 = vmatprep.mubr.f32.mxu0 %v4425
      %4743 = vmatmul.mubr.f32.gmra.mxu0 %v4423
      %v4744 = vpop.f32.mrf.mxu0
      %v4745 = vadd.f32 0.0, %v4744
      %v4746 = vpop.f32.mrf.mxu0
      %4747 = vdwg.mxu0
      %v4748 = vadd.f32 %v3979, %v4590
      %v4749 = vadd.f32 %v3984, %v4595
      %v4750 = vadd.f32 %v3989, %v4600
      %v4751 = vadd.f32 %v3994, %v4605
      %v4752 = vadd.f32 %v3999, %v4610
      %v4753 = vadd.f32 %v4004, %v4615
      %v4754 = vadd.f32 %v4009, %v4620
      %v4755 = vadd.f32 %v4014, %v4625
      %v4756 = vadd.f32 %v4019, %v4630
      %v4757 = vadd.f32 %v4024, %v4635
      %v4758 = vadd.f32 %v4029, %v4640
      %v4759 = vadd.f32 %v4034, %v4645
      %v4760 = vadd.f32 %v4039, %v4650
      %v4761 = vadd.f32 %v4044, %v4655
      %v4762 = vadd.f32 %v4049, %v4660
      %v4763 = vadd.f32 %v4054, %v4665
      %v4764 = vadd.f32 %v4059, %v4670
      %v4765 = vadd.f32 %v4064, %v4675
      %v4766 = vadd.f32 %v4069, %v4680
      %v4767 = vadd.f32 %v4074, %v4685
      %v4768 = vadd.f32 %v4079, %v4690
      %v4769 = vadd.f32 %v4084, %v4695
      %v4770 = vadd.f32 %v4089, %v4700
      %v4771 = vadd.f32 %v4094, %v4705
      %v4772 = vadd.f32 %v4099, %v4710
      %v4773 = vadd.f32 %v4104, %v4715
      %v4774 = vadd.f32 %v4109, %v4720
      %v4775 = vadd.f32 %v4114, %v4725
      %v4776 = vadd.f32 %v4119, %v4730
      %v4777 = vadd.f32 %v4124, %v4735
      %v4778 = vadd.f32 %v4129, %v4740
      %v4779 = vadd.f32 %v4134, %v4745
      %v4780 = vld [vmem:[%s3076] sm:$0xff]
      %v4781 = vld [vmem:[%s3076 + $0x8] sm:$0xff]
      %v4782 = vld [vmem:[%s3076 + $0x10] sm:$0xff]
      %v4783 = vld [vmem:[%s3076 + $0x18] sm:$0xff]
      %v4784 = vld [vmem:[%s3076 + $0x30] sm:$0xff]
      %v4785 = vld [vmem:[%s3076 + $0x38] sm:$0xff]
      %v4786 = vld [vmem:[%s3076 + $0x40] sm:$0xff]
      %v4787 = vld [vmem:[%s3076 + $0x48] sm:$0xff]
      %v4788 = vld [vmem:[%s3076 + $0x60] sm:$0xff]
      %v4789 = vld [vmem:[%s3076 + $0x68] sm:$0xff]
      %v4790 = vld [vmem:[%s3076 + $0x70] sm:$0xff]
      %v4791 = vld [vmem:[%s3076 + $0x78] sm:$0xff]
      %v4792 = vld [vmem:[%s3076 + $0x90] sm:$0xff]
      %v4793 = vld [vmem:[%s3076 + $0x98] sm:$0xff]
      %v4794 = vld [vmem:[%s3076 + $0xa0] sm:$0xff]
      %v4795 = vld [vmem:[%s3076 + $0xa8] sm:$0xff]
      %v4796 = vld [vmem:[%s3076 + $0xc0] sm:$0xff]
      %v4797 = vld [vmem:[%s3076 + $0xc8] sm:$0xff]
      %v4798 = vld [vmem:[%s3076 + $0xd0] sm:$0xff]
      %v4799 = vld [vmem:[%s3076 + $0xd8] sm:$0xff]
      %v4800 = vld [vmem:[%s3076 + $0xf0] sm:$0xff]
      %v4801 = vld [vmem:[%s3076 + $0xf8] sm:$0xff]
      %v4802 = vld [vmem:[%s3076 + $0x100] sm:$0xff]
      %v4803 = vld [vmem:[%s3076 + $0x108] sm:$0xff]
      %v4804 = vld [vmem:[%s3076 + $0x120] sm:$0xff]
      %v4805 = vld [vmem:[%s3076 + $0x128] sm:$0xff]
      %v4806 = vld [vmem:[%s3076 + $0x130] sm:$0xff]
      %v4807 = vld [vmem:[%s3076 + $0x138] sm:$0xff]
      %v4808 = vld [vmem:[%s3076 + $0x150] sm:$0xff]
      %v4809 = vld [vmem:[%s3076 + $0x158] sm:$0xff]
      %v4810 = vld [vmem:[%s3076 + $0x160] sm:$0xff]
      %v4811 = vld [vmem:[%s3076 + $0x168] sm:$0xff]
      %v4812 = vld [vmem:[%s3076 + $0x180] sm:$0xff]
      %v4813 = vld [vmem:[%s3076 + $0x188] sm:$0xff]
      %v4814 = vld [vmem:[%s3076 + $0x190] sm:$0xff]
      %v4815 = vld [vmem:[%s3076 + $0x198] sm:$0xff]
      %v4816 = vld [vmem:[%s3076 + $0x1b0] sm:$0xff]
      %v4817 = vld [vmem:[%s3076 + $0x1b8] sm:$0xff]
      %v4818 = vld [vmem:[%s3076 + $0x1c0] sm:$0xff]
      %v4819 = vld [vmem:[%s3076 + $0x1c8] sm:$0xff]
      %v4820 = vld [vmem:[%s3076 + $0x1e0] sm:$0xff]
      %v4821 = vld [vmem:[%s3076 + $0x1e8] sm:$0xff]
      %v4822 = vld [vmem:[%s3076 + $0x1f0] sm:$0xff]
      %v4823 = vld [vmem:[%s3076 + $0x1f8] sm:$0xff]
      %v4824 = vld [vmem:[%s3076 + $0x210] sm:$0xff]
      %v4825 = vld [vmem:[%s3076 + $0x218] sm:$0xff]
      %v4826 = vld [vmem:[%s3076 + $0x220] sm:$0xff]
      %v4827 = vld [vmem:[%s3076 + $0x228] sm:$0xff]
      %v4828 = vld [vmem:[%s3076 + $0x240] sm:$0xff]
      %v4829 = vld [vmem:[%s3076 + $0x248] sm:$0xff]
      %v4830 = vld [vmem:[%s3076 + $0x250] sm:$0xff]
      %v4831 = vld [vmem:[%s3076 + $0x258] sm:$0xff]
      %v4832 = vld [vmem:[%s3076 + $0x270] sm:$0xff]
      %v4833 = vld [vmem:[%s3076 + $0x278] sm:$0xff]
      %v4834 = vld [vmem:[%s3076 + $0x280] sm:$0xff]
      %v4835 = vld [vmem:[%s3076 + $0x288] sm:$0xff]
      %v4836 = vld [vmem:[%s3076 + $0x2a0] sm:$0xff]
      %v4837 = vld [vmem:[%s3076 + $0x2a8] sm:$0xff]
      %v4838 = vld [vmem:[%s3076 + $0x2b0] sm:$0xff]
      %v4839 = vld [vmem:[%s3076 + $0x2b8] sm:$0xff]
      %v4840 = vld [vmem:[%s3076 + $0x2d0] sm:$0xff]
      %v4841 = vld [vmem:[%s3076 + $0x2d8] sm:$0xff]
      %v4842 = vld [vmem:[%s3076 + $0x2e0] sm:$0xff]
      %v4843 = vld [vmem:[%s3076 + $0x2e8] sm:$0xff]
      %s4844 = scalar_lea.vmem %s5, 768
      %v4845 = vld [vmem:[%s4844] sm:$0xff]
      %v4846 = vld [vmem:[%s4844 + $0x8] sm:$0xff]
      %v4847 = vld [vmem:[%s4844 + $0x10] sm:$0xff]
      %v4848 = vld [vmem:[%s4844 + $0x18] sm:$0xff]
      %v4849 = vld [vmem:[%s4844 + $0x20] sm:$0xff]
      %v4850 = vld [vmem:[%s4844 + $0x28] sm:$0xff]
      %v4851 = vld [vmem:[%s4844 + $0x30] sm:$0xff]
      %v4852 = vld [vmem:[%s4844 + $0x38] sm:$0xff]
      %v4853 = vld [vmem:[%s4844 + $0x40] sm:$0xff]
      %v4854 = vld [vmem:[%s4844 + $0x48] sm:$0xff]
      %v4855 = vld [vmem:[%s4844 + $0x50] sm:$0xff]
      %v4856 = vld [vmem:[%s4844 + $0x58] sm:$0xff]
      %v4857 = vld [vmem:[%s4844 + $0x60] sm:$0xff]
      %v4858 = vld [vmem:[%s4844 + $0x68] sm:$0xff]
      %v4859 = vld [vmem:[%s4844 + $0x70] sm:$0xff]
      %v4860 = vld [vmem:[%s4844 + $0x78] sm:$0xff]
      %v4861 = vld [vmem:[%s4844 + $0x80] sm:$0xff]
      %v4862 = vld [vmem:[%s4844 + $0x88] sm:$0xff]
      %v4863 = vld [vmem:[%s4844 + $0x90] sm:$0xff]
      %v4864 = vld [vmem:[%s4844 + $0x98] sm:$0xff]
      %v4865 = vld [vmem:[%s4844 + $0xa0] sm:$0xff]
      %v4866 = vld [vmem:[%s4844 + $0xa8] sm:$0xff]
      %v4867 = vld [vmem:[%s4844 + $0xb0] sm:$0xff]
      %v4868 = vld [vmem:[%s4844 + $0xb8] sm:$0xff]
      %v4869 = vld [vmem:[%s4844 + $0xc0] sm:$0xff]
      %v4870 = vld [vmem:[%s4844 + $0xc8] sm:$0xff]
      %v4871 = vld [vmem:[%s4844 + $0xd0] sm:$0xff]
      %v4872 = vld [vmem:[%s4844 + $0xd8] sm:$0xff]
      %v4873 = vld [vmem:[%s4844 + $0xe0] sm:$0xff]
      %v4874 = vld [vmem:[%s4844 + $0xe8] sm:$0xff]
      %v4875 = vld [vmem:[%s4844 + $0xf0] sm:$0xff]
      %v4876 = vld [vmem:[%s4844 + $0xf8] sm:$0xff]
      %4877 = vmatprep.subr.mxu0 0.0
      %4878 = vmatpush1.msra.mxu0 %v4860
      %4879 = vmatprep.subr.mxu0 0.0
      %4880 = vmatpush1.msra.mxu0 %v4859
      %4881 = vmatprep.subr.mxu0 0.0
      %4882 = vmatpush1.msra.mxu0 %v4858
      %4883 = vmatprep.subr.mxu0 0.0
      %4884 = vmatpush1.msra.mxu0 %v4857
      %4885 = vmatprep.subr.mxu0 0.0
      %4886 = vmatpush1.msra.mxu0 %v4856
      %4887 = vmatprep.subr.mxu0 0.0
      %4888 = vmatpush1.msra.mxu0 %v4855
      %4889 = vmatprep.subr.mxu0 0.0
      %4890 = vmatpush1.msra.mxu0 %v4854
      %4891 = vmatprep.subr.mxu0 0.0
      %4892 = vmatpush1.msra.mxu0 %v4853
      %4893 = vmatprep.subr.mxu0 0.0
      %4894 = vmatpush1.msra.mxu0 %v4852
      %4895 = vmatprep.subr.mxu0 0.0
      %4896 = vmatpush1.msra.mxu0 %v4851
      %4897 = vmatprep.subr.mxu0 0.0
      %4898 = vmatpush1.msra.mxu0 %v4850
      %4899 = vmatprep.subr.mxu0 0.0
      %4900 = vmatpush1.msra.mxu0 %v4849
      %4901 = vmatprep.subr.mxu0 0.0
      %4902 = vmatpush1.msra.mxu0 %v4848
      %4903 = vmatprep.subr.mxu0 0.0
      %4904 = vmatpush1.msra.mxu0 %v4847
      %4905 = vmatprep.subr.mxu0 0.0
      %4906 = vmatpush1.msra.mxu0 %v4846
      %4907 = vmatprep.subr.mxu0 0.0
      %4908 = vmatpush1.msra.mxu0 %v4845
      %4909 = vmatprep.subr.mxu0 0.0
      %4910 = vmatpush2.msra.mxu0 %v4876
      %4911 = vmatprep.subr.mxu0 0.0
      %4912 = vmatpush2.msra.mxu0 %v4875
      %4913 = vmatprep.subr.mxu0 0.0
      %4914 = vmatpush2.msra.mxu0 %v4874
      %4915 = vmatprep.subr.mxu0 0.0
      %4916 = vmatpush2.msra.mxu0 %v4873
      %4917 = vmatprep.subr.mxu0 0.0
      %4918 = vmatpush2.msra.mxu0 %v4872
      %4919 = vmatprep.subr.mxu0 0.0
      %4920 = vmatpush2.msra.mxu0 %v4871
      %4921 = vmatprep.subr.mxu0 0.0
      %4922 = vmatpush2.msra.mxu0 %v4870
      %4923 = vmatprep.subr.mxu0 0.0
      %4924 = vmatpush2.msra.mxu0 %v4869
      %4925 = vmatprep.subr.mxu0 0.0
      %4926 = vmatpush2.msra.mxu0 %v4868
      %4927 = vmatprep.subr.mxu0 0.0
      %4928 = vmatpush2.msra.mxu0 %v4867
      %4929 = vmatprep.subr.mxu0 0.0
      %4930 = vmatpush2.msra.mxu0 %v4866
      %4931 = vmatprep.subr.mxu0 0.0
      %4932 = vmatpush2.msra.mxu0 %v4865
      %4933 = vmatprep.subr.mxu0 0.0
      %4934 = vmatpush2.msra.mxu0 %v4864
      %4935 = vmatprep.subr.mxu0 0.0
      %4936 = vmatpush2.msra.mxu0 %v4863
      %4937 = vmatprep.subr.mxu0 0.0
      %4938 = vmatpush2.msra.mxu0 %v4862
      %4939 = vmatprep.subr.mxu0 0.0
      %4940 = vmatpush2.msra.mxu0 %v4861
      %4941 = vmatprep.mubr.f32.mxu0 %v4781
      %4942 = vmatmul.mubr.f32.gmra.mxu0 %v4780
      %v4943 = vpop.f32.mrf.mxu0
      %v4944 = vadd.f32 0.0, %v4943
      %v4945 = vpop.f32.mrf.mxu0
      %4946 = vmatprep.mubr.f32.mxu0 %v4783
      %4947 = vmatmul.mubr.f32.gmra.mxu0 %v4782
      %v4948 = vpop.f32.mrf.mxu0
      %v4949 = vadd.f32 0.0, %v4948
      %v4950 = vpop.f32.mrf.mxu0
      %4951 = vmatprep.mubr.f32.mxu0 %v4785
      %4952 = vmatmul.mubr.f32.gmra.mxu0 %v4784
      %v4953 = vpop.f32.mrf.mxu0
      %v4954 = vadd.f32 0.0, %v4953
      %v4955 = vpop.f32.mrf.mxu0
      %4956 = vmatprep.mubr.f32.mxu0 %v4787
      %4957 = vmatmul.mubr.f32.gmra.mxu0 %v4786
      %v4958 = vpop.f32.mrf.mxu0
      %v4959 = vadd.f32 0.0, %v4958
      %v4960 = vpop.f32.mrf.mxu0
      %4961 = vmatprep.mubr.f32.mxu0 %v4789
      %4962 = vmatmul.mubr.f32.gmra.mxu0 %v4788
      %v4963 = vpop.f32.mrf.mxu0
      %v4964 = vadd.f32 0.0, %v4963
      %v4965 = vpop.f32.mrf.mxu0
      %4966 = vmatprep.mubr.f32.mxu0 %v4791
      %4967 = vmatmul.mubr.f32.gmra.mxu0 %v4790
      %v4968 = vpop.f32.mrf.mxu0
      %v4969 = vadd.f32 0.0, %v4968
      %v4970 = vpop.f32.mrf.mxu0
      %4971 = vmatprep.mubr.f32.mxu0 %v4793
      %4972 = vmatmul.mubr.f32.gmra.mxu0 %v4792
      %v4973 = vpop.f32.mrf.mxu0
      %v4974 = vadd.f32 0.0, %v4973
      %v4975 = vpop.f32.mrf.mxu0
      %4976 = vmatprep.mubr.f32.mxu0 %v4795
      %4977 = vmatmul.mubr.f32.gmra.mxu0 %v4794
      %v4978 = vpop.f32.mrf.mxu0
      %v4979 = vadd.f32 0.0, %v4978
      %v4980 = vpop.f32.mrf.mxu0
      %4981 = vmatprep.mubr.f32.mxu0 %v4797
      %4982 = vmatmul.mubr.f32.gmra.mxu0 %v4796
      %v4983 = vpop.f32.mrf.mxu0
      %v4984 = vadd.f32 0.0, %v4983
      %v4985 = vpop.f32.mrf.mxu0
      %4986 = vmatprep.mubr.f32.mxu0 %v4799
      %4987 = vmatmul.mubr.f32.gmra.mxu0 %v4798
      %v4988 = vpop.f32.mrf.mxu0
      %v4989 = vadd.f32 0.0, %v4988
      %v4990 = vpop.f32.mrf.mxu0
      %4991 = vmatprep.mubr.f32.mxu0 %v4801
      %4992 = vmatmul.mubr.f32.gmra.mxu0 %v4800
      %v4993 = vpop.f32.mrf.mxu0
      %v4994 = vadd.f32 0.0, %v4993
      %v4995 = vpop.f32.mrf.mxu0
      %4996 = vmatprep.mubr.f32.mxu0 %v4803
      %4997 = vmatmul.mubr.f32.gmra.mxu0 %v4802
      %v4998 = vpop.f32.mrf.mxu0
      %v4999 = vadd.f32 0.0, %v4998
      %v5000 = vpop.f32.mrf.mxu0
      %5001 = vmatprep.mubr.f32.mxu0 %v4805
      %5002 = vmatmul.mubr.f32.gmra.mxu0 %v4804
      %v5003 = vpop.f32.mrf.mxu0
      %v5004 = vadd.f32 0.0, %v5003
      %v5005 = vpop.f32.mrf.mxu0
      %5006 = vmatprep.mubr.f32.mxu0 %v4807
      %5007 = vmatmul.mubr.f32.gmra.mxu0 %v4806
      %v5008 = vpop.f32.mrf.mxu0
      %v5009 = vadd.f32 0.0, %v5008
      %v5010 = vpop.f32.mrf.mxu0
      %5011 = vmatprep.mubr.f32.mxu0 %v4809
      %5012 = vmatmul.mubr.f32.gmra.mxu0 %v4808
      %v5013 = vpop.f32.mrf.mxu0
      %v5014 = vadd.f32 0.0, %v5013
      %v5015 = vpop.f32.mrf.mxu0
      %5016 = vmatprep.mubr.f32.mxu0 %v4811
      %5017 = vmatmul.mubr.f32.gmra.mxu0 %v4810
      %v5018 = vpop.f32.mrf.mxu0
      %v5019 = vadd.f32 0.0, %v5018
      %v5020 = vpop.f32.mrf.mxu0
      %5021 = vmatprep.mubr.f32.mxu0 %v4813
      %5022 = vmatmul.mubr.f32.gmra.mxu0 %v4812
      %v5023 = vpop.f32.mrf.mxu0
      %v5024 = vadd.f32 0.0, %v5023
      %v5025 = vpop.f32.mrf.mxu0
      %5026 = vmatprep.mubr.f32.mxu0 %v4815
      %5027 = vmatmul.mubr.f32.gmra.mxu0 %v4814
      %v5028 = vpop.f32.mrf.mxu0
      %v5029 = vadd.f32 0.0, %v5028
      %v5030 = vpop.f32.mrf.mxu0
      %5031 = vmatprep.mubr.f32.mxu0 %v4817
      %5032 = vmatmul.mubr.f32.gmra.mxu0 %v4816
      %v5033 = vpop.f32.mrf.mxu0
      %v5034 = vadd.f32 0.0, %v5033
      %v5035 = vpop.f32.mrf.mxu0
      %5036 = vmatprep.mubr.f32.mxu0 %v4819
      %5037 = vmatmul.mubr.f32.gmra.mxu0 %v4818
      %v5038 = vpop.f32.mrf.mxu0
      %v5039 = vadd.f32 0.0, %v5038
      %v5040 = vpop.f32.mrf.mxu0
      %5041 = vmatprep.mubr.f32.mxu0 %v4821
      %5042 = vmatmul.mubr.f32.gmra.mxu0 %v4820
      %v5043 = vpop.f32.mrf.mxu0
      %v5044 = vadd.f32 0.0, %v5043
      %v5045 = vpop.f32.mrf.mxu0
      %5046 = vmatprep.mubr.f32.mxu0 %v4823
      %5047 = vmatmul.mubr.f32.gmra.mxu0 %v4822
      %v5048 = vpop.f32.mrf.mxu0
      %v5049 = vadd.f32 0.0, %v5048
      %v5050 = vpop.f32.mrf.mxu0
      %5051 = vmatprep.mubr.f32.mxu0 %v4825
      %5052 = vmatmul.mubr.f32.gmra.mxu0 %v4824
      %v5053 = vpop.f32.mrf.mxu0
      %v5054 = vadd.f32 0.0, %v5053
      %v5055 = vpop.f32.mrf.mxu0
      %5056 = vmatprep.mubr.f32.mxu0 %v4827
      %5057 = vmatmul.mubr.f32.gmra.mxu0 %v4826
      %v5058 = vpop.f32.mrf.mxu0
      %v5059 = vadd.f32 0.0, %v5058
      %v5060 = vpop.f32.mrf.mxu0
      %5061 = vmatprep.mubr.f32.mxu0 %v4829
      %5062 = vmatmul.mubr.f32.gmra.mxu0 %v4828
      %v5063 = vpop.f32.mrf.mxu0
      %v5064 = vadd.f32 0.0, %v5063
      %v5065 = vpop.f32.mrf.mxu0
      %5066 = vmatprep.mubr.f32.mxu0 %v4831
      %5067 = vmatmul.mubr.f32.gmra.mxu0 %v4830
      %v5068 = vpop.f32.mrf.mxu0
      %v5069 = vadd.f32 0.0, %v5068
      %v5070 = vpop.f32.mrf.mxu0
      %5071 = vmatprep.mubr.f32.mxu0 %v4833
      %5072 = vmatmul.mubr.f32.gmra.mxu0 %v4832
      %v5073 = vpop.f32.mrf.mxu0
      %v5074 = vadd.f32 0.0, %v5073
      %v5075 = vpop.f32.mrf.mxu0
      %5076 = vmatprep.mubr.f32.mxu0 %v4835
      %5077 = vmatmul.mubr.f32.gmra.mxu0 %v4834
      %v5078 = vpop.f32.mrf.mxu0
      %v5079 = vadd.f32 0.0, %v5078
      %v5080 = vpop.f32.mrf.mxu0
      %5081 = vmatprep.mubr.f32.mxu0 %v4837
      %5082 = vmatmul.mubr.f32.gmra.mxu0 %v4836
      %v5083 = vpop.f32.mrf.mxu0
      %v5084 = vadd.f32 0.0, %v5083
      %v5085 = vpop.f32.mrf.mxu0
      %5086 = vmatprep.mubr.f32.mxu0 %v4839
      %5087 = vmatmul.mubr.f32.gmra.mxu0 %v4838
      %v5088 = vpop.f32.mrf.mxu0
      %v5089 = vadd.f32 0.0, %v5088
      %v5090 = vpop.f32.mrf.mxu0
      %5091 = vmatprep.mubr.f32.mxu0 %v4841
      %5092 = vmatmul.mubr.f32.gmra.mxu0 %v4840
      %v5093 = vpop.f32.mrf.mxu0
      %v5094 = vadd.f32 0.0, %v5093
      %v5095 = vpop.f32.mrf.mxu0
      %5096 = vmatprep.mubr.f32.mxu0 %v4843
      %5097 = vmatmul.mubr.f32.gmra.mxu0 %v4842
      %v5098 = vpop.f32.mrf.mxu0
      %v5099 = vadd.f32 0.0, %v5098
      %v5100 = vpop.f32.mrf.mxu0
      %5101 = vdwg.mxu0
      %v5102 = vadd.f32 %v4748, %v4944
      %v5103 = vadd.f32 %v4749, %v4949
      %v5104 = vadd.f32 %v4750, %v4954
      %v5105 = vadd.f32 %v4751, %v4959
      %v5106 = vadd.f32 %v4752, %v4964
      %v5107 = vadd.f32 %v4753, %v4969
      %v5108 = vadd.f32 %v4754, %v4974
      %v5109 = vadd.f32 %v4755, %v4979
      %v5110 = vadd.f32 %v4756, %v4984
      %v5111 = vadd.f32 %v4757, %v4989
      %v5112 = vadd.f32 %v4758, %v4994
      %v5113 = vadd.f32 %v4759, %v4999
      %v5114 = vadd.f32 %v4760, %v5004
      %v5115 = vadd.f32 %v4761, %v5009
      %v5116 = vadd.f32 %v4762, %v5014
      %v5117 = vadd.f32 %v4763, %v5019
      %v5118 = vadd.f32 %v4764, %v5024
      %v5119 = vadd.f32 %v4765, %v5029
      %v5120 = vadd.f32 %v4766, %v5034
      %v5121 = vadd.f32 %v4767, %v5039
      %v5122 = vadd.f32 %v4768, %v5044
      %v5123 = vadd.f32 %v4769, %v5049
      %v5124 = vadd.f32 %v4770, %v5054
      %v5125 = vadd.f32 %v4771, %v5059
      %v5126 = vadd.f32 %v4772, %v5064
      %v5127 = vadd.f32 %v4773, %v5069
      %v5128 = vadd.f32 %v4774, %v5074
      %v5129 = vadd.f32 %v4775, %v5079
      %v5130 = vadd.f32 %v4776, %v5084
      %v5131 = vadd.f32 %v4777, %v5089
      %v5132 = vadd.f32 %v4778, %v5094
      %v5133 = vadd.f32 %v4779, %v5099
      %v5134 = vld [vmem:[%s3076] sm:$0xfe]
      %v5135 = vld [vmem:[%s3076 + $0x8] sm:$0xfe]
      %v5136 = vld [vmem:[%s3076 + $0x10] sm:$0xff]
      %v5137 = vld [vmem:[%s3076 + $0x18] sm:$0xff]
      %v5138 = vld [vmem:[%s3076 + $0x20] sm:$0x1]
      %v5139 = vld [vmem:[%s3076 + $0x28] sm:$0x1]
      %v5140 = vld [vmem:[%s3076 + $0x30] sm:$0xfe]
      %v5141 = vld [vmem:[%s3076 + $0x38] sm:$0xfe]
      %v5142 = vld [vmem:[%s3076 + $0x40] sm:$0xff]
      %v5143 = vld [vmem:[%s3076 + $0x48] sm:$0xff]
      %v5144 = vld [vmem:[%s3076 + $0x50] sm:$0x1]
      %v5145 = vld [vmem:[%s3076 + $0x58] sm:$0x1]
      %v5146 = vld [vmem:[%s3076 + $0x60] sm:$0xfe]
      %v5147 = vld [vmem:[%s3076 + $0x68] sm:$0xfe]
      %v5148 = vld [vmem:[%s3076 + $0x70] sm:$0xff]
      %v5149 = vld [vmem:[%s3076 + $0x78] sm:$0xff]
      %v5150 = vld [vmem:[%s3076 + $0x80] sm:$0x1]
      %v5151 = vld [vmem:[%s3076 + $0x88] sm:$0x1]
      %v5152 = vld [vmem:[%s3076 + $0x90] sm:$0xfe]
      %v5153 = vld [vmem:[%s3076 + $0x98] sm:$0xfe]
      %v5154 = vld [vmem:[%s3076 + $0xa0] sm:$0xff]
      %v5155 = vld [vmem:[%s3076 + $0xa8] sm:$0xff]
      %v5156 = vld [vmem:[%s3076 + $0xb0] sm:$0x1]
      %v5157 = vld [vmem:[%s3076 + $0xb8] sm:$0x1]
      %v5158 = vld [vmem:[%s3076 + $0xc0] sm:$0xfe]
      %v5159 = vld [vmem:[%s3076 + $0xc8] sm:$0xfe]
      %v5160 = vld [vmem:[%s3076 + $0xd0] sm:$0xff]
      %v5161 = vld [vmem:[%s3076 + $0xd8] sm:$0xff]
      %v5162 = vld [vmem:[%s3076 + $0xe0] sm:$0x1]
      %v5163 = vld [vmem:[%s3076 + $0xe8] sm:$0x1]
      %v5164 = vld [vmem:[%s3076 + $0xf0] sm:$0xfe]
      %v5165 = vld [vmem:[%s3076 + $0xf8] sm:$0xfe]
      %v5166 = vld [vmem:[%s3076 + $0x100] sm:$0xff]
      %v5167 = vld [vmem:[%s3076 + $0x108] sm:$0xff]
      %v5168 = vld [vmem:[%s3076 + $0x110] sm:$0x1]
      %v5169 = vld [vmem:[%s3076 + $0x118] sm:$0x1]
      %v5170 = vld [vmem:[%s3076 + $0x120] sm:$0xfe]
      %v5171 = vld [vmem:[%s3076 + $0x128] sm:$0xfe]
      %v5172 = vld [vmem:[%s3076 + $0x130] sm:$0xff]
      %v5173 = vld [vmem:[%s3076 + $0x138] sm:$0xff]
      %v5174 = vld [vmem:[%s3076 + $0x140] sm:$0x1]
      %v5175 = vld [vmem:[%s3076 + $0x148] sm:$0x1]
      %v5176 = vld [vmem:[%s3076 + $0x150] sm:$0xfe]
      %v5177 = vld [vmem:[%s3076 + $0x158] sm:$0xfe]
      %v5178 = vld [vmem:[%s3076 + $0x160] sm:$0xff]
      %v5179 = vld [vmem:[%s3076 + $0x168] sm:$0xff]
      %v5180 = vld [vmem:[%s3076 + $0x170] sm:$0x1]
      %v5181 = vld [vmem:[%s3076 + $0x178] sm:$0x1]
      %v5182 = vld [vmem:[%s3076 + $0x180] sm:$0xfe]
      %v5183 = vld [vmem:[%s3076 + $0x188] sm:$0xfe]
      %v5184 = vld [vmem:[%s3076 + $0x190] sm:$0xff]
      %v5185 = vld [vmem:[%s3076 + $0x198] sm:$0xff]
      %v5186 = vld [vmem:[%s3076 + $0x1a0] sm:$0x1]
      %v5187 = vld [vmem:[%s3076 + $0x1a8] sm:$0x1]
      %v5188 = vld [vmem:[%s3076 + $0x1b0] sm:$0xfe]
      %v5189 = vld [vmem:[%s3076 + $0x1b8] sm:$0xfe]
      %v5190 = vld [vmem:[%s3076 + $0x1c0] sm:$0xff]
      %v5191 = vld [vmem:[%s3076 + $0x1c8] sm:$0xff]
      %v5192 = vld [vmem:[%s3076 + $0x1d0] sm:$0x1]
      %v5193 = vld [vmem:[%s3076 + $0x1d8] sm:$0x1]
      %v5194 = vld [vmem:[%s3076 + $0x1e0] sm:$0xfe]
      %v5195 = vld [vmem:[%s3076 + $0x1e8] sm:$0xfe]
      %v5196 = vld [vmem:[%s3076 + $0x1f0] sm:$0xff]
      %v5197 = vld [vmem:[%s3076 + $0x1f8] sm:$0xff]
      %v5198 = vld [vmem:[%s3076 + $0x200] sm:$0x1]
      %v5199 = vld [vmem:[%s3076 + $0x208] sm:$0x1]
      %v5200 = vld [vmem:[%s3076 + $0x210] sm:$0xfe]
      %v5201 = vld [vmem:[%s3076 + $0x218] sm:$0xfe]
      %v5202 = vld [vmem:[%s3076 + $0x220] sm:$0xff]
      %v5203 = vld [vmem:[%s3076 + $0x228] sm:$0xff]
      %v5204 = vld [vmem:[%s3076 + $0x230] sm:$0x1]
      %v5205 = vld [vmem:[%s3076 + $0x238] sm:$0x1]
      %v5206 = vld [vmem:[%s3076 + $0x240] sm:$0xfe]
      %v5207 = vld [vmem:[%s3076 + $0x248] sm:$0xfe]
      %v5208 = vld [vmem:[%s3076 + $0x250] sm:$0xff]
      %v5209 = vld [vmem:[%s3076 + $0x258] sm:$0xff]
      %v5210 = vld [vmem:[%s3076 + $0x260] sm:$0x1]
      %v5211 = vld [vmem:[%s3076 + $0x268] sm:$0x1]
      %v5212 = vld [vmem:[%s3076 + $0x270] sm:$0xfe]
      %v5213 = vld [vmem:[%s3076 + $0x278] sm:$0xfe]
      %v5214 = vld [vmem:[%s3076 + $0x280] sm:$0xff]
      %v5215 = vld [vmem:[%s3076 + $0x288] sm:$0xff]
      %v5216 = vld [vmem:[%s3076 + $0x290] sm:$0x1]
      %v5217 = vld [vmem:[%s3076 + $0x298] sm:$0x1]
      %v5218 = vld [vmem:[%s3076 + $0x2a0] sm:$0xfe]
      %v5219 = vld [vmem:[%s3076 + $0x2a8] sm:$0xfe]
      %v5220 = vld [vmem:[%s3076 + $0x2b0] sm:$0xff]
      %v5221 = vld [vmem:[%s3076 + $0x2b8] sm:$0xff]
      %v5222 = vld [vmem:[%s3076 + $0x2c0] sm:$0x1]
      %v5223 = vld [vmem:[%s3076 + $0x2c8] sm:$0x1]
      %v5224 = vld [vmem:[%s3076 + $0x2d0] sm:$0xfe]
      %v5225 = vld [vmem:[%s3076 + $0x2d8] sm:$0xfe]
      %v5226 = vld [vmem:[%s3076 + $0x2e0] sm:$0xff]
      %v5227 = vld [vmem:[%s3076 + $0x2e8] sm:$0xff]
      %v5228 = vld [vmem:[%s3076 + $0x2f0] sm:$0x1]
      %v5229 = vld [vmem:[%s3076 + $0x2f8] sm:$0x1]
      %v5326 = vrot.slane %v5134, 1
      %v5327 = vrot.slane %v5136, 1
      %v5328 = vsel %vm3429, %v5326, %v5327
      %v5329 = vrot.slane %v5135, 1
      %v5330 = vrot.slane %v5137, 1
      %v5331 = vsel %vm3429, %v5329, %v5330
      %v5332 = vrot.slane %v5138, 1
      %v5333 = vsel %vm3429, %v5327, %v5332
      %v5334 = vrot.slane %v5139, 1
      %v5335 = vsel %vm3429, %v5330, %v5334
      %v5336 = vrot.slane %v5140, 1
      %v5337 = vrot.slane %v5142, 1
      %v5338 = vsel %vm3429, %v5336, %v5337
      %v5339 = vrot.slane %v5141, 1
      %v5340 = vrot.slane %v5143, 1
      %v5341 = vsel %vm3429, %v5339, %v5340
      %v5342 = vrot.slane %v5144, 1
      %v5343 = vsel %vm3429, %v5337, %v5342
      %v5344 = vrot.slane %v5145, 1
      %v5345 = vsel %vm3429, %v5340, %v5344
      %v5346 = vrot.slane %v5146, 1
      %v5347 = vrot.slane %v5148, 1
      %v5348 = vsel %vm3429, %v5346, %v5347
      %v5349 = vrot.slane %v5147, 1
      %v5350 = vrot.slane %v5149, 1
      %v5351 = vsel %vm3429, %v5349, %v5350
      %v5352 = vrot.slane %v5150, 1
      %v5353 = vsel %vm3429, %v5347, %v5352
      %v5354 = vrot.slane %v5151, 1
      %v5355 = vsel %vm3429, %v5350, %v5354
      %v5356 = vrot.slane %v5152, 1
      %v5357 = vrot.slane %v5154, 1
      %v5358 = vsel %vm3429, %v5356, %v5357
      %v5359 = vrot.slane %v5153, 1
      %v5360 = vrot.slane %v5155, 1
      %v5361 = vsel %vm3429, %v5359, %v5360
      %v5362 = vrot.slane %v5156, 1
      %v5363 = vsel %vm3429, %v5357, %v5362
      %v5364 = vrot.slane %v5157, 1
      %v5365 = vsel %vm3429, %v5360, %v5364
      %v5366 = vrot.slane %v5158, 1
      %v5367 = vrot.slane %v5160, 1
      %v5368 = vsel %vm3429, %v5366, %v5367
      %v5369 = vrot.slane %v5159, 1
      %v5370 = vrot.slane %v5161, 1
      %v5371 = vsel %vm3429, %v5369, %v5370
      %v5372 = vrot.slane %v5162, 1
      %v5373 = vsel %vm3429, %v5367, %v5372
      %v5374 = vrot.slane %v5163, 1
      %v5375 = vsel %vm3429, %v5370, %v5374
      %v5376 = vrot.slane %v5164, 1
      %v5377 = vrot.slane %v5166, 1
      %v5378 = vsel %vm3429, %v5376, %v5377
      %v5379 = vrot.slane %v5165, 1
      %v5380 = vrot.slane %v5167, 1
      %v5381 = vsel %vm3429, %v5379, %v5380
      %v5382 = vrot.slane %v5168, 1
      %v5383 = vsel %vm3429, %v5377, %v5382
      %v5384 = vrot.slane %v5169, 1
      %v5385 = vsel %vm3429, %v5380, %v5384
      %v5386 = vrot.slane %v5170, 1
      %v5387 = vrot.slane %v5172, 1
      %v5388 = vsel %vm3429, %v5386, %v5387
      %v5389 = vrot.slane %v5171, 1
      %v5390 = vrot.slane %v5173, 1
      %v5391 = vsel %vm3429, %v5389, %v5390
      %v5392 = vrot.slane %v5174, 1
      %v5393 = vsel %vm3429, %v5387, %v5392
      %v5394 = vrot.slane %v5175, 1
      %v5395 = vsel %vm3429, %v5390, %v5394
      %v5396 = vrot.slane %v5176, 1
      %v5397 = vrot.slane %v5178, 1
      %v5398 = vsel %vm3429, %v5396, %v5397
      %v5399 = vrot.slane %v5177, 1
      %v5400 = vrot.slane %v5179, 1
      %v5401 = vsel %vm3429, %v5399, %v5400
      %v5402 = vrot.slane %v5180, 1
      %v5403 = vsel %vm3429, %v5397, %v5402
      %v5404 = vrot.slane %v5181, 1
      %v5405 = vsel %vm3429, %v5400, %v5404
      %v5406 = vrot.slane %v5182, 1
      %v5407 = vrot.slane %v5184, 1
      %v5408 = vsel %vm3429, %v5406, %v5407
      %v5409 = vrot.slane %v5183, 1
      %v5410 = vrot.slane %v5185, 1
      %v5411 = vsel %vm3429, %v5409, %v5410
      %v5412 = vrot.slane %v5186, 1
      %v5413 = vsel %vm3429, %v5407, %v5412
      %v5414 = vrot.slane %v5187, 1
      %v5415 = vsel %vm3429, %v5410, %v5414
      %v5416 = vrot.slane %v5188, 1
      %v5417 = vrot.slane %v5190, 1
      %v5418 = vsel %vm3429, %v5416, %v5417
      %v5419 = vrot.slane %v5189, 1
      %v5420 = vrot.slane %v5191, 1
      %v5421 = vsel %vm3429, %v5419, %v5420
      %v5422 = vrot.slane %v5192, 1
      %v5423 = vsel %vm3429, %v5417, %v5422
      %v5424 = vrot.slane %v5193, 1
      %v5425 = vsel %vm3429, %v5420, %v5424
      %v5426 = vrot.slane %v5194, 1
      %v5427 = vrot.slane %v5196, 1
      %v5428 = vsel %vm3429, %v5426, %v5427
      %v5429 = vrot.slane %v5195, 1
      %v5430 = vrot.slane %v5197, 1
      %v5431 = vsel %vm3429, %v5429, %v5430
      %v5432 = vrot.slane %v5198, 1
      %v5433 = vsel %vm3429, %v5427, %v5432
      %v5434 = vrot.slane %v5199, 1
      %v5435 = vsel %vm3429, %v5430, %v5434
      %v5436 = vrot.slane %v5200, 1
      %v5437 = vrot.slane %v5202, 1
      %v5438 = vsel %vm3429, %v5436, %v5437
      %v5439 = vrot.slane %v5201, 1
      %v5440 = vrot.slane %v5203, 1
      %v5441 = vsel %vm3429, %v5439, %v5440
      %v5442 = vrot.slane %v5204, 1
      %v5443 = vsel %vm3429, %v5437, %v5442
      %v5444 = vrot.slane %v5205, 1
      %v5445 = vsel %vm3429, %v5440, %v5444
      %v5446 = vrot.slane %v5206, 1
      %v5447 = vrot.slane %v5208, 1
      %v5448 = vsel %vm3429, %v5446, %v5447
      %v5449 = vrot.slane %v5207, 1
      %v5450 = vrot.slane %v5209, 1
      %v5451 = vsel %vm3429, %v5449, %v5450
      %v5452 = vrot.slane %v5210, 1
      %v5453 = vsel %vm3429, %v5447, %v5452
      %v5454 = vrot.slane %v5211, 1
      %v5455 = vsel %vm3429, %v5450, %v5454
      %v5456 = vrot.slane %v5212, 1
      %v5457 = vrot.slane %v5214, 1
      %v5458 = vsel %vm3429, %v5456, %v5457
      %v5459 = vrot.slane %v5213, 1
      %v5460 = vrot.slane %v5215, 1
      %v5461 = vsel %vm3429, %v5459, %v5460
      %v5462 = vrot.slane %v5216, 1
      %v5463 = vsel %vm3429, %v5457, %v5462
      %v5464 = vrot.slane %v5217, 1
      %v5465 = vsel %vm3429, %v5460, %v5464
      %v5466 = vrot.slane %v5218, 1
      %v5467 = vrot.slane %v5220, 1
      %v5468 = vsel %vm3429, %v5466, %v5467
      %v5469 = vrot.slane %v5219, 1
      %v5470 = vrot.slane %v5221, 1
      %v5471 = vsel %vm3429, %v5469, %v5470
      %v5472 = vrot.slane %v5222, 1
      %v5473 = vsel %vm3429, %v5467, %v5472
      %v5474 = vrot.slane %v5223, 1
      %v5475 = vsel %vm3429, %v5470, %v5474
      %v5476 = vrot.slane %v5224, 1
      %v5477 = vrot.slane %v5226, 1
      %v5478 = vsel %vm3429, %v5476, %v5477
      %v5479 = vrot.slane %v5225, 1
      %v5480 = vrot.slane %v5227, 1
      %v5481 = vsel %vm3429, %v5479, %v5480
      %v5482 = vrot.slane %v5228, 1
      %v5483 = vsel %vm3429, %v5477, %v5482
      %v5484 = vrot.slane %v5229, 1
      %v5485 = vsel %vm3429, %v5480, %v5484
      %s5550 = scalar_lea.vmem %s5, 1024
      %v5551 = vld [vmem:[%s5550] sm:$0xff]
      %v5552 = vld [vmem:[%s5550 + $0x8] sm:$0xff]
      %v5553 = vld [vmem:[%s5550 + $0x10] sm:$0xff]
      %v5554 = vld [vmem:[%s5550 + $0x18] sm:$0xff]
      %v5555 = vld [vmem:[%s5550 + $0x20] sm:$0xff]
      %v5556 = vld [vmem:[%s5550 + $0x28] sm:$0xff]
      %v5557 = vld [vmem:[%s5550 + $0x30] sm:$0xff]
      %v5558 = vld [vmem:[%s5550 + $0x38] sm:$0xff]
      %v5559 = vld [vmem:[%s5550 + $0x40] sm:$0xff]
      %v5560 = vld [vmem:[%s5550 + $0x48] sm:$0xff]
      %v5561 = vld [vmem:[%s5550 + $0x50] sm:$0xff]
      %v5562 = vld [vmem:[%s5550 + $0x58] sm:$0xff]
      %v5563 = vld [vmem:[%s5550 + $0x60] sm:$0xff]
      %v5564 = vld [vmem:[%s5550 + $0x68] sm:$0xff]
      %v5565 = vld [vmem:[%s5550 + $0x70] sm:$0xff]
      %v5566 = vld [vmem:[%s5550 + $0x78] sm:$0xff]
      %v5567 = vld [vmem:[%s5550 + $0x80] sm:$0xff]
      %v5568 = vld [vmem:[%s5550 + $0x88] sm:$0xff]
      %v5569 = vld [vmem:[%s5550 + $0x90] sm:$0xff]
      %v5570 = vld [vmem:[%s5550 + $0x98] sm:$0xff]
      %v5571 = vld [vmem:[%s5550 + $0xa0] sm:$0xff]
      %v5572 = vld [vmem:[%s5550 + $0xa8] sm:$0xff]
      %v5573 = vld [vmem:[%s5550 + $0xb0] sm:$0xff]
      %v5574 = vld [vmem:[%s5550 + $0xb8] sm:$0xff]
      %v5575 = vld [vmem:[%s5550 + $0xc0] sm:$0xff]
      %v5576 = vld [vmem:[%s5550 + $0xc8] sm:$0xff]
      %v5577 = vld [vmem:[%s5550 + $0xd0] sm:$0xff]
      %v5578 = vld [vmem:[%s5550 + $0xd8] sm:$0xff]
      %v5579 = vld [vmem:[%s5550 + $0xe0] sm:$0xff]
      %v5580 = vld [vmem:[%s5550 + $0xe8] sm:$0xff]
      %v5581 = vld [vmem:[%s5550 + $0xf0] sm:$0xff]
      %v5582 = vld [vmem:[%s5550 + $0xf8] sm:$0xff]
      %5583 = vmatprep.subr.mxu0 0.0
      %5584 = vmatpush1.msra.mxu0 %v5566
      %5585 = vmatprep.subr.mxu0 0.0
      %5586 = vmatpush1.msra.mxu0 %v5565
      %5587 = vmatprep.subr.mxu0 0.0
      %5588 = vmatpush1.msra.mxu0 %v5564
      %5589 = vmatprep.subr.mxu0 0.0
      %5590 = vmatpush1.msra.mxu0 %v5563
      %5591 = vmatprep.subr.mxu0 0.0
      %5592 = vmatpush1.msra.mxu0 %v5562
      %5593 = vmatprep.subr.mxu0 0.0
      %5594 = vmatpush1.msra.mxu0 %v5561
      %5595 = vmatprep.subr.mxu0 0.0
      %5596 = vmatpush1.msra.mxu0 %v5560
      %5597 = vmatprep.subr.mxu0 0.0
      %5598 = vmatpush1.msra.mxu0 %v5559
      %5599 = vmatprep.subr.mxu0 0.0
      %5600 = vmatpush1.msra.mxu0 %v5558
      %5601 = vmatprep.subr.mxu0 0.0
      %5602 = vmatpush1.msra.mxu0 %v5557
      %5603 = vmatprep.subr.mxu0 0.0
      %5604 = vmatpush1.msra.mxu0 %v5556
      %5605 = vmatprep.subr.mxu0 0.0
      %5606 = vmatpush1.msra.mxu0 %v5555
      %5607 = vmatprep.subr.mxu0 0.0
      %5608 = vmatpush1.msra.mxu0 %v5554
      %5609 = vmatprep.subr.mxu0 0.0
      %5610 = vmatpush1.msra.mxu0 %v5553
      %5611 = vmatprep.subr.mxu0 0.0
      %5612 = vmatpush1.msra.mxu0 %v5552
      %5613 = vmatprep.subr.mxu0 0.0
      %5614 = vmatpush1.msra.mxu0 %v5551
      %5615 = vmatprep.subr.mxu0 0.0
      %5616 = vmatpush2.msra.mxu0 %v5582
      %5617 = vmatprep.subr.mxu0 0.0
      %5618 = vmatpush2.msra.mxu0 %v5581
      %5619 = vmatprep.subr.mxu0 0.0
      %5620 = vmatpush2.msra.mxu0 %v5580
      %5621 = vmatprep.subr.mxu0 0.0
      %5622 = vmatpush2.msra.mxu0 %v5579
      %5623 = vmatprep.subr.mxu0 0.0
      %5624 = vmatpush2.msra.mxu0 %v5578
      %5625 = vmatprep.subr.mxu0 0.0
      %5626 = vmatpush2.msra.mxu0 %v5577
      %5627 = vmatprep.subr.mxu0 0.0
      %5628 = vmatpush2.msra.mxu0 %v5576
      %5629 = vmatprep.subr.mxu0 0.0
      %5630 = vmatpush2.msra.mxu0 %v5575
      %5631 = vmatprep.subr.mxu0 0.0
      %5632 = vmatpush2.msra.mxu0 %v5574
      %5633 = vmatprep.subr.mxu0 0.0
      %5634 = vmatpush2.msra.mxu0 %v5573
      %5635 = vmatprep.subr.mxu0 0.0
      %5636 = vmatpush2.msra.mxu0 %v5572
      %5637 = vmatprep.subr.mxu0 0.0
      %5638 = vmatpush2.msra.mxu0 %v5571
      %5639 = vmatprep.subr.mxu0 0.0
      %5640 = vmatpush2.msra.mxu0 %v5570
      %5641 = vmatprep.subr.mxu0 0.0
      %5642 = vmatpush2.msra.mxu0 %v5569
      %5643 = vmatprep.subr.mxu0 0.0
      %5644 = vmatpush2.msra.mxu0 %v5568
      %5645 = vmatprep.subr.mxu0 0.0
      %5646 = vmatpush2.msra.mxu0 %v5567
      %5647 = vmatprep.mubr.f32.mxu0 %v5331
      %5648 = vmatmul.mubr.f32.gmra.mxu0 %v5328
      %v5649 = vpop.f32.mrf.mxu0
      %v5650 = vadd.f32 0.0, %v5649
      %v5651 = vpop.f32.mrf.mxu0
      %5652 = vmatprep.mubr.f32.mxu0 %v5335
      %5653 = vmatmul.mubr.f32.gmra.mxu0 %v5333
      %v5654 = vpop.f32.mrf.mxu0
      %v5655 = vadd.f32 0.0, %v5654
      %v5656 = vpop.f32.mrf.mxu0
      %5657 = vmatprep.mubr.f32.mxu0 %v5341
      %5658 = vmatmul.mubr.f32.gmra.mxu0 %v5338
      %v5659 = vpop.f32.mrf.mxu0
      %v5660 = vadd.f32 0.0, %v5659
      %v5661 = vpop.f32.mrf.mxu0
      %5662 = vmatprep.mubr.f32.mxu0 %v5345
      %5663 = vmatmul.mubr.f32.gmra.mxu0 %v5343
      %v5664 = vpop.f32.mrf.mxu0
      %v5665 = vadd.f32 0.0, %v5664
      %v5666 = vpop.f32.mrf.mxu0
      %5667 = vmatprep.mubr.f32.mxu0 %v5351
      %5668 = vmatmul.mubr.f32.gmra.mxu0 %v5348
      %v5669 = vpop.f32.mrf.mxu0
      %v5670 = vadd.f32 0.0, %v5669
      %v5671 = vpop.f32.mrf.mxu0
      %5672 = vmatprep.mubr.f32.mxu0 %v5355
      %5673 = vmatmul.mubr.f32.gmra.mxu0 %v5353
      %v5674 = vpop.f32.mrf.mxu0
      %v5675 = vadd.f32 0.0, %v5674
      %v5676 = vpop.f32.mrf.mxu0
      %5677 = vmatprep.mubr.f32.mxu0 %v5361
      %5678 = vmatmul.mubr.f32.gmra.mxu0 %v5358
      %v5679 = vpop.f32.mrf.mxu0
      %v5680 = vadd.f32 0.0, %v5679
      %v5681 = vpop.f32.mrf.mxu0
      %5682 = vmatprep.mubr.f32.mxu0 %v5365
      %5683 = vmatmul.mubr.f32.gmra.mxu0 %v5363
      %v5684 = vpop.f32.mrf.mxu0
      %v5685 = vadd.f32 0.0, %v5684
      %v5686 = vpop.f32.mrf.mxu0
      %5687 = vmatprep.mubr.f32.mxu0 %v5371
      %5688 = vmatmul.mubr.f32.gmra.mxu0 %v5368
      %v5689 = vpop.f32.mrf.mxu0
      %v5690 = vadd.f32 0.0, %v5689
      %v5691 = vpop.f32.mrf.mxu0
      %5692 = vmatprep.mubr.f32.mxu0 %v5375
      %5693 = vmatmul.mubr.f32.gmra.mxu0 %v5373
      %v5694 = vpop.f32.mrf.mxu0
      %v5695 = vadd.f32 0.0, %v5694
      %v5696 = vpop.f32.mrf.mxu0
      %5697 = vmatprep.mubr.f32.mxu0 %v5381
      %5698 = vmatmul.mubr.f32.gmra.mxu0 %v5378
      %v5699 = vpop.f32.mrf.mxu0
      %v5700 = vadd.f32 0.0, %v5699
      %v5701 = vpop.f32.mrf.mxu0
      %5702 = vmatprep.mubr.f32.mxu0 %v5385
      %5703 = vmatmul.mubr.f32.gmra.mxu0 %v5383
      %v5704 = vpop.f32.mrf.mxu0
      %v5705 = vadd.f32 0.0, %v5704
      %v5706 = vpop.f32.mrf.mxu0
      %5707 = vmatprep.mubr.f32.mxu0 %v5391
      %5708 = vmatmul.mubr.f32.gmra.mxu0 %v5388
      %v5709 = vpop.f32.mrf.mxu0
      %v5710 = vadd.f32 0.0, %v5709
      %v5711 = vpop.f32.mrf.mxu0
      %5712 = vmatprep.mubr.f32.mxu0 %v5395
      %5713 = vmatmul.mubr.f32.gmra.mxu0 %v5393
      %v5714 = vpop.f32.mrf.mxu0
      %v5715 = vadd.f32 0.0, %v5714
      %v5716 = vpop.f32.mrf.mxu0
      %5717 = vmatprep.mubr.f32.mxu0 %v5401
      %5718 = vmatmul.mubr.f32.gmra.mxu0 %v5398
      %v5719 = vpop.f32.mrf.mxu0
      %v5720 = vadd.f32 0.0, %v5719
      %v5721 = vpop.f32.mrf.mxu0
      %5722 = vmatprep.mubr.f32.mxu0 %v5405
      %5723 = vmatmul.mubr.f32.gmra.mxu0 %v5403
      %v5724 = vpop.f32.mrf.mxu0
      %v5725 = vadd.f32 0.0, %v5724
      %v5726 = vpop.f32.mrf.mxu0
      %5727 = vmatprep.mubr.f32.mxu0 %v5411
      %5728 = vmatmul.mubr.f32.gmra.mxu0 %v5408
      %v5729 = vpop.f32.mrf.mxu0
      %v5730 = vadd.f32 0.0, %v5729
      %v5731 = vpop.f32.mrf.mxu0
      %5732 = vmatprep.mubr.f32.mxu0 %v5415
      %5733 = vmatmul.mubr.f32.gmra.mxu0 %v5413
      %v5734 = vpop.f32.mrf.mxu0
      %v5735 = vadd.f32 0.0, %v5734
      %v5736 = vpop.f32.mrf.mxu0
      %5737 = vmatprep.mubr.f32.mxu0 %v5421
      %5738 = vmatmul.mubr.f32.gmra.mxu0 %v5418
      %v5739 = vpop.f32.mrf.mxu0
      %v5740 = vadd.f32 0.0, %v5739
      %v5741 = vpop.f32.mrf.mxu0
      %5742 = vmatprep.mubr.f32.mxu0 %v5425
      %5743 = vmatmul.mubr.f32.gmra.mxu0 %v5423
      %v5744 = vpop.f32.mrf.mxu0
      %v5745 = vadd.f32 0.0, %v5744
      %v5746 = vpop.f32.mrf.mxu0
      %5747 = vmatprep.mubr.f32.mxu0 %v5431
      %5748 = vmatmul.mubr.f32.gmra.mxu0 %v5428
      %v5749 = vpop.f32.mrf.mxu0
      %v5750 = vadd.f32 0.0, %v5749
      %v5751 = vpop.f32.mrf.mxu0
      %5752 = vmatprep.mubr.f32.mxu0 %v5435
      %5753 = vmatmul.mubr.f32.gmra.mxu0 %v5433
      %v5754 = vpop.f32.mrf.mxu0
      %v5755 = vadd.f32 0.0, %v5754
      %v5756 = vpop.f32.mrf.mxu0
      %5757 = vmatprep.mubr.f32.mxu0 %v5441
      %5758 = vmatmul.mubr.f32.gmra.mxu0 %v5438
      %v5759 = vpop.f32.mrf.mxu0
      %v5760 = vadd.f32 0.0, %v5759
      %v5761 = vpop.f32.mrf.mxu0
      %5762 = vmatprep.mubr.f32.mxu0 %v5445
      %5763 = vmatmul.mubr.f32.gmra.mxu0 %v5443
      %v5764 = vpop.f32.mrf.mxu0
      %v5765 = vadd.f32 0.0, %v5764
      %v5766 = vpop.f32.mrf.mxu0
      %5767 = vmatprep.mubr.f32.mxu0 %v5451
      %5768 = vmatmul.mubr.f32.gmra.mxu0 %v5448
      %v5769 = vpop.f32.mrf.mxu0
      %v5770 = vadd.f32 0.0, %v5769
      %v5771 = vpop.f32.mrf.mxu0
      %5772 = vmatprep.mubr.f32.mxu0 %v5455
      %5773 = vmatmul.mubr.f32.gmra.mxu0 %v5453
      %v5774 = vpop.f32.mrf.mxu0
      %v5775 = vadd.f32 0.0, %v5774
      %v5776 = vpop.f32.mrf.mxu0
      %5777 = vmatprep.mubr.f32.mxu0 %v5461
      %5778 = vmatmul.mubr.f32.gmra.mxu0 %v5458
      %v5779 = vpop.f32.mrf.mxu0
      %v5780 = vadd.f32 0.0, %v5779
      %v5781 = vpop.f32.mrf.mxu0
      %5782 = vmatprep.mubr.f32.mxu0 %v5465
      %5783 = vmatmul.mubr.f32.gmra.mxu0 %v5463
      %v5784 = vpop.f32.mrf.mxu0
      %v5785 = vadd.f32 0.0, %v5784
      %v5786 = vpop.f32.mrf.mxu0
      %5787 = vmatprep.mubr.f32.mxu0 %v5471
      %5788 = vmatmul.mubr.f32.gmra.mxu0 %v5468
      %v5789 = vpop.f32.mrf.mxu0
      %v5790 = vadd.f32 0.0, %v5789
      %v5791 = vpop.f32.mrf.mxu0
      %5792 = vmatprep.mubr.f32.mxu0 %v5475
      %5793 = vmatmul.mubr.f32.gmra.mxu0 %v5473
      %v5794 = vpop.f32.mrf.mxu0
      %v5795 = vadd.f32 0.0, %v5794
      %v5796 = vpop.f32.mrf.mxu0
      %5797 = vmatprep.mubr.f32.mxu0 %v5481
      %5798 = vmatmul.mubr.f32.gmra.mxu0 %v5478
      %v5799 = vpop.f32.mrf.mxu0
      %v5800 = vadd.f32 0.0, %v5799
      %v5801 = vpop.f32.mrf.mxu0
      %5802 = vmatprep.mubr.f32.mxu0 %v5485
      %5803 = vmatmul.mubr.f32.gmra.mxu0 %v5483
      %v5804 = vpop.f32.mrf.mxu0
      %v5805 = vadd.f32 0.0, %v5804
      %v5806 = vpop.f32.mrf.mxu0
      %5807 = vdwg.mxu0
      %v5808 = vadd.f32 %v5102, %v5650
      %v5809 = vadd.f32 %v5103, %v5655
      %v5810 = vadd.f32 %v5104, %v5660
      %v5811 = vadd.f32 %v5105, %v5665
      %v5812 = vadd.f32 %v5106, %v5670
      %v5813 = vadd.f32 %v5107, %v5675
      %v5814 = vadd.f32 %v5108, %v5680
      %v5815 = vadd.f32 %v5109, %v5685
      %v5816 = vadd.f32 %v5110, %v5690
      %v5817 = vadd.f32 %v5111, %v5695
      %v5818 = vadd.f32 %v5112, %v5700
      %v5819 = vadd.f32 %v5113, %v5705
      %v5820 = vadd.f32 %v5114, %v5710
      %v5821 = vadd.f32 %v5115, %v5715
      %v5822 = vadd.f32 %v5116, %v5720
      %v5823 = vadd.f32 %v5117, %v5725
      %v5824 = vadd.f32 %v5118, %v5730
      %v5825 = vadd.f32 %v5119, %v5735
      %v5826 = vadd.f32 %v5120, %v5740
      %v5827 = vadd.f32 %v5121, %v5745
      %v5828 = vadd.f32 %v5122, %v5750
      %v5829 = vadd.f32 %v5123, %v5755
      %v5830 = vadd.f32 %v5124, %v5760
      %v5831 = vadd.f32 %v5125, %v5765
      %v5832 = vadd.f32 %v5126, %v5770
      %v5833 = vadd.f32 %v5127, %v5775
      %v5834 = vadd.f32 %v5128, %v5780
      %v5835 = vadd.f32 %v5129, %v5785
      %v5836 = vadd.f32 %v5130, %v5790
      %v5837 = vadd.f32 %v5131, %v5795
      %v5838 = vadd.f32 %v5132, %v5800
      %v5839 = vadd.f32 %v5133, %v5805
      %v5840 = vld [vmem:[%s3076] sm:$0xfc]
      %v5841 = vld [vmem:[%s3076 + $0x8] sm:$0xfc]
      %v5842 = vld [vmem:[%s3076 + $0x20] sm:$0x3]
      %v5843 = vld [vmem:[%s3076 + $0x28] sm:$0x3]
      %v5844 = vld [vmem:[%s3076 + $0x30] sm:$0xfc]
      %v5845 = vld [vmem:[%s3076 + $0x38] sm:$0xfc]
      %v5846 = vld [vmem:[%s3076 + $0x50] sm:$0x3]
      %v5847 = vld [vmem:[%s3076 + $0x58] sm:$0x3]
      %v5848 = vld [vmem:[%s3076 + $0x60] sm:$0xfc]
      %v5849 = vld [vmem:[%s3076 + $0x68] sm:$0xfc]
      %v5850 = vld [vmem:[%s3076 + $0x80] sm:$0x3]
      %v5851 = vld [vmem:[%s3076 + $0x88] sm:$0x3]
      %v5852 = vld [vmem:[%s3076 + $0x90] sm:$0xfc]
      %v5853 = vld [vmem:[%s3076 + $0x98] sm:$0xfc]
      %v5854 = vld [vmem:[%s3076 + $0xb0] sm:$0x3]
      %v5855 = vld [vmem:[%s3076 + $0xb8] sm:$0x3]
      %v5856 = vld [vmem:[%s3076 + $0xc0] sm:$0xfc]
      %v5857 = vld [vmem:[%s3076 + $0xc8] sm:$0xfc]
      %v5858 = vld [vmem:[%s3076 + $0xe0] sm:$0x3]
      %v5859 = vld [vmem:[%s3076 + $0xe8] sm:$0x3]
      %v5860 = vld [vmem:[%s3076 + $0xf0] sm:$0xfc]
      %v5861 = vld [vmem:[%s3076 + $0xf8] sm:$0xfc]
      %v5862 = vld [vmem:[%s3076 + $0x110] sm:$0x3]
      %v5863 = vld [vmem:[%s3076 + $0x118] sm:$0x3]
      %v5864 = vld [vmem:[%s3076 + $0x120] sm:$0xfc]
      %v5865 = vld [vmem:[%s3076 + $0x128] sm:$0xfc]
      %v5866 = vld [vmem:[%s3076 + $0x140] sm:$0x3]
      %v5867 = vld [vmem:[%s3076 + $0x148] sm:$0x3]
      %v5868 = vld [vmem:[%s3076 + $0x150] sm:$0xfc]
      %v5869 = vld [vmem:[%s3076 + $0x158] sm:$0xfc]
      %v5870 = vld [vmem:[%s3076 + $0x170] sm:$0x3]
      %v5871 = vld [vmem:[%s3076 + $0x178] sm:$0x3]
      %v5872 = vld [vmem:[%s3076 + $0x180] sm:$0xfc]
      %v5873 = vld [vmem:[%s3076 + $0x188] sm:$0xfc]
      %v5874 = vld [vmem:[%s3076 + $0x1a0] sm:$0x3]
      %v5875 = vld [vmem:[%s3076 + $0x1a8] sm:$0x3]
      %v5876 = vld [vmem:[%s3076 + $0x1b0] sm:$0xfc]
      %v5877 = vld [vmem:[%s3076 + $0x1b8] sm:$0xfc]
      %v5878 = vld [vmem:[%s3076 + $0x1d0] sm:$0x3]
      %v5879 = vld [vmem:[%s3076 + $0x1d8] sm:$0x3]
      %v5880 = vld [vmem:[%s3076 + $0x1e0] sm:$0xfc]
      %v5881 = vld [vmem:[%s3076 + $0x1e8] sm:$0xfc]
      %v5882 = vld [vmem:[%s3076 + $0x200] sm:$0x3]
      %v5883 = vld [vmem:[%s3076 + $0x208] sm:$0x3]
      %v5884 = vld [vmem:[%s3076 + $0x210] sm:$0xfc]
      %v5885 = vld [vmem:[%s3076 + $0x218] sm:$0xfc]
      %v5886 = vld [vmem:[%s3076 + $0x230] sm:$0x3]
      %v5887 = vld [vmem:[%s3076 + $0x238] sm:$0x3]
      %v5888 = vld [vmem:[%s3076 + $0x240] sm:$0xfc]
      %v5889 = vld [vmem:[%s3076 + $0x248] sm:$0xfc]
      %v5890 = vld [vmem:[%s3076 + $0x260] sm:$0x3]
      %v5891 = vld [vmem:[%s3076 + $0x268] sm:$0x3]
      %v5892 = vld [vmem:[%s3076 + $0x270] sm:$0xfc]
      %v5893 = vld [vmem:[%s3076 + $0x278] sm:$0xfc]
      %v5894 = vld [vmem:[%s3076 + $0x290] sm:$0x3]
      %v5895 = vld [vmem:[%s3076 + $0x298] sm:$0x3]
      %v5896 = vld [vmem:[%s3076 + $0x2a0] sm:$0xfc]
      %v5897 = vld [vmem:[%s3076 + $0x2a8] sm:$0xfc]
      %v5898 = vld [vmem:[%s3076 + $0x2c0] sm:$0x3]
      %v5899 = vld [vmem:[%s3076 + $0x2c8] sm:$0x3]
      %v5900 = vld [vmem:[%s3076 + $0x2d0] sm:$0xfc]
      %v5901 = vld [vmem:[%s3076 + $0x2d8] sm:$0xfc]
      %v5902 = vld [vmem:[%s3076 + $0x2f0] sm:$0x3]
      %v5903 = vld [vmem:[%s3076 + $0x2f8] sm:$0x3]
      %v5968 = vrot.slane %v5840, 2
      %v5969 = vrot.slane %v5136, 2
      %v5970 = vsel %vm4265, %v5968, %v5969
      %v5971 = vrot.slane %v5841, 2
      %v5972 = vrot.slane %v5137, 2
      %v5973 = vsel %vm4265, %v5971, %v5972
      %v5974 = vrot.slane %v5842, 2
      %v5975 = vsel %vm4265, %v5969, %v5974
      %v5976 = vrot.slane %v5843, 2
      %v5977 = vsel %vm4265, %v5972, %v5976
      %v5978 = vrot.slane %v5844, 2
      %v5979 = vrot.slane %v5142, 2
      %v5980 = vsel %vm4265, %v5978, %v5979
      %v5981 = vrot.slane %v5845, 2
      %v5982 = vrot.slane %v5143, 2
      %v5983 = vsel %vm4265, %v5981, %v5982
      %v5984 = vrot.slane %v5846, 2
      %v5985 = vsel %vm4265, %v5979, %v5984
      %v5986 = vrot.slane %v5847, 2
      %v5987 = vsel %vm4265, %v5982, %v5986
      %v5988 = vrot.slane %v5848, 2
      %v5989 = vrot.slane %v5148, 2
      %v5990 = vsel %vm4265, %v5988, %v5989
      %v5991 = vrot.slane %v5849, 2
      %v5992 = vrot.slane %v5149, 2
      %v5993 = vsel %vm4265, %v5991, %v5992
      %v5994 = vrot.slane %v5850, 2
      %v5995 = vsel %vm4265, %v5989, %v5994
      %v5996 = vrot.slane %v5851, 2
      %v5997 = vsel %vm4265, %v5992, %v5996
      %v5998 = vrot.slane %v5852, 2
      %v5999 = vrot.slane %v5154, 2
      %v6000 = vsel %vm4265, %v5998, %v5999
      %v6001 = vrot.slane %v5853, 2
      %v6002 = vrot.slane %v5155, 2
      %v6003 = vsel %vm4265, %v6001, %v6002
      %v6004 = vrot.slane %v5854, 2
      %v6005 = vsel %vm4265, %v5999, %v6004
      %v6006 = vrot.slane %v5855, 2
      %v6007 = vsel %vm4265, %v6002, %v6006
      %v6008 = vrot.slane %v5856, 2
      %v6009 = vrot.slane %v5160, 2
      %v6010 = vsel %vm4265, %v6008, %v6009
      %v6011 = vrot.slane %v5857, 2
      %v6012 = vrot.slane %v5161, 2
      %v6013 = vsel %vm4265, %v6011, %v6012
      %v6014 = vrot.slane %v5858, 2
      %v6015 = vsel %vm4265, %v6009, %v6014
      %v6016 = vrot.slane %v5859, 2
      %v6017 = vsel %vm4265, %v6012, %v6016
      %v6018 = vrot.slane %v5860, 2
      %v6019 = vrot.slane %v5166, 2
      %v6020 = vsel %vm4265, %v6018, %v6019
      %v6021 = vrot.slane %v5861, 2
      %v6022 = vrot.slane %v5167, 2
      %v6023 = vsel %vm4265, %v6021, %v6022
      %v6024 = vrot.slane %v5862, 2
      %v6025 = vsel %vm4265, %v6019, %v6024
      %v6026 = vrot.slane %v5863, 2
      %v6027 = vsel %vm4265, %v6022, %v6026
      %v6028 = vrot.slane %v5864, 2
      %v6029 = vrot.slane %v5172, 2
      %v6030 = vsel %vm4265, %v6028, %v6029
      %v6031 = vrot.slane %v5865, 2
      %v6032 = vrot.slane %v5173, 2
      %v6033 = vsel %vm4265, %v6031, %v6032
      %v6034 = vrot.slane %v5866, 2
      %v6035 = vsel %vm4265, %v6029, %v6034
      %v6036 = vrot.slane %v5867, 2
      %v6037 = vsel %vm4265, %v6032, %v6036
      %v6038 = vrot.slane %v5868, 2
      %v6039 = vrot.slane %v5178, 2
      %v6040 = vsel %vm4265, %v6038, %v6039
      %v6041 = vrot.slane %v5869, 2
      %v6042 = vrot.slane %v5179, 2
      %v6043 = vsel %vm4265, %v6041, %v6042
      %v6044 = vrot.slane %v5870, 2
      %v6045 = vsel %vm4265, %v6039, %v6044
      %v6046 = vrot.slane %v5871, 2
      %v6047 = vsel %vm4265, %v6042, %v6046
      %v6048 = vrot.slane %v5872, 2
      %v6049 = vrot.slane %v5184, 2
      %v6050 = vsel %vm4265, %v6048, %v6049
      %v6051 = vrot.slane %v5873, 2
      %v6052 = vrot.slane %v5185, 2
      %v6053 = vsel %vm4265, %v6051, %v6052
      %v6054 = vrot.slane %v5874, 2
      %v6055 = vsel %vm4265, %v6049, %v6054
      %v6056 = vrot.slane %v5875, 2
      %v6057 = vsel %vm4265, %v6052, %v6056
      %v6058 = vrot.slane %v5876, 2
      %v6059 = vrot.slane %v5190, 2
      %v6060 = vsel %vm4265, %v6058, %v6059
      %v6061 = vrot.slane %v5877, 2
      %v6062 = vrot.slane %v5191, 2
      %v6063 = vsel %vm4265, %v6061, %v6062
      %v6064 = vrot.slane %v5878, 2
      %v6065 = vsel %vm4265, %v6059, %v6064
      %v6066 = vrot.slane %v5879, 2
      %v6067 = vsel %vm4265, %v6062, %v6066
      %v6068 = vrot.slane %v5880, 2
      %v6069 = vrot.slane %v5196, 2
      %v6070 = vsel %vm4265, %v6068, %v6069
      %v6071 = vrot.slane %v5881, 2
      %v6072 = vrot.slane %v5197, 2
      %v6073 = vsel %vm4265, %v6071, %v6072
      %v6074 = vrot.slane %v5882, 2
      %v6075 = vsel %vm4265, %v6069, %v6074
      %v6076 = vrot.slane %v5883, 2
      %v6077 = vsel %vm4265, %v6072, %v6076
      %v6078 = vrot.slane %v5884, 2
      %v6079 = vrot.slane %v5202, 2
      %v6080 = vsel %vm4265, %v6078, %v6079
      %v6081 = vrot.slane %v5885, 2
      %v6082 = vrot.slane %v5203, 2
      %v6083 = vsel %vm4265, %v6081, %v6082
      %v6084 = vrot.slane %v5886, 2
      %v6085 = vsel %vm4265, %v6079, %v6084
      %v6086 = vrot.slane %v5887, 2
      %v6087 = vsel %vm4265, %v6082, %v6086
      %v6088 = vrot.slane %v5888, 2
      %v6089 = vrot.slane %v5208, 2
      %v6090 = vsel %vm4265, %v6088, %v6089
      %v6091 = vrot.slane %v5889, 2
      %v6092 = vrot.slane %v5209, 2
      %v6093 = vsel %vm4265, %v6091, %v6092
      %v6094 = vrot.slane %v5890, 2
      %v6095 = vsel %vm4265, %v6089, %v6094
      %v6096 = vrot.slane %v5891, 2
      %v6097 = vsel %vm4265, %v6092, %v6096
      %v6098 = vrot.slane %v5892, 2
      %v6099 = vrot.slane %v5214, 2
      %v6100 = vsel %vm4265, %v6098, %v6099
      %v6101 = vrot.slane %v5893, 2
      %v6102 = vrot.slane %v5215, 2
      %v6103 = vsel %vm4265, %v6101, %v6102
      %v6104 = vrot.slane %v5894, 2
      %v6105 = vsel %vm4265, %v6099, %v6104
      %v6106 = vrot.slane %v5895, 2
      %v6107 = vsel %vm4265, %v6102, %v6106
      %v6108 = vrot.slane %v5896, 2
      %v6109 = vrot.slane %v5220, 2
      %v6110 = vsel %vm4265, %v6108, %v6109
      %v6111 = vrot.slane %v5897, 2
      %v6112 = vrot.slane %v5221, 2
      %v6113 = vsel %vm4265, %v6111, %v6112
      %v6114 = vrot.slane %v5898, 2
      %v6115 = vsel %vm4265, %v6109, %v6114
      %v6116 = vrot.slane %v5899, 2
      %v6117 = vsel %vm4265, %v6112, %v6116
      %v6118 = vrot.slane %v5900, 2
      %v6119 = vrot.slane %v5226, 2
      %v6120 = vsel %vm4265, %v6118, %v6119
      %v6121 = vrot.slane %v5901, 2
      %v6122 = vrot.slane %v5227, 2
      %v6123 = vsel %vm4265, %v6121, %v6122
      %v6124 = vrot.slane %v5902, 2
      %v6125 = vsel %vm4265, %v6119, %v6124
      %v6126 = vrot.slane %v5903, 2
      %v6127 = vsel %vm4265, %v6122, %v6126
      %s6192 = scalar_lea.vmem %s5, 1280
      %v6193 = vld [vmem:[%s6192] sm:$0xff]
      %v6194 = vld [vmem:[%s6192 + $0x8] sm:$0xff]
      %v6195 = vld [vmem:[%s6192 + $0x10] sm:$0xff]
      %v6196 = vld [vmem:[%s6192 + $0x18] sm:$0xff]
      %v6197 = vld [vmem:[%s6192 + $0x20] sm:$0xff]
      %v6198 = vld [vmem:[%s6192 + $0x28] sm:$0xff]
      %v6199 = vld [vmem:[%s6192 + $0x30] sm:$0xff]
      %v6200 = vld [vmem:[%s6192 + $0x38] sm:$0xff]
      %v6201 = vld [vmem:[%s6192 + $0x40] sm:$0xff]
      %v6202 = vld [vmem:[%s6192 + $0x48] sm:$0xff]
      %v6203 = vld [vmem:[%s6192 + $0x50] sm:$0xff]
      %v6204 = vld [vmem:[%s6192 + $0x58] sm:$0xff]
      %v6205 = vld [vmem:[%s6192 + $0x60] sm:$0xff]
      %v6206 = vld [vmem:[%s6192 + $0x68] sm:$0xff]
      %v6207 = vld [vmem:[%s6192 + $0x70] sm:$0xff]
      %v6208 = vld [vmem:[%s6192 + $0x78] sm:$0xff]
      %v6209 = vld [vmem:[%s6192 + $0x80] sm:$0xff]
      %v6210 = vld [vmem:[%s6192 + $0x88] sm:$0xff]
      %v6211 = vld [vmem:[%s6192 + $0x90] sm:$0xff]
      %v6212 = vld [vmem:[%s6192 + $0x98] sm:$0xff]
      %v6213 = vld [vmem:[%s6192 + $0xa0] sm:$0xff]
      %v6214 = vld [vmem:[%s6192 + $0xa8] sm:$0xff]
      %v6215 = vld [vmem:[%s6192 + $0xb0] sm:$0xff]
      %v6216 = vld [vmem:[%s6192 + $0xb8] sm:$0xff]
      %v6217 = vld [vmem:[%s6192 + $0xc0] sm:$0xff]
      %v6218 = vld [vmem:[%s6192 + $0xc8] sm:$0xff]
      %v6219 = vld [vmem:[%s6192 + $0xd0] sm:$0xff]
      %v6220 = vld [vmem:[%s6192 + $0xd8] sm:$0xff]
      %v6221 = vld [vmem:[%s6192 + $0xe0] sm:$0xff]
      %v6222 = vld [vmem:[%s6192 + $0xe8] sm:$0xff]
      %v6223 = vld [vmem:[%s6192 + $0xf0] sm:$0xff]
      %v6224 = vld [vmem:[%s6192 + $0xf8] sm:$0xff]
      %6225 = vmatprep.subr.mxu0 0.0
      %6226 = vmatpush1.msra.mxu0 %v6208
      %6227 = vmatprep.subr.mxu0 0.0
      %6228 = vmatpush1.msra.mxu0 %v6207
      %6229 = vmatprep.subr.mxu0 0.0
      %6230 = vmatpush1.msra.mxu0 %v6206
      %6231 = vmatprep.subr.mxu0 0.0
      %6232 = vmatpush1.msra.mxu0 %v6205
      %6233 = vmatprep.subr.mxu0 0.0
      %6234 = vmatpush1.msra.mxu0 %v6204
      %6235 = vmatprep.subr.mxu0 0.0
      %6236 = vmatpush1.msra.mxu0 %v6203
      %6237 = vmatprep.subr.mxu0 0.0
      %6238 = vmatpush1.msra.mxu0 %v6202
      %6239 = vmatprep.subr.mxu0 0.0
      %6240 = vmatpush1.msra.mxu0 %v6201
      %6241 = vmatprep.subr.mxu0 0.0
      %6242 = vmatpush1.msra.mxu0 %v6200
      %6243 = vmatprep.subr.mxu0 0.0
      %6244 = vmatpush1.msra.mxu0 %v6199
      %6245 = vmatprep.subr.mxu0 0.0
      %6246 = vmatpush1.msra.mxu0 %v6198
      %6247 = vmatprep.subr.mxu0 0.0
      %6248 = vmatpush1.msra.mxu0 %v6197
      %6249 = vmatprep.subr.mxu0 0.0
      %6250 = vmatpush1.msra.mxu0 %v6196
      %6251 = vmatprep.subr.mxu0 0.0
      %6252 = vmatpush1.msra.mxu0 %v6195
      %6253 = vmatprep.subr.mxu0 0.0
      %6254 = vmatpush1.msra.mxu0 %v6194
      %6255 = vmatprep.subr.mxu0 0.0
      %6256 = vmatpush1.msra.mxu0 %v6193
      %6257 = vmatprep.subr.mxu0 0.0
      %6258 = vmatpush2.msra.mxu0 %v6224
      %6259 = vmatprep.subr.mxu0 0.0
      %6260 = vmatpush2.msra.mxu0 %v6223
      %6261 = vmatprep.subr.mxu0 0.0
      %6262 = vmatpush2.msra.mxu0 %v6222
      %6263 = vmatprep.subr.mxu0 0.0
      %6264 = vmatpush2.msra.mxu0 %v6221
      %6265 = vmatprep.subr.mxu0 0.0
      %6266 = vmatpush2.msra.mxu0 %v6220
      %6267 = vmatprep.subr.mxu0 0.0
      %6268 = vmatpush2.msra.mxu0 %v6219
      %6269 = vmatprep.subr.mxu0 0.0
      %6270 = vmatpush2.msra.mxu0 %v6218
      %6271 = vmatprep.subr.mxu0 0.0
      %6272 = vmatpush2.msra.mxu0 %v6217
      %6273 = vmatprep.subr.mxu0 0.0
      %6274 = vmatpush2.msra.mxu0 %v6216
      %6275 = vmatprep.subr.mxu0 0.0
      %6276 = vmatpush2.msra.mxu0 %v6215
      %6277 = vmatprep.subr.mxu0 0.0
      %6278 = vmatpush2.msra.mxu0 %v6214
      %6279 = vmatprep.subr.mxu0 0.0
      %6280 = vmatpush2.msra.mxu0 %v6213
      %6281 = vmatprep.subr.mxu0 0.0
      %6282 = vmatpush2.msra.mxu0 %v6212
      %6283 = vmatprep.subr.mxu0 0.0
      %6284 = vmatpush2.msra.mxu0 %v6211
      %6285 = vmatprep.subr.mxu0 0.0
      %6286 = vmatpush2.msra.mxu0 %v6210
      %6287 = vmatprep.subr.mxu0 0.0
      %6288 = vmatpush2.msra.mxu0 %v6209
      %6289 = vmatprep.mubr.f32.mxu0 %v5973
      %6290 = vmatmul.mubr.f32.gmra.mxu0 %v5970
      %v6291 = vpop.f32.mrf.mxu0
      %v6292 = vadd.f32 0.0, %v6291
      %v6293 = vpop.f32.mrf.mxu0
      %6294 = vmatprep.mubr.f32.mxu0 %v5977
      %6295 = vmatmul.mubr.f32.gmra.mxu0 %v5975
      %v6296 = vpop.f32.mrf.mxu0
      %v6297 = vadd.f32 0.0, %v6296
      %v6298 = vpop.f32.mrf.mxu0
      %6299 = vmatprep.mubr.f32.mxu0 %v5983
      %6300 = vmatmul.mubr.f32.gmra.mxu0 %v5980
      %v6301 = vpop.f32.mrf.mxu0
      %v6302 = vadd.f32 0.0, %v6301
      %v6303 = vpop.f32.mrf.mxu0
      %6304 = vmatprep.mubr.f32.mxu0 %v5987
      %6305 = vmatmul.mubr.f32.gmra.mxu0 %v5985
      %v6306 = vpop.f32.mrf.mxu0
      %v6307 = vadd.f32 0.0, %v6306
      %v6308 = vpop.f32.mrf.mxu0
      %6309 = vmatprep.mubr.f32.mxu0 %v5993
      %6310 = vmatmul.mubr.f32.gmra.mxu0 %v5990
      %v6311 = vpop.f32.mrf.mxu0
      %v6312 = vadd.f32 0.0, %v6311
      %v6313 = vpop.f32.mrf.mxu0
      %6314 = vmatprep.mubr.f32.mxu0 %v5997
      %6315 = vmatmul.mubr.f32.gmra.mxu0 %v5995
      %v6316 = vpop.f32.mrf.mxu0
      %v6317 = vadd.f32 0.0, %v6316
      %v6318 = vpop.f32.mrf.mxu0
      %6319 = vmatprep.mubr.f32.mxu0 %v6003
      %6320 = vmatmul.mubr.f32.gmra.mxu0 %v6000
      %v6321 = vpop.f32.mrf.mxu0
      %v6322 = vadd.f32 0.0, %v6321
      %v6323 = vpop.f32.mrf.mxu0
      %6324 = vmatprep.mubr.f32.mxu0 %v6007
      %6325 = vmatmul.mubr.f32.gmra.mxu0 %v6005
      %v6326 = vpop.f32.mrf.mxu0
      %v6327 = vadd.f32 0.0, %v6326
      %v6328 = vpop.f32.mrf.mxu0
      %6329 = vmatprep.mubr.f32.mxu0 %v6013
      %6330 = vmatmul.mubr.f32.gmra.mxu0 %v6010
      %v6331 = vpop.f32.mrf.mxu0
      %v6332 = vadd.f32 0.0, %v6331
      %v6333 = vpop.f32.mrf.mxu0
      %6334 = vmatprep.mubr.f32.mxu0 %v6017
      %6335 = vmatmul.mubr.f32.gmra.mxu0 %v6015
      %v6336 = vpop.f32.mrf.mxu0
      %v6337 = vadd.f32 0.0, %v6336
      %v6338 = vpop.f32.mrf.mxu0
      %6339 = vmatprep.mubr.f32.mxu0 %v6023
      %6340 = vmatmul.mubr.f32.gmra.mxu0 %v6020
      %v6341 = vpop.f32.mrf.mxu0
      %v6342 = vadd.f32 0.0, %v6341
      %v6343 = vpop.f32.mrf.mxu0
      %6344 = vmatprep.mubr.f32.mxu0 %v6027
      %6345 = vmatmul.mubr.f32.gmra.mxu0 %v6025
      %v6346 = vpop.f32.mrf.mxu0
      %v6347 = vadd.f32 0.0, %v6346
      %v6348 = vpop.f32.mrf.mxu0
      %6349 = vmatprep.mubr.f32.mxu0 %v6033
      %6350 = vmatmul.mubr.f32.gmra.mxu0 %v6030
      %v6351 = vpop.f32.mrf.mxu0
      %v6352 = vadd.f32 0.0, %v6351
      %v6353 = vpop.f32.mrf.mxu0
      %6354 = vmatprep.mubr.f32.mxu0 %v6037
      %6355 = vmatmul.mubr.f32.gmra.mxu0 %v6035
      %v6356 = vpop.f32.mrf.mxu0
      %v6357 = vadd.f32 0.0, %v6356
      %v6358 = vpop.f32.mrf.mxu0
      %6359 = vmatprep.mubr.f32.mxu0 %v6043
      %6360 = vmatmul.mubr.f32.gmra.mxu0 %v6040
      %v6361 = vpop.f32.mrf.mxu0
      %v6362 = vadd.f32 0.0, %v6361
      %v6363 = vpop.f32.mrf.mxu0
      %6364 = vmatprep.mubr.f32.mxu0 %v6047
      %6365 = vmatmul.mubr.f32.gmra.mxu0 %v6045
      %v6366 = vpop.f32.mrf.mxu0
      %v6367 = vadd.f32 0.0, %v6366
      %v6368 = vpop.f32.mrf.mxu0
      %6369 = vmatprep.mubr.f32.mxu0 %v6053
      %6370 = vmatmul.mubr.f32.gmra.mxu0 %v6050
      %v6371 = vpop.f32.mrf.mxu0
      %v6372 = vadd.f32 0.0, %v6371
      %v6373 = vpop.f32.mrf.mxu0
      %6374 = vmatprep.mubr.f32.mxu0 %v6057
      %6375 = vmatmul.mubr.f32.gmra.mxu0 %v6055
      %v6376 = vpop.f32.mrf.mxu0
      %v6377 = vadd.f32 0.0, %v6376
      %v6378 = vpop.f32.mrf.mxu0
      %6379 = vmatprep.mubr.f32.mxu0 %v6063
      %6380 = vmatmul.mubr.f32.gmra.mxu0 %v6060
      %v6381 = vpop.f32.mrf.mxu0
      %v6382 = vadd.f32 0.0, %v6381
      %v6383 = vpop.f32.mrf.mxu0
      %6384 = vmatprep.mubr.f32.mxu0 %v6067
      %6385 = vmatmul.mubr.f32.gmra.mxu0 %v6065
      %v6386 = vpop.f32.mrf.mxu0
      %v6387 = vadd.f32 0.0, %v6386
      %v6388 = vpop.f32.mrf.mxu0
      %6389 = vmatprep.mubr.f32.mxu0 %v6073
      %6390 = vmatmul.mubr.f32.gmra.mxu0 %v6070
      %v6391 = vpop.f32.mrf.mxu0
      %v6392 = vadd.f32 0.0, %v6391
      %v6393 = vpop.f32.mrf.mxu0
      %6394 = vmatprep.mubr.f32.mxu0 %v6077
      %6395 = vmatmul.mubr.f32.gmra.mxu0 %v6075
      %v6396 = vpop.f32.mrf.mxu0
      %v6397 = vadd.f32 0.0, %v6396
      %v6398 = vpop.f32.mrf.mxu0
      %6399 = vmatprep.mubr.f32.mxu0 %v6083
      %6400 = vmatmul.mubr.f32.gmra.mxu0 %v6080
      %v6401 = vpop.f32.mrf.mxu0
      %v6402 = vadd.f32 0.0, %v6401
      %v6403 = vpop.f32.mrf.mxu0
      %6404 = vmatprep.mubr.f32.mxu0 %v6087
      %6405 = vmatmul.mubr.f32.gmra.mxu0 %v6085
      %v6406 = vpop.f32.mrf.mxu0
      %v6407 = vadd.f32 0.0, %v6406
      %v6408 = vpop.f32.mrf.mxu0
      %6409 = vmatprep.mubr.f32.mxu0 %v6093
      %6410 = vmatmul.mubr.f32.gmra.mxu0 %v6090
      %v6411 = vpop.f32.mrf.mxu0
      %v6412 = vadd.f32 0.0, %v6411
      %v6413 = vpop.f32.mrf.mxu0
      %6414 = vmatprep.mubr.f32.mxu0 %v6097
      %6415 = vmatmul.mubr.f32.gmra.mxu0 %v6095
      %v6416 = vpop.f32.mrf.mxu0
      %v6417 = vadd.f32 0.0, %v6416
      %v6418 = vpop.f32.mrf.mxu0
      %6419 = vmatprep.mubr.f32.mxu0 %v6103
      %6420 = vmatmul.mubr.f32.gmra.mxu0 %v6100
      %v6421 = vpop.f32.mrf.mxu0
      %v6422 = vadd.f32 0.0, %v6421
      %v6423 = vpop.f32.mrf.mxu0
      %6424 = vmatprep.mubr.f32.mxu0 %v6107
      %6425 = vmatmul.mubr.f32.gmra.mxu0 %v6105
      %v6426 = vpop.f32.mrf.mxu0
      %v6427 = vadd.f32 0.0, %v6426
      %v6428 = vpop.f32.mrf.mxu0
      %6429 = vmatprep.mubr.f32.mxu0 %v6113
      %6430 = vmatmul.mubr.f32.gmra.mxu0 %v6110
      %v6431 = vpop.f32.mrf.mxu0
      %v6432 = vadd.f32 0.0, %v6431
      %v6433 = vpop.f32.mrf.mxu0
      %6434 = vmatprep.mubr.f32.mxu0 %v6117
      %6435 = vmatmul.mubr.f32.gmra.mxu0 %v6115
      %v6436 = vpop.f32.mrf.mxu0
      %v6437 = vadd.f32 0.0, %v6436
      %v6438 = vpop.f32.mrf.mxu0
      %6439 = vmatprep.mubr.f32.mxu0 %v6123
      %6440 = vmatmul.mubr.f32.gmra.mxu0 %v6120
      %v6441 = vpop.f32.mrf.mxu0
      %v6442 = vadd.f32 0.0, %v6441
      %v6443 = vpop.f32.mrf.mxu0
      %6444 = vmatprep.mubr.f32.mxu0 %v6127
      %6445 = vmatmul.mubr.f32.gmra.mxu0 %v6125
      %v6446 = vpop.f32.mrf.mxu0
      %v6447 = vadd.f32 0.0, %v6446
      %v6448 = vpop.f32.mrf.mxu0
      %6449 = vdwg.mxu0
      %v6450 = vadd.f32 %v5808, %v6292
      %v6451 = vadd.f32 %v5809, %v6297
      %v6452 = vadd.f32 %v5810, %v6302
      %v6453 = vadd.f32 %v5811, %v6307
      %v6454 = vadd.f32 %v5812, %v6312
      %v6455 = vadd.f32 %v5813, %v6317
      %v6456 = vadd.f32 %v5814, %v6322
      %v6457 = vadd.f32 %v5815, %v6327
      %v6458 = vadd.f32 %v5816, %v6332
      %v6459 = vadd.f32 %v5817, %v6337
      %v6460 = vadd.f32 %v5818, %v6342
      %v6461 = vadd.f32 %v5819, %v6347
      %v6462 = vadd.f32 %v5820, %v6352
      %v6463 = vadd.f32 %v5821, %v6357
      %v6464 = vadd.f32 %v5822, %v6362
      %v6465 = vadd.f32 %v5823, %v6367
      %v6466 = vadd.f32 %v5824, %v6372
      %v6467 = vadd.f32 %v5825, %v6377
      %v6468 = vadd.f32 %v5826, %v6382
      %v6469 = vadd.f32 %v5827, %v6387
      %v6470 = vadd.f32 %v5828, %v6392
      %v6471 = vadd.f32 %v5829, %v6397
      %v6472 = vadd.f32 %v5830, %v6402
      %v6473 = vadd.f32 %v5831, %v6407
      %v6474 = vadd.f32 %v5832, %v6412
      %v6475 = vadd.f32 %v5833, %v6417
      %v6476 = vadd.f32 %v5834, %v6422
      %v6477 = vadd.f32 %v5835, %v6427
      %v6478 = vadd.f32 %v5836, %v6432
      %v6479 = vadd.f32 %v5837, %v6437
      %v6480 = vadd.f32 %v5838, %v6442
      %v6481 = vadd.f32 %v5839, %v6447
      %s6482 = scalar_lea.vmem [#allocation3], 96
      %v6483 = vld [vmem:[%s6482] sm:$0xff]
      %v6484 = vld [vmem:[%s6482 + $0x8] sm:$0xff]
      %v6485 = vld [vmem:[%s6482 + $0x10] sm:$0xff]
      %v6486 = vld [vmem:[%s6482 + $0x18] sm:$0xff]
      %v6487 = vld [vmem:[%s6482 + $0x30] sm:$0xff]
      %v6488 = vld [vmem:[%s6482 + $0x38] sm:$0xff]
      %v6489 = vld [vmem:[%s6482 + $0x40] sm:$0xff]
      %v6490 = vld [vmem:[%s6482 + $0x48] sm:$0xff]
      %v6491 = vld [vmem:[%s6482 + $0x60] sm:$0xff]
      %v6492 = vld [vmem:[%s6482 + $0x68] sm:$0xff]
      %v6493 = vld [vmem:[%s6482 + $0x70] sm:$0xff]
      %v6494 = vld [vmem:[%s6482 + $0x78] sm:$0xff]
      %v6495 = vld [vmem:[%s6482 + $0x90] sm:$0xff]
      %v6496 = vld [vmem:[%s6482 + $0x98] sm:$0xff]
      %v6497 = vld [vmem:[%s6482 + $0xa0] sm:$0xff]
      %v6498 = vld [vmem:[%s6482 + $0xa8] sm:$0xff]
      %v6499 = vld [vmem:[%s6482 + $0xc0] sm:$0xff]
      %v6500 = vld [vmem:[%s6482 + $0xc8] sm:$0xff]
      %v6501 = vld [vmem:[%s6482 + $0xd0] sm:$0xff]
      %v6502 = vld [vmem:[%s6482 + $0xd8] sm:$0xff]
      %v6503 = vld [vmem:[%s6482 + $0xf0] sm:$0xff]
      %v6504 = vld [vmem:[%s6482 + $0xf8] sm:$0xff]
      %v6505 = vld [vmem:[%s6482 + $0x100] sm:$0xff]
      %v6506 = vld [vmem:[%s6482 + $0x108] sm:$0xff]
      %v6507 = vld [vmem:[%s6482 + $0x120] sm:$0xff]
      %v6508 = vld [vmem:[%s6482 + $0x128] sm:$0xff]
      %v6509 = vld [vmem:[%s6482 + $0x130] sm:$0xff]
      %v6510 = vld [vmem:[%s6482 + $0x138] sm:$0xff]
      %v6511 = vld [vmem:[%s6482 + $0x150] sm:$0xff]
      %v6512 = vld [vmem:[%s6482 + $0x158] sm:$0xff]
      %v6513 = vld [vmem:[%s6482 + $0x160] sm:$0xff]
      %v6514 = vld [vmem:[%s6482 + $0x168] sm:$0xff]
      %v6515 = vld [vmem:[%s6482 + $0x180] sm:$0xff]
      %v6516 = vld [vmem:[%s6482 + $0x188] sm:$0xff]
      %v6517 = vld [vmem:[%s6482 + $0x190] sm:$0xff]
      %v6518 = vld [vmem:[%s6482 + $0x198] sm:$0xff]
      %v6519 = vld [vmem:[%s6482 + $0x1b0] sm:$0xff]
      %v6520 = vld [vmem:[%s6482 + $0x1b8] sm:$0xff]
      %v6521 = vld [vmem:[%s6482 + $0x1c0] sm:$0xff]
      %v6522 = vld [vmem:[%s6482 + $0x1c8] sm:$0xff]
      %v6523 = vld [vmem:[%s6482 + $0x1e0] sm:$0xff]
      %v6524 = vld [vmem:[%s6482 + $0x1e8] sm:$0xff]
      %v6525 = vld [vmem:[%s6482 + $0x1f0] sm:$0xff]
      %v6526 = vld [vmem:[%s6482 + $0x1f8] sm:$0xff]
      %v6527 = vld [vmem:[%s6482 + $0x210] sm:$0xff]
      %v6528 = vld [vmem:[%s6482 + $0x218] sm:$0xff]
      %v6529 = vld [vmem:[%s6482 + $0x220] sm:$0xff]
      %v6530 = vld [vmem:[%s6482 + $0x228] sm:$0xff]
      %v6531 = vld [vmem:[%s6482 + $0x240] sm:$0xff]
      %v6532 = vld [vmem:[%s6482 + $0x248] sm:$0xff]
      %v6533 = vld [vmem:[%s6482 + $0x250] sm:$0xff]
      %v6534 = vld [vmem:[%s6482 + $0x258] sm:$0xff]
      %v6535 = vld [vmem:[%s6482 + $0x270] sm:$0xff]
      %v6536 = vld [vmem:[%s6482 + $0x278] sm:$0xff]
      %v6537 = vld [vmem:[%s6482 + $0x280] sm:$0xff]
      %v6538 = vld [vmem:[%s6482 + $0x288] sm:$0xff]
      %v6539 = vld [vmem:[%s6482 + $0x2a0] sm:$0xff]
      %v6540 = vld [vmem:[%s6482 + $0x2a8] sm:$0xff]
      %v6541 = vld [vmem:[%s6482 + $0x2b0] sm:$0xff]
      %v6542 = vld [vmem:[%s6482 + $0x2b8] sm:$0xff]
      %v6543 = vld [vmem:[%s6482 + $0x2d0] sm:$0xff]
      %v6544 = vld [vmem:[%s6482 + $0x2d8] sm:$0xff]
      %v6545 = vld [vmem:[%s6482 + $0x2e0] sm:$0xff]
      %v6546 = vld [vmem:[%s6482 + $0x2e8] sm:$0xff]
      %s6547 = scalar_lea.vmem %s5, 1536
      %v6548 = vld [vmem:[%s6547] sm:$0xff]
      %v6549 = vld [vmem:[%s6547 + $0x8] sm:$0xff]
      %v6550 = vld [vmem:[%s6547 + $0x10] sm:$0xff]
      %v6551 = vld [vmem:[%s6547 + $0x18] sm:$0xff]
      %v6552 = vld [vmem:[%s6547 + $0x20] sm:$0xff]
      %v6553 = vld [vmem:[%s6547 + $0x28] sm:$0xff]
      %v6554 = vld [vmem:[%s6547 + $0x30] sm:$0xff]
      %v6555 = vld [vmem:[%s6547 + $0x38] sm:$0xff]
      %v6556 = vld [vmem:[%s6547 + $0x40] sm:$0xff]
      %v6557 = vld [vmem:[%s6547 + $0x48] sm:$0xff]
      %v6558 = vld [vmem:[%s6547 + $0x50] sm:$0xff]
      %v6559 = vld [vmem:[%s6547 + $0x58] sm:$0xff]
      %v6560 = vld [vmem:[%s6547 + $0x60] sm:$0xff]
      %v6561 = vld [vmem:[%s6547 + $0x68] sm:$0xff]
      %v6562 = vld [vmem:[%s6547 + $0x70] sm:$0xff]
      %v6563 = vld [vmem:[%s6547 + $0x78] sm:$0xff]
      %v6564 = vld [vmem:[%s6547 + $0x80] sm:$0xff]
      %v6565 = vld [vmem:[%s6547 + $0x88] sm:$0xff]
      %v6566 = vld [vmem:[%s6547 + $0x90] sm:$0xff]
      %v6567 = vld [vmem:[%s6547 + $0x98] sm:$0xff]
      %v6568 = vld [vmem:[%s6547 + $0xa0] sm:$0xff]
      %v6569 = vld [vmem:[%s6547 + $0xa8] sm:$0xff]
      %v6570 = vld [vmem:[%s6547 + $0xb0] sm:$0xff]
      %v6571 = vld [vmem:[%s6547 + $0xb8] sm:$0xff]
      %v6572 = vld [vmem:[%s6547 + $0xc0] sm:$0xff]
      %v6573 = vld [vmem:[%s6547 + $0xc8] sm:$0xff]
      %v6574 = vld [vmem:[%s6547 + $0xd0] sm:$0xff]
      %v6575 = vld [vmem:[%s6547 + $0xd8] sm:$0xff]
      %v6576 = vld [vmem:[%s6547 + $0xe0] sm:$0xff]
      %v6577 = vld [vmem:[%s6547 + $0xe8] sm:$0xff]
      %v6578 = vld [vmem:[%s6547 + $0xf0] sm:$0xff]
      %v6579 = vld [vmem:[%s6547 + $0xf8] sm:$0xff]
      %6580 = vmatprep.subr.mxu0 0.0
      %6581 = vmatpush1.msra.mxu0 %v6563
      %6582 = vmatprep.subr.mxu0 0.0
      %6583 = vmatpush1.msra.mxu0 %v6562
      %6584 = vmatprep.subr.mxu0 0.0
      %6585 = vmatpush1.msra.mxu0 %v6561
      %6586 = vmatprep.subr.mxu0 0.0
      %6587 = vmatpush1.msra.mxu0 %v6560
      %6588 = vmatprep.subr.mxu0 0.0
      %6589 = vmatpush1.msra.mxu0 %v6559
      %6590 = vmatprep.subr.mxu0 0.0
      %6591 = vmatpush1.msra.mxu0 %v6558
      %6592 = vmatprep.subr.mxu0 0.0
      %6593 = vmatpush1.msra.mxu0 %v6557
      %6594 = vmatprep.subr.mxu0 0.0
      %6595 = vmatpush1.msra.mxu0 %v6556
      %6596 = vmatprep.subr.mxu0 0.0
      %6597 = vmatpush1.msra.mxu0 %v6555
      %6598 = vmatprep.subr.mxu0 0.0
      %6599 = vmatpush1.msra.mxu0 %v6554
      %6600 = vmatprep.subr.mxu0 0.0
      %6601 = vmatpush1.msra.mxu0 %v6553
      %6602 = vmatprep.subr.mxu0 0.0
      %6603 = vmatpush1.msra.mxu0 %v6552
      %6604 = vmatprep.subr.mxu0 0.0
      %6605 = vmatpush1.msra.mxu0 %v6551
      %6606 = vmatprep.subr.mxu0 0.0
      %6607 = vmatpush1.msra.mxu0 %v6550
      %6608 = vmatprep.subr.mxu0 0.0
      %6609 = vmatpush1.msra.mxu0 %v6549
      %6610 = vmatprep.subr.mxu0 0.0
      %6611 = vmatpush1.msra.mxu0 %v6548
      %6612 = vmatprep.subr.mxu0 0.0
      %6613 = vmatpush2.msra.mxu0 %v6579
      %6614 = vmatprep.subr.mxu0 0.0
      %6615 = vmatpush2.msra.mxu0 %v6578
      %6616 = vmatprep.subr.mxu0 0.0
      %6617 = vmatpush2.msra.mxu0 %v6577
      %6618 = vmatprep.subr.mxu0 0.0
      %6619 = vmatpush2.msra.mxu0 %v6576
      %6620 = vmatprep.subr.mxu0 0.0
      %6621 = vmatpush2.msra.mxu0 %v6575
      %6622 = vmatprep.subr.mxu0 0.0
      %6623 = vmatpush2.msra.mxu0 %v6574
      %6624 = vmatprep.subr.mxu0 0.0
      %6625 = vmatpush2.msra.mxu0 %v6573
      %6626 = vmatprep.subr.mxu0 0.0
      %6627 = vmatpush2.msra.mxu0 %v6572
      %6628 = vmatprep.subr.mxu0 0.0
      %6629 = vmatpush2.msra.mxu0 %v6571
      %6630 = vmatprep.subr.mxu0 0.0
      %6631 = vmatpush2.msra.mxu0 %v6570
      %6632 = vmatprep.subr.mxu0 0.0
      %6633 = vmatpush2.msra.mxu0 %v6569
      %6634 = vmatprep.subr.mxu0 0.0
      %6635 = vmatpush2.msra.mxu0 %v6568
      %6636 = vmatprep.subr.mxu0 0.0
      %6637 = vmatpush2.msra.mxu0 %v6567
      %6638 = vmatprep.subr.mxu0 0.0
      %6639 = vmatpush2.msra.mxu0 %v6566
      %6640 = vmatprep.subr.mxu0 0.0
      %6641 = vmatpush2.msra.mxu0 %v6565
      %6642 = vmatprep.subr.mxu0 0.0
      %6643 = vmatpush2.msra.mxu0 %v6564
      %6644 = vmatprep.mubr.f32.mxu0 %v6484
      %6645 = vmatmul.mubr.f32.gmra.mxu0 %v6483
      %v6646 = vpop.f32.mrf.mxu0
      %v6647 = vadd.f32 0.0, %v6646
      %v6648 = vpop.f32.mrf.mxu0
      %6649 = vmatprep.mubr.f32.mxu0 %v6486
      %6650 = vmatmul.mubr.f32.gmra.mxu0 %v6485
      %v6651 = vpop.f32.mrf.mxu0
      %v6652 = vadd.f32 0.0, %v6651
      %v6653 = vpop.f32.mrf.mxu0
      %6654 = vmatprep.mubr.f32.mxu0 %v6488
      %6655 = vmatmul.mubr.f32.gmra.mxu0 %v6487
      %v6656 = vpop.f32.mrf.mxu0
      %v6657 = vadd.f32 0.0, %v6656
      %v6658 = vpop.f32.mrf.mxu0
      %6659 = vmatprep.mubr.f32.mxu0 %v6490
      %6660 = vmatmul.mubr.f32.gmra.mxu0 %v6489
      %v6661 = vpop.f32.mrf.mxu0
      %v6662 = vadd.f32 0.0, %v6661
      %v6663 = vpop.f32.mrf.mxu0
      %6664 = vmatprep.mubr.f32.mxu0 %v6492
      %6665 = vmatmul.mubr.f32.gmra.mxu0 %v6491
      %v6666 = vpop.f32.mrf.mxu0
      %v6667 = vadd.f32 0.0, %v6666
      %v6668 = vpop.f32.mrf.mxu0
      %6669 = vmatprep.mubr.f32.mxu0 %v6494
      %6670 = vmatmul.mubr.f32.gmra.mxu0 %v6493
      %v6671 = vpop.f32.mrf.mxu0
      %v6672 = vadd.f32 0.0, %v6671
      %v6673 = vpop.f32.mrf.mxu0
      %6674 = vmatprep.mubr.f32.mxu0 %v6496
      %6675 = vmatmul.mubr.f32.gmra.mxu0 %v6495
      %v6676 = vpop.f32.mrf.mxu0
      %v6677 = vadd.f32 0.0, %v6676
      %v6678 = vpop.f32.mrf.mxu0
      %6679 = vmatprep.mubr.f32.mxu0 %v6498
      %6680 = vmatmul.mubr.f32.gmra.mxu0 %v6497
      %v6681 = vpop.f32.mrf.mxu0
      %v6682 = vadd.f32 0.0, %v6681
      %v6683 = vpop.f32.mrf.mxu0
      %6684 = vmatprep.mubr.f32.mxu0 %v6500
      %6685 = vmatmul.mubr.f32.gmra.mxu0 %v6499
      %v6686 = vpop.f32.mrf.mxu0
      %v6687 = vadd.f32 0.0, %v6686
      %v6688 = vpop.f32.mrf.mxu0
      %6689 = vmatprep.mubr.f32.mxu0 %v6502
      %6690 = vmatmul.mubr.f32.gmra.mxu0 %v6501
      %v6691 = vpop.f32.mrf.mxu0
      %v6692 = vadd.f32 0.0, %v6691
      %v6693 = vpop.f32.mrf.mxu0
      %6694 = vmatprep.mubr.f32.mxu0 %v6504
      %6695 = vmatmul.mubr.f32.gmra.mxu0 %v6503
      %v6696 = vpop.f32.mrf.mxu0
      %v6697 = vadd.f32 0.0, %v6696
      %v6698 = vpop.f32.mrf.mxu0
      %6699 = vmatprep.mubr.f32.mxu0 %v6506
      %6700 = vmatmul.mubr.f32.gmra.mxu0 %v6505
      %v6701 = vpop.f32.mrf.mxu0
      %v6702 = vadd.f32 0.0, %v6701
      %v6703 = vpop.f32.mrf.mxu0
      %6704 = vmatprep.mubr.f32.mxu0 %v6508
      %6705 = vmatmul.mubr.f32.gmra.mxu0 %v6507
      %v6706 = vpop.f32.mrf.mxu0
      %v6707 = vadd.f32 0.0, %v6706
      %v6708 = vpop.f32.mrf.mxu0
      %6709 = vmatprep.mubr.f32.mxu0 %v6510
      %6710 = vmatmul.mubr.f32.gmra.mxu0 %v6509
      %v6711 = vpop.f32.mrf.mxu0
      %v6712 = vadd.f32 0.0, %v6711
      %v6713 = vpop.f32.mrf.mxu0
      %6714 = vmatprep.mubr.f32.mxu0 %v6512
      %6715 = vmatmul.mubr.f32.gmra.mxu0 %v6511
      %v6716 = vpop.f32.mrf.mxu0
      %v6717 = vadd.f32 0.0, %v6716
      %v6718 = vpop.f32.mrf.mxu0
      %6719 = vmatprep.mubr.f32.mxu0 %v6514
      %6720 = vmatmul.mubr.f32.gmra.mxu0 %v6513
      %v6721 = vpop.f32.mrf.mxu0
      %v6722 = vadd.f32 0.0, %v6721
      %v6723 = vpop.f32.mrf.mxu0
      %6724 = vmatprep.mubr.f32.mxu0 %v6516
      %6725 = vmatmul.mubr.f32.gmra.mxu0 %v6515
      %v6726 = vpop.f32.mrf.mxu0
      %v6727 = vadd.f32 0.0, %v6726
      %v6728 = vpop.f32.mrf.mxu0
      %6729 = vmatprep.mubr.f32.mxu0 %v6518
      %6730 = vmatmul.mubr.f32.gmra.mxu0 %v6517
      %v6731 = vpop.f32.mrf.mxu0
      %v6732 = vadd.f32 0.0, %v6731
      %v6733 = vpop.f32.mrf.mxu0
      %6734 = vmatprep.mubr.f32.mxu0 %v6520
      %6735 = vmatmul.mubr.f32.gmra.mxu0 %v6519
      %v6736 = vpop.f32.mrf.mxu0
      %v6737 = vadd.f32 0.0, %v6736
      %v6738 = vpop.f32.mrf.mxu0
      %6739 = vmatprep.mubr.f32.mxu0 %v6522
      %6740 = vmatmul.mubr.f32.gmra.mxu0 %v6521
      %v6741 = vpop.f32.mrf.mxu0
      %v6742 = vadd.f32 0.0, %v6741
      %v6743 = vpop.f32.mrf.mxu0
      %6744 = vmatprep.mubr.f32.mxu0 %v6524
      %6745 = vmatmul.mubr.f32.gmra.mxu0 %v6523
      %v6746 = vpop.f32.mrf.mxu0
      %v6747 = vadd.f32 0.0, %v6746
      %v6748 = vpop.f32.mrf.mxu0
      %6749 = vmatprep.mubr.f32.mxu0 %v6526
      %6750 = vmatmul.mubr.f32.gmra.mxu0 %v6525
      %v6751 = vpop.f32.mrf.mxu0
      %v6752 = vadd.f32 0.0, %v6751
      %v6753 = vpop.f32.mrf.mxu0
      %6754 = vmatprep.mubr.f32.mxu0 %v6528
      %6755 = vmatmul.mubr.f32.gmra.mxu0 %v6527
      %v6756 = vpop.f32.mrf.mxu0
      %v6757 = vadd.f32 0.0, %v6756
      %v6758 = vpop.f32.mrf.mxu0
      %6759 = vmatprep.mubr.f32.mxu0 %v6530
      %6760 = vmatmul.mubr.f32.gmra.mxu0 %v6529
      %v6761 = vpop.f32.mrf.mxu0
      %v6762 = vadd.f32 0.0, %v6761
      %v6763 = vpop.f32.mrf.mxu0
      %6764 = vmatprep.mubr.f32.mxu0 %v6532
      %6765 = vmatmul.mubr.f32.gmra.mxu0 %v6531
      %v6766 = vpop.f32.mrf.mxu0
      %v6767 = vadd.f32 0.0, %v6766
      %v6768 = vpop.f32.mrf.mxu0
      %6769 = vmatprep.mubr.f32.mxu0 %v6534
      %6770 = vmatmul.mubr.f32.gmra.mxu0 %v6533
      %v6771 = vpop.f32.mrf.mxu0
      %v6772 = vadd.f32 0.0, %v6771
      %v6773 = vpop.f32.mrf.mxu0
      %6774 = vmatprep.mubr.f32.mxu0 %v6536
      %6775 = vmatmul.mubr.f32.gmra.mxu0 %v6535
      %v6776 = vpop.f32.mrf.mxu0
      %v6777 = vadd.f32 0.0, %v6776
      %v6778 = vpop.f32.mrf.mxu0
      %6779 = vmatprep.mubr.f32.mxu0 %v6538
      %6780 = vmatmul.mubr.f32.gmra.mxu0 %v6537
      %v6781 = vpop.f32.mrf.mxu0
      %v6782 = vadd.f32 0.0, %v6781
      %v6783 = vpop.f32.mrf.mxu0
      %6784 = vmatprep.mubr.f32.mxu0 %v6540
      %6785 = vmatmul.mubr.f32.gmra.mxu0 %v6539
      %v6786 = vpop.f32.mrf.mxu0
      %v6787 = vadd.f32 0.0, %v6786
      %v6788 = vpop.f32.mrf.mxu0
      %6789 = vmatprep.mubr.f32.mxu0 %v6542
      %6790 = vmatmul.mubr.f32.gmra.mxu0 %v6541
      %v6791 = vpop.f32.mrf.mxu0
      %v6792 = vadd.f32 0.0, %v6791
      %v6793 = vpop.f32.mrf.mxu0
      %6794 = vmatprep.mubr.f32.mxu0 %v6544
      %6795 = vmatmul.mubr.f32.gmra.mxu0 %v6543
      %v6796 = vpop.f32.mrf.mxu0
      %v6797 = vadd.f32 0.0, %v6796
      %v6798 = vpop.f32.mrf.mxu0
      %6799 = vmatprep.mubr.f32.mxu0 %v6546
      %6800 = vmatmul.mubr.f32.gmra.mxu0 %v6545
      %v6801 = vpop.f32.mrf.mxu0
      %v6802 = vadd.f32 0.0, %v6801
      %v6803 = vpop.f32.mrf.mxu0
      %6804 = vdwg.mxu0
      %v6805 = vadd.f32 %v6450, %v6647
      %v6806 = vadd.f32 %v6451, %v6652
      %v6807 = vadd.f32 %v6452, %v6657
      %v6808 = vadd.f32 %v6453, %v6662
      %v6809 = vadd.f32 %v6454, %v6667
      %v6810 = vadd.f32 %v6455, %v6672
      %v6811 = vadd.f32 %v6456, %v6677
      %v6812 = vadd.f32 %v6457, %v6682
      %v6813 = vadd.f32 %v6458, %v6687
      %v6814 = vadd.f32 %v6459, %v6692
      %v6815 = vadd.f32 %v6460, %v6697
      %v6816 = vadd.f32 %v6461, %v6702
      %v6817 = vadd.f32 %v6462, %v6707
      %v6818 = vadd.f32 %v6463, %v6712
      %v6819 = vadd.f32 %v6464, %v6717
      %v6820 = vadd.f32 %v6465, %v6722
      %v6821 = vadd.f32 %v6466, %v6727
      %v6822 = vadd.f32 %v6467, %v6732
      %v6823 = vadd.f32 %v6468, %v6737
      %v6824 = vadd.f32 %v6469, %v6742
      %v6825 = vadd.f32 %v6470, %v6747
      %v6826 = vadd.f32 %v6471, %v6752
      %v6827 = vadd.f32 %v6472, %v6757
      %v6828 = vadd.f32 %v6473, %v6762
      %v6829 = vadd.f32 %v6474, %v6767
      %v6830 = vadd.f32 %v6475, %v6772
      %v6831 = vadd.f32 %v6476, %v6777
      %v6832 = vadd.f32 %v6477, %v6782
      %v6833 = vadd.f32 %v6478, %v6787
      %v6834 = vadd.f32 %v6479, %v6792
      %v6835 = vadd.f32 %v6480, %v6797
      %v6836 = vadd.f32 %v6481, %v6802
      %v6837 = vld [vmem:[%s6482] sm:$0xfe]
      %v6838 = vld [vmem:[%s6482 + $0x8] sm:$0xfe]
      %v6839 = vld [vmem:[%s6482 + $0x10] sm:$0xff]
      %v6840 = vld [vmem:[%s6482 + $0x18] sm:$0xff]
      %v6841 = vld [vmem:[%s6482 + $0x20] sm:$0x1]
      %v6842 = vld [vmem:[%s6482 + $0x28] sm:$0x1]
      %v6843 = vld [vmem:[%s6482 + $0x30] sm:$0xfe]
      %v6844 = vld [vmem:[%s6482 + $0x38] sm:$0xfe]
      %v6845 = vld [vmem:[%s6482 + $0x40] sm:$0xff]
      %v6846 = vld [vmem:[%s6482 + $0x48] sm:$0xff]
      %v6847 = vld [vmem:[%s6482 + $0x50] sm:$0x1]
      %v6848 = vld [vmem:[%s6482 + $0x58] sm:$0x1]
      %v6849 = vld [vmem:[%s6482 + $0x60] sm:$0xfe]
      %v6850 = vld [vmem:[%s6482 + $0x68] sm:$0xfe]
      %v6851 = vld [vmem:[%s6482 + $0x70] sm:$0xff]
      %v6852 = vld [vmem:[%s6482 + $0x78] sm:$0xff]
      %v6853 = vld [vmem:[%s6482 + $0x80] sm:$0x1]
      %v6854 = vld [vmem:[%s6482 + $0x88] sm:$0x1]
      %v6855 = vld [vmem:[%s6482 + $0x90] sm:$0xfe]
      %v6856 = vld [vmem:[%s6482 + $0x98] sm:$0xfe]
      %v6857 = vld [vmem:[%s6482 + $0xa0] sm:$0xff]
      %v6858 = vld [vmem:[%s6482 + $0xa8] sm:$0xff]
      %v6859 = vld [vmem:[%s6482 + $0xb0] sm:$0x1]
      %v6860 = vld [vmem:[%s6482 + $0xb8] sm:$0x1]
      %v6861 = vld [vmem:[%s6482 + $0xc0] sm:$0xfe]
      %v6862 = vld [vmem:[%s6482 + $0xc8] sm:$0xfe]
      %v6863 = vld [vmem:[%s6482 + $0xd0] sm:$0xff]
      %v6864 = vld [vmem:[%s6482 + $0xd8] sm:$0xff]
      %v6865 = vld [vmem:[%s6482 + $0xe0] sm:$0x1]
      %v6866 = vld [vmem:[%s6482 + $0xe8] sm:$0x1]
      %v6867 = vld [vmem:[%s6482 + $0xf0] sm:$0xfe]
      %v6868 = vld [vmem:[%s6482 + $0xf8] sm:$0xfe]
      %v6869 = vld [vmem:[%s6482 + $0x100] sm:$0xff]
      %v6870 = vld [vmem:[%s6482 + $0x108] sm:$0xff]
      %v6871 = vld [vmem:[%s6482 + $0x110] sm:$0x1]
      %v6872 = vld [vmem:[%s6482 + $0x118] sm:$0x1]
      %v6873 = vld [vmem:[%s6482 + $0x120] sm:$0xfe]
      %v6874 = vld [vmem:[%s6482 + $0x128] sm:$0xfe]
      %v6875 = vld [vmem:[%s6482 + $0x130] sm:$0xff]
      %v6876 = vld [vmem:[%s6482 + $0x138] sm:$0xff]
      %v6877 = vld [vmem:[%s6482 + $0x140] sm:$0x1]
      %v6878 = vld [vmem:[%s6482 + $0x148] sm:$0x1]
      %v6879 = vld [vmem:[%s6482 + $0x150] sm:$0xfe]
      %v6880 = vld [vmem:[%s6482 + $0x158] sm:$0xfe]
      %v6881 = vld [vmem:[%s6482 + $0x160] sm:$0xff]
      %v6882 = vld [vmem:[%s6482 + $0x168] sm:$0xff]
      %v6883 = vld [vmem:[%s6482 + $0x170] sm:$0x1]
      %v6884 = vld [vmem:[%s6482 + $0x178] sm:$0x1]
      %v6885 = vld [vmem:[%s6482 + $0x180] sm:$0xfe]
      %v6886 = vld [vmem:[%s6482 + $0x188] sm:$0xfe]
      %v6887 = vld [vmem:[%s6482 + $0x190] sm:$0xff]
      %v6888 = vld [vmem:[%s6482 + $0x198] sm:$0xff]
      %v6889 = vld [vmem:[%s6482 + $0x1a0] sm:$0x1]
      %v6890 = vld [vmem:[%s6482 + $0x1a8] sm:$0x1]
      %v6891 = vld [vmem:[%s6482 + $0x1b0] sm:$0xfe]
      %v6892 = vld [vmem:[%s6482 + $0x1b8] sm:$0xfe]
      %v6893 = vld [vmem:[%s6482 + $0x1c0] sm:$0xff]
      %v6894 = vld [vmem:[%s6482 + $0x1c8] sm:$0xff]
      %v6895 = vld [vmem:[%s6482 + $0x1d0] sm:$0x1]
      %v6896 = vld [vmem:[%s6482 + $0x1d8] sm:$0x1]
      %v6897 = vld [vmem:[%s6482 + $0x1e0] sm:$0xfe]
      %v6898 = vld [vmem:[%s6482 + $0x1e8] sm:$0xfe]
      %v6899 = vld [vmem:[%s6482 + $0x1f0] sm:$0xff]
      %v6900 = vld [vmem:[%s6482 + $0x1f8] sm:$0xff]
      %v6901 = vld [vmem:[%s6482 + $0x200] sm:$0x1]
      %v6902 = vld [vmem:[%s6482 + $0x208] sm:$0x1]
      %v6903 = vld [vmem:[%s6482 + $0x210] sm:$0xfe]
      %v6904 = vld [vmem:[%s6482 + $0x218] sm:$0xfe]
      %v6905 = vld [vmem:[%s6482 + $0x220] sm:$0xff]
      %v6906 = vld [vmem:[%s6482 + $0x228] sm:$0xff]
      %v6907 = vld [vmem:[%s6482 + $0x230] sm:$0x1]
      %v6908 = vld [vmem:[%s6482 + $0x238] sm:$0x1]
      %v6909 = vld [vmem:[%s6482 + $0x240] sm:$0xfe]
      %v6910 = vld [vmem:[%s6482 + $0x248] sm:$0xfe]
      %v6911 = vld [vmem:[%s6482 + $0x250] sm:$0xff]
      %v6912 = vld [vmem:[%s6482 + $0x258] sm:$0xff]
      %v6913 = vld [vmem:[%s6482 + $0x260] sm:$0x1]
      %v6914 = vld [vmem:[%s6482 + $0x268] sm:$0x1]
      %v6915 = vld [vmem:[%s6482 + $0x270] sm:$0xfe]
      %v6916 = vld [vmem:[%s6482 + $0x278] sm:$0xfe]
      %v6917 = vld [vmem:[%s6482 + $0x280] sm:$0xff]
      %v6918 = vld [vmem:[%s6482 + $0x288] sm:$0xff]
      %v6919 = vld [vmem:[%s6482 + $0x290] sm:$0x1]
      %v6920 = vld [vmem:[%s6482 + $0x298] sm:$0x1]
      %v6921 = vld [vmem:[%s6482 + $0x2a0] sm:$0xfe]
      %v6922 = vld [vmem:[%s6482 + $0x2a8] sm:$0xfe]
      %v6923 = vld [vmem:[%s6482 + $0x2b0] sm:$0xff]
      %v6924 = vld [vmem:[%s6482 + $0x2b8] sm:$0xff]
      %v6925 = vld [vmem:[%s6482 + $0x2c0] sm:$0x1]
      %v6926 = vld [vmem:[%s6482 + $0x2c8] sm:$0x1]
      %v6927 = vld [vmem:[%s6482 + $0x2d0] sm:$0xfe]
      %v6928 = vld [vmem:[%s6482 + $0x2d8] sm:$0xfe]
      %v6929 = vld [vmem:[%s6482 + $0x2e0] sm:$0xff]
      %v6930 = vld [vmem:[%s6482 + $0x2e8] sm:$0xff]
      %v6931 = vld [vmem:[%s6482 + $0x2f0] sm:$0x1]
      %v6932 = vld [vmem:[%s6482 + $0x2f8] sm:$0x1]
      %v7029 = vrot.slane %v6837, 1
      %v7030 = vrot.slane %v6839, 1
      %v7031 = vsel %vm3429, %v7029, %v7030
      %v7032 = vrot.slane %v6838, 1
      %v7033 = vrot.slane %v6840, 1
      %v7034 = vsel %vm3429, %v7032, %v7033
      %v7035 = vrot.slane %v6841, 1
      %v7036 = vsel %vm3429, %v7030, %v7035
      %v7037 = vrot.slane %v6842, 1
      %v7038 = vsel %vm3429, %v7033, %v7037
      %v7039 = vrot.slane %v6843, 1
      %v7040 = vrot.slane %v6845, 1
      %v7041 = vsel %vm3429, %v7039, %v7040
      %v7042 = vrot.slane %v6844, 1
      %v7043 = vrot.slane %v6846, 1
      %v7044 = vsel %vm3429, %v7042, %v7043
      %v7045 = vrot.slane %v6847, 1
      %v7046 = vsel %vm3429, %v7040, %v7045
      %v7047 = vrot.slane %v6848, 1
      %v7048 = vsel %vm3429, %v7043, %v7047
      %v7049 = vrot.slane %v6849, 1
      %v7050 = vrot.slane %v6851, 1
      %v7051 = vsel %vm3429, %v7049, %v7050
      %v7052 = vrot.slane %v6850, 1
      %v7053 = vrot.slane %v6852, 1
      %v7054 = vsel %vm3429, %v7052, %v7053
      %v7055 = vrot.slane %v6853, 1
      %v7056 = vsel %vm3429, %v7050, %v7055
      %v7057 = vrot.slane %v6854, 1
      %v7058 = vsel %vm3429, %v7053, %v7057
      %v7059 = vrot.slane %v6855, 1
      %v7060 = vrot.slane %v6857, 1
      %v7061 = vsel %vm3429, %v7059, %v7060
      %v7062 = vrot.slane %v6856, 1
      %v7063 = vrot.slane %v6858, 1
      %v7064 = vsel %vm3429, %v7062, %v7063
      %v7065 = vrot.slane %v6859, 1
      %v7066 = vsel %vm3429, %v7060, %v7065
      %v7067 = vrot.slane %v6860, 1
      %v7068 = vsel %vm3429, %v7063, %v7067
      %v7069 = vrot.slane %v6861, 1
      %v7070 = vrot.slane %v6863, 1
      %v7071 = vsel %vm3429, %v7069, %v7070
      %v7072 = vrot.slane %v6862, 1
      %v7073 = vrot.slane %v6864, 1
      %v7074 = vsel %vm3429, %v7072, %v7073
      %v7075 = vrot.slane %v6865, 1
      %v7076 = vsel %vm3429, %v7070, %v7075
      %v7077 = vrot.slane %v6866, 1
      %v7078 = vsel %vm3429, %v7073, %v7077
      %v7079 = vrot.slane %v6867, 1
      %v7080 = vrot.slane %v6869, 1
      %v7081 = vsel %vm3429, %v7079, %v7080
      %v7082 = vrot.slane %v6868, 1
      %v7083 = vrot.slane %v6870, 1
      %v7084 = vsel %vm3429, %v7082, %v7083
      %v7085 = vrot.slane %v6871, 1
      %v7086 = vsel %vm3429, %v7080, %v7085
      %v7087 = vrot.slane %v6872, 1
      %v7088 = vsel %vm3429, %v7083, %v7087
      %v7089 = vrot.slane %v6873, 1
      %v7090 = vrot.slane %v6875, 1
      %v7091 = vsel %vm3429, %v7089, %v7090
      %v7092 = vrot.slane %v6874, 1
      %v7093 = vrot.slane %v6876, 1
      %v7094 = vsel %vm3429, %v7092, %v7093
      %v7095 = vrot.slane %v6877, 1
      %v7096 = vsel %vm3429, %v7090, %v7095
      %v7097 = vrot.slane %v6878, 1
      %v7098 = vsel %vm3429, %v7093, %v7097
      %v7099 = vrot.slane %v6879, 1
      %v7100 = vrot.slane %v6881, 1
      %v7101 = vsel %vm3429, %v7099, %v7100
      %v7102 = vrot.slane %v6880, 1
      %v7103 = vrot.slane %v6882, 1
      %v7104 = vsel %vm3429, %v7102, %v7103
      %v7105 = vrot.slane %v6883, 1
      %v7106 = vsel %vm3429, %v7100, %v7105
      %v7107 = vrot.slane %v6884, 1
      %v7108 = vsel %vm3429, %v7103, %v7107
      %v7109 = vrot.slane %v6885, 1
      %v7110 = vrot.slane %v6887, 1
      %v7111 = vsel %vm3429, %v7109, %v7110
      %v7112 = vrot.slane %v6886, 1
      %v7113 = vrot.slane %v6888, 1
      %v7114 = vsel %vm3429, %v7112, %v7113
      %v7115 = vrot.slane %v6889, 1
      %v7116 = vsel %vm3429, %v7110, %v7115
      %v7117 = vrot.slane %v6890, 1
      %v7118 = vsel %vm3429, %v7113, %v7117
      %v7119 = vrot.slane %v6891, 1
      %v7120 = vrot.slane %v6893, 1
      %v7121 = vsel %vm3429, %v7119, %v7120
      %v7122 = vrot.slane %v6892, 1
      %v7123 = vrot.slane %v6894, 1
      %v7124 = vsel %vm3429, %v7122, %v7123
      %v7125 = vrot.slane %v6895, 1
      %v7126 = vsel %vm3429, %v7120, %v7125
      %v7127 = vrot.slane %v6896, 1
      %v7128 = vsel %vm3429, %v7123, %v7127
      %v7129 = vrot.slane %v6897, 1
      %v7130 = vrot.slane %v6899, 1
      %v7131 = vsel %vm3429, %v7129, %v7130
      %v7132 = vrot.slane %v6898, 1
      %v7133 = vrot.slane %v6900, 1
      %v7134 = vsel %vm3429, %v7132, %v7133
      %v7135 = vrot.slane %v6901, 1
      %v7136 = vsel %vm3429, %v7130, %v7135
      %v7137 = vrot.slane %v6902, 1
      %v7138 = vsel %vm3429, %v7133, %v7137
      %v7139 = vrot.slane %v6903, 1
      %v7140 = vrot.slane %v6905, 1
      %v7141 = vsel %vm3429, %v7139, %v7140
      %v7142 = vrot.slane %v6904, 1
      %v7143 = vrot.slane %v6906, 1
      %v7144 = vsel %vm3429, %v7142, %v7143
      %v7145 = vrot.slane %v6907, 1
      %v7146 = vsel %vm3429, %v7140, %v7145
      %v7147 = vrot.slane %v6908, 1
      %v7148 = vsel %vm3429, %v7143, %v7147
      %v7149 = vrot.slane %v6909, 1
      %v7150 = vrot.slane %v6911, 1
      %v7151 = vsel %vm3429, %v7149, %v7150
      %v7152 = vrot.slane %v6910, 1
      %v7153 = vrot.slane %v6912, 1
      %v7154 = vsel %vm3429, %v7152, %v7153
      %v7155 = vrot.slane %v6913, 1
      %v7156 = vsel %vm3429, %v7150, %v7155
      %v7157 = vrot.slane %v6914, 1
      %v7158 = vsel %vm3429, %v7153, %v7157
      %v7159 = vrot.slane %v6915, 1
      %v7160 = vrot.slane %v6917, 1
      %v7161 = vsel %vm3429, %v7159, %v7160
      %v7162 = vrot.slane %v6916, 1
      %v7163 = vrot.slane %v6918, 1
      %v7164 = vsel %vm3429, %v7162, %v7163
      %v7165 = vrot.slane %v6919, 1
      %v7166 = vsel %vm3429, %v7160, %v7165
      %v7167 = vrot.slane %v6920, 1
      %v7168 = vsel %vm3429, %v7163, %v7167
      %v7169 = vrot.slane %v6921, 1
      %v7170 = vrot.slane %v6923, 1
      %v7171 = vsel %vm3429, %v7169, %v7170
      %v7172 = vrot.slane %v6922, 1
      %v7173 = vrot.slane %v6924, 1
      %v7174 = vsel %vm3429, %v7172, %v7173
      %v7175 = vrot.slane %v6925, 1
      %v7176 = vsel %vm3429, %v7170, %v7175
      %v7177 = vrot.slane %v6926, 1
      %v7178 = vsel %vm3429, %v7173, %v7177
      %v7179 = vrot.slane %v6927, 1
      %v7180 = vrot.slane %v6929, 1
      %v7181 = vsel %vm3429, %v7179, %v7180
      %v7182 = vrot.slane %v6928, 1
      %v7183 = vrot.slane %v6930, 1
      %v7184 = vsel %vm3429, %v7182, %v7183
      %v7185 = vrot.slane %v6931, 1
      %v7186 = vsel %vm3429, %v7180, %v7185
      %v7187 = vrot.slane %v6932, 1
      %v7188 = vsel %vm3429, %v7183, %v7187
      %s7253 = scalar_lea.vmem %s5, 1792
      %v7254 = vld [vmem:[%s7253] sm:$0xff]
      %v7255 = vld [vmem:[%s7253 + $0x8] sm:$0xff]
      %v7256 = vld [vmem:[%s7253 + $0x10] sm:$0xff]
      %v7257 = vld [vmem:[%s7253 + $0x18] sm:$0xff]
      %v7258 = vld [vmem:[%s7253 + $0x20] sm:$0xff]
      %v7259 = vld [vmem:[%s7253 + $0x28] sm:$0xff]
      %v7260 = vld [vmem:[%s7253 + $0x30] sm:$0xff]
      %v7261 = vld [vmem:[%s7253 + $0x38] sm:$0xff]
      %v7262 = vld [vmem:[%s7253 + $0x40] sm:$0xff]
      %v7263 = vld [vmem:[%s7253 + $0x48] sm:$0xff]
      %v7264 = vld [vmem:[%s7253 + $0x50] sm:$0xff]
      %v7265 = vld [vmem:[%s7253 + $0x58] sm:$0xff]
      %v7266 = vld [vmem:[%s7253 + $0x60] sm:$0xff]
      %v7267 = vld [vmem:[%s7253 + $0x68] sm:$0xff]
      %v7268 = vld [vmem:[%s7253 + $0x70] sm:$0xff]
      %v7269 = vld [vmem:[%s7253 + $0x78] sm:$0xff]
      %v7270 = vld [vmem:[%s7253 + $0x80] sm:$0xff]
      %v7271 = vld [vmem:[%s7253 + $0x88] sm:$0xff]
      %v7272 = vld [vmem:[%s7253 + $0x90] sm:$0xff]
      %v7273 = vld [vmem:[%s7253 + $0x98] sm:$0xff]
      %v7274 = vld [vmem:[%s7253 + $0xa0] sm:$0xff]
      %v7275 = vld [vmem:[%s7253 + $0xa8] sm:$0xff]
      %v7276 = vld [vmem:[%s7253 + $0xb0] sm:$0xff]
      %v7277 = vld [vmem:[%s7253 + $0xb8] sm:$0xff]
      %v7278 = vld [vmem:[%s7253 + $0xc0] sm:$0xff]
      %v7279 = vld [vmem:[%s7253 + $0xc8] sm:$0xff]
      %v7280 = vld [vmem:[%s7253 + $0xd0] sm:$0xff]
      %v7281 = vld [vmem:[%s7253 + $0xd8] sm:$0xff]
      %v7282 = vld [vmem:[%s7253 + $0xe0] sm:$0xff]
      %v7283 = vld [vmem:[%s7253 + $0xe8] sm:$0xff]
      %v7284 = vld [vmem:[%s7253 + $0xf0] sm:$0xff]
      %v7285 = vld [vmem:[%s7253 + $0xf8] sm:$0xff]
      %7286 = vmatprep.subr.mxu0 0.0
      %7287 = vmatpush1.msra.mxu0 %v7269
      %7288 = vmatprep.subr.mxu0 0.0
      %7289 = vmatpush1.msra.mxu0 %v7268
      %7290 = vmatprep.subr.mxu0 0.0
      %7291 = vmatpush1.msra.mxu0 %v7267
      %7292 = vmatprep.subr.mxu0 0.0
      %7293 = vmatpush1.msra.mxu0 %v7266
      %7294 = vmatprep.subr.mxu0 0.0
      %7295 = vmatpush1.msra.mxu0 %v7265
      %7296 = vmatprep.subr.mxu0 0.0
      %7297 = vmatpush1.msra.mxu0 %v7264
      %7298 = vmatprep.subr.mxu0 0.0
      %7299 = vmatpush1.msra.mxu0 %v7263
      %7300 = vmatprep.subr.mxu0 0.0
      %7301 = vmatpush1.msra.mxu0 %v7262
      %7302 = vmatprep.subr.mxu0 0.0
      %7303 = vmatpush1.msra.mxu0 %v7261
      %7304 = vmatprep.subr.mxu0 0.0
      %7305 = vmatpush1.msra.mxu0 %v7260
      %7306 = vmatprep.subr.mxu0 0.0
      %7307 = vmatpush1.msra.mxu0 %v7259
      %7308 = vmatprep.subr.mxu0 0.0
      %7309 = vmatpush1.msra.mxu0 %v7258
      %7310 = vmatprep.subr.mxu0 0.0
      %7311 = vmatpush1.msra.mxu0 %v7257
      %7312 = vmatprep.subr.mxu0 0.0
      %7313 = vmatpush1.msra.mxu0 %v7256
      %7314 = vmatprep.subr.mxu0 0.0
      %7315 = vmatpush1.msra.mxu0 %v7255
      %7316 = vmatprep.subr.mxu0 0.0
      %7317 = vmatpush1.msra.mxu0 %v7254
      %7318 = vmatprep.subr.mxu0 0.0
      %7319 = vmatpush2.msra.mxu0 %v7285
      %7320 = vmatprep.subr.mxu0 0.0
      %7321 = vmatpush2.msra.mxu0 %v7284
      %7322 = vmatprep.subr.mxu0 0.0
      %7323 = vmatpush2.msra.mxu0 %v7283
      %7324 = vmatprep.subr.mxu0 0.0
      %7325 = vmatpush2.msra.mxu0 %v7282
      %7326 = vmatprep.subr.mxu0 0.0
      %7327 = vmatpush2.msra.mxu0 %v7281
      %7328 = vmatprep.subr.mxu0 0.0
      %7329 = vmatpush2.msra.mxu0 %v7280
      %7330 = vmatprep.subr.mxu0 0.0
      %7331 = vmatpush2.msra.mxu0 %v7279
      %7332 = vmatprep.subr.mxu0 0.0
      %7333 = vmatpush2.msra.mxu0 %v7278
      %7334 = vmatprep.subr.mxu0 0.0
      %7335 = vmatpush2.msra.mxu0 %v7277
      %7336 = vmatprep.subr.mxu0 0.0
      %7337 = vmatpush2.msra.mxu0 %v7276
      %7338 = vmatprep.subr.mxu0 0.0
      %7339 = vmatpush2.msra.mxu0 %v7275
      %7340 = vmatprep.subr.mxu0 0.0
      %7341 = vmatpush2.msra.mxu0 %v7274
      %7342 = vmatprep.subr.mxu0 0.0
      %7343 = vmatpush2.msra.mxu0 %v7273
      %7344 = vmatprep.subr.mxu0 0.0
      %7345 = vmatpush2.msra.mxu0 %v7272
      %7346 = vmatprep.subr.mxu0 0.0
      %7347 = vmatpush2.msra.mxu0 %v7271
      %7348 = vmatprep.subr.mxu0 0.0
      %7349 = vmatpush2.msra.mxu0 %v7270
      %7350 = vmatprep.mubr.f32.mxu0 %v7034
      %7351 = vmatmul.mubr.f32.gmra.mxu0 %v7031
      %v7352 = vpop.f32.mrf.mxu0
      %v7353 = vadd.f32 0.0, %v7352
      %v7354 = vpop.f32.mrf.mxu0
      %7355 = vmatprep.mubr.f32.mxu0 %v7038
      %7356 = vmatmul.mubr.f32.gmra.mxu0 %v7036
      %v7357 = vpop.f32.mrf.mxu0
      %v7358 = vadd.f32 0.0, %v7357
      %v7359 = vpop.f32.mrf.mxu0
      %7360 = vmatprep.mubr.f32.mxu0 %v7044
      %7361 = vmatmul.mubr.f32.gmra.mxu0 %v7041
      %v7362 = vpop.f32.mrf.mxu0
      %v7363 = vadd.f32 0.0, %v7362
      %v7364 = vpop.f32.mrf.mxu0
      %7365 = vmatprep.mubr.f32.mxu0 %v7048
      %7366 = vmatmul.mubr.f32.gmra.mxu0 %v7046
      %v7367 = vpop.f32.mrf.mxu0
      %v7368 = vadd.f32 0.0, %v7367
      %v7369 = vpop.f32.mrf.mxu0
      %7370 = vmatprep.mubr.f32.mxu0 %v7054
      %7371 = vmatmul.mubr.f32.gmra.mxu0 %v7051
      %v7372 = vpop.f32.mrf.mxu0
      %v7373 = vadd.f32 0.0, %v7372
      %v7374 = vpop.f32.mrf.mxu0
      %7375 = vmatprep.mubr.f32.mxu0 %v7058
      %7376 = vmatmul.mubr.f32.gmra.mxu0 %v7056
      %v7377 = vpop.f32.mrf.mxu0
      %v7378 = vadd.f32 0.0, %v7377
      %v7379 = vpop.f32.mrf.mxu0
      %7380 = vmatprep.mubr.f32.mxu0 %v7064
      %7381 = vmatmul.mubr.f32.gmra.mxu0 %v7061
      %v7382 = vpop.f32.mrf.mxu0
      %v7383 = vadd.f32 0.0, %v7382
      %v7384 = vpop.f32.mrf.mxu0
      %7385 = vmatprep.mubr.f32.mxu0 %v7068
      %7386 = vmatmul.mubr.f32.gmra.mxu0 %v7066
      %v7387 = vpop.f32.mrf.mxu0
      %v7388 = vadd.f32 0.0, %v7387
      %v7389 = vpop.f32.mrf.mxu0
      %7390 = vmatprep.mubr.f32.mxu0 %v7074
      %7391 = vmatmul.mubr.f32.gmra.mxu0 %v7071
      %v7392 = vpop.f32.mrf.mxu0
      %v7393 = vadd.f32 0.0, %v7392
      %v7394 = vpop.f32.mrf.mxu0
      %7395 = vmatprep.mubr.f32.mxu0 %v7078
      %7396 = vmatmul.mubr.f32.gmra.mxu0 %v7076
      %v7397 = vpop.f32.mrf.mxu0
      %v7398 = vadd.f32 0.0, %v7397
      %v7399 = vpop.f32.mrf.mxu0
      %7400 = vmatprep.mubr.f32.mxu0 %v7084
      %7401 = vmatmul.mubr.f32.gmra.mxu0 %v7081
      %v7402 = vpop.f32.mrf.mxu0
      %v7403 = vadd.f32 0.0, %v7402
      %v7404 = vpop.f32.mrf.mxu0
      %7405 = vmatprep.mubr.f32.mxu0 %v7088
      %7406 = vmatmul.mubr.f32.gmra.mxu0 %v7086
      %v7407 = vpop.f32.mrf.mxu0
      %v7408 = vadd.f32 0.0, %v7407
      %v7409 = vpop.f32.mrf.mxu0
      %7410 = vmatprep.mubr.f32.mxu0 %v7094
      %7411 = vmatmul.mubr.f32.gmra.mxu0 %v7091
      %v7412 = vpop.f32.mrf.mxu0
      %v7413 = vadd.f32 0.0, %v7412
      %v7414 = vpop.f32.mrf.mxu0
      %7415 = vmatprep.mubr.f32.mxu0 %v7098
      %7416 = vmatmul.mubr.f32.gmra.mxu0 %v7096
      %v7417 = vpop.f32.mrf.mxu0
      %v7418 = vadd.f32 0.0, %v7417
      %v7419 = vpop.f32.mrf.mxu0
      %7420 = vmatprep.mubr.f32.mxu0 %v7104
      %7421 = vmatmul.mubr.f32.gmra.mxu0 %v7101
      %v7422 = vpop.f32.mrf.mxu0
      %v7423 = vadd.f32 0.0, %v7422
      %v7424 = vpop.f32.mrf.mxu0
      %7425 = vmatprep.mubr.f32.mxu0 %v7108
      %7426 = vmatmul.mubr.f32.gmra.mxu0 %v7106
      %v7427 = vpop.f32.mrf.mxu0
      %v7428 = vadd.f32 0.0, %v7427
      %v7429 = vpop.f32.mrf.mxu0
      %7430 = vmatprep.mubr.f32.mxu0 %v7114
      %7431 = vmatmul.mubr.f32.gmra.mxu0 %v7111
      %v7432 = vpop.f32.mrf.mxu0
      %v7433 = vadd.f32 0.0, %v7432
      %v7434 = vpop.f32.mrf.mxu0
      %7435 = vmatprep.mubr.f32.mxu0 %v7118
      %7436 = vmatmul.mubr.f32.gmra.mxu0 %v7116
      %v7437 = vpop.f32.mrf.mxu0
      %v7438 = vadd.f32 0.0, %v7437
      %v7439 = vpop.f32.mrf.mxu0
      %7440 = vmatprep.mubr.f32.mxu0 %v7124
      %7441 = vmatmul.mubr.f32.gmra.mxu0 %v7121
      %v7442 = vpop.f32.mrf.mxu0
      %v7443 = vadd.f32 0.0, %v7442
      %v7444 = vpop.f32.mrf.mxu0
      %7445 = vmatprep.mubr.f32.mxu0 %v7128
      %7446 = vmatmul.mubr.f32.gmra.mxu0 %v7126
      %v7447 = vpop.f32.mrf.mxu0
      %v7448 = vadd.f32 0.0, %v7447
      %v7449 = vpop.f32.mrf.mxu0
      %7450 = vmatprep.mubr.f32.mxu0 %v7134
      %7451 = vmatmul.mubr.f32.gmra.mxu0 %v7131
      %v7452 = vpop.f32.mrf.mxu0
      %v7453 = vadd.f32 0.0, %v7452
      %v7454 = vpop.f32.mrf.mxu0
      %7455 = vmatprep.mubr.f32.mxu0 %v7138
      %7456 = vmatmul.mubr.f32.gmra.mxu0 %v7136
      %v7457 = vpop.f32.mrf.mxu0
      %v7458 = vadd.f32 0.0, %v7457
      %v7459 = vpop.f32.mrf.mxu0
      %7460 = vmatprep.mubr.f32.mxu0 %v7144
      %7461 = vmatmul.mubr.f32.gmra.mxu0 %v7141
      %v7462 = vpop.f32.mrf.mxu0
      %v7463 = vadd.f32 0.0, %v7462
      %v7464 = vpop.f32.mrf.mxu0
      %7465 = vmatprep.mubr.f32.mxu0 %v7148
      %7466 = vmatmul.mubr.f32.gmra.mxu0 %v7146
      %v7467 = vpop.f32.mrf.mxu0
      %v7468 = vadd.f32 0.0, %v7467
      %v7469 = vpop.f32.mrf.mxu0
      %7470 = vmatprep.mubr.f32.mxu0 %v7154
      %7471 = vmatmul.mubr.f32.gmra.mxu0 %v7151
      %v7472 = vpop.f32.mrf.mxu0
      %v7473 = vadd.f32 0.0, %v7472
      %v7474 = vpop.f32.mrf.mxu0
      %7475 = vmatprep.mubr.f32.mxu0 %v7158
      %7476 = vmatmul.mubr.f32.gmra.mxu0 %v7156
      %v7477 = vpop.f32.mrf.mxu0
      %v7478 = vadd.f32 0.0, %v7477
      %v7479 = vpop.f32.mrf.mxu0
      %7480 = vmatprep.mubr.f32.mxu0 %v7164
      %7481 = vmatmul.mubr.f32.gmra.mxu0 %v7161
      %v7482 = vpop.f32.mrf.mxu0
      %v7483 = vadd.f32 0.0, %v7482
      %v7484 = vpop.f32.mrf.mxu0
      %7485 = vmatprep.mubr.f32.mxu0 %v7168
      %7486 = vmatmul.mubr.f32.gmra.mxu0 %v7166
      %v7487 = vpop.f32.mrf.mxu0
      %v7488 = vadd.f32 0.0, %v7487
      %v7489 = vpop.f32.mrf.mxu0
      %7490 = vmatprep.mubr.f32.mxu0 %v7174
      %7491 = vmatmul.mubr.f32.gmra.mxu0 %v7171
      %v7492 = vpop.f32.mrf.mxu0
      %v7493 = vadd.f32 0.0, %v7492
      %v7494 = vpop.f32.mrf.mxu0
      %7495 = vmatprep.mubr.f32.mxu0 %v7178
      %7496 = vmatmul.mubr.f32.gmra.mxu0 %v7176
      %v7497 = vpop.f32.mrf.mxu0
      %v7498 = vadd.f32 0.0, %v7497
      %v7499 = vpop.f32.mrf.mxu0
      %7500 = vmatprep.mubr.f32.mxu0 %v7184
      %7501 = vmatmul.mubr.f32.gmra.mxu0 %v7181
      %v7502 = vpop.f32.mrf.mxu0
      %v7503 = vadd.f32 0.0, %v7502
      %v7504 = vpop.f32.mrf.mxu0
      %7505 = vmatprep.mubr.f32.mxu0 %v7188
      %7506 = vmatmul.mubr.f32.gmra.mxu0 %v7186
      %v7507 = vpop.f32.mrf.mxu0
      %v7508 = vadd.f32 0.0, %v7507
      %v7509 = vpop.f32.mrf.mxu0
      %7510 = vdwg.mxu0
      %v7511 = vadd.f32 %v6805, %v7353
      %v7512 = vadd.f32 %v6806, %v7358
      %v7513 = vadd.f32 %v6807, %v7363
      %v7514 = vadd.f32 %v6808, %v7368
      %v7515 = vadd.f32 %v6809, %v7373
      %v7516 = vadd.f32 %v6810, %v7378
      %v7517 = vadd.f32 %v6811, %v7383
      %v7518 = vadd.f32 %v6812, %v7388
      %v7519 = vadd.f32 %v6813, %v7393
      %v7520 = vadd.f32 %v6814, %v7398
      %v7521 = vadd.f32 %v6815, %v7403
      %v7522 = vadd.f32 %v6816, %v7408
      %v7523 = vadd.f32 %v6817, %v7413
      %v7524 = vadd.f32 %v6818, %v7418
      %v7525 = vadd.f32 %v6819, %v7423
      %v7526 = vadd.f32 %v6820, %v7428
      %v7527 = vadd.f32 %v6821, %v7433
      %v7528 = vadd.f32 %v6822, %v7438
      %v7529 = vadd.f32 %v6823, %v7443
      %v7530 = vadd.f32 %v6824, %v7448
      %v7531 = vadd.f32 %v6825, %v7453
      %v7532 = vadd.f32 %v6826, %v7458
      %v7533 = vadd.f32 %v6827, %v7463
      %v7534 = vadd.f32 %v6828, %v7468
      %v7535 = vadd.f32 %v6829, %v7473
      %v7536 = vadd.f32 %v6830, %v7478
      %v7537 = vadd.f32 %v6831, %v7483
      %v7538 = vadd.f32 %v6832, %v7488
      %v7539 = vadd.f32 %v6833, %v7493
      %v7540 = vadd.f32 %v6834, %v7498
      %v7541 = vadd.f32 %v6835, %v7503
      %v7542 = vadd.f32 %v6836, %v7508
      %v7543 = vld [vmem:[%s6482] sm:$0xfc]
      %v7544 = vld [vmem:[%s6482 + $0x8] sm:$0xfc]
      %v7545 = vld [vmem:[%s6482 + $0x20] sm:$0x3]
      %v7546 = vld [vmem:[%s6482 + $0x28] sm:$0x3]
      %v7547 = vld [vmem:[%s6482 + $0x30] sm:$0xfc]
      %v7548 = vld [vmem:[%s6482 + $0x38] sm:$0xfc]
      %v7549 = vld [vmem:[%s6482 + $0x50] sm:$0x3]
      %v7550 = vld [vmem:[%s6482 + $0x58] sm:$0x3]
      %v7551 = vld [vmem:[%s6482 + $0x60] sm:$0xfc]
      %v7552 = vld [vmem:[%s6482 + $0x68] sm:$0xfc]
      %v7553 = vld [vmem:[%s6482 + $0x80] sm:$0x3]
      %v7554 = vld [vmem:[%s6482 + $0x88] sm:$0x3]
      %v7555 = vld [vmem:[%s6482 + $0x90] sm:$0xfc]
      %v7556 = vld [vmem:[%s6482 + $0x98] sm:$0xfc]
      %v7557 = vld [vmem:[%s6482 + $0xb0] sm:$0x3]
      %v7558 = vld [vmem:[%s6482 + $0xb8] sm:$0x3]
      %v7559 = vld [vmem:[%s6482 + $0xc0] sm:$0xfc]
      %v7560 = vld [vmem:[%s6482 + $0xc8] sm:$0xfc]
      %v7561 = vld [vmem:[%s6482 + $0xe0] sm:$0x3]
      %v7562 = vld [vmem:[%s6482 + $0xe8] sm:$0x3]
      %v7563 = vld [vmem:[%s6482 + $0xf0] sm:$0xfc]
      %v7564 = vld [vmem:[%s6482 + $0xf8] sm:$0xfc]
      %v7565 = vld [vmem:[%s6482 + $0x110] sm:$0x3]
      %v7566 = vld [vmem:[%s6482 + $0x118] sm:$0x3]
      %v7567 = vld [vmem:[%s6482 + $0x120] sm:$0xfc]
      %v7568 = vld [vmem:[%s6482 + $0x128] sm:$0xfc]
      %v7569 = vld [vmem:[%s6482 + $0x140] sm:$0x3]
      %v7570 = vld [vmem:[%s6482 + $0x148] sm:$0x3]
      %v7571 = vld [vmem:[%s6482 + $0x150] sm:$0xfc]
      %v7572 = vld [vmem:[%s6482 + $0x158] sm:$0xfc]
      %v7573 = vld [vmem:[%s6482 + $0x170] sm:$0x3]
      %v7574 = vld [vmem:[%s6482 + $0x178] sm:$0x3]
      %v7575 = vld [vmem:[%s6482 + $0x180] sm:$0xfc]
      %v7576 = vld [vmem:[%s6482 + $0x188] sm:$0xfc]
      %v7577 = vld [vmem:[%s6482 + $0x1a0] sm:$0x3]
      %v7578 = vld [vmem:[%s6482 + $0x1a8] sm:$0x3]
      %v7579 = vld [vmem:[%s6482 + $0x1b0] sm:$0xfc]
      %v7580 = vld [vmem:[%s6482 + $0x1b8] sm:$0xfc]
      %v7581 = vld [vmem:[%s6482 + $0x1d0] sm:$0x3]
      %v7582 = vld [vmem:[%s6482 + $0x1d8] sm:$0x3]
      %v7583 = vld [vmem:[%s6482 + $0x1e0] sm:$0xfc]
      %v7584 = vld [vmem:[%s6482 + $0x1e8] sm:$0xfc]
      %v7585 = vld [vmem:[%s6482 + $0x200] sm:$0x3]
      %v7586 = vld [vmem:[%s6482 + $0x208] sm:$0x3]
      %v7587 = vld [vmem:[%s6482 + $0x210] sm:$0xfc]
      %v7588 = vld [vmem:[%s6482 + $0x218] sm:$0xfc]
      %v7589 = vld [vmem:[%s6482 + $0x230] sm:$0x3]
      %v7590 = vld [vmem:[%s6482 + $0x238] sm:$0x3]
      %v7591 = vld [vmem:[%s6482 + $0x240] sm:$0xfc]
      %v7592 = vld [vmem:[%s6482 + $0x248] sm:$0xfc]
      %v7593 = vld [vmem:[%s6482 + $0x260] sm:$0x3]
      %v7594 = vld [vmem:[%s6482 + $0x268] sm:$0x3]
      %v7595 = vld [vmem:[%s6482 + $0x270] sm:$0xfc]
      %v7596 = vld [vmem:[%s6482 + $0x278] sm:$0xfc]
      %v7597 = vld [vmem:[%s6482 + $0x290] sm:$0x3]
      %v7598 = vld [vmem:[%s6482 + $0x298] sm:$0x3]
      %v7599 = vld [vmem:[%s6482 + $0x2a0] sm:$0xfc]
      %v7600 = vld [vmem:[%s6482 + $0x2a8] sm:$0xfc]
      %v7601 = vld [vmem:[%s6482 + $0x2c0] sm:$0x3]
      %v7602 = vld [vmem:[%s6482 + $0x2c8] sm:$0x3]
      %v7603 = vld [vmem:[%s6482 + $0x2d0] sm:$0xfc]
      %v7604 = vld [vmem:[%s6482 + $0x2d8] sm:$0xfc]
      %v7605 = vld [vmem:[%s6482 + $0x2f0] sm:$0x3]
      %v7606 = vld [vmem:[%s6482 + $0x2f8] sm:$0x3]
      %v7671 = vrot.slane %v7543, 2
      %v7672 = vrot.slane %v6839, 2
      %v7673 = vsel %vm4265, %v7671, %v7672
      %v7674 = vrot.slane %v7544, 2
      %v7675 = vrot.slane %v6840, 2
      %v7676 = vsel %vm4265, %v7674, %v7675
      %v7677 = vrot.slane %v7545, 2
      %v7678 = vsel %vm4265, %v7672, %v7677
      %v7679 = vrot.slane %v7546, 2
      %v7680 = vsel %vm4265, %v7675, %v7679
      %v7681 = vrot.slane %v7547, 2
      %v7682 = vrot.slane %v6845, 2
      %v7683 = vsel %vm4265, %v7681, %v7682
      %v7684 = vrot.slane %v7548, 2
      %v7685 = vrot.slane %v6846, 2
      %v7686 = vsel %vm4265, %v7684, %v7685
      %v7687 = vrot.slane %v7549, 2
      %v7688 = vsel %vm4265, %v7682, %v7687
      %v7689 = vrot.slane %v7550, 2
      %v7690 = vsel %vm4265, %v7685, %v7689
      %v7691 = vrot.slane %v7551, 2
      %v7692 = vrot.slane %v6851, 2
      %v7693 = vsel %vm4265, %v7691, %v7692
      %v7694 = vrot.slane %v7552, 2
      %v7695 = vrot.slane %v6852, 2
      %v7696 = vsel %vm4265, %v7694, %v7695
      %v7697 = vrot.slane %v7553, 2
      %v7698 = vsel %vm4265, %v7692, %v7697
      %v7699 = vrot.slane %v7554, 2
      %v7700 = vsel %vm4265, %v7695, %v7699
      %v7701 = vrot.slane %v7555, 2
      %v7702 = vrot.slane %v6857, 2
      %v7703 = vsel %vm4265, %v7701, %v7702
      %v7704 = vrot.slane %v7556, 2
      %v7705 = vrot.slane %v6858, 2
      %v7706 = vsel %vm4265, %v7704, %v7705
      %v7707 = vrot.slane %v7557, 2
      %v7708 = vsel %vm4265, %v7702, %v7707
      %v7709 = vrot.slane %v7558, 2
      %v7710 = vsel %vm4265, %v7705, %v7709
      %v7711 = vrot.slane %v7559, 2
      %v7712 = vrot.slane %v6863, 2
      %v7713 = vsel %vm4265, %v7711, %v7712
      %v7714 = vrot.slane %v7560, 2
      %v7715 = vrot.slane %v6864, 2
      %v7716 = vsel %vm4265, %v7714, %v7715
      %v7717 = vrot.slane %v7561, 2
      %v7718 = vsel %vm4265, %v7712, %v7717
      %v7719 = vrot.slane %v7562, 2
      %v7720 = vsel %vm4265, %v7715, %v7719
      %v7721 = vrot.slane %v7563, 2
      %v7722 = vrot.slane %v6869, 2
      %v7723 = vsel %vm4265, %v7721, %v7722
      %v7724 = vrot.slane %v7564, 2
      %v7725 = vrot.slane %v6870, 2
      %v7726 = vsel %vm4265, %v7724, %v7725
      %v7727 = vrot.slane %v7565, 2
      %v7728 = vsel %vm4265, %v7722, %v7727
      %v7729 = vrot.slane %v7566, 2
      %v7730 = vsel %vm4265, %v7725, %v7729
      %v7731 = vrot.slane %v7567, 2
      %v7732 = vrot.slane %v6875, 2
      %v7733 = vsel %vm4265, %v7731, %v7732
      %v7734 = vrot.slane %v7568, 2
      %v7735 = vrot.slane %v6876, 2
      %v7736 = vsel %vm4265, %v7734, %v7735
      %v7737 = vrot.slane %v7569, 2
      %v7738 = vsel %vm4265, %v7732, %v7737
      %v7739 = vrot.slane %v7570, 2
      %v7740 = vsel %vm4265, %v7735, %v7739
      %v7741 = vrot.slane %v7571, 2
      %v7742 = vrot.slane %v6881, 2
      %v7743 = vsel %vm4265, %v7741, %v7742
      %v7744 = vrot.slane %v7572, 2
      %v7745 = vrot.slane %v6882, 2
      %v7746 = vsel %vm4265, %v7744, %v7745
      %v7747 = vrot.slane %v7573, 2
      %v7748 = vsel %vm4265, %v7742, %v7747
      %v7749 = vrot.slane %v7574, 2
      %v7750 = vsel %vm4265, %v7745, %v7749
      %v7751 = vrot.slane %v7575, 2
      %v7752 = vrot.slane %v6887, 2
      %v7753 = vsel %vm4265, %v7751, %v7752
      %v7754 = vrot.slane %v7576, 2
      %v7755 = vrot.slane %v6888, 2
      %v7756 = vsel %vm4265, %v7754, %v7755
      %v7757 = vrot.slane %v7577, 2
      %v7758 = vsel %vm4265, %v7752, %v7757
      %v7759 = vrot.slane %v7578, 2
      %v7760 = vsel %vm4265, %v7755, %v7759
      %v7761 = vrot.slane %v7579, 2
      %v7762 = vrot.slane %v6893, 2
      %v7763 = vsel %vm4265, %v7761, %v7762
      %v7764 = vrot.slane %v7580, 2
      %v7765 = vrot.slane %v6894, 2
      %v7766 = vsel %vm4265, %v7764, %v7765
      %v7767 = vrot.slane %v7581, 2
      %v7768 = vsel %vm4265, %v7762, %v7767
      %v7769 = vrot.slane %v7582, 2
      %v7770 = vsel %vm4265, %v7765, %v7769
      %v7771 = vrot.slane %v7583, 2
      %v7772 = vrot.slane %v6899, 2
      %v7773 = vsel %vm4265, %v7771, %v7772
      %v7774 = vrot.slane %v7584, 2
      %v7775 = vrot.slane %v6900, 2
      %v7776 = vsel %vm4265, %v7774, %v7775
      %v7777 = vrot.slane %v7585, 2
      %v7778 = vsel %vm4265, %v7772, %v7777
      %v7779 = vrot.slane %v7586, 2
      %v7780 = vsel %vm4265, %v7775, %v7779
      %v7781 = vrot.slane %v7587, 2
      %v7782 = vrot.slane %v6905, 2
      %v7783 = vsel %vm4265, %v7781, %v7782
      %v7784 = vrot.slane %v7588, 2
      %v7785 = vrot.slane %v6906, 2
      %v7786 = vsel %vm4265, %v7784, %v7785
      %v7787 = vrot.slane %v7589, 2
      %v7788 = vsel %vm4265, %v7782, %v7787
      %v7789 = vrot.slane %v7590, 2
      %v7790 = vsel %vm4265, %v7785, %v7789
      %v7791 = vrot.slane %v7591, 2
      %v7792 = vrot.slane %v6911, 2
      %v7793 = vsel %vm4265, %v7791, %v7792
      %v7794 = vrot.slane %v7592, 2
      %v7795 = vrot.slane %v6912, 2
      %v7796 = vsel %vm4265, %v7794, %v7795
      %v7797 = vrot.slane %v7593, 2
      %v7798 = vsel %vm4265, %v7792, %v7797
      %v7799 = vrot.slane %v7594, 2
      %v7800 = vsel %vm4265, %v7795, %v7799
      %v7801 = vrot.slane %v7595, 2
      %v7802 = vrot.slane %v6917, 2
      %v7803 = vsel %vm4265, %v7801, %v7802
      %v7804 = vrot.slane %v7596, 2
      %v7805 = vrot.slane %v6918, 2
      %v7806 = vsel %vm4265, %v7804, %v7805
      %v7807 = vrot.slane %v7597, 2
      %v7808 = vsel %vm4265, %v7802, %v7807
      %v7809 = vrot.slane %v7598, 2
      %v7810 = vsel %vm4265, %v7805, %v7809
      %v7811 = vrot.slane %v7599, 2
      %v7812 = vrot.slane %v6923, 2
      %v7813 = vsel %vm4265, %v7811, %v7812
      %v7814 = vrot.slane %v7600, 2
      %v7815 = vrot.slane %v6924, 2
      %v7816 = vsel %vm4265, %v7814, %v7815
      %v7817 = vrot.slane %v7601, 2
      %v7818 = vsel %vm4265, %v7812, %v7817
      %v7819 = vrot.slane %v7602, 2
      %v7820 = vsel %vm4265, %v7815, %v7819
      %v7821 = vrot.slane %v7603, 2
      %v7822 = vrot.slane %v6929, 2
      %v7823 = vsel %vm4265, %v7821, %v7822
      %v7824 = vrot.slane %v7604, 2
      %v7825 = vrot.slane %v6930, 2
      %v7826 = vsel %vm4265, %v7824, %v7825
      %v7827 = vrot.slane %v7605, 2
      %v7828 = vsel %vm4265, %v7822, %v7827
      %v7829 = vrot.slane %v7606, 2
      %v7830 = vsel %vm4265, %v7825, %v7829
      %s7895 = scalar_lea.vmem %s5, 2048
      %v7896 = vld [vmem:[%s7895] sm:$0xff]
      %v7897 = vld [vmem:[%s7895 + $0x8] sm:$0xff]
      %v7898 = vld [vmem:[%s7895 + $0x10] sm:$0xff]
      %v7899 = vld [vmem:[%s7895 + $0x18] sm:$0xff]
      %v7900 = vld [vmem:[%s7895 + $0x20] sm:$0xff]
      %v7901 = vld [vmem:[%s7895 + $0x28] sm:$0xff]
      %v7902 = vld [vmem:[%s7895 + $0x30] sm:$0xff]
      %v7903 = vld [vmem:[%s7895 + $0x38] sm:$0xff]
      %v7904 = vld [vmem:[%s7895 + $0x40] sm:$0xff]
      %v7905 = vld [vmem:[%s7895 + $0x48] sm:$0xff]
      %v7906 = vld [vmem:[%s7895 + $0x50] sm:$0xff]
      %v7907 = vld [vmem:[%s7895 + $0x58] sm:$0xff]
      %v7908 = vld [vmem:[%s7895 + $0x60] sm:$0xff]
      %v7909 = vld [vmem:[%s7895 + $0x68] sm:$0xff]
      %v7910 = vld [vmem:[%s7895 + $0x70] sm:$0xff]
      %v7911 = vld [vmem:[%s7895 + $0x78] sm:$0xff]
      %v7912 = vld [vmem:[%s7895 + $0x80] sm:$0xff]
      %v7913 = vld [vmem:[%s7895 + $0x88] sm:$0xff]
      %v7914 = vld [vmem:[%s7895 + $0x90] sm:$0xff]
      %v7915 = vld [vmem:[%s7895 + $0x98] sm:$0xff]
      %v7916 = vld [vmem:[%s7895 + $0xa0] sm:$0xff]
      %v7917 = vld [vmem:[%s7895 + $0xa8] sm:$0xff]
      %v7918 = vld [vmem:[%s7895 + $0xb0] sm:$0xff]
      %v7919 = vld [vmem:[%s7895 + $0xb8] sm:$0xff]
      %v7920 = vld [vmem:[%s7895 + $0xc0] sm:$0xff]
      %v7921 = vld [vmem:[%s7895 + $0xc8] sm:$0xff]
      %v7922 = vld [vmem:[%s7895 + $0xd0] sm:$0xff]
      %v7923 = vld [vmem:[%s7895 + $0xd8] sm:$0xff]
      %v7924 = vld [vmem:[%s7895 + $0xe0] sm:$0xff]
      %v7925 = vld [vmem:[%s7895 + $0xe8] sm:$0xff]
      %v7926 = vld [vmem:[%s7895 + $0xf0] sm:$0xff]
      %v7927 = vld [vmem:[%s7895 + $0xf8] sm:$0xff]
      %7928 = vmatprep.subr.mxu0 0.0
      %7929 = vmatpush1.msra.mxu0 %v7911
      %7930 = vmatprep.subr.mxu0 0.0
      %7931 = vmatpush1.msra.mxu0 %v7910
      %7932 = vmatprep.subr.mxu0 0.0
      %7933 = vmatpush1.msra.mxu0 %v7909
      %7934 = vmatprep.subr.mxu0 0.0
      %7935 = vmatpush1.msra.mxu0 %v7908
      %7936 = vmatprep.subr.mxu0 0.0
      %7937 = vmatpush1.msra.mxu0 %v7907
      %7938 = vmatprep.subr.mxu0 0.0
      %7939 = vmatpush1.msra.mxu0 %v7906
      %7940 = vmatprep.subr.mxu0 0.0
      %7941 = vmatpush1.msra.mxu0 %v7905
      %7942 = vmatprep.subr.mxu0 0.0
      %7943 = vmatpush1.msra.mxu0 %v7904
      %7944 = vmatprep.subr.mxu0 0.0
      %7945 = vmatpush1.msra.mxu0 %v7903
      %7946 = vmatprep.subr.mxu0 0.0
      %7947 = vmatpush1.msra.mxu0 %v7902
      %7948 = vmatprep.subr.mxu0 0.0
      %7949 = vmatpush1.msra.mxu0 %v7901
      %7950 = vmatprep.subr.mxu0 0.0
      %7951 = vmatpush1.msra.mxu0 %v7900
      %7952 = vmatprep.subr.mxu0 0.0
      %7953 = vmatpush1.msra.mxu0 %v7899
      %7954 = vmatprep.subr.mxu0 0.0
      %7955 = vmatpush1.msra.mxu0 %v7898
      %7956 = vmatprep.subr.mxu0 0.0
      %7957 = vmatpush1.msra.mxu0 %v7897
      %7958 = vmatprep.subr.mxu0 0.0
      %7959 = vmatpush1.msra.mxu0 %v7896
      %7960 = vmatprep.subr.mxu0 0.0
      %7961 = vmatpush2.msra.mxu0 %v7927
      %7962 = vmatprep.subr.mxu0 0.0
      %7963 = vmatpush2.msra.mxu0 %v7926
      %7964 = vmatprep.subr.mxu0 0.0
      %7965 = vmatpush2.msra.mxu0 %v7925
      %7966 = vmatprep.subr.mxu0 0.0
      %7967 = vmatpush2.msra.mxu0 %v7924
      %7968 = vmatprep.subr.mxu0 0.0
      %7969 = vmatpush2.msra.mxu0 %v7923
      %7970 = vmatprep.subr.mxu0 0.0
      %7971 = vmatpush2.msra.mxu0 %v7922
      %7972 = vmatprep.subr.mxu0 0.0
      %7973 = vmatpush2.msra.mxu0 %v7921
      %7974 = vmatprep.subr.mxu0 0.0
      %7975 = vmatpush2.msra.mxu0 %v7920
      %7976 = vmatprep.subr.mxu0 0.0
      %7977 = vmatpush2.msra.mxu0 %v7919
      %7978 = vmatprep.subr.mxu0 0.0
      %7979 = vmatpush2.msra.mxu0 %v7918
      %7980 = vmatprep.subr.mxu0 0.0
      %7981 = vmatpush2.msra.mxu0 %v7917
      %7982 = vmatprep.subr.mxu0 0.0
      %7983 = vmatpush2.msra.mxu0 %v7916
      %7984 = vmatprep.subr.mxu0 0.0
      %7985 = vmatpush2.msra.mxu0 %v7915
      %7986 = vmatprep.subr.mxu0 0.0
      %7987 = vmatpush2.msra.mxu0 %v7914
      %7988 = vmatprep.subr.mxu0 0.0
      %7989 = vmatpush2.msra.mxu0 %v7913
      %7990 = vmatprep.subr.mxu0 0.0
      %7991 = vmatpush2.msra.mxu0 %v7912
      %7992 = vmatprep.mubr.f32.mxu0 %v7676
      %7993 = vmatmul.mubr.f32.gmra.mxu0 %v7673
      %v7994 = vpop.f32.mrf.mxu0
      %v7995 = vadd.f32 0.0, %v7994
      %v7996 = vpop.f32.mrf.mxu0
      %7997 = vmatprep.mubr.f32.mxu0 %v7680
      %7998 = vmatmul.mubr.f32.gmra.mxu0 %v7678
      %v7999 = vpop.f32.mrf.mxu0
      %v8000 = vadd.f32 0.0, %v7999
      %v8001 = vpop.f32.mrf.mxu0
      %8002 = vmatprep.mubr.f32.mxu0 %v7686
      %8003 = vmatmul.mubr.f32.gmra.mxu0 %v7683
      %v8004 = vpop.f32.mrf.mxu0
      %v8005 = vadd.f32 0.0, %v8004
      %v8006 = vpop.f32.mrf.mxu0
      %8007 = vmatprep.mubr.f32.mxu0 %v7690
      %8008 = vmatmul.mubr.f32.gmra.mxu0 %v7688
      %v8009 = vpop.f32.mrf.mxu0
      %v8010 = vadd.f32 0.0, %v8009
      %v8011 = vpop.f32.mrf.mxu0
      %8012 = vmatprep.mubr.f32.mxu0 %v7696
      %8013 = vmatmul.mubr.f32.gmra.mxu0 %v7693
      %v8014 = vpop.f32.mrf.mxu0
      %v8015 = vadd.f32 0.0, %v8014
      %v8016 = vpop.f32.mrf.mxu0
      %8017 = vmatprep.mubr.f32.mxu0 %v7700
      %8018 = vmatmul.mubr.f32.gmra.mxu0 %v7698
      %v8019 = vpop.f32.mrf.mxu0
      %v8020 = vadd.f32 0.0, %v8019
      %v8021 = vpop.f32.mrf.mxu0
      %8022 = vmatprep.mubr.f32.mxu0 %v7706
      %8023 = vmatmul.mubr.f32.gmra.mxu0 %v7703
      %v8024 = vpop.f32.mrf.mxu0
      %v8025 = vadd.f32 0.0, %v8024
      %v8026 = vpop.f32.mrf.mxu0
      %8027 = vmatprep.mubr.f32.mxu0 %v7710
      %8028 = vmatmul.mubr.f32.gmra.mxu0 %v7708
      %v8029 = vpop.f32.mrf.mxu0
      %v8030 = vadd.f32 0.0, %v8029
      %v8031 = vpop.f32.mrf.mxu0
      %8032 = vmatprep.mubr.f32.mxu0 %v7716
      %8033 = vmatmul.mubr.f32.gmra.mxu0 %v7713
      %v8034 = vpop.f32.mrf.mxu0
      %v8035 = vadd.f32 0.0, %v8034
      %v8036 = vpop.f32.mrf.mxu0
      %8037 = vmatprep.mubr.f32.mxu0 %v7720
      %8038 = vmatmul.mubr.f32.gmra.mxu0 %v7718
      %v8039 = vpop.f32.mrf.mxu0
      %v8040 = vadd.f32 0.0, %v8039
      %v8041 = vpop.f32.mrf.mxu0
      %8042 = vmatprep.mubr.f32.mxu0 %v7726
      %8043 = vmatmul.mubr.f32.gmra.mxu0 %v7723
      %v8044 = vpop.f32.mrf.mxu0
      %v8045 = vadd.f32 0.0, %v8044
      %v8046 = vpop.f32.mrf.mxu0
      %8047 = vmatprep.mubr.f32.mxu0 %v7730
      %8048 = vmatmul.mubr.f32.gmra.mxu0 %v7728
      %v8049 = vpop.f32.mrf.mxu0
      %v8050 = vadd.f32 0.0, %v8049
      %v8051 = vpop.f32.mrf.mxu0
      %8052 = vmatprep.mubr.f32.mxu0 %v7736
      %8053 = vmatmul.mubr.f32.gmra.mxu0 %v7733
      %v8054 = vpop.f32.mrf.mxu0
      %v8055 = vadd.f32 0.0, %v8054
      %v8056 = vpop.f32.mrf.mxu0
      %8057 = vmatprep.mubr.f32.mxu0 %v7740
      %8058 = vmatmul.mubr.f32.gmra.mxu0 %v7738
      %v8059 = vpop.f32.mrf.mxu0
      %v8060 = vadd.f32 0.0, %v8059
      %v8061 = vpop.f32.mrf.mxu0
      %8062 = vmatprep.mubr.f32.mxu0 %v7746
      %8063 = vmatmul.mubr.f32.gmra.mxu0 %v7743
      %v8064 = vpop.f32.mrf.mxu0
      %v8065 = vadd.f32 0.0, %v8064
      %v8066 = vpop.f32.mrf.mxu0
      %8067 = vmatprep.mubr.f32.mxu0 %v7750
      %8068 = vmatmul.mubr.f32.gmra.mxu0 %v7748
      %v8069 = vpop.f32.mrf.mxu0
      %v8070 = vadd.f32 0.0, %v8069
      %v8071 = vpop.f32.mrf.mxu0
      %8072 = vmatprep.mubr.f32.mxu0 %v7756
      %8073 = vmatmul.mubr.f32.gmra.mxu0 %v7753
      %v8074 = vpop.f32.mrf.mxu0
      %v8075 = vadd.f32 0.0, %v8074
      %v8076 = vpop.f32.mrf.mxu0
      %8077 = vmatprep.mubr.f32.mxu0 %v7760
      %8078 = vmatmul.mubr.f32.gmra.mxu0 %v7758
      %v8079 = vpop.f32.mrf.mxu0
      %v8080 = vadd.f32 0.0, %v8079
      %v8081 = vpop.f32.mrf.mxu0
      %8082 = vmatprep.mubr.f32.mxu0 %v7766
      %8083 = vmatmul.mubr.f32.gmra.mxu0 %v7763
      %v8084 = vpop.f32.mrf.mxu0
      %v8085 = vadd.f32 0.0, %v8084
      %v8086 = vpop.f32.mrf.mxu0
      %8087 = vmatprep.mubr.f32.mxu0 %v7770
      %8088 = vmatmul.mubr.f32.gmra.mxu0 %v7768
      %v8089 = vpop.f32.mrf.mxu0
      %v8090 = vadd.f32 0.0, %v8089
      %v8091 = vpop.f32.mrf.mxu0
      %8092 = vmatprep.mubr.f32.mxu0 %v7776
      %8093 = vmatmul.mubr.f32.gmra.mxu0 %v7773
      %v8094 = vpop.f32.mrf.mxu0
      %v8095 = vadd.f32 0.0, %v8094
      %v8096 = vpop.f32.mrf.mxu0
      %8097 = vmatprep.mubr.f32.mxu0 %v7780
      %8098 = vmatmul.mubr.f32.gmra.mxu0 %v7778
      %v8099 = vpop.f32.mrf.mxu0
      %v8100 = vadd.f32 0.0, %v8099
      %v8101 = vpop.f32.mrf.mxu0
      %8102 = vmatprep.mubr.f32.mxu0 %v7786
      %8103 = vmatmul.mubr.f32.gmra.mxu0 %v7783
      %v8104 = vpop.f32.mrf.mxu0
      %v8105 = vadd.f32 0.0, %v8104
      %v8106 = vpop.f32.mrf.mxu0
      %8107 = vmatprep.mubr.f32.mxu0 %v7790
      %8108 = vmatmul.mubr.f32.gmra.mxu0 %v7788
      %v8109 = vpop.f32.mrf.mxu0
      %v8110 = vadd.f32 0.0, %v8109
      %v8111 = vpop.f32.mrf.mxu0
      %8112 = vmatprep.mubr.f32.mxu0 %v7796
      %8113 = vmatmul.mubr.f32.gmra.mxu0 %v7793
      %v8114 = vpop.f32.mrf.mxu0
      %v8115 = vadd.f32 0.0, %v8114
      %v8116 = vpop.f32.mrf.mxu0
      %8117 = vmatprep.mubr.f32.mxu0 %v7800
      %8118 = vmatmul.mubr.f32.gmra.mxu0 %v7798
      %v8119 = vpop.f32.mrf.mxu0
      %v8120 = vadd.f32 0.0, %v8119
      %v8121 = vpop.f32.mrf.mxu0
      %8122 = vmatprep.mubr.f32.mxu0 %v7806
      %8123 = vmatmul.mubr.f32.gmra.mxu0 %v7803
      %v8124 = vpop.f32.mrf.mxu0
      %v8125 = vadd.f32 0.0, %v8124
      %v8126 = vpop.f32.mrf.mxu0
      %8127 = vmatprep.mubr.f32.mxu0 %v7810
      %8128 = vmatmul.mubr.f32.gmra.mxu0 %v7808
      %v8129 = vpop.f32.mrf.mxu0
      %v8130 = vadd.f32 0.0, %v8129
      %v8131 = vpop.f32.mrf.mxu0
      %8132 = vmatprep.mubr.f32.mxu0 %v7816
      %8133 = vmatmul.mubr.f32.gmra.mxu0 %v7813
      %v8134 = vpop.f32.mrf.mxu0
      %v8135 = vadd.f32 0.0, %v8134
      %v8136 = vpop.f32.mrf.mxu0
      %8137 = vmatprep.mubr.f32.mxu0 %v7820
      %8138 = vmatmul.mubr.f32.gmra.mxu0 %v7818
      %v8139 = vpop.f32.mrf.mxu0
      %v8140 = vadd.f32 0.0, %v8139
      %v8141 = vpop.f32.mrf.mxu0
      %8142 = vmatprep.mubr.f32.mxu0 %v7826
      %8143 = vmatmul.mubr.f32.gmra.mxu0 %v7823
      %v8144 = vpop.f32.mrf.mxu0
      %v8145 = vadd.f32 0.0, %v8144
      %v8146 = vpop.f32.mrf.mxu0
      %8147 = vmatprep.mubr.f32.mxu0 %v7830
      %8148 = vmatmul.mubr.f32.gmra.mxu0 %v7828
      %v8149 = vpop.f32.mrf.mxu0
      %v8150 = vadd.f32 0.0, %v8149
      %v8151 = vpop.f32.mrf.mxu0
      %8152 = vdwg.mxu0
      %v8153 = vadd.f32 %v7511, %v7995
      %v8154 = vadd.f32 %v7512, %v8000
      %v8155 = vadd.f32 %v7513, %v8005
      %v8156 = vadd.f32 %v7514, %v8010
      %v8157 = vadd.f32 %v7515, %v8015
      %v8158 = vadd.f32 %v7516, %v8020
      %v8159 = vadd.f32 %v7517, %v8025
      %v8160 = vadd.f32 %v7518, %v8030
      %v8161 = vadd.f32 %v7519, %v8035
      %v8162 = vadd.f32 %v7520, %v8040
      %v8163 = vadd.f32 %v7521, %v8045
      %v8164 = vadd.f32 %v7522, %v8050
      %v8165 = vadd.f32 %v7523, %v8055
      %v8166 = vadd.f32 %v7524, %v8060
      %v8167 = vadd.f32 %v7525, %v8065
      %v8168 = vadd.f32 %v7526, %v8070
      %v8169 = vadd.f32 %v7527, %v8075
      %v8170 = vadd.f32 %v7528, %v8080
      %v8171 = vadd.f32 %v7529, %v8085
      %v8172 = vadd.f32 %v7530, %v8090
      %v8173 = vadd.f32 %v7531, %v8095
      %v8174 = vadd.f32 %v7532, %v8100
      %v8175 = vadd.f32 %v7533, %v8105
      %v8176 = vadd.f32 %v7534, %v8110
      %v8177 = vadd.f32 %v7535, %v8115
      %v8178 = vadd.f32 %v7536, %v8120
      %v8179 = vadd.f32 %v7537, %v8125
      %v8180 = vadd.f32 %v7538, %v8130
      %v8181 = vadd.f32 %v7539, %v8135
      %v8182 = vadd.f32 %v7540, %v8140
      %v8183 = vadd.f32 %v7541, %v8145
      %v8184 = vadd.f32 %v7542, %v8150
      %v8185 = vld [vmem:[%s6] sm:$0x1]
      %v8187 = vlaneseq
      %v8188 = vshrl.u32 %v8187, 7
      %v8189 = vsub.s32 0, %v8188
      %v8190 = vrot.slane %v8185, %v8189
      %v8192 = vadd.f32 %v8153, %v8190
      %v8193 = vadd.f32 %v8154, %v8190
      %v8194 = vadd.f32 %v8155, %v8190
      %v8195 = vadd.f32 %v8156, %v8190
      %v8196 = vadd.f32 %v8157, %v8190
      %v8197 = vadd.f32 %v8158, %v8190
      %v8198 = vadd.f32 %v8159, %v8190
      %v8199 = vadd.f32 %v8160, %v8190
      %v8200 = vadd.f32 %v8161, %v8190
      %v8201 = vadd.f32 %v8162, %v8190
      %v8202 = vadd.f32 %v8163, %v8190
      %v8203 = vadd.f32 %v8164, %v8190
      %v8204 = vadd.f32 %v8165, %v8190
      %v8205 = vadd.f32 %v8166, %v8190
      %v8206 = vadd.f32 %v8167, %v8190
      %v8207 = vadd.f32 %v8168, %v8190
      %v8208 = vadd.f32 %v8169, %v8190
      %v8209 = vadd.f32 %v8170, %v8190
      %v8210 = vadd.f32 %v8171, %v8190
      %v8211 = vadd.f32 %v8172, %v8190
      %v8212 = vadd.f32 %v8173, %v8190
      %v8213 = vadd.f32 %v8174, %v8190
      %v8214 = vadd.f32 %v8175, %v8190
      %v8215 = vadd.f32 %v8176, %v8190
      %v8216 = vadd.f32 %v8177, %v8190
      %v8217 = vadd.f32 %v8178, %v8190
      %v8218 = vadd.f32 %v8179, %v8190
      %v8219 = vadd.f32 %v8180, %v8190
      %v8220 = vadd.f32 %v8181, %v8190
      %v8221 = vadd.f32 %v8182, %v8190
      %v8222 = vadd.f32 %v8183, %v8190
      %v8223 = vadd.f32 %v8184, %v8190
      %v8224 = vmax.f32 %v8192, 0.0
      %v8225 = vmax.f32 %v8193, 0.0
      %v8226 = vmax.f32 %v8194, 0.0
      %v8227 = vmax.f32 %v8195, 0.0
      %v8228 = vmax.f32 %v8196, 0.0
      %v8229 = vmax.f32 %v8197, 0.0
      %v8230 = vmax.f32 %v8198, 0.0
      %v8231 = vmax.f32 %v8199, 0.0
      %v8232 = vmax.f32 %v8200, 0.0
      %v8233 = vmax.f32 %v8201, 0.0
      %v8234 = vmax.f32 %v8202, 0.0
      %v8235 = vmax.f32 %v8203, 0.0
      %v8236 = vmax.f32 %v8204, 0.0
      %v8237 = vmax.f32 %v8205, 0.0
      %v8238 = vmax.f32 %v8206, 0.0
      %v8239 = vmax.f32 %v8207, 0.0
      %v8240 = vmax.f32 %v8208, 0.0
      %v8241 = vmax.f32 %v8209, 0.0
      %v8242 = vmax.f32 %v8210, 0.0
      %v8243 = vmax.f32 %v8211, 0.0
      %v8244 = vmax.f32 %v8212, 0.0
      %v8245 = vmax.f32 %v8213, 0.0
      %v8246 = vmax.f32 %v8214, 0.0
      %v8247 = vmax.f32 %v8215, 0.0
      %v8248 = vmax.f32 %v8216, 0.0
      %v8249 = vmax.f32 %v8217, 0.0
      %v8250 = vmax.f32 %v8218, 0.0
      %v8251 = vmax.f32 %v8219, 0.0
      %v8252 = vmax.f32 %v8220, 0.0
      %v8253 = vmax.f32 %v8221, 0.0
      %v8254 = vmax.f32 %v8222, 0.0
      %v8255 = vmax.f32 %v8223, 0.0
      %8256 = vxpose.xlu0.b32.start [1/16] %v8224, 128
      %8257 = vxpose.xlu0.b32.cont [2/16] %v8225, 128
      %8258 = vxpose.xlu0.b32.cont [3/16] %v8226, 128
      %8259 = vxpose.xlu0.b32.cont [4/16] %v8227, 128
      %8260 = vxpose.xlu0.b32.cont [5/16] %v8228, 128
      %8261 = vxpose.xlu0.b32.cont [6/16] %v8229, 128
      %8262 = vxpose.xlu0.b32.cont [7/16] %v8230, 128
      %8263 = vxpose.xlu0.b32.cont [8/16] %v8231, 128
      %8264 = vxpose.xlu0.b32.cont [9/16] %v8232, 128
      %8265 = vxpose.xlu0.b32.cont [10/16] %v8233, 128
      %8266 = vxpose.xlu0.b32.cont [11/16] %v8234, 128
      %8267 = vxpose.xlu0.b32.cont [12/16] %v8235, 128
      %8268 = vxpose.xlu0.b32.cont [13/16] %v8236, 128
      %8269 = vxpose.xlu0.b32.cont [14/16] %v8237, 128
      %8270 = vxpose.xlu0.b32.cont [15/16] %v8238, 128
      %8271 = vxpose.xlu0.b32.end [16/16] %v8239, 128
      %v8272 = vpop.trf.xlu0
      %v8273 = vpop.trf.xlu0
      %v8274 = vpop.trf.xlu0
      %v8275 = vpop.trf.xlu0
      %v8276 = vpop.trf.xlu0
      %v8277 = vpop.trf.xlu0
      %v8278 = vpop.trf.xlu0
      %v8279 = vpop.trf.xlu0
      %v8280 = vpop.trf.xlu0
      %v8281 = vpop.trf.xlu0
      %v8282 = vpop.trf.xlu0
      %v8283 = vpop.trf.xlu0
      %v8284 = vpop.trf.xlu0
      %v8285 = vpop.trf.xlu0
      %v8286 = vpop.trf.xlu0
      %v8287 = vpop.trf.xlu0
      %8288 = vxpose.xlu0.b32.start [1/16] %v8240, 128
      %8289 = vxpose.xlu0.b32.cont [2/16] %v8241, 128
      %8290 = vxpose.xlu0.b32.cont [3/16] %v8242, 128
      %8291 = vxpose.xlu0.b32.cont [4/16] %v8243, 128
      %8292 = vxpose.xlu0.b32.cont [5/16] %v8244, 128
      %8293 = vxpose.xlu0.b32.cont [6/16] %v8245, 128
      %8294 = vxpose.xlu0.b32.cont [7/16] %v8246, 128
      %8295 = vxpose.xlu0.b32.cont [8/16] %v8247, 128
      %8296 = vxpose.xlu0.b32.cont [9/16] %v8248, 128
      %8297 = vxpose.xlu0.b32.cont [10/16] %v8249, 128
      %8298 = vxpose.xlu0.b32.cont [11/16] %v8250, 128
      %8299 = vxpose.xlu0.b32.cont [12/16] %v8251, 128
      %8300 = vxpose.xlu0.b32.cont [13/16] %v8252, 128
      %8301 = vxpose.xlu0.b32.cont [14/16] %v8253, 128
      %8302 = vxpose.xlu0.b32.cont [15/16] %v8254, 128
      %8303 = vxpose.xlu0.b32.end [16/16] %v8255, 128
      %v8304 = vpop.trf.xlu0
      %v8305 = vpop.trf.xlu0
      %v8306 = vpop.trf.xlu0
      %v8307 = vpop.trf.xlu0
      %v8308 = vpop.trf.xlu0
      %v8309 = vpop.trf.xlu0
      %v8310 = vpop.trf.xlu0
      %v8311 = vpop.trf.xlu0
      %v8312 = vpop.trf.xlu0
      %v8313 = vpop.trf.xlu0
      %v8314 = vpop.trf.xlu0
      %v8315 = vpop.trf.xlu0
      %v8316 = vpop.trf.xlu0
      %v8317 = vpop.trf.xlu0
      %v8318 = vpop.trf.xlu0
      %v8319 = vpop.trf.xlu0
      %v8322 = vcombine.low %v8272, %v8304
      %8324 = vst [vmem:[%s278] sm:$0xff] %v8322
      %p8325 = scmp.lt.s32.totalorder %s18, 1
      %s8326 = scalar_select %p8325, %s18, 1
      %s8327 = smul.addr %s8326, 2
      %s8328 = smul.addr %s8327, 4
      %s8329 = scalar_lea.vmem %s7, %s8328
      // Predicated region
      $region49: #{convert1x_net_forward.1} parent=47 // pred_check
        %p8330 = pneg %p188
      $region50: #{convert1x_net_forward.1} parent=47 // pred_check_branch
        %8332 = sbr.rel (%p8330) target = $region52
      $region51: #{convert1x_net_forward.1} parent=47 // pred_region
        _
      $region52: #{convert1x_net_forward.1} parent=47 // pred_fallthru
        _
    $region48: #{convert1x_net_forward.1} parent=5 // pred_fallthru
      _
    %p8333 = scmp.le.s32.totalorder 2, %s13
    // Predicated region
    $region53: #{convert1x_net_forward.1} parent=5 // pred_check
      %p8334 = pneg %p8333
    $region54: #{convert1x_net_forward.1} parent=5 // pred_check_branch
      %8336 = sbr.rel (%p8334) target = $region56
    $region55: #{convert1x_net_forward.1} parent=5 // pred_region
      %s8337 = ssub.s32 %s13, 2
      // Predicated region
      $region57: #{convert1x_net_forward.1} parent=55 // pred_check
        %p8338 = pneg %p194
      $region58: #{convert1x_net_forward.1} parent=55 // pred_check_branch
        %8340 = sbr.rel (%p8338) target = $region60
      $region59: #{convert1x_net_forward.1} parent=55 // pred_region
        %p8341 = scmp.lt.s32.totalorder %s19, 1
        %s8342 = scalar_select %p8341, %s19, 1
        %s8343 = smul.addr %s8342, 2
        %s8344 = smul.addr %s8343, 4
        %s8345 = scalar_lea.vmem %s7, %s8344
      $region60: #{convert1x_net_forward.1} parent=55 // pred_fallthru
        _
    $region56: #{convert1x_net_forward.1} parent=5 // pred_fallthru
      _
  $region6: #{convert1x_net_forward.1} parent=0 // loop_footer
    %s17 = sadd.s32 1, %s13
  $region7: #{convert1x_net_forward.1} parent=0 // loop_footer_branch
    %12 = sbr.rel target = $region3
  $region8: #{convert1x_net_forward.1} parent=0 // loop_exit
    _

</llo_original>
